<compile_context>
chip_gen: v6e
topology: v6e:2x2x1
jax: 0.10.0
libtpu: 0.0.40
codegen_flags: <defaults>
</compile_context>

<pallas_src>
import functools

import jax
import jax.numpy as jnp
import numpy as np
from jax.experimental import pallas as pl
from jax.experimental.pallas import tpu as pltpu


# ------------------------------ Pallas kernel ------------------------------

def _diag_lstm_fused_kernel(xs_ref, wi_ref, bi_ref, ms_ref, mc_ref, bc_ref,
                            wu_ref, bu_ref, out_ref, i2s_ref, hseq_ref,
                            *, new_w, bp, n1, n4):
    """Whole DiagonalLSTM forward in one gridless kernel invocation.

    xs_ref   : (new_w*bp, H*C)        skewed input columns, flat (h, c) per row
    wi_ref   : (H*C, n4)       f32    block-diag input2state 1x1-conv weight
    bi_ref   : (1, n4)         f32    b_i2s + b_s2s (folded), tiled over H
    ms_ref   : (n1, n4)        bf16   banded state2state Conv1d matrix
    mc_ref   : (n1, n1)        bf16   banded cell2cell  Conv1d matrix
    bc_ref   : (1, n1)         f32    b_c2c tiled over H
    wu_ref   : (n1, H*2Hd)     f32    block-diag upsampling 1x1-conv weight
    bu_ref   : (1, H*2Hd)      f32    b_up tiled over H
    out_ref  : (new_w*bp, H*2Hd)      upsampled skewed output columns
    i2s_ref  : VMEM scratch (new_w*bp, n4)  f32
    hseq_ref : VMEM scratch (new_w*bp, n1)  f32
    """
    # ---- prologue: input2state 1x1 conv for ALL skewed columns (one matmul).
    i2s_ref[...] = (jnp.dot(xs_ref[...], wi_ref[...],
                            preferred_element_type=jnp.float32) + bi_ref[...])

    bc = bc_ref[...]                                    # hoisted constant (1, n1)
    h_bf = jnp.zeros((bp, n1), jnp.bfloat16)
    c_bf = jnp.zeros((bp, n1), jnp.bfloat16)

    # ---- recurrence over anti-diagonal columns: strictly serial, fully
    # unrolled (new_w = H+W-1 is small & static).  Two independent K=n1 bf16
    # matmuls per step; bf16 weights, f32 accumulation, f32 state.
    for t in range(new_w):
        x_t = i2s_ref[pl.ds(t * bp, bp), :]                               # (bp, n4)
        s2s = jnp.dot(h_bf, ms_ref[...], preferred_element_type=jnp.float32)
        c2c = jnp.dot(c_bf, mc_ref[...], preferred_element_type=jnp.float32) + bc
        gates = jax.nn.sigmoid(x_t + s2s)                                 # (bp, n4)
        # torch.split of the flat h-major (H, 4*Hd) vector -> 4 contiguous chunks.
        i_g = gates[:, 0 * n1:1 * n1]
        g_g = gates[:, 1 * n1:2 * n1]
        f_g = gates[:, 2 * n1:3 * n1]
        o_g = gates[:, 3 * n1:4 * n1]
        c = f_g * c2c + i_g * g_g
        h = o_g * jnp.tanh(c)
        hseq_ref[pl.ds(t * bp, bp), :] = h                                # unmasked store
        h_bf = h.astype(jnp.bfloat16)
        c_bf = c.astype(jnp.bfloat16)

    # ---- epilogue: upsampling 1x1 conv on all skewed h columns (one matmul).
    # Output stays lane-dense (last dim H*2Hd >= 128) -> unmasked stores; the
    # cheap unskew/NCHW relayout happens on a ~120 KB tensor outside.
    out_ref[...] = (jnp.dot(hseq_ref[...], wu_ref[...],
                            preferred_element_type=jnp.float32) + bu_ref[...])


# ------------------- one-time constant weight preparation ------------------

def build_banded(w_conv1d, H):
    """Conv1d(kernel=2, on zero-padded length-(H+1) input) as a banded matrix
    mapping a flat (H, Cin) state row to a flat (H, Cout) output row."""
    cout, cin, _ = w_conv1d.shape
    w0t = w_conv1d[:, :, 0].T                       # (Cin, Cout)
    w1t = w_conv1d[:, :, 1].T
    m = jnp.zeros((H, cin, H, cout), dtype=jnp.float32)
    for t in range(H):
        if t >= 1:
            m = m.at[t - 1, :, t, :].set(w0t)
        m = m.at[t, :, t, :].set(w1t)
    return m.reshape(H * cin, H * cout)


def prepare_params(p, H, Hd):
    """Hoisted, one-time weight preprocessing (NOT in the per-forward path)."""
    n1 = H * Hd
    n4 = 4 * n1
    wi = p['w_i2s'][:, :, 0, 0].T                                   # (C, 4Hd)
    wu = p['w_up'][:, :, 0, 0].T                                    # (Hd, 2Hd)
    return dict(
        wi_bd=jax.scipy.linalg.block_diag(*([wi] * H)).astype(jnp.float32),
        bi=jnp.tile(p['b_i2s'] + p['b_s2s'], H).reshape(1, n4),     # fold s2s bias
        m_s=build_banded(p['w_s2s'], H).astype(jnp.bfloat16),
        m_c=build_banded(p['w_c2c'], H).astype(jnp.bfloat16),
        bc=jnp.tile(p['b_c2c'], H).reshape(1, n1),
        wu_bd=jax.scipy.linalg.block_diag(*([wu] * H)).astype(jnp.float32),
        bu=jnp.tile(p['b_up'], H).reshape(1, H * 2 * Hd),
    )


# --------------------------------- forward ---------------------------------

def diagonal_lstm_forward(x, w, Hd):
    B, C, H, W = x.shape
    new_w = H + W - 1
    n1 = H * Hd
    n4 = 4 * n1
    bp = ((B + 7) // 8) * 8          # pad batch to the 8-sublane f32 tile

    # ---- skew via pad+reshape+slice (no gathers); build (new_w*bp, H*C) columns.
    xb = jnp.pad(x, ((0, bp - B), (0, 0), (0, 0), (0, 0)))
    xsk = jnp.pad(xb, ((0, 0), (0, 0), (0, 0), (0, H)))             # (bp, C, H, W+H)
    xsk = xsk.reshape(bp, C, H * (W + H))[:, :, :H * new_w]
    xsk = xsk.reshape(bp, C, H, new_w)
    xs = jnp.transpose(xsk, (3, 0, 2, 1)).reshape(new_w * bp, H * C)

    # ---- single fused Pallas call (prologue conv + recurrence + epilogue conv).
    # TODO / v7x: shard the padded batch over the 2 TensorCores (grid over B
    # with dimension_semantics=("parallel",)) — left gridless: no win on v5e/v6e.
    kernel = functools.partial(_diag_lstm_fused_kernel,
                               new_w=new_w, bp=bp, n1=n1, n4=n4)
    out_flat = pl.pallas_call(
        kernel,
        out_shape=jax.ShapeDtypeStruct((new_w * bp, H * 2 * Hd), jnp.float32),
        scratch_shapes=[pltpu.VMEM((new_w * bp, n4), jnp.float32),
                        pltpu.VMEM((new_w * bp, n1), jnp.float32)],
    )(xs, w['wi_bd'], w['bi'], w['m_s'], w['m_c'], w['bc'], w['wu_bd'], w['bu'])

    # ---- unskew via pad+reshape+slice, slice off batch padding, final NCHW.
    up = out_flat.reshape(new_w, bp, H, 2 * Hd)[:, :B]              # (new_w, B, H, 2Hd)
    up = jnp.transpose(up, (1, 3, 2, 0))                            # (B, 2Hd, H, new_w)
    upf = up.reshape(B, 2 * Hd, H * new_w)
    upf = jnp.pad(upf, ((0, 0), (0, 0), (0, H)))
    return upf.reshape(B, 2 * Hd, H, H + W)[:, :, :, :W]            # NCHW


# --------------------------- pure-JAX reference -----------------------------

def skew_ref(x):
    """Reference-only skew. (B, C, H, W) -> (B, C, H, H+W-1)."""
    B, C, H, W = x.shape
    new_w = H + W - 1
    xp = jnp.pad(x, ((0, 0), (0, 0), (0, 0), (0, H - 1)))
    idx = (jnp.arange(new_w)[None, :] - jnp.arange(H)[:, None]) % new_w
    idx = jnp.broadcast_to(idx[None, None], (B, C, H, new_w))
    return jnp.take_along_axis(xp, idx, axis=3)


def unskew_ref(x, W):
    """Reference-only unskew. (B, C, H, H+W-1) -> (B, C, H, W)."""
    B, C, H, _ = x.shape
    idx = jnp.arange(W)[None, :] + jnp.arange(H)[:, None]
    idx = jnp.broadcast_to(idx[None, None], (B, C, H, W))
    return jnp.take_along_axis(x, idx, axis=3)


def reference_forward(x, p, Hd):
    """Faithful f32 translation of the PyTorch DiagonalLSTM forward."""
    B, C, H, W = x.shape
    new_w = H + W - 1
    skewed = skew_ref(x)
    wi = p['w_i2s'][:, :, 0, 0]
    i2s = jnp.einsum('bchw,oc->bohw', skewed, wi) + p['b_i2s'][None, :, None, None]
    cols = jnp.transpose(i2s, (0, 3, 2, 1)).reshape(B, new_w, H * 4 * Hd)
    ws, bs = p['w_s2s'], p['b_s2s']
    wc, bc = p['w_c2c'], p['b_c2c']
    c_state = jnp.zeros((B, H, Hd), jnp.float32)
    h_state = jnp.zeros((B, H, Hd), jnp.float32)
    zero_row = jnp.zeros((B, 1, Hd), jnp.float32)
    n = H * Hd
    outs = []
    for t in range(new_w):
        ph = jnp.concatenate([zero_row, h_state], axis=1)
        pc = jnp.concatenate([zero_row, c_state], axis=1)
        s2s = (jnp.einsum('bti,oi->bto', ph[:, :H], ws[:, :, 0]) +
               jnp.einsum('bti,oi->bto', ph[:, 1:], ws[:, :, 1]) + bs[None, None, :])
        c2c = (jnp.einsum('bti,oi->bto', pc[:, :H], wc[:, :, 0]) +
               jnp.einsum('bti,oi->bto', pc[:, 1:], wc[:, :, 1]) + bc[None, None, :])
        gates = jax.nn.sigmoid(cols[:, t] + s2s.reshape(B, H * 4 * Hd))
        c2cf = c2c.reshape(B, n)
        i_g, g_g = gates[:, :n], gates[:, n:2 * n]
        f_g, o_g = gates[:, 2 * n:3 * n], gates[:, 3 * n:]
        c = f_g * c2cf + i_g * g_g
        h = o_g * jnp.tanh(c)
        c_state = c.reshape(B, H, Hd)
        h_state = h.reshape(B, H, Hd)
        outs.append(h)
    rnn = jnp.stack(outs, axis=1).reshape(B, new_w, H, Hd)
    sk_out = jnp.transpose(rnn, (0, 3, 2, 1))
    out = unskew_ref(sk_out, W)
    wu = p['w_up'][:, :, 0, 0]
    return jnp.einsum('bchw,oc->bohw', out, wu) + p['b_up'][None, :, None, None]


# ----------------------------------- main -----------------------------------

if __name__ == "__main__":
    B, C, H, W = 2, 4, 8, 8          # input_size = (C, H, W)
    Hd = 16                          # hidden_size
    key = jax.random.PRNGKey(0)
    keys = jax.random.split(key, 9)
    x = jax.random.normal(keys[0], (B, C, H, W), dtype=jnp.float32)
    s = 0.1
    params = {
        'w_i2s': s * jax.random.normal(keys[1], (4 * Hd, C, 1, 1), jnp.float32),
        'b_i2s': s * jax.random.normal(keys[2], (4 * Hd,), jnp.float32),
        'w_s2s': s * jax.random.normal(keys[3], (4 * Hd, Hd, 2), jnp.float32),
        'b_s2s': s * jax.random.normal(keys[4], (4 * Hd,), jnp.float32),
        'w_c2c': s * jax.random.normal(keys[5], (Hd, Hd, 2), jnp.float32),
        'b_c2c': s * jax.random.normal(keys[6], (Hd,), jnp.float32),
        'w_up': s * jax.random.normal(keys[7], (2 * Hd, Hd, 1, 1), jnp.float32),
        'b_up': s * jax.random.normal(keys[8], (2 * Hd,), jnp.float32),
    }

    # One-time weight preprocessing, hoisted out of the per-forward path.
    prepped = prepare_params(params, H, Hd)

    fwd = jax.jit(functools.partial(diagonal_lstm_forward, Hd=Hd))
    ref_fn = jax.jit(functools.partial(reference_forward, Hd=Hd))

    out = jax.block_until_ready(fwd(x, prepped))
    ref = jax.block_until_ready(ref_fn(x, params))
    assert out.shape == (B, 2 * Hd, H, W), out.shape
    # bf16 recurrent weights (f32 accumulation / f32 state) vs pure-f32 reference.
    np.testing.assert_allclose(np.asarray(out), np.asarray(ref),
                               rtol=2e-2, atol=2e-2)
    print("KERNEL_OK")
</pallas_src>

<mosaic_0001>
module attributes {stable_mosaic.version = 11 : i64} {
  func.func @_diag_lstm_fused_kernel(%arg0: memref<120x32xf32, #tpu.memory_space<vmem>>, %arg1: memref<32x512xf32, #tpu.memory_space<vmem>>, %arg2: memref<1x512xf32, #tpu.memory_space<vmem>>, %arg3: memref<128x512xbf16, #tpu.memory_space<vmem>>, %arg4: memref<128x128xbf16, #tpu.memory_space<vmem>>, %arg5: memref<1x128xf32, #tpu.memory_space<vmem>>, %arg6: memref<128x256xf32, #tpu.memory_space<vmem>>, %arg7: memref<1x256xf32, #tpu.memory_space<vmem>>, %arg8: memref<120x256xf32, #tpu.memory_space<vmem>>, %arg9: memref<120x512xf32, #tpu.memory_space<vmem>>, %arg10: memref<120x128xf32, #tpu.memory_space<vmem>>) attributes {dimension_semantics = [], scalar_prefetch = 0 : i64, scratch_operands = 2 : i64, tpu.core_type = #tpu.core_type<tc>} {
    %c0 = arith.constant 0 : index
    %c0_0 = arith.constant 0 : index
    %0 = vector.load %arg0[%c0, %c0_0] : memref<120x32xf32, #tpu.memory_space<vmem>>, vector<120x32xf32>
    %c0_1 = arith.constant 0 : index
    %c0_2 = arith.constant 0 : index
    %1 = vector.load %arg1[%c0_1, %c0_2] : memref<32x512xf32, #tpu.memory_space<vmem>>, vector<32x512xf32>
    %cst = arith.constant dense<0.000000e+00> : vector<120x512xf32>
    %2 = tpu.matmul %0, %1, %cst {dimension_numbers = #tpu.dot_dimension_numbers<[1], [0], [0], [1], [0, 0, 1, 1], [], []>} : vector<120x32xf32>, vector<32x512xf32>, vector<120x512xf32> -> vector<120x512xf32>
    %c0_3 = arith.constant 0 : index
    %c0_4 = arith.constant 0 : index
    %3 = vector.load %arg2[%c0_3, %c0_4] : memref<1x512xf32, #tpu.memory_space<vmem>>, vector<1x512xf32>
    %4 = vector.broadcast %3 : vector<1x512xf32> to vector<120x512xf32>
    %5 = arith.addf %2, %4 : vector<120x512xf32>
    %c0_5 = arith.constant 0 : index
    %c0_6 = arith.constant 0 : index
    %6 = vector.load %arg9[%c0_5, %c0_6] : memref<120x512xf32, #tpu.memory_space<vmem>>, vector<120x512xf32>
    tpu.vector_store %arg9[%c0_5, %c0_6], %5 {strides = array<i32>} : memref<120x512xf32, #tpu.memory_space<vmem>>, vector<120x512xf32>,
    %c0_7 = arith.constant 0 : index
    %c0_8 = arith.constant 0 : index
    %7 = vector.load %arg5[%c0_7, %c0_8] : memref<1x128xf32, #tpu.memory_space<vmem>>, vector<1x128xf32>
    %cst_9 = arith.constant 0.000000e+00 : bf16
    %8 = vector.broadcast %cst_9 : bf16 to vector<8x128xbf16>
    %cst_10 = arith.constant 0.000000e+00 : bf16
    %9 = vector.broadcast %cst_10 : bf16 to vector<8x128xbf16>
    %c0_11 = arith.constant 0 : index
    %c0_12 = arith.constant 0 : index
    %10 = vector.load %arg9[%c0_11, %c0_12] : memref<120x512xf32, #tpu.memory_space<vmem>>, vector<8x512xf32>
    %c0_13 = arith.constant 0 : index
    %c0_14 = arith.constant 0 : index
    %11 = vector.load %arg3[%c0_13, %c0_14] : memref<128x512xbf16, #tpu.memory_space<vmem>>, vector<128x512xbf16>
    %cst_15 = arith.constant dense<0.000000e+00> : vector<8x512xf32>
    %12 = tpu.matmul %8, %11, %cst_15 {dimension_numbers = #tpu.dot_dimension_numbers<[1], [0], [0], [1], [0, 0, 1, 1], [], []>} : vector<8x128xbf16>, vector<128x512xbf16>, vector<8x512xf32> -> vector<8x512xf32>
    %c0_16 = arith.constant 0 : index
    %c0_17 = arith.constant 0 : index
    %13 = vector.load %arg4[%c0_16, %c0_17] : memref<128x128xbf16, #tpu.memory_space<vmem>>, vector<128x128xbf16>
    %cst_18 = arith.constant dense<0.000000e+00> : vector<8x128xf32>
    %14 = tpu.matmul %9, %13, %cst_18 {dimension_numbers = #tpu.dot_dimension_numbers<[1], [0], [0], [1], [0, 0, 1, 1], [], []>} : vector<8x128xbf16>, vector<128x128xbf16>, vector<8x128xf32> -> vector<8x128xf32>
    %15 = vector.broadcast %7 : vector<1x128xf32> to vector<8x128xf32>
    %16 = arith.addf %14, %15 : vector<8x128xf32>
    %17 = arith.addf %10, %12 : vector<8x512xf32>
    %18 = arith.negf %17 : vector<8x512xf32>
    %19 = math.exp %18 : vector<8x512xf32>
    %cst_19 = arith.constant 1.000000e+00 : f32
    %20 = vector.broadcast %cst_19 : f32 to vector<8x512xf32>
    %21 = arith.addf %20, %19 : vector<8x512xf32>
    %22 = arith.divf %20, %21 : vector<8x512xf32>
    %23 = vector.extract_strided_slice %22 {offsets = [0, 0], sizes = [8, 128], strides = [1, 1]} : vector<8x512xf32> to vector<8x128xf32>
    %24 = vector.extract_strided_slice %22 {offsets = [0, 128], sizes = [8, 128], strides = [1, 1]} : vector<8x512xf32> to vector<8x128xf32>
    %25 = vector.extract_strided_slice %22 {offsets = [0, 256], sizes = [8, 128], strides = [1, 1]} : vector<8x512xf32> to vector<8x128xf32>
    %26 = vector.extract_strided_slice %22 {offsets = [0, 384], sizes = [8, 128], strides = [1, 1]} : vector<8x512xf32> to vector<8x128xf32>
    %27 = arith.mulf %25, %16 : vector<8x128xf32>
    %28 = arith.mulf %23, %24 : vector<8x128xf32>
    %29 = arith.addf %27, %28 : vector<8x128xf32>
    %30 = math.tanh %29 : vector<8x128xf32>
    %31 = arith.mulf %26, %30 : vector<8x128xf32>
    %c0_20 = arith.constant 0 : index
    %c0_21 = arith.constant 0 : index
    %32 = vector.load %arg10[%c0_20, %c0_21] : memref<120x128xf32, #tpu.memory_space<vmem>>, vector<8x128xf32>
    tpu.vector_store %arg10[%c0_20, %c0_21], %31 {strides = array<i32>} : memref<120x128xf32, #tpu.memory_space<vmem>>, vector<8x128xf32>,
    %33 = arith.truncf %31 : vector<8x128xf32> to vector<8x128xbf16>
    %34 = arith.truncf %29 : vector<8x128xf32> to vector<8x128xbf16>
    %c8 = arith.constant 8 : index
    %c0_22 = arith.constant 0 : index
    %35 = vector.load %arg9[%c8, %c0_22] : memref<120x512xf32, #tpu.memory_space<vmem>>, vector<8x512xf32>
    %c0_23 = arith.constant 0 : index
    %c0_24 = arith.constant 0 : index
    %36 = vector.load %arg3[%c0_23, %c0_24] : memref<128x512xbf16, #tpu.memory_space<vmem>>, vector<128x512xbf16>
    %cst_25 = arith.constant dense<0.000000e+00> : vector<8x512xf32>
    %37 = tpu.matmul %33, %36, %cst_25 {dimension_numbers = #tpu.dot_dimension_numbers<[1], [0], [0], [1], [0, 0, 1, 1], [], []>} : vector<8x128xbf16>, vector<128x512xbf16>, vector<8x512xf32> -> vector<8x512xf32>
    %c0_26 = arith.constant 0 : index
    %c0_27 = arith.constant 0 : index
    %38 = vector.load %arg4[%c0_26, %c0_27] : memref<128x128xbf16, #tpu.memory_space<vmem>>, vector<128x128xbf16>
    %cst_28 = arith.constant dense<0.000000e+00> : vector<8x128xf32>
    %39 = tpu.matmul %34, %38, %cst_28 {dimension_numbers = #tpu.dot_dimension_numbers<[1], [0], [0], [1], [0, 0, 1, 1], [], []>} : vector<8x128xbf16>, vector<128x128xbf16>, vector<8x128xf32> -> vector<8x128xf32>
    %40 = vector.broadcast %7 : vector<1x128xf32> to vector<8x128xf32>
    %41 = arith.addf %39, %40 : vector<8x128xf32>
    %42 = arith.addf %35, %37 : vector<8x512xf32>
    %43 = arith.negf %42 : vector<8x512xf32>
    %44 = math.exp %43 : vector<8x512xf32>
    %cst_29 = arith.constant 1.000000e+00 : f32
    %45 = vector.broadcast %cst_29 : f32 to vector<8x512xf32>
    %46 = arith.addf %45, %44 : vector<8x512xf32>
    %47 = arith.divf %45, %46 : vector<8x512xf32>
    %48 = vector.extract_strided_slice %47 {offsets = [0, 0], sizes = [8, 128], strides = [1, 1]} : vector<8x512xf32> to vector<8x128xf32>
    %49 = vector.extract_strided_slice %47 {offsets = [0, 128], sizes = [8, 128], strides = [1, 1]} : vector<8x512xf32> to vector<8x128xf32>
    %50 = vector.extract_strided_slice %47 {offsets = [0, 256], sizes = [8, 128], strides = [1, 1]} : vector<8x512xf32> to vector<8x128xf32>
    %51 = vector.extract_strided_slice %47 {offsets = [0, 384], sizes = [8, 128], strides = [1, 1]} : vector<8x512xf32> to vector<8x128xf32>
    %52 = arith.mulf %50, %41 : vector<8x128xf32>
    %53 = arith.mulf %48, %49 : vector<8x128xf32>
    %54 = arith.addf %52, %53 : vector<8x128xf32>
    %55 = math.tanh %54 : vector<8x128xf32>
    %56 = arith.mulf %51, %55 : vector<8x128xf32>
    %c8_30 = arith.constant 8 : index
    %c0_31 = arith.constant 0 : index
    %57 = vector.load %arg10[%c8_30, %c0_31] : memref<120x128xf32, #tpu.memory_space<vmem>>, vector<8x128xf32>
    tpu.vector_store %arg10[%c8_30, %c0_31], %56 {strides = array<i32>} : memref<120x128xf32, #tpu.memory_space<vmem>>, vector<8x128xf32>,
    %58 = arith.truncf %56 : vector<8x128xf32> to vector<8x128xbf16>
    %59 = arith.truncf %54 : vector<8x128xf32> to vector<8x128xbf16>
    %c16 = arith.constant 16 : index
    %c0_32 = arith.constant 0 : index
    %60 = vector.load %arg9[%c16, %c0_32] : memref<120x512xf32, #tpu.memory_space<vmem>>, vector<8x512xf32>
    %c0_33 = arith.constant 0 : index
    %c0_34 = arith.constant 0 : index
    %61 = vector.load %arg3[%c0_33, %c0_34] : memref<128x512xbf16, #tpu.memory_space<vmem>>, vector<128x512xbf16>
    %cst_35 = arith.constant dense<0.000000e+00> : vector<8x512xf32>
    %62 = tpu.matmul %58, %61, %cst_35 {dimension_numbers = #tpu.dot_dimension_numbers<[1], [0], [0], [1], [0, 0, 1, 1], [], []>} : vector<8x128xbf16>, vector<128x512xbf16>, vector<8x512xf32> -> vector<8x512xf32>
    %c0_36 = arith.constant 0 : index
    %c0_37 = arith.constant 0 : index
    %63 = vector.load %arg4[%c0_36, %c0_37] : memref<128x128xbf16, #tpu.memory_space<vmem>>, vector<128x128xbf16>
    %cst_38 = arith.constant dense<0.000000e+00> : vector<8x128xf32>
    %64 = tpu.matmul %59, %63, %cst_38 {dimension_numbers = #tpu.dot_dimension_numbers<[1], [0], [0], [1], [0, 0, 1, 1], [], []>} : vector<8x128xbf16>, vector<128x128xbf16>, vector<8x128xf32> -> vector<8x128xf32>
    %65 = vector.broadcast %7 : vector<1x128xf32> to vector<8x128xf32>
    %66 = arith.addf %64, %65 : vector<8x128xf32>
    %67 = arith.addf %60, %62 : vector<8x512xf32>
    %68 = arith.negf %67 : vector<8x512xf32>
    %69 = math.exp %68 : vector<8x512xf32>
    %cst_39 = arith.constant 1.000000e+00 : f32
    %70 = vector.broadcast %cst_39 : f32 to vector<8x512xf32>
    %71 = arith.addf %70, %69 : vector<8x512xf32>
    %72 = arith.divf %70, %71 : vector<8x512xf32>
    %73 = vector.extract_strided_slice %72 {offsets = [0, 0], sizes = [8, 128], strides = [1, 1]} : vector<8x512xf32> to vector<8x128xf32>
    %74 = vector.extract_strided_slice %72 {offsets = [0, 128], sizes = [8, 128], strides = [1, 1]} : vector<8x512xf32> to vector<8x128xf32>
    %75 = vector.extract_strided_slice %72 {offsets = [0, 256], sizes = [8, 128], strides = [1, 1]} : vector<8x512xf32> to vector<8x128xf32>
    %76 = vector.extract_strided_slice %72 {offsets = [0, 384], sizes = [8, 128], strides = [1, 1]} : vector<8x512xf32> to vector<8x128xf32>
    %77 = arith.mulf %75, %66 : vector<8x128xf32>
    %78 = arith.mulf %73, %74 : vector<8x128xf32>
    %79 = arith.addf %77, %78 : vector<8x128xf32>
    %80 = math.tanh %79 : vector<8x128xf32>
    %81 = arith.mulf %76, %80 : vector<8x128xf32>
    %c16_40 = arith.constant 16 : index
    %c0_41 = arith.constant 0 : index
    %82 = vector.load %arg10[%c16_40, %c0_41] : memref<120x128xf32, #tpu.memory_space<vmem>>, vector<8x128xf32>
    tpu.vector_store %arg10[%c16_40, %c0_41], %81 {strides = array<i32>} : memref<120x128xf32, #tpu.memory_space<vmem>>, vector<8x128xf32>,
    %83 = arith.truncf %81 : vector<8x128xf32> to vector<8x128xbf16>
    %84 = arith.truncf %79 : vector<8x128xf32> to vector<8x128xbf16>
    %c24 = arith.constant 24 : index
    %c0_42 = arith.constant 0 : index
    %85 = vector.load %arg9[%c24, %c0_42] : memref<120x512xf32, #tpu.memory_space<vmem>>, vector<8x512xf32>
    %c0_43 = arith.constant 0 : index
    %c0_44 = arith.constant 0 : index
    %86 = vector.load %arg3[%c0_43, %c0_44] : memref<128x512xbf16, #tpu.memory_space<vmem>>, vector<128x512xbf16>
    %cst_45 = arith.constant dense<0.000000e+00> : vector<8x512xf32>
    %87 = tpu.matmul %83, %86, %cst_45 {dimension_numbers = #tpu.dot_dimension_numbers<[1], [0], [0], [1], [0, 0, 1, 1], [], []>} : vector<8x128xbf16>, vector<128x512xbf16>, vector<8x512xf32> -> vector<8x512xf32>
    %c0_46 = arith.constant 0 : index
    %c0_47 = arith.constant 0 : index
    %88 = vector.load %arg4[%c0_46, %c0_47] : memref<128x128xbf16, #tpu.memory_space<vmem>>, vector<128x128xbf16>
    %cst_48 = arith.constant dense<0.000000e+00> : vector<8x128xf32>
    %89 = tpu.matmul %84, %88, %cst_48 {dimension_numbers = #tpu.dot_dimension_numbers<[1], [0], [0], [1], [0, 0, 1, 1], [], []>} : vector<8x128xbf16>, vector<128x128xbf16>, vector<8x128xf32> -> vector<8x128xf32>
    %90 = vector.broadcast %7 : vector<1x128xf32> to vector<8x128xf32>
    %91 = arith.addf %89, %90 : vector<8x128xf32>
    %92 = arith.addf %85, %87 : vector<8x512xf32>
    %93 = arith.negf %92 : vector<8x512xf32>
    %94 = math.exp %93 : vector<8x512xf32>
    %cst_49 = arith.constant 1.000000e+00 : f32
    %95 = vector.broadcast %cst_49 : f32 to vector<8x512xf32>
    %96 = arith.addf %95, %94 : vector<8x512xf32>
    %97 = arith.divf %95, %96 : vector<8x512xf32>
    %98 = vector.extract_strided_slice %97 {offsets = [0, 0], sizes = [8, 128], strides = [1, 1]} : vector<8x512xf32> to vector<8x128xf32>
    %99 = vector.extract_strided_slice %97 {offsets = [0, 128], sizes = [8, 128], strides = [1, 1]} : vector<8x512xf32> to vector<8x128xf32>
    %100 = vector.extract_strided_slice %97 {offsets = [0, 256], sizes = [8, 128], strides = [1, 1]} : vector<8x512xf32> to vector<8x128xf32>
    %101 = vector.extract_strided_slice %97 {offsets = [0, 384], sizes = [8, 128], strides = [1, 1]} : vector<8x512xf32> to vector<8x128xf32>
    %102 = arith.mulf %100, %91 : vector<8x128xf32>
    %103 = arith.mulf %98, %99 : vector<8x128xf32>
    %104 = arith.addf %102, %103 : vector<8x128xf32>
    %105 = math.tanh %104 : vector<8x128xf32>
    %106 = arith.mulf %101, %105 : vector<8x128xf32>
    %c24_50 = arith.constant 24 : index
    %c0_51 = arith.constant 0 : index
    %107 = vector.load %arg10[%c24_50, %c0_51] : memref<120x128xf32, #tpu.memory_space<vmem>>, vector<8x128xf32>
    tpu.vector_store %arg10[%c24_50, %c0_51], %106 {strides = array<i32>} : memref<120x128xf32, #tpu.memory_space<vmem>>, vector<8x128xf32>,
    %108 = arith.truncf %106 : vector<8x128xf32> to vector<8x128xbf16>
    %109 = arith.truncf %104 : vector<8x128xf32> to vector<8x128xbf16>
    %c32 = arith.constant 32 : index
    %c0_52 = arith.constant 0 : index
    %110 = vector.load %arg9[%c32, %c0_52] : memref<120x512xf32, #tpu.memory_space<vmem>>, vector<8x512xf32>
    %c0_53 = arith.constant 0 : index
    %c0_54 = arith.constant 0 : index
    %111 = vector.load %arg3[%c0_53, %c0_54] : memref<128x512xbf16, #tpu.memory_space<vmem>>, vector<128x512xbf16>
    %cst_55 = arith.constant dense<0.000000e+00> : vector<8x512xf32>
    %112 = tpu.matmul %108, %111, %cst_55 {dimension_numbers = #tpu.dot_dimension_numbers<[1], [0], [0], [1], [0, 0, 1, 1], [], []>} : vector<8x128xbf16>, vector<128x512xbf16>, vector<8x512xf32> -> vector<8x512xf32>
    %c0_56 = arith.constant 0 : index
    %c0_57 = arith.constant 0 : index
    %113 = vector.load %arg4[%c0_56, %c0_57] : memref<128x128xbf16, #tpu.memory_space<vmem>>, vector<128x128xbf16>
    %cst_58 = arith.constant dense<0.000000e+00> : vector<8x128xf32>
    %114 = tpu.matmul %109, %113, %cst_58 {dimension_numbers = #tpu.dot_dimension_numbers<[1], [0], [0], [1], [0, 0, 1, 1], [], []>} : vector<8x128xbf16>, vector<128x128xbf16>, vector<8x128xf32> -> vector<8x128xf32>
    %115 = vector.broadcast %7 : vector<1x128xf32> to vector<8x128xf32>
    %116 = arith.addf %114, %115 : vector<8x128xf32>
    %117 = arith.addf %110, %112 : vector<8x512xf32>
    %118 = arith.negf %117 : vector<8x512xf32>
    %119 = math.exp %118 : vector<8x512xf32>
    %cst_59 = arith.constant 1.000000e+00 : f32
    %120 = vector.broadcast %cst_59 : f32 to vector<8x512xf32>
    %121 = arith.addf %120, %119 : vector<8x512xf32>
    %122 = arith.divf %120, %121 : vector<8x512xf32>
    %123 = vector.extract_strided_slice %122 {offsets = [0, 0], sizes = [8, 128], strides = [1, 1]} : vector<8x512xf32> to vector<8x128xf32>
    %124 = vector.extract_strided_slice %122 {offsets = [0, 128], sizes = [8, 128], strides = [1, 1]} : vector<8x512xf32> to vector<8x128xf32>
    %125 = vector.extract_strided_slice %122 {offsets = [0, 256], sizes = [8, 128], strides = [1, 1]} : vector<8x512xf32> to vector<8x128xf32>
    %126 = vector.extract_strided_slice %122 {offsets = [0, 384], sizes = [8, 128], strides = [1, 1]} : vector<8x512xf32> to vector<8x128xf32>
    %127 = arith.mulf %125, %116 : vector<8x128xf32>
    %128 = arith.mulf %123, %124 : vector<8x128xf32>
    %129 = arith.addf %127, %128 : vector<8x128xf32>
    %130 = math.tanh %129 : vector<8x128xf32>
    %131 = arith.mulf %126, %130 : vector<8x128xf32>
    %c32_60 = arith.constant 32 : index
    %c0_61 = arith.constant 0 : index
    %132 = vector.load %arg10[%c32_60, %c0_61] : memref<120x128xf32, #tpu.memory_space<vmem>>, vector<8x128xf32>
    tpu.vector_store %arg10[%c32_60, %c0_61], %131 {strides = array<i32>} : memref<120x128xf32, #tpu.memory_space<vmem>>, vector<8x128xf32>,
    %133 = arith.truncf %131 : vector<8x128xf32> to vector<8x128xbf16>
    %134 = arith.truncf %129 : vector<8x128xf32> to vector<8x128xbf16>
    %c40 = arith.constant 40 : index
    %c0_62 = arith.constant 0 : index
    %135 = vector.load %arg9[%c40, %c0_62] : memref<120x512xf32, #tpu.memory_space<vmem>>, vector<8x512xf32>
    %c0_63 = arith.constant 0 : index
    %c0_64 = arith.constant 0 : index
    %136 = vector.load %arg3[%c0_63, %c0_64] : memref<128x512xbf16, #tpu.memory_space<vmem>>, vector<128x512xbf16>
    %cst_65 = arith.constant dense<0.000000e+00> : vector<8x512xf32>
    %137 = tpu.matmul %133, %136, %cst_65 {dimension_numbers = #tpu.dot_dimension_numbers<[1], [0], [0], [1], [0, 0, 1, 1], [], []>} : vector<8x128xbf16>, vector<128x512xbf16>, vector<8x512xf32> -> vector<8x512xf32>
    %c0_66 = arith.constant 0 : index
    %c0_67 = arith.constant 0 : index
    %138 = vector.load %arg4[%c0_66, %c0_67] : memref<128x128xbf16, #tpu.memory_space<vmem>>, vector<128x128xbf16>
    %cst_68 = arith.constant dense<0.000000e+00> : vector<8x128xf32>
    %139 = tpu.matmul %134, %138, %cst_68 {dimension_numbers = #tpu.dot_dimension_numbers<[1], [0], [0], [1], [0, 0, 1, 1], [], []>} : vector<8x128xbf16>, vector<128x128xbf16>, vector<8x128xf32> -> vector<8x128xf32>
    %140 = vector.broadcast %7 : vector<1x128xf32> to vector<8x128xf32>
    %141 = arith.addf %139, %140 : vector<8x128xf32>
    %142 = arith.addf %135, %137 : vector<8x512xf32>
    %143 = arith.negf %142 : vector<8x512xf32>
    %144 = math.exp %143 : vector<8x512xf32>
    %cst_69 = arith.constant 1.000000e+00 : f32
    %145 = vector.broadcast %cst_69 : f32 to vector<8x512xf32>
    %146 = arith.addf %145, %144 : vector<8x512xf32>
    %147 = arith.divf %145, %146 : vector<8x512xf32>
    %148 = vector.extract_strided_slice %147 {offsets = [0, 0], sizes = [8, 128], strides = [1, 1]} : vector<8x512xf32> to vector<8x128xf32>
    %149 = vector.extract_strided_slice %147 {offsets = [0, 128], sizes = [8, 128], strides = [1, 1]} : vector<8x512xf32> to vector<8x128xf32>
    %150 = vector.extract_strided_slice %147 {offsets = [0, 256], sizes = [8, 128], strides = [1, 1]} : vector<8x512xf32> to vector<8x128xf32>
    %151 = vector.extract_strided_slice %147 {offsets = [0, 384], sizes = [8, 128], strides = [1, 1]} : vector<8x512xf32> to vector<8x128xf32>
    %152 = arith.mulf %150, %141 : vector<8x128xf32>
    %153 = arith.mulf %148, %149 : vector<8x128xf32>
    %154 = arith.addf %152, %153 : vector<8x128xf32>
    %155 = math.tanh %154 : vector<8x128xf32>
    %156 = arith.mulf %151, %155 : vector<8x128xf32>
    %c40_70 = arith.constant 40 : index
    %c0_71 = arith.constant 0 : index
    %157 = vector.load %arg10[%c40_70, %c0_71] : memref<120x128xf32, #tpu.memory_space<vmem>>, vector<8x128xf32>
    tpu.vector_store %arg10[%c40_70, %c0_71], %156 {strides = array<i32>} : memref<120x128xf32, #tpu.memory_space<vmem>>, vector<8x128xf32>,
    %158 = arith.truncf %156 : vector<8x128xf32> to vector<8x128xbf16>
    %159 = arith.truncf %154 : vector<8x128xf32> to vector<8x128xbf16>
    %c48 = arith.constant 48 : index
    %c0_72 = arith.constant 0 : index
    %160 = vector.load %arg9[%c48, %c0_72] : memref<120x512xf32, #tpu.memory_space<vmem>>, vector<8x512xf32>
    %c0_73 = arith.constant 0 : index
    %c0_74 = arith.constant 0 : index
    %161 = vector.load %arg3[%c0_73, %c0_74] : memref<128x512xbf16, #tpu.memory_space<vmem>>, vector<128x512xbf16>
    %cst_75 = arith.constant dense<0.000000e+00> : vector<8x512xf32>
    %162 = tpu.matmul %158, %161, %cst_75 {dimension_numbers = #tpu.dot_dimension_numbers<[1], [0], [0], [1], [0, 0, 1, 1], [], []>} : vector<8x128xbf16>, vector<128x512xbf16>, vector<8x512xf32> -> vector<8x512xf32>
    %c0_76 = arith.constant 0 : index
    %c0_77 = arith.constant 0 : index
    %163 = vector.load %arg4[%c0_76, %c0_77] : memref<128x128xbf16, #tpu.memory_space<vmem>>, vector<128x128xbf16>
    %cst_78 = arith.constant dense<0.000000e+00> : vector<8x128xf32>
    %164 = tpu.matmul %159, %163, %cst_78 {dimension_numbers = #tpu.dot_dimension_numbers<[1], [0], [0], [1], [0, 0, 1, 1], [], []>} : vector<8x128xbf16>, vector<128x128xbf16>, vector<8x128xf32> -> vector<8x128xf32>
    %165 = vector.broadcast %7 : vector<1x128xf32> to vector<8x128xf32>
    %166 = arith.addf %164, %165 : vector<8x128xf32>
    %167 = arith.addf %160, %162 : vector<8x512xf32>
    %168 = arith.negf %167 : vector<8x512xf32>
    %169 = math.exp %168 : vector<8x512xf32>
    %cst_79 = arith.constant 1.000000e+00 : f32
    %170 = vector.broadcast %cst_79 : f32 to vector<8x512xf32>
    %171 = arith.addf %170, %169 : vector<8x512xf32>
    %172 = arith.divf %170, %171 : vector<8x512xf32>
    %173 = vector.extract_strided_slice %172 {offsets = [0, 0], sizes = [8, 128], strides = [1, 1]} : vector<8x512xf32> to vector<8x128xf32>
    %174 = vector.extract_strided_slice %172 {offsets = [0, 128], sizes = [8, 128], strides = [1, 1]} : vector<8x512xf32> to vector<8x128xf32>
    %175 = vector.extract_strided_slice %172 {offsets = [0, 256], sizes = [8, 128], strides = [1, 1]} : vector<8x512xf32> to vector<8x128xf32>
    %176 = vector.extract_strided_slice %172 {offsets = [0, 384], sizes = [8, 128], strides = [1, 1]} : vector<8x512xf32> to vector<8x128xf32>
    %177 = arith.mulf %175, %166 : vector<8x128xf32>
    %178 = arith.mulf %173, %174 : vector<8x128xf32>
    %179 = arith.addf %177, %178 : vector<8x128xf32>
    %180 = math.tanh %179 : vector<8x128xf32>
    %181 = arith.mulf %176, %180 : vector<8x128xf32>
    %c48_80 = arith.constant 48 : index
    %c0_81 = arith.constant 0 : index
    %182 = vector.load %arg10[%c48_80, %c0_81] : memref<120x128xf32, #tpu.memory_space<vmem>>, vector<8x128xf32>
    tpu.vector_store %arg10[%c48_80, %c0_81], %181 {strides = array<i32>} : memref<120x128xf32, #tpu.memory_space<vmem>>, vector<8x128xf32>,
    %183 = arith.truncf %181 : vector<8x128xf32> to vector<8x128xbf16>
    %184 = arith.truncf %179 : vector<8x128xf32> to vector<8x128xbf16>
    %c56 = arith.constant 56 : index
    %c0_82 = arith.constant 0 : index
    %185 = vector.load %arg9[%c56, %c0_82] : memref<120x512xf32, #tpu.memory_space<vmem>>, vector<8x512xf32>
    %c0_83 = arith.constant 0 : index
    %c0_84 = arith.constant 0 : index
    %186 = vector.load %arg3[%c0_83, %c0_84] : memref<128x512xbf16, #tpu.memory_space<vmem>>, vector<128x512xbf16>
    %cst_85 = arith.constant dense<0.000000e+00> : vector<8x512xf32>
    %187 = tpu.matmul %183, %186, %cst_85 {dimension_numbers = #tpu.dot_dimension_numbers<[1], [0], [0], [1], [0, 0, 1, 1], [], []>} : vector<8x128xbf16>, vector<128x512xbf16>, vector<8x512xf32> -> vector<8x512xf32>
    %c0_86 = arith.constant 0 : index
    %c0_87 = arith.constant 0 : index
    %188 = vector.load %arg4[%c0_86, %c0_87] : memref<128x128xbf16, #tpu.memory_space<vmem>>, vector<128x128xbf16>
    %cst_88 = arith.constant dense<0.000000e+00> : vector<8x128xf32>
    %189 = tpu.matmul %184, %188, %cst_88 {dimension_numbers = #tpu.dot_dimension_numbers<[1], [0], [0], [1], [0, 0, 1, 1], [], []>} : vector<8x128xbf16>, vector<128x128xbf16>, vector<8x128xf32> -> vector<8x128xf32>
    %190 = vector.broadcast %7 : vector<1x128xf32> to vector<8x128xf32>
    %191 = arith.addf %189, %190 : vector<8x128xf32>
    %192 = arith.addf %185, %187 : vector<8x512xf32>
    %193 = arith.negf %192 : vector<8x512xf32>
    %194 = math.exp %193 : vector<8x512xf32>
    %cst_89 = arith.constant 1.000000e+00 : f32
    %195 = vector.broadcast %cst_89 : f32 to vector<8x512xf32>
    %196 = arith.addf %195, %194 : vector<8x512xf32>
    %197 = arith.divf %195, %196 : vector<8x512xf32>
    %198 = vector.extract_strided_slice %197 {offsets = [0, 0], sizes = [8, 128], strides = [1, 1]} : vector<8x512xf32> to vector<8x128xf32>
    %199 = vector.extract_strided_slice %197 {offsets = [0, 128], sizes = [8, 128], strides = [1, 1]} : vector<8x512xf32> to vector<8x128xf32>
    %200 = vector.extract_strided_slice %197 {offsets = [0, 256], sizes = [8, 128], strides = [1, 1]} : vector<8x512xf32> to vector<8x128xf32>
    %201 = vector.extract_strided_slice %197 {offsets = [0, 384], sizes = [8, 128], strides = [1, 1]} : vector<8x512xf32> to vector<8x128xf32>
    %202 = arith.mulf %200, %191 : vector<8x128xf32>
    %203 = arith.mulf %198, %199 : vector<8x128xf32>
    %204 = arith.addf %202, %203 : vector<8x128xf32>
    %205 = math.tanh %204 : vector<8x128xf32>
    %206 = arith.mulf %201, %205 : vector<8x128xf32>
    %c56_90 = arith.constant 56 : index
    %c0_91 = arith.constant 0 : index
    %207 = vector.load %arg10[%c56_90, %c0_91] : memref<120x128xf32, #tpu.memory_space<vmem>>, vector<8x128xf32>
    tpu.vector_store %arg10[%c56_90, %c0_91], %206 {strides = array<i32>} : memref<120x128xf32, #tpu.memory_space<vmem>>, vector<8x128xf32>,
    %208 = arith.truncf %206 : vector<8x128xf32> to vector<8x128xbf16>
    %209 = arith.truncf %204 : vector<8x128xf32> to vector<8x128xbf16>
    %c64 = arith.constant 64 : index
    %c0_92 = arith.constant 0 : index
    %210 = vector.load %arg9[%c64, %c0_92] : memref<120x512xf32, #tpu.memory_space<vmem>>, vector<8x512xf32>
    %c0_93 = arith.constant 0 : index
    %c0_94 = arith.constant 0 : index
    %211 = vector.load %arg3[%c0_93, %c0_94] : memref<128x512xbf16, #tpu.memory_space<vmem>>, vector<128x512xbf16>
    %cst_95 = arith.constant dense<0.000000e+00> : vector<8x512xf32>
    %212 = tpu.matmul %208, %211, %cst_95 {dimension_numbers = #tpu.dot_dimension_numbers<[1], [0], [0], [1], [0, 0, 1, 1], [], []>} : vector<8x128xbf16>, vector<128x512xbf16>, vector<8x512xf32> -> vector<8x512xf32>
    %c0_96 = arith.constant 0 : index
    %c0_97 = arith.constant 0 : index
    %213 = vector.load %arg4[%c0_96, %c0_97] : memref<128x128xbf16, #tpu.memory_space<vmem>>, vector<128x128xbf16>
    %cst_98 = arith.constant dense<0.000000e+00> : vector<8x128xf32>
    %214 = tpu.matmul %209, %213, %cst_98 {dimension_numbers = #tpu.dot_dimension_numbers<[1], [0], [0], [1], [0, 0, 1, 1], [], []>} : vector<8x128xbf16>, vector<128x128xbf16>, vector<8x128xf32> -> vector<8x128xf32>
    %215 = vector.broadcast %7 : vector<1x128xf32> to vector<8x128xf32>
    %216 = arith.addf %214, %215 : vector<8x128xf32>
    %217 = arith.addf %210, %212 : vector<8x512xf32>
    %218 = arith.negf %217 : vector<8x512xf32>
    %219 = math.exp %218 : vector<8x512xf32>
    %cst_99 = arith.constant 1.000000e+00 : f32
    %220 = vector.broadcast %cst_99 : f32 to vector<8x512xf32>
    %221 = arith.addf %220, %219 : vector<8x512xf32>
    %222 = arith.divf %220, %221 : vector<8x512xf32>
    %223 = vector.extract_strided_slice %222 {offsets = [0, 0], sizes = [8, 128], strides = [1, 1]} : vector<8x512xf32> to vector<8x128xf32>
    %224 = vector.extract_strided_slice %222 {offsets = [0, 128], sizes = [8, 128], strides = [1, 1]} : vector<8x512xf32> to vector<8x128xf32>
    %225 = vector.extract_strided_slice %222 {offsets = [0, 256], sizes = [8, 128], strides = [1, 1]} : vector<8x512xf32> to vector<8x128xf32>
    %226 = vector.extract_strided_slice %222 {offsets = [0, 384], sizes = [8, 128], strides = [1, 1]} : vector<8x512xf32> to vector<8x128xf32>
    %227 = arith.mulf %225, %216 : vector<8x128xf32>
    %228 = arith.mulf %223, %224 : vector<8x128xf32>
    %229 = arith.addf %227, %228 : vector<8x128xf32>
    %230 = math.tanh %229 : vector<8x128xf32>
    %231 = arith.mulf %226, %230 : vector<8x128xf32>
    %c64_100 = arith.constant 64 : index
    %c0_101 = arith.constant 0 : index
    %232 = vector.load %arg10[%c64_100, %c0_101] : memref<120x128xf32, #tpu.memory_space<vmem>>, vector<8x128xf32>
    tpu.vector_store %arg10[%c64_100, %c0_101], %231 {strides = array<i32>} : memref<120x128xf32, #tpu.memory_space<vmem>>, vector<8x128xf32>,
    %233 = arith.truncf %231 : vector<8x128xf32> to vector<8x128xbf16>
    %234 = arith.truncf %229 : vector<8x128xf32> to vector<8x128xbf16>
    %c72 = arith.constant 72 : index
    %c0_102 = arith.constant 0 : index
    %235 = vector.load %arg9[%c72, %c0_102] : memref<120x512xf32, #tpu.memory_space<vmem>>, vector<8x512xf32>
    %c0_103 = arith.constant 0 : index
    %c0_104 = arith.constant 0 : index
    %236 = vector.load %arg3[%c0_103, %c0_104] : memref<128x512xbf16, #tpu.memory_space<vmem>>, vector<128x512xbf16>
    %cst_105 = arith.constant dense<0.000000e+00> : vector<8x512xf32>
    %237 = tpu.matmul %233, %236, %cst_105 {dimension_numbers = #tpu.dot_dimension_numbers<[1], [0], [0], [1], [0, 0, 1, 1], [], []>} : vector<8x128xbf16>, vector<128x512xbf16>, vector<8x512xf32> -> vector<8x512xf32>
    %c0_106 = arith.constant 0 : index
    %c0_107 = arith.constant 0 : index
    %238 = vector.load %arg4[%c0_106, %c0_107] : memref<128x128xbf16, #tpu.memory_space<vmem>>, vector<128x128xbf16>
    %cst_108 = arith.constant dense<0.000000e+00> : vector<8x128xf32>
    %239 = tpu.matmul %234, %238, %cst_108 {dimension_numbers = #tpu.dot_dimension_numbers<[1], [0], [0], [1], [0, 0, 1, 1], [], []>} : vector<8x128xbf16>, vector<128x128xbf16>, vector<8x128xf32> -> vector<8x128xf32>
    %240 = vector.broadcast %7 : vector<1x128xf32> to vector<8x128xf32>
    %241 = arith.addf %239, %240 : vector<8x128xf32>
    %242 = arith.addf %235, %237 : vector<8x512xf32>
    %243 = arith.negf %242 : vector<8x512xf32>
    %244 = math.exp %243 : vector<8x512xf32>
    %cst_109 = arith.constant 1.000000e+00 : f32
    %245 = vector.broadcast %cst_109 : f32 to vector<8x512xf32>
    %246 = arith.addf %245, %244 : vector<8x512xf32>
    %247 = arith.divf %245, %246 : vector<8x512xf32>
    %248 = vector.extract_strided_slice %247 {offsets = [0, 0], sizes = [8, 128], strides = [1, 1]} : vector<8x512xf32> to vector<8x128xf32>
    %249 = vector.extract_strided_slice %247 {offsets = [0, 128], sizes = [8, 128], strides = [1, 1]} : vector<8x512xf32> to vector<8x128xf32>
    %250 = vector.extract_strided_slice %247 {offsets = [0, 256], sizes = [8, 128], strides = [1, 1]} : vector<8x512xf32> to vector<8x128xf32>
    %251 = vector.extract_strided_slice %247 {offsets = [0, 384], sizes = [8, 128], strides = [1, 1]} : vector<8x512xf32> to vector<8x128xf32>
    %252 = arith.mulf %250, %241 : vector<8x128xf32>
    %253 = arith.mulf %248, %249 : vector<8x128xf32>
    %254 = arith.addf %252, %253 : vector<8x128xf32>
    %255 = math.tanh %254 : vector<8x128xf32>
    %256 = arith.mulf %251, %255 : vector<8x128xf32>
    %c72_110 = arith.constant 72 : index
    %c0_111 = arith.constant 0 : index
    %257 = vector.load %arg10[%c72_110, %c0_111] : memref<120x128xf32, #tpu.memory_space<vmem>>, vector<8x128xf32>
    tpu.vector_store %arg10[%c72_110, %c0_111], %256 {strides = array<i32>} : memref<120x128xf32, #tpu.memory_space<vmem>>, vector<8x128xf32>,
    %258 = arith.truncf %256 : vector<8x128xf32> to vector<8x128xbf16>
    %259 = arith.truncf %254 : vector<8x128xf32> to vector<8x128xbf16>
    %c80 = arith.constant 80 : index
    %c0_112 = arith.constant 0 : index
    %260 = vector.load %arg9[%c80, %c0_112] : memref<120x512xf32, #tpu.memory_space<vmem>>, vector<8x512xf32>
    %c0_113 = arith.constant 0 : index
    %c0_114 = arith.constant 0 : index
    %261 = vector.load %arg3[%c0_113, %c0_114] : memref<128x512xbf16, #tpu.memory_space<vmem>>, vector<128x512xbf16>
    %cst_115 = arith.constant dense<0.000000e+00> : vector<8x512xf32>
    %262 = tpu.matmul %258, %261, %cst_115 {dimension_numbers = #tpu.dot_dimension_numbers<[1], [0], [0], [1], [0, 0, 1, 1], [], []>} : vector<8x128xbf16>, vector<128x512xbf16>, vector<8x512xf32> -> vector<8x512xf32>
    %c0_116 = arith.constant 0 : index
    %c0_117 = arith.constant 0 : index
    %263 = vector.load %arg4[%c0_116, %c0_117] : memref<128x128xbf16, #tpu.memory_space<vmem>>, vector<128x128xbf16>
    %cst_118 = arith.constant dense<0.000000e+00> : vector<8x128xf32>
    %264 = tpu.matmul %259, %263, %cst_118 {dimension_numbers = #tpu.dot_dimension_numbers<[1], [0], [0], [1], [0, 0, 1, 1], [], []>} : vector<8x128xbf16>, vector<128x128xbf16>, vector<8x128xf32> -> vector<8x128xf32>
    %265 = vector.broadcast %7 : vector<1x128xf32> to vector<8x128xf32>
    %266 = arith.addf %264, %265 : vector<8x128xf32>
    %267 = arith.addf %260, %262 : vector<8x512xf32>
    %268 = arith.negf %267 : vector<8x512xf32>
    %269 = math.exp %268 : vector<8x512xf32>
    %cst_119 = arith.constant 1.000000e+00 : f32
    %270 = vector.broadcast %cst_119 : f32 to vector<8x512xf32>
    %271 = arith.addf %270, %269 : vector<8x512xf32>
    %272 = arith.divf %270, %271 : vector<8x512xf32>
    %273 = vector.extract_strided_slice %272 {offsets = [0, 0], sizes = [8, 128], strides = [1, 1]} : vector<8x512xf32> to vector<8x128xf32>
    %274 = vector.extract_strided_slice %272 {offsets = [0, 128], sizes = [8, 128], strides = [1, 1]} : vector<8x512xf32> to vector<8x128xf32>
    %275 = vector.extract_strided_slice %272 {offsets = [0, 256], sizes = [8, 128], strides = [1, 1]} : vector<8x512xf32> to vector<8x128xf32>
    %276 = vector.extract_strided_slice %272 {offsets = [0, 384], sizes = [8, 128], strides = [1, 1]} : vector<8x512xf32> to vector<8x128xf32>
    %277 = arith.mulf %275, %266 : vector<8x128xf32>
    %278 = arith.mulf %273, %274 : vector<8x128xf32>
    %279 = arith.addf %277, %278 : vector<8x128xf32>
    %280 = math.tanh %279 : vector<8x128xf32>
    %281 = arith.mulf %276, %280 : vector<8x128xf32>
    %c80_120 = arith.constant 80 : index
    %c0_121 = arith.constant 0 : index
    %282 = vector.load %arg10[%c80_120, %c0_121] : memref<120x128xf32, #tpu.memory_space<vmem>>, vector<8x128xf32>
    tpu.vector_store %arg10[%c80_120, %c0_121], %281 {strides = array<i32>} : memref<120x128xf32, #tpu.memory_space<vmem>>, vector<8x128xf32>,
    %283 = arith.truncf %281 : vector<8x128xf32> to vector<8x128xbf16>
    %284 = arith.truncf %279 : vector<8x128xf32> to vector<8x128xbf16>
    %c88 = arith.constant 88 : index
    %c0_122 = arith.constant 0 : index
    %285 = vector.load %arg9[%c88, %c0_122] : memref<120x512xf32, #tpu.memory_space<vmem>>, vector<8x512xf32>
    %c0_123 = arith.constant 0 : index
    %c0_124 = arith.constant 0 : index
    %286 = vector.load %arg3[%c0_123, %c0_124] : memref<128x512xbf16, #tpu.memory_space<vmem>>, vector<128x512xbf16>
    %cst_125 = arith.constant dense<0.000000e+00> : vector<8x512xf32>
    %287 = tpu.matmul %283, %286, %cst_125 {dimension_numbers = #tpu.dot_dimension_numbers<[1], [0], [0], [1], [0, 0, 1, 1], [], []>} : vector<8x128xbf16>, vector<128x512xbf16>, vector<8x512xf32> -> vector<8x512xf32>
    %c0_126 = arith.constant 0 : index
    %c0_127 = arith.constant 0 : index
    %288 = vector.load %arg4[%c0_126, %c0_127] : memref<128x128xbf16, #tpu.memory_space<vmem>>, vector<128x128xbf16>
    %cst_128 = arith.constant dense<0.000000e+00> : vector<8x128xf32>
    %289 = tpu.matmul %284, %288, %cst_128 {dimension_numbers = #tpu.dot_dimension_numbers<[1], [0], [0], [1], [0, 0, 1, 1], [], []>} : vector<8x128xbf16>, vector<128x128xbf16>, vector<8x128xf32> -> vector<8x128xf32>
    %290 = vector.broadcast %7 : vector<1x128xf32> to vector<8x128xf32>
    %291 = arith.addf %289, %290 : vector<8x128xf32>
    %292 = arith.addf %285, %287 : vector<8x512xf32>
    %293 = arith.negf %292 : vector<8x512xf32>
    %294 = math.exp %293 : vector<8x512xf32>
    %cst_129 = arith.constant 1.000000e+00 : f32
    %295 = vector.broadcast %cst_129 : f32 to vector<8x512xf32>
    %296 = arith.addf %295, %294 : vector<8x512xf32>
    %297 = arith.divf %295, %296 : vector<8x512xf32>
    %298 = vector.extract_strided_slice %297 {offsets = [0, 0], sizes = [8, 128], strides = [1, 1]} : vector<8x512xf32> to vector<8x128xf32>
    %299 = vector.extract_strided_slice %297 {offsets = [0, 128], sizes = [8, 128], strides = [1, 1]} : vector<8x512xf32> to vector<8x128xf32>
    %300 = vector.extract_strided_slice %297 {offsets = [0, 256], sizes = [8, 128], strides = [1, 1]} : vector<8x512xf32> to vector<8x128xf32>
    %301 = vector.extract_strided_slice %297 {offsets = [0, 384], sizes = [8, 128], strides = [1, 1]} : vector<8x512xf32> to vector<8x128xf32>
    %302 = arith.mulf %300, %291 : vector<8x128xf32>
    %303 = arith.mulf %298, %299 : vector<8x128xf32>
    %304 = arith.addf %302, %303 : vector<8x128xf32>
    %305 = math.tanh %304 : vector<8x128xf32>
    %306 = arith.mulf %301, %305 : vector<8x128xf32>
    %c88_130 = arith.constant 88 : index
    %c0_131 = arith.constant 0 : index
    %307 = vector.load %arg10[%c88_130, %c0_131] : memref<120x128xf32, #tpu.memory_space<vmem>>, vector<8x128xf32>
    tpu.vector_store %arg10[%c88_130, %c0_131], %306 {strides = array<i32>} : memref<120x128xf32, #tpu.memory_space<vmem>>, vector<8x128xf32>,
    %308 = arith.truncf %306 : vector<8x128xf32> to vector<8x128xbf16>
    %309 = arith.truncf %304 : vector<8x128xf32> to vector<8x128xbf16>
    %c96 = arith.constant 96 : index
    %c0_132 = arith.constant 0 : index
    %310 = vector.load %arg9[%c96, %c0_132] : memref<120x512xf32, #tpu.memory_space<vmem>>, vector<8x512xf32>
    %c0_133 = arith.constant 0 : index
    %c0_134 = arith.constant 0 : index
    %311 = vector.load %arg3[%c0_133, %c0_134] : memref<128x512xbf16, #tpu.memory_space<vmem>>, vector<128x512xbf16>
    %cst_135 = arith.constant dense<0.000000e+00> : vector<8x512xf32>
    %312 = tpu.matmul %308, %311, %cst_135 {dimension_numbers = #tpu.dot_dimension_numbers<[1], [0], [0], [1], [0, 0, 1, 1], [], []>} : vector<8x128xbf16>, vector<128x512xbf16>, vector<8x512xf32> -> vector<8x512xf32>
    %c0_136 = arith.constant 0 : index
    %c0_137 = arith.constant 0 : index
    %313 = vector.load %arg4[%c0_136, %c0_137] : memref<128x128xbf16, #tpu.memory_space<vmem>>, vector<128x128xbf16>
    %cst_138 = arith.constant dense<0.000000e+00> : vector<8x128xf32>
    %314 = tpu.matmul %309, %313, %cst_138 {dimension_numbers = #tpu.dot_dimension_numbers<[1], [0], [0], [1], [0, 0, 1, 1], [], []>} : vector<8x128xbf16>, vector<128x128xbf16>, vector<8x128xf32> -> vector<8x128xf32>
    %315 = vector.broadcast %7 : vector<1x128xf32> to vector<8x128xf32>
    %316 = arith.addf %314, %315 : vector<8x128xf32>
    %317 = arith.addf %310, %312 : vector<8x512xf32>
    %318 = arith.negf %317 : vector<8x512xf32>
    %319 = math.exp %318 : vector<8x512xf32>
    %cst_139 = arith.constant 1.000000e+00 : f32
    %320 = vector.broadcast %cst_139 : f32 to vector<8x512xf32>
    %321 = arith.addf %320, %319 : vector<8x512xf32>
    %322 = arith.divf %320, %321 : vector<8x512xf32>
    %323 = vector.extract_strided_slice %322 {offsets = [0, 0], sizes = [8, 128], strides = [1, 1]} : vector<8x512xf32> to vector<8x128xf32>
    %324 = vector.extract_strided_slice %322 {offsets = [0, 128], sizes = [8, 128], strides = [1, 1]} : vector<8x512xf32> to vector<8x128xf32>
    %325 = vector.extract_strided_slice %322 {offsets = [0, 256], sizes = [8, 128], strides = [1, 1]} : vector<8x512xf32> to vector<8x128xf32>
    %326 = vector.extract_strided_slice %322 {offsets = [0, 384], sizes = [8, 128], strides = [1, 1]} : vector<8x512xf32> to vector<8x128xf32>
    %327 = arith.mulf %325, %316 : vector<8x128xf32>
    %328 = arith.mulf %323, %324 : vector<8x128xf32>
    %329 = arith.addf %327, %328 : vector<8x128xf32>
    %330 = math.tanh %329 : vector<8x128xf32>
    %331 = arith.mulf %326, %330 : vector<8x128xf32>
    %c96_140 = arith.constant 96 : index
    %c0_141 = arith.constant 0 : index
    %332 = vector.load %arg10[%c96_140, %c0_141] : memref<120x128xf32, #tpu.memory_space<vmem>>, vector<8x128xf32>
    tpu.vector_store %arg10[%c96_140, %c0_141], %331 {strides = array<i32>} : memref<120x128xf32, #tpu.memory_space<vmem>>, vector<8x128xf32>,
    %333 = arith.truncf %331 : vector<8x128xf32> to vector<8x128xbf16>
    %334 = arith.truncf %329 : vector<8x128xf32> to vector<8x128xbf16>
    %c104 = arith.constant 104 : index
    %c0_142 = arith.constant 0 : index
    %335 = vector.load %arg9[%c104, %c0_142] : memref<120x512xf32, #tpu.memory_space<vmem>>, vector<8x512xf32>
    %c0_143 = arith.constant 0 : index
    %c0_144 = arith.constant 0 : index
    %336 = vector.load %arg3[%c0_143, %c0_144] : memref<128x512xbf16, #tpu.memory_space<vmem>>, vector<128x512xbf16>
    %cst_145 = arith.constant dense<0.000000e+00> : vector<8x512xf32>
    %337 = tpu.matmul %333, %336, %cst_145 {dimension_numbers = #tpu.dot_dimension_numbers<[1], [0], [0], [1], [0, 0, 1, 1], [], []>} : vector<8x128xbf16>, vector<128x512xbf16>, vector<8x512xf32> -> vector<8x512xf32>
    %c0_146 = arith.constant 0 : index
    %c0_147 = arith.constant 0 : index
    %338 = vector.load %arg4[%c0_146, %c0_147] : memref<128x128xbf16, #tpu.memory_space<vmem>>, vector<128x128xbf16>
    %cst_148 = arith.constant dense<0.000000e+00> : vector<8x128xf32>
    %339 = tpu.matmul %334, %338, %cst_148 {dimension_numbers = #tpu.dot_dimension_numbers<[1], [0], [0], [1], [0, 0, 1, 1], [], []>} : vector<8x128xbf16>, vector<128x128xbf16>, vector<8x128xf32> -> vector<8x128xf32>
    %340 = vector.broadcast %7 : vector<1x128xf32> to vector<8x128xf32>
    %341 = arith.addf %339, %340 : vector<8x128xf32>
    %342 = arith.addf %335, %337 : vector<8x512xf32>
    %343 = arith.negf %342 : vector<8x512xf32>
    %344 = math.exp %343 : vector<8x512xf32>
    %cst_149 = arith.constant 1.000000e+00 : f32
    %345 = vector.broadcast %cst_149 : f32 to vector<8x512xf32>
    %346 = arith.addf %345, %344 : vector<8x512xf32>
    %347 = arith.divf %345, %346 : vector<8x512xf32>
    %348 = vector.extract_strided_slice %347 {offsets = [0, 0], sizes = [8, 128], strides = [1, 1]} : vector<8x512xf32> to vector<8x128xf32>
    %349 = vector.extract_strided_slice %347 {offsets = [0, 128], sizes = [8, 128], strides = [1, 1]} : vector<8x512xf32> to vector<8x128xf32>
    %350 = vector.extract_strided_slice %347 {offsets = [0, 256], sizes = [8, 128], strides = [1, 1]} : vector<8x512xf32> to vector<8x128xf32>
    %351 = vector.extract_strided_slice %347 {offsets = [0, 384], sizes = [8, 128], strides = [1, 1]} : vector<8x512xf32> to vector<8x128xf32>
    %352 = arith.mulf %350, %341 : vector<8x128xf32>
    %353 = arith.mulf %348, %349 : vector<8x128xf32>
    %354 = arith.addf %352, %353 : vector<8x128xf32>
    %355 = math.tanh %354 : vector<8x128xf32>
    %356 = arith.mulf %351, %355 : vector<8x128xf32>
    %c104_150 = arith.constant 104 : index
    %c0_151 = arith.constant 0 : index
    %357 = vector.load %arg10[%c104_150, %c0_151] : memref<120x128xf32, #tpu.memory_space<vmem>>, vector<8x128xf32>
    tpu.vector_store %arg10[%c104_150, %c0_151], %356 {strides = array<i32>} : memref<120x128xf32, #tpu.memory_space<vmem>>, vector<8x128xf32>,
    %358 = arith.truncf %356 : vector<8x128xf32> to vector<8x128xbf16>
    %359 = arith.truncf %354 : vector<8x128xf32> to vector<8x128xbf16>
    %c112 = arith.constant 112 : index
    %c0_152 = arith.constant 0 : index
    %360 = vector.load %arg9[%c112, %c0_152] : memref<120x512xf32, #tpu.memory_space<vmem>>, vector<8x512xf32>
    %c0_153 = arith.constant 0 : index
    %c0_154 = arith.constant 0 : index
    %361 = vector.load %arg3[%c0_153, %c0_154] : memref<128x512xbf16, #tpu.memory_space<vmem>>, vector<128x512xbf16>
    %cst_155 = arith.constant dense<0.000000e+00> : vector<8x512xf32>
    %362 = tpu.matmul %358, %361, %cst_155 {dimension_numbers = #tpu.dot_dimension_numbers<[1], [0], [0], [1], [0, 0, 1, 1], [], []>} : vector<8x128xbf16>, vector<128x512xbf16>, vector<8x512xf32> -> vector<8x512xf32>
    %c0_156 = arith.constant 0 : index
    %c0_157 = arith.constant 0 : index
    %363 = vector.load %arg4[%c0_156, %c0_157] : memref<128x128xbf16, #tpu.memory_space<vmem>>, vector<128x128xbf16>
    %cst_158 = arith.constant dense<0.000000e+00> : vector<8x128xf32>
    %364 = tpu.matmul %359, %363, %cst_158 {dimension_numbers = #tpu.dot_dimension_numbers<[1], [0], [0], [1], [0, 0, 1, 1], [], []>} : vector<8x128xbf16>, vector<128x128xbf16>, vector<8x128xf32> -> vector<8x128xf32>
    %365 = vector.broadcast %7 : vector<1x128xf32> to vector<8x128xf32>
    %366 = arith.addf %364, %365 : vector<8x128xf32>
    %367 = arith.addf %360, %362 : vector<8x512xf32>
    %368 = arith.negf %367 : vector<8x512xf32>
    %369 = math.exp %368 : vector<8x512xf32>
    %cst_159 = arith.constant 1.000000e+00 : f32
    %370 = vector.broadcast %cst_159 : f32 to vector<8x512xf32>
    %371 = arith.addf %370, %369 : vector<8x512xf32>
    %372 = arith.divf %370, %371 : vector<8x512xf32>
    %373 = vector.extract_strided_slice %372 {offsets = [0, 0], sizes = [8, 128], strides = [1, 1]} : vector<8x512xf32> to vector<8x128xf32>
    %374 = vector.extract_strided_slice %372 {offsets = [0, 128], sizes = [8, 128], strides = [1, 1]} : vector<8x512xf32> to vector<8x128xf32>
    %375 = vector.extract_strided_slice %372 {offsets = [0, 256], sizes = [8, 128], strides = [1, 1]} : vector<8x512xf32> to vector<8x128xf32>
    %376 = vector.extract_strided_slice %372 {offsets = [0, 384], sizes = [8, 128], strides = [1, 1]} : vector<8x512xf32> to vector<8x128xf32>
    %377 = arith.mulf %375, %366 : vector<8x128xf32>
    %378 = arith.mulf %373, %374 : vector<8x128xf32>
    %379 = arith.addf %377, %378 : vector<8x128xf32>
    %380 = math.tanh %379 : vector<8x128xf32>
    %381 = arith.mulf %376, %380 : vector<8x128xf32>
    %c112_160 = arith.constant 112 : index
    %c0_161 = arith.constant 0 : index
    %382 = vector.load %arg10[%c112_160, %c0_161] : memref<120x128xf32, #tpu.memory_space<vmem>>, vector<8x128xf32>
    tpu.vector_store %arg10[%c112_160, %c0_161], %381 {strides = array<i32>} : memref<120x128xf32, #tpu.memory_space<vmem>>, vector<8x128xf32>,
    %c0_162 = arith.constant 0 : index
    %c0_163 = arith.constant 0 : index
    %383 = vector.load %arg10[%c0_162, %c0_163] : memref<120x128xf32, #tpu.memory_space<vmem>>, vector<120x128xf32>
    %c0_164 = arith.constant 0 : index
    %c0_165 = arith.constant 0 : index
    %384 = vector.load %arg6[%c0_164, %c0_165] : memref<128x256xf32, #tpu.memory_space<vmem>>, vector<128x256xf32>
    %cst_166 = arith.constant dense<0.000000e+00> : vector<120x256xf32>
    %385 = tpu.matmul %383, %384, %cst_166 {dimension_numbers = #tpu.dot_dimension_numbers<[1], [0], [0], [1], [0, 0, 1, 1], [], []>} : vector<120x128xf32>, vector<128x256xf32>, vector<120x256xf32> -> vector<120x256xf32>
    %c0_167 = arith.constant 0 : index
    %c0_168 = arith.constant 0 : index
    %386 = vector.load %arg7[%c0_167, %c0_168] : memref<1x256xf32, #tpu.memory_space<vmem>>, vector<1x256xf32>
    %387 = vector.broadcast %386 : vector<1x256xf32> to vector<120x256xf32>
    %388 = arith.addf %385, %387 : vector<120x256xf32>
    %c0_169 = arith.constant 0 : index
    %c0_170 = arith.constant 0 : index
    %389 = vector.load %arg8[%c0_169, %c0_170] : memref<120x256xf32, #tpu.memory_space<vmem>>, vector<120x256xf32>
    tpu.vector_store %arg8[%c0_169, %c0_170], %388 {strides = array<i32>} : memref<120x256xf32, #tpu.memory_space<vmem>>, vector<120x256xf32>,
    return
  }
}

</mosaic_0001>

<llo_original>
// kernel: diagonal_lstm_forward.1
$region0: #{diagonal_lstm_forward.1}
  #allocation0 [shape = 'u32[]', space=smem, size = 0x4, offset = 0x4, fixed_abs, tag = 'smem constant byte address 0x4 - core index']
  #allocation1 [shape = 'u32[144,128]{1,0:T(1,128)}', space=vmem, size = 0x12000, scoped, tag = 'internal scratch']
  #allocation2 [shape = 'f32[120,512]{1,0:T(8,128)}', space=vmem, size = 0x3c000, scoped, tag = 'scratch operand']
  #allocation3 [shape = 'f32[120,128]{1,0:T(8,128)}', space=vmem, size = 0xf000, scoped, tag = 'scratch operand']
  %s0 = inlined_call_operand.vmem [shape: f32[120,32], index: 0, kind: input, shape index: {}]
  %s1 = inlined_call_operand.vmem [shape: f32[32,512], index: 1, kind: input, shape index: {}]
  %s2 = inlined_call_operand.vmem [shape: f32[1,512], index: 2, kind: input, shape index: {}]
  %s3 = inlined_call_operand.vmem [shape: bf16[128,512], index: 3, kind: input, shape index: {}]
  %s4 = inlined_call_operand.vmem [shape: bf16[128,128], index: 4, kind: input, shape index: {}]
  %s5 = inlined_call_operand.vmem [shape: f32[1,128], index: 5, kind: input, shape index: {}]
  %s6 = inlined_call_operand.vmem [shape: f32[128,256], index: 6, kind: input, shape index: {}]
  %s7 = inlined_call_operand.vmem [shape: f32[1,256], index: 7, kind: input, shape index: {}]
  %s8 = inlined_call_operand.vmem [shape: f32[120,256], index: 8, kind: output, shape index: {}]
  %s9 = sld [smem:[#allocation0]]
  $region42: #{diagonal_lstm_forward.1} parent=0
    _
  %s11 = ssub.s32 1, %s9
  %s12 = scalar_select 0, %s11, %s9
  // Predicated region
  $region2: #{diagonal_lstm_forward.1} parent=0 // pred_check
    _
  $region3: #{diagonal_lstm_forward.1} parent=0 // pred_check_branch
    %14 = sbr.rel (0) target = $region5
  $region4: #{diagonal_lstm_forward.1} parent=0 // pred_region
    _
  $region5: #{diagonal_lstm_forward.1} parent=0 // pred_fallthru
    _
  // Predicated region
  $region6: #{diagonal_lstm_forward.1} parent=0 // pred_check
    _
  $region7: #{diagonal_lstm_forward.1} parent=0 // pred_check_branch
    %16 = sbr.rel (0) target = $region9
  $region8: #{diagonal_lstm_forward.1} parent=0 // pred_region
    _
  $region9: #{diagonal_lstm_forward.1} parent=0 // pred_fallthru
    _
  // Predicated region
  $region10: #{diagonal_lstm_forward.1} parent=0 // pred_check
    _
  $region11: #{diagonal_lstm_forward.1} parent=0 // pred_check_branch
    %18 = sbr.rel (0) target = $region13
  $region12: #{diagonal_lstm_forward.1} parent=0 // pred_region
    _
  $region13: #{diagonal_lstm_forward.1} parent=0 // pred_fallthru
    _
  // Predicated region
  $region14: #{diagonal_lstm_forward.1} parent=0 // pred_check
    _
  $region15: #{diagonal_lstm_forward.1} parent=0 // pred_check_branch
    %20 = sbr.rel (0) target = $region17
  $region16: #{diagonal_lstm_forward.1} parent=0 // pred_region
    _
  $region17: #{diagonal_lstm_forward.1} parent=0 // pred_fallthru
    _
  // Predicated region
  $region18: #{diagonal_lstm_forward.1} parent=0 // pred_check
    _
  $region19: #{diagonal_lstm_forward.1} parent=0 // pred_check_branch
    %22 = sbr.rel (0) target = $region21
  $region20: #{diagonal_lstm_forward.1} parent=0 // pred_region
    _
  $region21: #{diagonal_lstm_forward.1} parent=0 // pred_fallthru
    _
  // Predicated region
  $region22: #{diagonal_lstm_forward.1} parent=0 // pred_check
    _
  $region23: #{diagonal_lstm_forward.1} parent=0 // pred_check_branch
    %24 = sbr.rel (0) target = $region25
  $region24: #{diagonal_lstm_forward.1} parent=0 // pred_region
    _
  $region25: #{diagonal_lstm_forward.1} parent=0 // pred_fallthru
    _
  // Predicated region
  $region26: #{diagonal_lstm_forward.1} parent=0 // pred_check
    _
  $region27: #{diagonal_lstm_forward.1} parent=0 // pred_check_branch
    %26 = sbr.rel (0) target = $region29
  $region28: #{diagonal_lstm_forward.1} parent=0 // pred_region
    _
  $region29: #{diagonal_lstm_forward.1} parent=0 // pred_fallthru
    _
  // Predicated region
  $region30: #{diagonal_lstm_forward.1} parent=0 // pred_check
    _
  $region31: #{diagonal_lstm_forward.1} parent=0 // pred_check_branch
    %28 = sbr.rel (0) target = $region33
  $region32: #{diagonal_lstm_forward.1} parent=0 // pred_region
    _
  $region33: #{diagonal_lstm_forward.1} parent=0 // pred_fallthru
    _
  %v30 = vld [vmem:[%s0] sm:$0xff]
  %v31 = vld [vmem:[%s0 + $0x8] sm:$0xff]
  %v32 = vld [vmem:[%s0 + $0x10] sm:$0xff]
  %v33 = vld [vmem:[%s0 + $0x18] sm:$0xff]
  %v34 = vld [vmem:[%s0 + $0x20] sm:$0xff]
  %v35 = vld [vmem:[%s0 + $0x28] sm:$0xff]
  %v36 = vld [vmem:[%s0 + $0x30] sm:$0xff]
  %v37 = vld [vmem:[%s0 + $0x38] sm:$0xff]
  %v38 = vld [vmem:[%s0 + $0x40] sm:$0xff]
  %v39 = vld [vmem:[%s0 + $0x48] sm:$0xff]
  %v40 = vld [vmem:[%s0 + $0x50] sm:$0xff]
  %v41 = vld [vmem:[%s0 + $0x58] sm:$0xff]
  %v42 = vld [vmem:[%s0 + $0x60] sm:$0xff]
  %v43 = vld [vmem:[%s0 + $0x68] sm:$0xff]
  %v44 = vld [vmem:[%s0 + $0x70] sm:$0xff]
  %v45 = vld [vmem:[%s1] sm:$0xff]
  %v46 = vld [vmem:[%s1 + $0x8] sm:$0xff]
  %v47 = vld [vmem:[%s1 + $0x10] sm:$0xff]
  %v48 = vld [vmem:[%s1 + $0x18] sm:$0xff]
  %v49 = vld [vmem:[%s1 + $0x20] sm:$0xff]
  %v50 = vld [vmem:[%s1 + $0x28] sm:$0xff]
  %v51 = vld [vmem:[%s1 + $0x30] sm:$0xff]
  %v52 = vld [vmem:[%s1 + $0x38] sm:$0xff]
  %v53 = vld [vmem:[%s1 + $0x40] sm:$0xff]
  %v54 = vld [vmem:[%s1 + $0x48] sm:$0xff]
  %v55 = vld [vmem:[%s1 + $0x50] sm:$0xff]
  %v56 = vld [vmem:[%s1 + $0x58] sm:$0xff]
  %v57 = vld [vmem:[%s1 + $0x60] sm:$0xff]
  %v58 = vld [vmem:[%s1 + $0x68] sm:$0xff]
  %v59 = vld [vmem:[%s1 + $0x70] sm:$0xff]
  %v60 = vld [vmem:[%s1 + $0x78] sm:$0xff]
  %v61 = vld [vmem:[%s2] sm:$0xf]
  %v63 = vlaneseq
  %v64 = vshrl.u32 %v63, 7
  %v65 = vsub.s32 0, %v64
  %v66 = vrot.slane %v61, %v65
  %v67 = vlaneseq
  %v68 = vshrl.u32 %v67, 7
  %v69 = vsub.s32 1, %v68
  %v70 = vrot.slane %v61, %v69
  %v71 = vlaneseq
  %v72 = vshrl.u32 %v71, 7
  %v73 = vsub.s32 2, %v72
  %v74 = vrot.slane %v61, %v73
  %v75 = vlaneseq
  %v76 = vshrl.u32 %v75, 7
  %v77 = vsub.s32 3, %v76
  %v78 = vrot.slane %v61, %v77
  %vm83 = vcmask 261120
  %v85 = vsel %vm83, %v30, 0
  %v88 = vsel %vm83, %v31, 0
  %v91 = vsel %vm83, %v32, 0
  %v94 = vsel %vm83, %v33, 0
  %v97 = vsel %vm83, %v34, 0
  %v100 = vsel %vm83, %v35, 0
  %v103 = vsel %vm83, %v36, 0
  %v106 = vsel %vm83, %v37, 0
  %v109 = vsel %vm83, %v38, 0
  %v112 = vsel %vm83, %v39, 0
  %v115 = vsel %vm83, %v40, 0
  %v118 = vsel %vm83, %v41, 0
  %v121 = vsel %vm83, %v42, 0
  %v124 = vsel %vm83, %v43, 0
  %v127 = vsel %vm83, %v44, 0
  %129 = vmatprep.subr.mxu0 0.0
  %130 = vmatpush1.msra.mxu0 0.0
  %131 = vmatprep.subr.mxu0 0.0
  %132 = vmatpush1.msra.mxu0 0.0
  %133 = vmatprep.subr.mxu0 0.0
  %134 = vmatpush1.msra.mxu0 0.0
  %135 = vmatprep.subr.mxu0 0.0
  %136 = vmatpush1.msra.mxu0 0.0
  %137 = vmatprep.subr.mxu0 0.0
  %138 = vmatpush1.msra.mxu0 0.0
  %139 = vmatprep.subr.mxu0 0.0
  %140 = vmatpush1.msra.mxu0 0.0
  %141 = vmatprep.subr.mxu0 0.0
  %142 = vmatpush1.msra.mxu0 0.0
  %143 = vmatprep.subr.mxu0 0.0
  %144 = vmatpush1.msra.mxu0 0.0
  %145 = vmatprep.subr.mxu0 0.0
  %146 = vmatpush1.msra.mxu0 0.0
  %147 = vmatprep.subr.mxu0 0.0
  %148 = vmatpush1.msra.mxu0 0.0
  %149 = vmatprep.subr.mxu0 0.0
  %150 = vmatpush1.msra.mxu0 0.0
  %151 = vmatprep.subr.mxu0 0.0
  %152 = vmatpush1.msra.mxu0 0.0
  %153 = vmatprep.subr.mxu0 %v58
  %154 = vmatpush1.msra.mxu0 %v57
  %155 = vmatprep.subr.mxu0 %v54
  %156 = vmatpush1.msra.mxu0 %v53
  %157 = vmatprep.subr.mxu0 %v50
  %158 = vmatpush1.msra.mxu0 %v49
  %159 = vmatprep.subr.mxu0 %v46
  %160 = vmatpush1.msra.mxu0 %v45
  %161 = vmatprep.subr.mxu0 0.0
  %162 = vmatpush2.msra.mxu0 0.0
  %163 = vmatprep.subr.mxu0 0.0
  %164 = vmatpush2.msra.mxu0 0.0
  %165 = vmatprep.subr.mxu0 0.0
  %166 = vmatpush2.msra.mxu0 0.0
  %167 = vmatprep.subr.mxu0 0.0
  %168 = vmatpush2.msra.mxu0 0.0
  %169 = vmatprep.subr.mxu0 0.0
  %170 = vmatpush2.msra.mxu0 0.0
  %171 = vmatprep.subr.mxu0 0.0
  %172 = vmatpush2.msra.mxu0 0.0
  %173 = vmatprep.subr.mxu0 0.0
  %174 = vmatpush2.msra.mxu0 0.0
  %175 = vmatprep.subr.mxu0 0.0
  %176 = vmatpush2.msra.mxu0 0.0
  %177 = vmatprep.subr.mxu0 0.0
  %178 = vmatpush2.msra.mxu0 0.0
  %179 = vmatprep.subr.mxu0 0.0
  %180 = vmatpush2.msra.mxu0 0.0
  %181 = vmatprep.subr.mxu0 0.0
  %182 = vmatpush2.msra.mxu0 0.0
  %183 = vmatprep.subr.mxu0 0.0
  %184 = vmatpush2.msra.mxu0 0.0
  %185 = vmatprep.subr.mxu0 0.0
  %186 = vmatpush2.msra.mxu0 0.0
  %187 = vmatprep.subr.mxu0 0.0
  %188 = vmatpush2.msra.mxu0 0.0
  %189 = vmatprep.subr.mxu0 0.0
  %190 = vmatpush2.msra.mxu0 0.0
  %191 = vmatprep.subr.mxu0 0.0
  %192 = vmatpush2.msra.mxu0 0.0
  %193 = vmatprep.mubr.f32.mxu0 0.0
  %194 = vmatmul.mubr.f32.gmra.mxu0 %v85
  %v195 = vpop.f32.mrf.mxu0
  %v196 = vadd.f32 %v66, %v195
  %v197 = vpop.f32.mrf.mxu0
  %v198 = vadd.f32 %v70, %v197
  %199 = vmatprep.mubr.f32.mxu0 0.0
  %200 = vmatmul.mubr.f32.gmra.mxu0 %v88
  %v201 = vpop.f32.mrf.mxu0
  %v202 = vadd.f32 %v66, %v201
  %v203 = vpop.f32.mrf.mxu0
  %v204 = vadd.f32 %v70, %v203
  %205 = vmatprep.mubr.f32.mxu0 0.0
  %206 = vmatmul.mubr.f32.gmra.mxu0 %v91
  %v207 = vpop.f32.mrf.mxu0
  %v208 = vadd.f32 %v66, %v207
  %v209 = vpop.f32.mrf.mxu0
  %v210 = vadd.f32 %v70, %v209
  %211 = vmatprep.mubr.f32.mxu0 0.0
  %212 = vmatmul.mubr.f32.gmra.mxu0 %v94
  %v213 = vpop.f32.mrf.mxu0
  %v214 = vadd.f32 %v66, %v213
  %v215 = vpop.f32.mrf.mxu0
  %v216 = vadd.f32 %v70, %v215
  %217 = vmatprep.mubr.f32.mxu0 0.0
  %218 = vmatmul.mubr.f32.gmra.mxu0 %v97
  %v219 = vpop.f32.mrf.mxu0
  %v220 = vadd.f32 %v66, %v219
  %v221 = vpop.f32.mrf.mxu0
  %v222 = vadd.f32 %v70, %v221
  %223 = vmatprep.mubr.f32.mxu0 0.0
  %224 = vmatmul.mubr.f32.gmra.mxu0 %v100
  %v225 = vpop.f32.mrf.mxu0
  %v226 = vadd.f32 %v66, %v225
  %v227 = vpop.f32.mrf.mxu0
  %v228 = vadd.f32 %v70, %v227
  %229 = vmatprep.mubr.f32.mxu0 0.0
  %230 = vmatmul.mubr.f32.gmra.mxu0 %v103
  %v231 = vpop.f32.mrf.mxu0
  %v232 = vadd.f32 %v66, %v231
  %v233 = vpop.f32.mrf.mxu0
  %v234 = vadd.f32 %v70, %v233
  %235 = vmatprep.mubr.f32.mxu0 0.0
  %236 = vmatmul.mubr.f32.gmra.mxu0 %v106
  %v237 = vpop.f32.mrf.mxu0
  %v238 = vadd.f32 %v66, %v237
  %v239 = vpop.f32.mrf.mxu0
  %v240 = vadd.f32 %v70, %v239
  %241 = vmatprep.mubr.f32.mxu0 0.0
  %242 = vmatmul.mubr.f32.gmra.mxu0 %v109
  %v243 = vpop.f32.mrf.mxu0
  %v244 = vadd.f32 %v66, %v243
  %v245 = vpop.f32.mrf.mxu0
  %v246 = vadd.f32 %v70, %v245
  %247 = vmatprep.mubr.f32.mxu0 0.0
  %248 = vmatmul.mubr.f32.gmra.mxu0 %v112
  %v249 = vpop.f32.mrf.mxu0
  %v250 = vadd.f32 %v66, %v249
  %v251 = vpop.f32.mrf.mxu0
  %v252 = vadd.f32 %v70, %v251
  %253 = vmatprep.mubr.f32.mxu0 0.0
  %254 = vmatmul.mubr.f32.gmra.mxu0 %v115
  %v255 = vpop.f32.mrf.mxu0
  %v256 = vadd.f32 %v66, %v255
  %v257 = vpop.f32.mrf.mxu0
  %v258 = vadd.f32 %v70, %v257
  %259 = vmatprep.mubr.f32.mxu0 0.0
  %260 = vmatmul.mubr.f32.gmra.mxu0 %v118
  %v261 = vpop.f32.mrf.mxu0
  %v262 = vadd.f32 %v66, %v261
  %v263 = vpop.f32.mrf.mxu0
  %v264 = vadd.f32 %v70, %v263
  %265 = vmatprep.mubr.f32.mxu0 0.0
  %266 = vmatmul.mubr.f32.gmra.mxu0 %v121
  %v267 = vpop.f32.mrf.mxu0
  %v268 = vadd.f32 %v66, %v267
  %v269 = vpop.f32.mrf.mxu0
  %v270 = vadd.f32 %v70, %v269
  %271 = vmatprep.mubr.f32.mxu0 0.0
  %272 = vmatmul.mubr.f32.gmra.mxu0 %v124
  %v273 = vpop.f32.mrf.mxu0
  %v274 = vadd.f32 %v66, %v273
  %v275 = vpop.f32.mrf.mxu0
  %v276 = vadd.f32 %v70, %v275
  %277 = vmatprep.mubr.f32.mxu0 0.0
  %278 = vmatmul.mubr.f32.gmra.mxu0 %v127
  %v279 = vpop.f32.mrf.mxu0
  %v280 = vadd.f32 %v66, %v279
  %v281 = vpop.f32.mrf.mxu0
  %v282 = vadd.f32 %v70, %v281
  %283 = vdwg.mxu0
  %284 = vmatprep.subr.mxu0 0.0
  %285 = vmatpush1.msra.mxu0 0.0
  %286 = vmatprep.subr.mxu0 0.0
  %287 = vmatpush1.msra.mxu0 0.0
  %288 = vmatprep.subr.mxu0 0.0
  %289 = vmatpush1.msra.mxu0 0.0
  %290 = vmatprep.subr.mxu0 0.0
  %291 = vmatpush1.msra.mxu0 0.0
  %292 = vmatprep.subr.mxu0 0.0
  %293 = vmatpush1.msra.mxu0 0.0
  %294 = vmatprep.subr.mxu0 0.0
  %295 = vmatpush1.msra.mxu0 0.0
  %296 = vmatprep.subr.mxu0 0.0
  %297 = vmatpush1.msra.mxu0 0.0
  %298 = vmatprep.subr.mxu0 0.0
  %299 = vmatpush1.msra.mxu0 0.0
  %300 = vmatprep.subr.mxu0 0.0
  %301 = vmatpush1.msra.mxu0 0.0
  %302 = vmatprep.subr.mxu0 0.0
  %303 = vmatpush1.msra.mxu0 0.0
  %304 = vmatprep.subr.mxu0 0.0
  %305 = vmatpush1.msra.mxu0 0.0
  %306 = vmatprep.subr.mxu0 0.0
  %307 = vmatpush1.msra.mxu0 0.0
  %308 = vmatprep.subr.mxu0 %v60
  %309 = vmatpush1.msra.mxu0 %v59
  %310 = vmatprep.subr.mxu0 %v56
  %311 = vmatpush1.msra.mxu0 %v55
  %312 = vmatprep.subr.mxu0 %v52
  %313 = vmatpush1.msra.mxu0 %v51
  %314 = vmatprep.subr.mxu0 %v48
  %315 = vmatpush1.msra.mxu0 %v47
  %316 = vmatprep.subr.mxu0 0.0
  %317 = vmatpush2.msra.mxu0 0.0
  %318 = vmatprep.subr.mxu0 0.0
  %319 = vmatpush2.msra.mxu0 0.0
  %320 = vmatprep.subr.mxu0 0.0
  %321 = vmatpush2.msra.mxu0 0.0
  %322 = vmatprep.subr.mxu0 0.0
  %323 = vmatpush2.msra.mxu0 0.0
  %324 = vmatprep.subr.mxu0 0.0
  %325 = vmatpush2.msra.mxu0 0.0
  %326 = vmatprep.subr.mxu0 0.0
  %327 = vmatpush2.msra.mxu0 0.0
  %328 = vmatprep.subr.mxu0 0.0
  %329 = vmatpush2.msra.mxu0 0.0
  %330 = vmatprep.subr.mxu0 0.0
  %331 = vmatpush2.msra.mxu0 0.0
  %332 = vmatprep.subr.mxu0 0.0
  %333 = vmatpush2.msra.mxu0 0.0
  %334 = vmatprep.subr.mxu0 0.0
  %335 = vmatpush2.msra.mxu0 0.0
  %336 = vmatprep.subr.mxu0 0.0
  %337 = vmatpush2.msra.mxu0 0.0
  %338 = vmatprep.subr.mxu0 0.0
  %339 = vmatpush2.msra.mxu0 0.0
  %340 = vmatprep.subr.mxu0 0.0
  %341 = vmatpush2.msra.mxu0 0.0
  %342 = vmatprep.subr.mxu0 0.0
  %343 = vmatpush2.msra.mxu0 0.0
  %344 = vmatprep.subr.mxu0 0.0
  %345 = vmatpush2.msra.mxu0 0.0
  %346 = vmatprep.subr.mxu0 0.0
  %347 = vmatpush2.msra.mxu0 0.0
  %348 = vmatprep.mubr.f32.mxu0 0.0
  %349 = vmatmul.mubr.f32.gmra.mxu0 %v85
  %v350 = vpop.f32.mrf.mxu0
  %v351 = vadd.f32 %v74, %v350
  %v352 = vpop.f32.mrf.mxu0
  %v353 = vadd.f32 %v78, %v352
  %354 = vmatprep.mubr.f32.mxu0 0.0
  %355 = vmatmul.mubr.f32.gmra.mxu0 %v88
  %v356 = vpop.f32.mrf.mxu0
  %v357 = vadd.f32 %v74, %v356
  %v358 = vpop.f32.mrf.mxu0
  %v359 = vadd.f32 %v78, %v358
  %360 = vmatprep.mubr.f32.mxu0 0.0
  %361 = vmatmul.mubr.f32.gmra.mxu0 %v91
  %v362 = vpop.f32.mrf.mxu0
  %v363 = vadd.f32 %v74, %v362
  %v364 = vpop.f32.mrf.mxu0
  %v365 = vadd.f32 %v78, %v364
  %366 = vmatprep.mubr.f32.mxu0 0.0
  %367 = vmatmul.mubr.f32.gmra.mxu0 %v94
  %v368 = vpop.f32.mrf.mxu0
  %v369 = vadd.f32 %v74, %v368
  %v370 = vpop.f32.mrf.mxu0
  %v371 = vadd.f32 %v78, %v370
  %372 = vmatprep.mubr.f32.mxu0 0.0
  %373 = vmatmul.mubr.f32.gmra.mxu0 %v97
  %v374 = vpop.f32.mrf.mxu0
  %v375 = vadd.f32 %v74, %v374
  %v376 = vpop.f32.mrf.mxu0
  %v377 = vadd.f32 %v78, %v376
  %378 = vmatprep.mubr.f32.mxu0 0.0
  %379 = vmatmul.mubr.f32.gmra.mxu0 %v100
  %v380 = vpop.f32.mrf.mxu0
  %v381 = vadd.f32 %v74, %v380
  %v382 = vpop.f32.mrf.mxu0
  %v383 = vadd.f32 %v78, %v382
  %384 = vmatprep.mubr.f32.mxu0 0.0
  %385 = vmatmul.mubr.f32.gmra.mxu0 %v103
  %v386 = vpop.f32.mrf.mxu0
  %v387 = vadd.f32 %v74, %v386
  %v388 = vpop.f32.mrf.mxu0
  %v389 = vadd.f32 %v78, %v388
  %390 = vmatprep.mubr.f32.mxu0 0.0
  %391 = vmatmul.mubr.f32.gmra.mxu0 %v106
  %v392 = vpop.f32.mrf.mxu0
  %v393 = vadd.f32 %v74, %v392
  %v394 = vpop.f32.mrf.mxu0
  %v395 = vadd.f32 %v78, %v394
  %396 = vmatprep.mubr.f32.mxu0 0.0
  %397 = vmatmul.mubr.f32.gmra.mxu0 %v109
  %v398 = vpop.f32.mrf.mxu0
  %v399 = vadd.f32 %v74, %v398
  %v400 = vpop.f32.mrf.mxu0
  %v401 = vadd.f32 %v78, %v400
  %402 = vmatprep.mubr.f32.mxu0 0.0
  %403 = vmatmul.mubr.f32.gmra.mxu0 %v112
  %v404 = vpop.f32.mrf.mxu0
  %v405 = vadd.f32 %v74, %v404
  %v406 = vpop.f32.mrf.mxu0
  %v407 = vadd.f32 %v78, %v406
  %408 = vmatprep.mubr.f32.mxu0 0.0
  %409 = vmatmul.mubr.f32.gmra.mxu0 %v115
  %v410 = vpop.f32.mrf.mxu0
  %v411 = vadd.f32 %v74, %v410
  %v412 = vpop.f32.mrf.mxu0
  %v413 = vadd.f32 %v78, %v412
  %414 = vmatprep.mubr.f32.mxu0 0.0
  %415 = vmatmul.mubr.f32.gmra.mxu0 %v118
  %v416 = vpop.f32.mrf.mxu0
  %v417 = vadd.f32 %v74, %v416
  %v418 = vpop.f32.mrf.mxu0
  %v419 = vadd.f32 %v78, %v418
  %420 = vmatprep.mubr.f32.mxu0 0.0
  %421 = vmatmul.mubr.f32.gmra.mxu0 %v121
  %v422 = vpop.f32.mrf.mxu0
  %v423 = vadd.f32 %v74, %v422
  %v424 = vpop.f32.mrf.mxu0
  %v425 = vadd.f32 %v78, %v424
  %426 = vmatprep.mubr.f32.mxu0 0.0
  %427 = vmatmul.mubr.f32.gmra.mxu0 %v124
  %v428 = vpop.f32.mrf.mxu0
  %v429 = vadd.f32 %v74, %v428
  %v430 = vpop.f32.mrf.mxu0
  %v431 = vadd.f32 %v78, %v430
  %432 = vmatprep.mubr.f32.mxu0 0.0
  %433 = vmatmul.mubr.f32.gmra.mxu0 %v127
  %v434 = vpop.f32.mrf.mxu0
  %v435 = vadd.f32 %v74, %v434
  %v436 = vpop.f32.mrf.mxu0
  %v437 = vadd.f32 %v78, %v436
  %438 = vdwg.mxu0
  %439 = vst [vmem:[#allocation2] sm:$0xff] %v196
  %440 = vst [vmem:[#allocation2 + $0x8] sm:$0xff] %v198
  %441 = vst [vmem:[#allocation2 + $0x10] sm:$0xff] %v351
  %442 = vst [vmem:[#allocation2 + $0x18] sm:$0xff] %v353
  %443 = vst [vmem:[#allocation2 + $0x20] sm:$0xff] %v202
  %444 = vst [vmem:[#allocation2 + $0x28] sm:$0xff] %v204
  %445 = vst [vmem:[#allocation2 + $0x30] sm:$0xff] %v357
  %446 = vst [vmem:[#allocation2 + $0x38] sm:$0xff] %v359
  %447 = vst [vmem:[#allocation2 + $0x40] sm:$0xff] %v208
  %448 = vst [vmem:[#allocation2 + $0x48] sm:$0xff] %v210
  %449 = vst [vmem:[#allocation2 + $0x50] sm:$0xff] %v363
  %450 = vst [vmem:[#allocation2 + $0x58] sm:$0xff] %v365
  %451 = vst [vmem:[#allocation2 + $0x60] sm:$0xff] %v214
  %452 = vst [vmem:[#allocation2 + $0x68] sm:$0xff] %v216
  %453 = vst [vmem:[#allocation2 + $0x70] sm:$0xff] %v369
  %454 = vst [vmem:[#allocation2 + $0x78] sm:$0xff] %v371
  %455 = vst [vmem:[#allocation2 + $0x80] sm:$0xff] %v220
  %456 = vst [vmem:[#allocation2 + $0x88] sm:$0xff] %v222
  %457 = vst [vmem:[#allocation2 + $0x90] sm:$0xff] %v375
  %458 = vst [vmem:[#allocation2 + $0x98] sm:$0xff] %v377
  %459 = vst [vmem:[#allocation2 + $0xa0] sm:$0xff] %v226
  %460 = vst [vmem:[#allocation2 + $0xa8] sm:$0xff] %v228
  %461 = vst [vmem:[#allocation2 + $0xb0] sm:$0xff] %v381
  %462 = vst [vmem:[#allocation2 + $0xb8] sm:$0xff] %v383
  %463 = vst [vmem:[#allocation2 + $0xc0] sm:$0xff] %v232
  %464 = vst [vmem:[#allocation2 + $0xc8] sm:$0xff] %v234
  %465 = vst [vmem:[#allocation2 + $0xd0] sm:$0xff] %v387
  %466 = vst [vmem:[#allocation2 + $0xd8] sm:$0xff] %v389
  %467 = vst [vmem:[#allocation2 + $0xe0] sm:$0xff] %v238
  %468 = vst [vmem:[#allocation2 + $0xe8] sm:$0xff] %v240
  %469 = vst [vmem:[#allocation2 + $0xf0] sm:$0xff] %v393
  %470 = vst [vmem:[#allocation2 + $0xf8] sm:$0xff] %v395
  %471 = vst [vmem:[#allocation2 + $0x100] sm:$0xff] %v244
  %472 = vst [vmem:[#allocation2 + $0x108] sm:$0xff] %v246
  %473 = vst [vmem:[#allocation2 + $0x110] sm:$0xff] %v399
  %474 = vst [vmem:[#allocation2 + $0x118] sm:$0xff] %v401
  %475 = vst [vmem:[#allocation2 + $0x120] sm:$0xff] %v250
  %476 = vst [vmem:[#allocation2 + $0x128] sm:$0xff] %v252
  %477 = vst [vmem:[#allocation2 + $0x130] sm:$0xff] %v405
  %478 = vst [vmem:[#allocation2 + $0x138] sm:$0xff] %v407
  %479 = vst [vmem:[#allocation2 + $0x140] sm:$0xff] %v256
  %480 = vst [vmem:[#allocation2 + $0x148] sm:$0xff] %v258
  %481 = vst [vmem:[#allocation2 + $0x150] sm:$0xff] %v411
  %482 = vst [vmem:[#allocation2 + $0x158] sm:$0xff] %v413
  %483 = vst [vmem:[#allocation2 + $0x160] sm:$0xff] %v262
  %484 = vst [vmem:[#allocation2 + $0x168] sm:$0xff] %v264
  %485 = vst [vmem:[#allocation2 + $0x170] sm:$0xff] %v417
  %486 = vst [vmem:[#allocation2 + $0x178] sm:$0xff] %v419
  %487 = vst [vmem:[#allocation2 + $0x180] sm:$0xff] %v268
  %488 = vst [vmem:[#allocation2 + $0x188] sm:$0xff] %v270
  %489 = vst [vmem:[#allocation2 + $0x190] sm:$0xff] %v423
  %490 = vst [vmem:[#allocation2 + $0x198] sm:$0xff] %v425
  %491 = vst [vmem:[#allocation2 + $0x1a0] sm:$0xff] %v274
  %492 = vst [vmem:[#allocation2 + $0x1a8] sm:$0xff] %v276
  %493 = vst [vmem:[#allocation2 + $0x1b0] sm:$0xff] %v429
  %494 = vst [vmem:[#allocation2 + $0x1b8] sm:$0xff] %v431
  %495 = vst [vmem:[#allocation2 + $0x1c0] sm:$0xff] %v280
  %496 = vst [vmem:[#allocation2 + $0x1c8] sm:$0xff] %v282
  %497 = vst [vmem:[#allocation2 + $0x1d0] sm:$0xff] %v435
  %498 = vst [vmem:[#allocation2 + $0x1d8] sm:$0xff] %v437
  %v499 = vld [vmem:[%s5] sm:$0x1]
  %v500 = vld [vmem:[#allocation2] sm:$0xff]
  %v501 = vld [vmem:[#allocation2 + $0x8] sm:$0xff]
  %v502 = vld [vmem:[#allocation2 + $0x10] sm:$0xff]
  %v503 = vld [vmem:[#allocation2 + $0x18] sm:$0xff]
  %v504 = vld [vmem:[%s3] sm:$0xff]
  %v505 = vld [vmem:[%s3 + $0x8] sm:$0xff]
  %v506 = vld [vmem:[%s3 + $0x10] sm:$0xff]
  %v507 = vld [vmem:[%s3 + $0x18] sm:$0xff]
  %v508 = vld [vmem:[%s3 + $0x20] sm:$0xff]
  %v509 = vld [vmem:[%s3 + $0x28] sm:$0xff]
  %v510 = vld [vmem:[%s3 + $0x30] sm:$0xff]
  %v511 = vld [vmem:[%s3 + $0x38] sm:$0xff]
  %v512 = vld [vmem:[%s3 + $0x40] sm:$0xff]
  %v513 = vld [vmem:[%s3 + $0x48] sm:$0xff]
  %v514 = vld [vmem:[%s3 + $0x50] sm:$0xff]
  %v515 = vld [vmem:[%s3 + $0x58] sm:$0xff]
  %v516 = vld [vmem:[%s3 + $0x60] sm:$0xff]
  %v517 = vld [vmem:[%s3 + $0x68] sm:$0xff]
  %v518 = vld [vmem:[%s3 + $0x70] sm:$0xff]
  %v519 = vld [vmem:[%s3 + $0x78] sm:$0xff]
  %v520 = vld [vmem:[%s3 + $0x80] sm:$0xff]
  %v521 = vld [vmem:[%s3 + $0x88] sm:$0xff]
  %v522 = vld [vmem:[%s3 + $0x90] sm:$0xff]
  %v523 = vld [vmem:[%s3 + $0x98] sm:$0xff]
  %v524 = vld [vmem:[%s3 + $0xa0] sm:$0xff]
  %v525 = vld [vmem:[%s3 + $0xa8] sm:$0xff]
  %v526 = vld [vmem:[%s3 + $0xb0] sm:$0xff]
  %v527 = vld [vmem:[%s3 + $0xb8] sm:$0xff]
  %v528 = vld [vmem:[%s3 + $0xc0] sm:$0xff]
  %v529 = vld [vmem:[%s3 + $0xc8] sm:$0xff]
  %v530 = vld [vmem:[%s3 + $0xd0] sm:$0xff]
  %v531 = vld [vmem:[%s3 + $0xd8] sm:$0xff]
  %v532 = vld [vmem:[%s3 + $0xe0] sm:$0xff]
  %v533 = vld [vmem:[%s3 + $0xe8] sm:$0xff]
  %v534 = vld [vmem:[%s3 + $0xf0] sm:$0xff]
  %v535 = vld [vmem:[%s3 + $0xf8] sm:$0xff]
  %v568 = vunpack.c.l.b16 %v504
  %v569 = vunpack.c.h.b16 %v504
  %v570 = vunpack.c.l.b16 %v505
  %v571 = vunpack.c.h.b16 %v505
  %v572 = vunpack.c.l.b16 %v506
  %v573 = vunpack.c.h.b16 %v506
  %v574 = vunpack.c.l.b16 %v507
  %v575 = vunpack.c.h.b16 %v507
  %v576 = vunpack.c.l.b16 %v508
  %v577 = vunpack.c.h.b16 %v508
  %v578 = vunpack.c.l.b16 %v509
  %v579 = vunpack.c.h.b16 %v509
  %v580 = vunpack.c.l.b16 %v510
  %v581 = vunpack.c.h.b16 %v510
  %v582 = vunpack.c.l.b16 %v511
  %v583 = vunpack.c.h.b16 %v511
  %v584 = vunpack.c.l.b16 %v512
  %v585 = vunpack.c.h.b16 %v512
  %v586 = vunpack.c.l.b16 %v513
  %v587 = vunpack.c.h.b16 %v513
  %v588 = vunpack.c.l.b16 %v514
  %v589 = vunpack.c.h.b16 %v514
  %v590 = vunpack.c.l.b16 %v515
  %v591 = vunpack.c.h.b16 %v515
  %v592 = vunpack.c.l.b16 %v516
  %v593 = vunpack.c.h.b16 %v516
  %v594 = vunpack.c.l.b16 %v517
  %v595 = vunpack.c.h.b16 %v517
  %v596 = vunpack.c.l.b16 %v518
  %v597 = vunpack.c.h.b16 %v518
  %v598 = vunpack.c.l.b16 %v519
  %v599 = vunpack.c.h.b16 %v519
  %v600 = vunpack.c.l.b16 %v520
  %v601 = vunpack.c.h.b16 %v520
  %v602 = vunpack.c.l.b16 %v521
  %v603 = vunpack.c.h.b16 %v521
  %v604 = vunpack.c.l.b16 %v522
  %v605 = vunpack.c.h.b16 %v522
  %v606 = vunpack.c.l.b16 %v523
  %v607 = vunpack.c.h.b16 %v523
  %v608 = vunpack.c.l.b16 %v524
  %v609 = vunpack.c.h.b16 %v524
  %v610 = vunpack.c.l.b16 %v525
  %v611 = vunpack.c.h.b16 %v525
  %v612 = vunpack.c.l.b16 %v526
  %v613 = vunpack.c.h.b16 %v526
  %v614 = vunpack.c.l.b16 %v527
  %v615 = vunpack.c.h.b16 %v527
  %v616 = vunpack.c.l.b16 %v528
  %v617 = vunpack.c.h.b16 %v528
  %v618 = vunpack.c.l.b16 %v529
  %v619 = vunpack.c.h.b16 %v529
  %v620 = vunpack.c.l.b16 %v530
  %v621 = vunpack.c.h.b16 %v530
  %v622 = vunpack.c.l.b16 %v531
  %v623 = vunpack.c.h.b16 %v531
  %v624 = vunpack.c.l.b16 %v532
  %v625 = vunpack.c.h.b16 %v532
  %v626 = vunpack.c.l.b16 %v533
  %v627 = vunpack.c.h.b16 %v533
  %v628 = vunpack.c.l.b16 %v534
  %v629 = vunpack.c.h.b16 %v534
  %v630 = vunpack.c.l.b16 %v535
  %v631 = vunpack.c.h.b16 %v535
  %v632 = vpack.c.b16 %v572, %v568
  %v633 = vpack.c.b16 %v573, %v569
  %v634 = vpack.c.b16 %v574, %v570
  %v635 = vpack.c.b16 %v575, %v571
  %v636 = vpack.c.b16 %v580, %v576
  %v637 = vpack.c.b16 %v581, %v577
  %v638 = vpack.c.b16 %v582, %v578
  %v639 = vpack.c.b16 %v583, %v579
  %v640 = vpack.c.b16 %v588, %v584
  %v641 = vpack.c.b16 %v589, %v585
  %v642 = vpack.c.b16 %v590, %v586
  %v643 = vpack.c.b16 %v591, %v587
  %v644 = vpack.c.b16 %v596, %v592
  %v645 = vpack.c.b16 %v597, %v593
  %v646 = vpack.c.b16 %v598, %v594
  %v647 = vpack.c.b16 %v599, %v595
  %v648 = vpack.c.b16 %v604, %v600
  %v649 = vpack.c.b16 %v605, %v601
  %v650 = vpack.c.b16 %v606, %v602
  %v651 = vpack.c.b16 %v607, %v603
  %v652 = vpack.c.b16 %v612, %v608
  %v653 = vpack.c.b16 %v613, %v609
  %v654 = vpack.c.b16 %v614, %v610
  %v655 = vpack.c.b16 %v615, %v611
  %v656 = vpack.c.b16 %v620, %v616
  %v657 = vpack.c.b16 %v621, %v617
  %v658 = vpack.c.b16 %v622, %v618
  %v659 = vpack.c.b16 %v623, %v619
  %v660 = vpack.c.b16 %v628, %v624
  %v661 = vpack.c.b16 %v629, %v625
  %v662 = vpack.c.b16 %v630, %v626
  %v663 = vpack.c.b16 %v631, %v627
  %696 = vmatprep.subr.bf16.mxu0 %v661
  %697 = vmatpush1.bf16.msra.mxu0 %v660
  %698 = vmatprep.subr.bf16.mxu0 %v657
  %699 = vmatpush1.bf16.msra.mxu0 %v656
  %700 = vmatprep.subr.bf16.mxu0 %v653
  %701 = vmatpush1.bf16.msra.mxu0 %v652
  %702 = vmatprep.subr.bf16.mxu0 %v649
  %703 = vmatpush1.bf16.msra.mxu0 %v648
  %704 = vmatprep.subr.bf16.mxu0 %v645
  %705 = vmatpush1.bf16.msra.mxu0 %v644
  %706 = vmatprep.subr.bf16.mxu0 %v641
  %707 = vmatpush1.bf16.msra.mxu0 %v640
  %708 = vmatprep.subr.bf16.mxu0 %v637
  %709 = vmatpush1.bf16.msra.mxu0 %v636
  %710 = vmatprep.subr.bf16.mxu0 %v633
  %711 = vmatpush1.bf16.msra.mxu0 %v632
  %712 = vmatprep.subr.bf16.mxu0 0
  %713 = vmatpush2.bf16.msra.mxu0 0
  %714 = vmatprep.subr.bf16.mxu0 0
  %715 = vmatpush2.bf16.msra.mxu0 0
  %716 = vmatprep.subr.bf16.mxu0 0
  %717 = vmatpush2.bf16.msra.mxu0 0
  %718 = vmatprep.subr.bf16.mxu0 0
  %719 = vmatpush2.bf16.msra.mxu0 0
  %720 = vmatprep.subr.bf16.mxu0 0
  %721 = vmatpush2.bf16.msra.mxu0 0
  %722 = vmatprep.subr.bf16.mxu0 0
  %723 = vmatpush2.bf16.msra.mxu0 0
  %724 = vmatprep.subr.bf16.mxu0 0
  %725 = vmatpush2.bf16.msra.mxu0 0
  %726 = vmatprep.subr.bf16.mxu0 0
  %727 = vmatpush2.bf16.msra.mxu0 0
  %728 = vmatprep.mubr.bf16.mxu0 0
  %729 = vmatmul.mubr.bf16.gmra.mxu0 0
  %v730 = vpop.f32.mrf.mxu0
  %v731 = vadd.f32 0.0, %v730
  %v732 = vpop.f32.mrf.mxu0
  %v733 = vadd.f32 0.0, %v732
  %v734 = vpop.f32.mrf.mxu0
  %v735 = vpop.f32.mrf.mxu0
  %736 = vdwg.mxu0
  %737 = vmatprep.subr.bf16.mxu0 %v663
  %738 = vmatpush1.bf16.msra.mxu0 %v662
  %739 = vmatprep.subr.bf16.mxu0 %v659
  %740 = vmatpush1.bf16.msra.mxu0 %v658
  %741 = vmatprep.subr.bf16.mxu0 %v655
  %742 = vmatpush1.bf16.msra.mxu0 %v654
  %743 = vmatprep.subr.bf16.mxu0 %v651
  %744 = vmatpush1.bf16.msra.mxu0 %v650
  %745 = vmatprep.subr.bf16.mxu0 %v647
  %746 = vmatpush1.bf16.msra.mxu0 %v646
  %747 = vmatprep.subr.bf16.mxu0 %v643
  %748 = vmatpush1.bf16.msra.mxu0 %v642
  %749 = vmatprep.subr.bf16.mxu0 %v639
  %750 = vmatpush1.bf16.msra.mxu0 %v638
  %751 = vmatprep.subr.bf16.mxu0 %v635
  %752 = vmatpush1.bf16.msra.mxu0 %v634
  %753 = vmatprep.subr.bf16.mxu0 0
  %754 = vmatpush2.bf16.msra.mxu0 0
  %755 = vmatprep.subr.bf16.mxu0 0
  %756 = vmatpush2.bf16.msra.mxu0 0
  %757 = vmatprep.subr.bf16.mxu0 0
  %758 = vmatpush2.bf16.msra.mxu0 0
  %759 = vmatprep.subr.bf16.mxu0 0
  %760 = vmatpush2.bf16.msra.mxu0 0
  %761 = vmatprep.subr.bf16.mxu0 0
  %762 = vmatpush2.bf16.msra.mxu0 0
  %763 = vmatprep.subr.bf16.mxu0 0
  %764 = vmatpush2.bf16.msra.mxu0 0
  %765 = vmatprep.subr.bf16.mxu0 0
  %766 = vmatpush2.bf16.msra.mxu0 0
  %767 = vmatprep.subr.bf16.mxu0 0
  %768 = vmatpush2.bf16.msra.mxu0 0
  %769 = vmatprep.mubr.bf16.mxu0 0
  %770 = vmatmul.mubr.bf16.gmra.mxu0 0
  %v771 = vpop.f32.mrf.mxu0
  %v772 = vadd.f32 0.0, %v771
  %v773 = vpop.f32.mrf.mxu0
  %v774 = vadd.f32 0.0, %v773
  %v775 = vpop.f32.mrf.mxu0
  %v776 = vpop.f32.mrf.mxu0
  %777 = vdwg.mxu0
  %v778 = vld [vmem:[%s4] sm:$0xf]
  %v779 = vld [vmem:[%s4 + $0x4] sm:$0xf]
  %v780 = vld [vmem:[%s4 + $0x8] sm:$0xf]
  %v781 = vld [vmem:[%s4 + $0xc] sm:$0xf]
  %v782 = vld [vmem:[%s4 + $0x10] sm:$0xf]
  %v783 = vld [vmem:[%s4 + $0x14] sm:$0xf]
  %v784 = vld [vmem:[%s4 + $0x18] sm:$0xf]
  %v785 = vld [vmem:[%s4 + $0x1c] sm:$0xf]
  %v786 = vld [vmem:[%s4 + $0x20] sm:$0xf]
  %v787 = vld [vmem:[%s4 + $0x24] sm:$0xf]
  %v788 = vld [vmem:[%s4 + $0x28] sm:$0xf]
  %v789 = vld [vmem:[%s4 + $0x2c] sm:$0xf]
  %v790 = vld [vmem:[%s4 + $0x30] sm:$0xf]
  %v791 = vld [vmem:[%s4 + $0x34] sm:$0xf]
  %v792 = vld [vmem:[%s4 + $0x38] sm:$0xf]
  %v793 = vld [vmem:[%s4 + $0x3c] sm:$0xf]
  %v795 = vlaneseq
  %v796 = vshrl.u32 %v795, 7
  %v797 = vsub.s32 0, %v796
  %v798 = vrot.slane %v499, %v797
  %v816 = vunpack.c.l.b16 %v778
  %v817 = vunpack.c.l.b16 %v779
  %v818 = vunpack.c.l.b16 %v780
  %v819 = vunpack.c.l.b16 %v781
  %v820 = vunpack.c.l.b16 %v782
  %v821 = vunpack.c.l.b16 %v783
  %v822 = vunpack.c.l.b16 %v784
  %v823 = vunpack.c.l.b16 %v785
  %v824 = vunpack.c.l.b16 %v786
  %v825 = vunpack.c.l.b16 %v787
  %v826 = vunpack.c.l.b16 %v788
  %v827 = vunpack.c.l.b16 %v789
  %v828 = vunpack.c.l.b16 %v790
  %v829 = vunpack.c.l.b16 %v791
  %v830 = vunpack.c.l.b16 %v792
  %v831 = vunpack.c.l.b16 %v793
  %v832 = vpack.c.b16 %v817, %v816
  %v833 = vpack.c.b16 %v819, %v818
  %v834 = vpack.c.b16 %v821, %v820
  %v835 = vpack.c.b16 %v823, %v822
  %v836 = vpack.c.b16 %v825, %v824
  %v837 = vpack.c.b16 %v827, %v826
  %v838 = vpack.c.b16 %v829, %v828
  %v839 = vpack.c.b16 %v831, %v830
  %848 = vmatprep.subr.bf16.mxu0 0
  %849 = vmatpush1.bf16.msra.mxu0 %v839
  %850 = vmatprep.subr.bf16.mxu0 0
  %851 = vmatpush1.bf16.msra.mxu0 %v838
  %852 = vmatprep.subr.bf16.mxu0 0
  %853 = vmatpush1.bf16.msra.mxu0 %v837
  %854 = vmatprep.subr.bf16.mxu0 0
  %855 = vmatpush1.bf16.msra.mxu0 %v836
  %856 = vmatprep.subr.bf16.mxu0 0
  %857 = vmatpush1.bf16.msra.mxu0 %v835
  %858 = vmatprep.subr.bf16.mxu0 0
  %859 = vmatpush1.bf16.msra.mxu0 %v834
  %860 = vmatprep.subr.bf16.mxu0 0
  %861 = vmatpush1.bf16.msra.mxu0 %v833
  %862 = vmatprep.subr.bf16.mxu0 0
  %863 = vmatpush1.bf16.msra.mxu0 %v832
  %864 = vmatprep.subr.bf16.mxu0 0
  %865 = vmatpush2.bf16.msra.mxu0 0
  %866 = vmatprep.subr.bf16.mxu0 0
  %867 = vmatpush2.bf16.msra.mxu0 0
  %868 = vmatprep.subr.bf16.mxu0 0
  %869 = vmatpush2.bf16.msra.mxu0 0
  %870 = vmatprep.subr.bf16.mxu0 0
  %871 = vmatpush2.bf16.msra.mxu0 0
  %872 = vmatprep.subr.bf16.mxu0 0
  %873 = vmatpush2.bf16.msra.mxu0 0
  %874 = vmatprep.subr.bf16.mxu0 0
  %875 = vmatpush2.bf16.msra.mxu0 0
  %876 = vmatprep.subr.bf16.mxu0 0
  %877 = vmatpush2.bf16.msra.mxu0 0
  %878 = vmatprep.subr.bf16.mxu0 0
  %879 = vmatpush2.bf16.msra.mxu0 0
  %880 = vmatprep.mubr.bf16.mxu0 0
  %881 = vmatmul.mubr.bf16.gmra.mxu0 0
  %v882 = vpop.f32.mrf.mxu0
  %v883 = vadd.f32 %v798, %v882
  %v884 = vpop.f32.mrf.mxu0
  %v885 = vpop.f32.mrf.mxu0
  %v886 = vpop.f32.mrf.mxu0
  %887 = vdwg.mxu0
  %v888 = vadd.f32 %v500, %v731
  %v889 = vadd.f32 %v501, %v733
  %v890 = vadd.f32 %v502, %v772
  %v891 = vadd.f32 %v503, %v774
  %v892 = vxor.u32 %v888, 2147483648
  %v893 = vxor.u32 %v889, 2147483648
  %v894 = vxor.u32 %v890, 2147483648
  %v895 = vxor.u32 %v891, 2147483648
  %v896 = vmul.f32 %v892, 1.442695
  %v897 = vpow.pop %v896
  %v898 = vmul.f32 %v893, 1.442695
  %v899 = vpow.pop %v898
  %v900 = vmul.f32 %v894, 1.442695
  %v901 = vpow.pop %v900
  %v902 = vmul.f32 %v895, 1.442695
  %v903 = vpow.pop %v902
  %v904 = vadd.f32 %v897, 1.0
  %v905 = vadd.f32 %v899, 1.0
  %v906 = vadd.f32 %v901, 1.0
  %v907 = vadd.f32 %v903, 1.0
  %v908 = vrcp.pop %v904
  %v909 = vmul.f32 1.0, %v908
  %v910 = vrcp.pop %v905
  %v911 = vmul.f32 1.0, %v910
  %v912 = vrcp.pop %v906
  %v913 = vmul.f32 1.0, %v912
  %v914 = vrcp.pop %v907
  %v915 = vmul.f32 1.0, %v914
  %v916 = vmul.f32 %v913, %v883
  %v917 = vmul.f32 %v909, %v911
  %v918 = vadd.f32 %v916, %v917
  %v919 = vtanh.pop %v918
  %v920 = vmul.f32 %v915, %v919
  %921 = vst [vmem:[#allocation3] sm:$0xff] %v920
  %v922 = vpack.c.bf16 %v920, %v920
  %v923 = vpack.c.bf16 %v918, %v918
  %v924 = vld [vmem:[#allocation2 + $0x20] sm:$0xff]
  %v925 = vld [vmem:[#allocation2 + $0x28] sm:$0xff]
  %v926 = vld [vmem:[#allocation2 + $0x30] sm:$0xff]
  %v927 = vld [vmem:[#allocation2 + $0x38] sm:$0xff]
  %v928 = vld [vmem:[%s3] sm:$0xff]
  %v929 = vld [vmem:[%s3 + $0x8] sm:$0xff]
  %v930 = vld [vmem:[%s3 + $0x10] sm:$0xff]
  %v931 = vld [vmem:[%s3 + $0x18] sm:$0xff]
  %v932 = vld [vmem:[%s3 + $0x20] sm:$0xff]
  %v933 = vld [vmem:[%s3 + $0x28] sm:$0xff]
  %v934 = vld [vmem:[%s3 + $0x30] sm:$0xff]
  %v935 = vld [vmem:[%s3 + $0x38] sm:$0xff]
  %v936 = vld [vmem:[%s3 + $0x40] sm:$0xff]
  %v937 = vld [vmem:[%s3 + $0x48] sm:$0xff]
  %v938 = vld [vmem:[%s3 + $0x50] sm:$0xff]
  %v939 = vld [vmem:[%s3 + $0x58] sm:$0xff]
  %v940 = vld [vmem:[%s3 + $0x60] sm:$0xff]
  %v941 = vld [vmem:[%s3 + $0x68] sm:$0xff]
  %v942 = vld [vmem:[%s3 + $0x70] sm:$0xff]
  %v943 = vld [vmem:[%s3 + $0x78] sm:$0xff]
  %v944 = vld [vmem:[%s3 + $0x80] sm:$0xff]
  %v945 = vld [vmem:[%s3 + $0x88] sm:$0xff]
  %v946 = vld [vmem:[%s3 + $0x90] sm:$0xff]
  %v947 = vld [vmem:[%s3 + $0x98] sm:$0xff]
  %v948 = vld [vmem:[%s3 + $0xa0] sm:$0xff]
  %v949 = vld [vmem:[%s3 + $0xa8] sm:$0xff]
  %v950 = vld [vmem:[%s3 + $0xb0] sm:$0xff]
  %v951 = vld [vmem:[%s3 + $0xb8] sm:$0xff]
  %v952 = vld [vmem:[%s3 + $0xc0] sm:$0xff]
  %v953 = vld [vmem:[%s3 + $0xc8] sm:$0xff]
  %v954 = vld [vmem:[%s3 + $0xd0] sm:$0xff]
  %v955 = vld [vmem:[%s3 + $0xd8] sm:$0xff]
  %v956 = vld [vmem:[%s3 + $0xe0] sm:$0xff]
  %v957 = vld [vmem:[%s3 + $0xe8] sm:$0xff]
  %v958 = vld [vmem:[%s3 + $0xf0] sm:$0xff]
  %v959 = vld [vmem:[%s3 + $0xf8] sm:$0xff]
  %v992 = vunpack.c.l.b16 %v928
  %v993 = vunpack.c.h.b16 %v928
  %v994 = vunpack.c.l.b16 %v929
  %v995 = vunpack.c.h.b16 %v929
  %v996 = vunpack.c.l.b16 %v930
  %v997 = vunpack.c.h.b16 %v930
  %v998 = vunpack.c.l.b16 %v931
  %v999 = vunpack.c.h.b16 %v931
  %v1000 = vunpack.c.l.b16 %v932
  %v1001 = vunpack.c.h.b16 %v932
  %v1002 = vunpack.c.l.b16 %v933
  %v1003 = vunpack.c.h.b16 %v933
  %v1004 = vunpack.c.l.b16 %v934
  %v1005 = vunpack.c.h.b16 %v934
  %v1006 = vunpack.c.l.b16 %v935
  %v1007 = vunpack.c.h.b16 %v935
  %v1008 = vunpack.c.l.b16 %v936
  %v1009 = vunpack.c.h.b16 %v936
  %v1010 = vunpack.c.l.b16 %v937
  %v1011 = vunpack.c.h.b16 %v937
  %v1012 = vunpack.c.l.b16 %v938
  %v1013 = vunpack.c.h.b16 %v938
  %v1014 = vunpack.c.l.b16 %v939
  %v1015 = vunpack.c.h.b16 %v939
  %v1016 = vunpack.c.l.b16 %v940
  %v1017 = vunpack.c.h.b16 %v940
  %v1018 = vunpack.c.l.b16 %v941
  %v1019 = vunpack.c.h.b16 %v941
  %v1020 = vunpack.c.l.b16 %v942
  %v1021 = vunpack.c.h.b16 %v942
  %v1022 = vunpack.c.l.b16 %v943
  %v1023 = vunpack.c.h.b16 %v943
  %v1024 = vunpack.c.l.b16 %v944
  %v1025 = vunpack.c.h.b16 %v944
  %v1026 = vunpack.c.l.b16 %v945
  %v1027 = vunpack.c.h.b16 %v945
  %v1028 = vunpack.c.l.b16 %v946
  %v1029 = vunpack.c.h.b16 %v946
  %v1030 = vunpack.c.l.b16 %v947
  %v1031 = vunpack.c.h.b16 %v947
  %v1032 = vunpack.c.l.b16 %v948
  %v1033 = vunpack.c.h.b16 %v948
  %v1034 = vunpack.c.l.b16 %v949
  %v1035 = vunpack.c.h.b16 %v949
  %v1036 = vunpack.c.l.b16 %v950
  %v1037 = vunpack.c.h.b16 %v950
  %v1038 = vunpack.c.l.b16 %v951
  %v1039 = vunpack.c.h.b16 %v951
  %v1040 = vunpack.c.l.b16 %v952
  %v1041 = vunpack.c.h.b16 %v952
  %v1042 = vunpack.c.l.b16 %v953
  %v1043 = vunpack.c.h.b16 %v953
  %v1044 = vunpack.c.l.b16 %v954
  %v1045 = vunpack.c.h.b16 %v954
  %v1046 = vunpack.c.l.b16 %v955
  %v1047 = vunpack.c.h.b16 %v955
  %v1048 = vunpack.c.l.b16 %v956
  %v1049 = vunpack.c.h.b16 %v956
  %v1050 = vunpack.c.l.b16 %v957
  %v1051 = vunpack.c.h.b16 %v957
  %v1052 = vunpack.c.l.b16 %v958
  %v1053 = vunpack.c.h.b16 %v958
  %v1054 = vunpack.c.l.b16 %v959
  %v1055 = vunpack.c.h.b16 %v959
  %v1056 = vpack.c.b16 %v996, %v992
  %v1057 = vpack.c.b16 %v997, %v993
  %v1058 = vpack.c.b16 %v998, %v994
  %v1059 = vpack.c.b16 %v999, %v995
  %v1060 = vpack.c.b16 %v1004, %v1000
  %v1061 = vpack.c.b16 %v1005, %v1001
  %v1062 = vpack.c.b16 %v1006, %v1002
  %v1063 = vpack.c.b16 %v1007, %v1003
  %v1064 = vpack.c.b16 %v1012, %v1008
  %v1065 = vpack.c.b16 %v1013, %v1009
  %v1066 = vpack.c.b16 %v1014, %v1010
  %v1067 = vpack.c.b16 %v1015, %v1011
  %v1068 = vpack.c.b16 %v1020, %v1016
  %v1069 = vpack.c.b16 %v1021, %v1017
  %v1070 = vpack.c.b16 %v1022, %v1018
  %v1071 = vpack.c.b16 %v1023, %v1019
  %v1072 = vpack.c.b16 %v1028, %v1024
  %v1073 = vpack.c.b16 %v1029, %v1025
  %v1074 = vpack.c.b16 %v1030, %v1026
  %v1075 = vpack.c.b16 %v1031, %v1027
  %v1076 = vpack.c.b16 %v1036, %v1032
  %v1077 = vpack.c.b16 %v1037, %v1033
  %v1078 = vpack.c.b16 %v1038, %v1034
  %v1079 = vpack.c.b16 %v1039, %v1035
  %v1080 = vpack.c.b16 %v1044, %v1040
  %v1081 = vpack.c.b16 %v1045, %v1041
  %v1082 = vpack.c.b16 %v1046, %v1042
  %v1083 = vpack.c.b16 %v1047, %v1043
  %v1084 = vpack.c.b16 %v1052, %v1048
  %v1085 = vpack.c.b16 %v1053, %v1049
  %v1086 = vpack.c.b16 %v1054, %v1050
  %v1087 = vpack.c.b16 %v1055, %v1051
  %1120 = vmatprep.subr.bf16.mxu0 %v1085
  %1121 = vmatpush1.bf16.msra.mxu0 %v1084
  %1122 = vmatprep.subr.bf16.mxu0 %v1081
  %1123 = vmatpush1.bf16.msra.mxu0 %v1080
  %1124 = vmatprep.subr.bf16.mxu0 %v1077
  %1125 = vmatpush1.bf16.msra.mxu0 %v1076
  %1126 = vmatprep.subr.bf16.mxu0 %v1073
  %1127 = vmatpush1.bf16.msra.mxu0 %v1072
  %1128 = vmatprep.subr.bf16.mxu0 %v1069
  %1129 = vmatpush1.bf16.msra.mxu0 %v1068
  %1130 = vmatprep.subr.bf16.mxu0 %v1065
  %1131 = vmatpush1.bf16.msra.mxu0 %v1064
  %1132 = vmatprep.subr.bf16.mxu0 %v1061
  %1133 = vmatpush1.bf16.msra.mxu0 %v1060
  %1134 = vmatprep.subr.bf16.mxu0 %v1057
  %1135 = vmatpush1.bf16.msra.mxu0 %v1056
  %1136 = vmatprep.subr.bf16.mxu0 0
  %1137 = vmatpush2.bf16.msra.mxu0 0
  %1138 = vmatprep.subr.bf16.mxu0 0
  %1139 = vmatpush2.bf16.msra.mxu0 0
  %1140 = vmatprep.subr.bf16.mxu0 0
  %1141 = vmatpush2.bf16.msra.mxu0 0
  %1142 = vmatprep.subr.bf16.mxu0 0
  %1143 = vmatpush2.bf16.msra.mxu0 0
  %1144 = vmatprep.subr.bf16.mxu0 0
  %1145 = vmatpush2.bf16.msra.mxu0 0
  %1146 = vmatprep.subr.bf16.mxu0 0
  %1147 = vmatpush2.bf16.msra.mxu0 0
  %1148 = vmatprep.subr.bf16.mxu0 0
  %1149 = vmatpush2.bf16.msra.mxu0 0
  %1150 = vmatprep.subr.bf16.mxu0 0
  %1151 = vmatpush2.bf16.msra.mxu0 0
  %1152 = vmatprep.mubr.bf16.mxu0 0
  %1153 = vmatmul.mubr.bf16.gmra.mxu0 %v922
  %v1154 = vpop.f32.mrf.mxu0
  %v1155 = vadd.f32 0.0, %v1154
  %v1156 = vpop.f32.mrf.mxu0
  %v1157 = vadd.f32 0.0, %v1156
  %v1158 = vpop.f32.mrf.mxu0
  %v1159 = vpop.f32.mrf.mxu0
  %1160 = vdwg.mxu0
  %1161 = vmatprep.subr.bf16.mxu0 %v1087
  %1162 = vmatpush1.bf16.msra.mxu0 %v1086
  %1163 = vmatprep.subr.bf16.mxu0 %v1083
  %1164 = vmatpush1.bf16.msra.mxu0 %v1082
  %1165 = vmatprep.subr.bf16.mxu0 %v1079
  %1166 = vmatpush1.bf16.msra.mxu0 %v1078
  %1167 = vmatprep.subr.bf16.mxu0 %v1075
  %1168 = vmatpush1.bf16.msra.mxu0 %v1074
  %1169 = vmatprep.subr.bf16.mxu0 %v1071
  %1170 = vmatpush1.bf16.msra.mxu0 %v1070
  %1171 = vmatprep.subr.bf16.mxu0 %v1067
  %1172 = vmatpush1.bf16.msra.mxu0 %v1066
  %1173 = vmatprep.subr.bf16.mxu0 %v1063
  %1174 = vmatpush1.bf16.msra.mxu0 %v1062
  %1175 = vmatprep.subr.bf16.mxu0 %v1059
  %1176 = vmatpush1.bf16.msra.mxu0 %v1058
  %1177 = vmatprep.subr.bf16.mxu0 0
  %1178 = vmatpush2.bf16.msra.mxu0 0
  %1179 = vmatprep.subr.bf16.mxu0 0
  %1180 = vmatpush2.bf16.msra.mxu0 0
  %1181 = vmatprep.subr.bf16.mxu0 0
  %1182 = vmatpush2.bf16.msra.mxu0 0
  %1183 = vmatprep.subr.bf16.mxu0 0
  %1184 = vmatpush2.bf16.msra.mxu0 0
  %1185 = vmatprep.subr.bf16.mxu0 0
  %1186 = vmatpush2.bf16.msra.mxu0 0
  %1187 = vmatprep.subr.bf16.mxu0 0
  %1188 = vmatpush2.bf16.msra.mxu0 0
  %1189 = vmatprep.subr.bf16.mxu0 0
  %1190 = vmatpush2.bf16.msra.mxu0 0
  %1191 = vmatprep.subr.bf16.mxu0 0
  %1192 = vmatpush2.bf16.msra.mxu0 0
  %1193 = vmatprep.mubr.bf16.mxu0 0
  %1194 = vmatmul.mubr.bf16.gmra.mxu0 %v922
  %v1195 = vpop.f32.mrf.mxu0
  %v1196 = vadd.f32 0.0, %v1195
  %v1197 = vpop.f32.mrf.mxu0
  %v1198 = vadd.f32 0.0, %v1197
  %v1199 = vpop.f32.mrf.mxu0
  %v1200 = vpop.f32.mrf.mxu0
  %1201 = vdwg.mxu0
  %v1202 = vld [vmem:[%s4] sm:$0xf]
  %v1203 = vld [vmem:[%s4 + $0x4] sm:$0xf]
  %v1204 = vld [vmem:[%s4 + $0x8] sm:$0xf]
  %v1205 = vld [vmem:[%s4 + $0xc] sm:$0xf]
  %v1206 = vld [vmem:[%s4 + $0x10] sm:$0xf]
  %v1207 = vld [vmem:[%s4 + $0x14] sm:$0xf]
  %v1208 = vld [vmem:[%s4 + $0x18] sm:$0xf]
  %v1209 = vld [vmem:[%s4 + $0x1c] sm:$0xf]
  %v1210 = vld [vmem:[%s4 + $0x20] sm:$0xf]
  %v1211 = vld [vmem:[%s4 + $0x24] sm:$0xf]
  %v1212 = vld [vmem:[%s4 + $0x28] sm:$0xf]
  %v1213 = vld [vmem:[%s4 + $0x2c] sm:$0xf]
  %v1214 = vld [vmem:[%s4 + $0x30] sm:$0xf]
  %v1215 = vld [vmem:[%s4 + $0x34] sm:$0xf]
  %v1216 = vld [vmem:[%s4 + $0x38] sm:$0xf]
  %v1217 = vld [vmem:[%s4 + $0x3c] sm:$0xf]
  %v1234 = vunpack.c.l.b16 %v1202
  %v1235 = vunpack.c.l.b16 %v1203
  %v1236 = vunpack.c.l.b16 %v1204
  %v1237 = vunpack.c.l.b16 %v1205
  %v1238 = vunpack.c.l.b16 %v1206
  %v1239 = vunpack.c.l.b16 %v1207
  %v1240 = vunpack.c.l.b16 %v1208
  %v1241 = vunpack.c.l.b16 %v1209
  %v1242 = vunpack.c.l.b16 %v1210
  %v1243 = vunpack.c.l.b16 %v1211
  %v1244 = vunpack.c.l.b16 %v1212
  %v1245 = vunpack.c.l.b16 %v1213
  %v1246 = vunpack.c.l.b16 %v1214
  %v1247 = vunpack.c.l.b16 %v1215
  %v1248 = vunpack.c.l.b16 %v1216
  %v1249 = vunpack.c.l.b16 %v1217
  %v1250 = vpack.c.b16 %v1235, %v1234
  %v1251 = vpack.c.b16 %v1237, %v1236
  %v1252 = vpack.c.b16 %v1239, %v1238
  %v1253 = vpack.c.b16 %v1241, %v1240
  %v1254 = vpack.c.b16 %v1243, %v1242
  %v1255 = vpack.c.b16 %v1245, %v1244
  %v1256 = vpack.c.b16 %v1247, %v1246
  %v1257 = vpack.c.b16 %v1249, %v1248
  %1266 = vmatprep.subr.bf16.mxu0 0
  %1267 = vmatpush1.bf16.msra.mxu0 %v1257
  %1268 = vmatprep.subr.bf16.mxu0 0
  %1269 = vmatpush1.bf16.msra.mxu0 %v1256
  %1270 = vmatprep.subr.bf16.mxu0 0
  %1271 = vmatpush1.bf16.msra.mxu0 %v1255
  %1272 = vmatprep.subr.bf16.mxu0 0
  %1273 = vmatpush1.bf16.msra.mxu0 %v1254
  %1274 = vmatprep.subr.bf16.mxu0 0
  %1275 = vmatpush1.bf16.msra.mxu0 %v1253
  %1276 = vmatprep.subr.bf16.mxu0 0
  %1277 = vmatpush1.bf16.msra.mxu0 %v1252
  %1278 = vmatprep.subr.bf16.mxu0 0
  %1279 = vmatpush1.bf16.msra.mxu0 %v1251
  %1280 = vmatprep.subr.bf16.mxu0 0
  %1281 = vmatpush1.bf16.msra.mxu0 %v1250
  %1282 = vmatprep.subr.bf16.mxu0 0
  %1283 = vmatpush2.bf16.msra.mxu0 0
  %1284 = vmatprep.subr.bf16.mxu0 0
  %1285 = vmatpush2.bf16.msra.mxu0 0
  %1286 = vmatprep.subr.bf16.mxu0 0
  %1287 = vmatpush2.bf16.msra.mxu0 0
  %1288 = vmatprep.subr.bf16.mxu0 0
  %1289 = vmatpush2.bf16.msra.mxu0 0
  %1290 = vmatprep.subr.bf16.mxu0 0
  %1291 = vmatpush2.bf16.msra.mxu0 0
  %1292 = vmatprep.subr.bf16.mxu0 0
  %1293 = vmatpush2.bf16.msra.mxu0 0
  %1294 = vmatprep.subr.bf16.mxu0 0
  %1295 = vmatpush2.bf16.msra.mxu0 0
  %1296 = vmatprep.subr.bf16.mxu0 0
  %1297 = vmatpush2.bf16.msra.mxu0 0
  %1298 = vmatprep.mubr.bf16.mxu0 0
  %1299 = vmatmul.mubr.bf16.gmra.mxu0 %v923
  %v1300 = vpop.f32.mrf.mxu0
  %v1301 = vadd.f32 %v798, %v1300
  %v1302 = vpop.f32.mrf.mxu0
  %v1303 = vpop.f32.mrf.mxu0
  %v1304 = vpop.f32.mrf.mxu0
  %1305 = vdwg.mxu0
  %v1306 = vadd.f32 %v924, %v1155
  %v1307 = vadd.f32 %v925, %v1157
  %v1308 = vadd.f32 %v926, %v1196
  %v1309 = vadd.f32 %v927, %v1198
  %v1310 = vxor.u32 %v1306, 2147483648
  %v1311 = vxor.u32 %v1307, 2147483648
  %v1312 = vxor.u32 %v1308, 2147483648
  %v1313 = vxor.u32 %v1309, 2147483648
  %v1314 = vmul.f32 %v1310, 1.442695
  %v1315 = vpow.pop %v1314
  %v1316 = vmul.f32 %v1311, 1.442695
  %v1317 = vpow.pop %v1316
  %v1318 = vmul.f32 %v1312, 1.442695
  %v1319 = vpow.pop %v1318
  %v1320 = vmul.f32 %v1313, 1.442695
  %v1321 = vpow.pop %v1320
  %v1322 = vadd.f32 %v1315, 1.0
  %v1323 = vadd.f32 %v1317, 1.0
  %v1324 = vadd.f32 %v1319, 1.0
  %v1325 = vadd.f32 %v1321, 1.0
  %v1326 = vrcp.pop %v1322
  %v1327 = vmul.f32 1.0, %v1326
  %v1328 = vrcp.pop %v1323
  %v1329 = vmul.f32 1.0, %v1328
  %v1330 = vrcp.pop %v1324
  %v1331 = vmul.f32 1.0, %v1330
  %v1332 = vrcp.pop %v1325
  %v1333 = vmul.f32 1.0, %v1332
  %v1334 = vmul.f32 %v1331, %v1301
  %v1335 = vmul.f32 %v1327, %v1329
  %v1336 = vadd.f32 %v1334, %v1335
  %v1337 = vtanh.pop %v1336
  %v1338 = vmul.f32 %v1333, %v1337
  %1339 = vst [vmem:[#allocation3 + $0x8] sm:$0xff] %v1338
  %v1340 = vpack.c.bf16 %v1338, %v1338
  %v1341 = vpack.c.bf16 %v1336, %v1336
  %v1342 = vld [vmem:[#allocation2 + $0x40] sm:$0xff]
  %v1343 = vld [vmem:[#allocation2 + $0x48] sm:$0xff]
  %v1344 = vld [vmem:[#allocation2 + $0x50] sm:$0xff]
  %v1345 = vld [vmem:[#allocation2 + $0x58] sm:$0xff]
  %v1346 = vld [vmem:[%s3] sm:$0xff]
  %v1347 = vld [vmem:[%s3 + $0x8] sm:$0xff]
  %v1348 = vld [vmem:[%s3 + $0x10] sm:$0xff]
  %v1349 = vld [vmem:[%s3 + $0x18] sm:$0xff]
  %v1350 = vld [vmem:[%s3 + $0x20] sm:$0xff]
  %v1351 = vld [vmem:[%s3 + $0x28] sm:$0xff]
  %v1352 = vld [vmem:[%s3 + $0x30] sm:$0xff]
  %v1353 = vld [vmem:[%s3 + $0x38] sm:$0xff]
  %v1354 = vld [vmem:[%s3 + $0x40] sm:$0xff]
  %v1355 = vld [vmem:[%s3 + $0x48] sm:$0xff]
  %v1356 = vld [vmem:[%s3 + $0x50] sm:$0xff]
  %v1357 = vld [vmem:[%s3 + $0x58] sm:$0xff]
  %v1358 = vld [vmem:[%s3 + $0x60] sm:$0xff]
  %v1359 = vld [vmem:[%s3 + $0x68] sm:$0xff]
  %v1360 = vld [vmem:[%s3 + $0x70] sm:$0xff]
  %v1361 = vld [vmem:[%s3 + $0x78] sm:$0xff]
  %v1362 = vld [vmem:[%s3 + $0x80] sm:$0xff]
  %v1363 = vld [vmem:[%s3 + $0x88] sm:$0xff]
  %v1364 = vld [vmem:[%s3 + $0x90] sm:$0xff]
  %v1365 = vld [vmem:[%s3 + $0x98] sm:$0xff]
  %v1366 = vld [vmem:[%s3 + $0xa0] sm:$0xff]
  %v1367 = vld [vmem:[%s3 + $0xa8] sm:$0xff]
  %v1368 = vld [vmem:[%s3 + $0xb0] sm:$0xff]
  %v1369 = vld [vmem:[%s3 + $0xb8] sm:$0xff]
  %v1370 = vld [vmem:[%s3 + $0xc0] sm:$0xff]
  %v1371 = vld [vmem:[%s3 + $0xc8] sm:$0xff]
  %v1372 = vld [vmem:[%s3 + $0xd0] sm:$0xff]
  %v1373 = vld [vmem:[%s3 + $0xd8] sm:$0xff]
  %v1374 = vld [vmem:[%s3 + $0xe0] sm:$0xff]
  %v1375 = vld [vmem:[%s3 + $0xe8] sm:$0xff]
  %v1376 = vld [vmem:[%s3 + $0xf0] sm:$0xff]
  %v1377 = vld [vmem:[%s3 + $0xf8] sm:$0xff]
  %v1410 = vunpack.c.l.b16 %v1346
  %v1411 = vunpack.c.h.b16 %v1346
  %v1412 = vunpack.c.l.b16 %v1347
  %v1413 = vunpack.c.h.b16 %v1347
  %v1414 = vunpack.c.l.b16 %v1348
  %v1415 = vunpack.c.h.b16 %v1348
  %v1416 = vunpack.c.l.b16 %v1349
  %v1417 = vunpack.c.h.b16 %v1349
  %v1418 = vunpack.c.l.b16 %v1350
  %v1419 = vunpack.c.h.b16 %v1350
  %v1420 = vunpack.c.l.b16 %v1351
  %v1421 = vunpack.c.h.b16 %v1351
  %v1422 = vunpack.c.l.b16 %v1352
  %v1423 = vunpack.c.h.b16 %v1352
  %v1424 = vunpack.c.l.b16 %v1353
  %v1425 = vunpack.c.h.b16 %v1353
  %v1426 = vunpack.c.l.b16 %v1354
  %v1427 = vunpack.c.h.b16 %v1354
  %v1428 = vunpack.c.l.b16 %v1355
  %v1429 = vunpack.c.h.b16 %v1355
  %v1430 = vunpack.c.l.b16 %v1356
  %v1431 = vunpack.c.h.b16 %v1356
  %v1432 = vunpack.c.l.b16 %v1357
  %v1433 = vunpack.c.h.b16 %v1357
  %v1434 = vunpack.c.l.b16 %v1358
  %v1435 = vunpack.c.h.b16 %v1358
  %v1436 = vunpack.c.l.b16 %v1359
  %v1437 = vunpack.c.h.b16 %v1359
  %v1438 = vunpack.c.l.b16 %v1360
  %v1439 = vunpack.c.h.b16 %v1360
  %v1440 = vunpack.c.l.b16 %v1361
  %v1441 = vunpack.c.h.b16 %v1361
  %v1442 = vunpack.c.l.b16 %v1362
  %v1443 = vunpack.c.h.b16 %v1362
  %v1444 = vunpack.c.l.b16 %v1363
  %v1445 = vunpack.c.h.b16 %v1363
  %v1446 = vunpack.c.l.b16 %v1364
  %v1447 = vunpack.c.h.b16 %v1364
  %v1448 = vunpack.c.l.b16 %v1365
  %v1449 = vunpack.c.h.b16 %v1365
  %v1450 = vunpack.c.l.b16 %v1366
  %v1451 = vunpack.c.h.b16 %v1366
  %v1452 = vunpack.c.l.b16 %v1367
  %v1453 = vunpack.c.h.b16 %v1367
  %v1454 = vunpack.c.l.b16 %v1368
  %v1455 = vunpack.c.h.b16 %v1368
  %v1456 = vunpack.c.l.b16 %v1369
  %v1457 = vunpack.c.h.b16 %v1369
  %v1458 = vunpack.c.l.b16 %v1370
  %v1459 = vunpack.c.h.b16 %v1370
  %v1460 = vunpack.c.l.b16 %v1371
  %v1461 = vunpack.c.h.b16 %v1371
  %v1462 = vunpack.c.l.b16 %v1372
  %v1463 = vunpack.c.h.b16 %v1372
  %v1464 = vunpack.c.l.b16 %v1373
  %v1465 = vunpack.c.h.b16 %v1373
  %v1466 = vunpack.c.l.b16 %v1374
  %v1467 = vunpack.c.h.b16 %v1374
  %v1468 = vunpack.c.l.b16 %v1375
  %v1469 = vunpack.c.h.b16 %v1375
  %v1470 = vunpack.c.l.b16 %v1376
  %v1471 = vunpack.c.h.b16 %v1376
  %v1472 = vunpack.c.l.b16 %v1377
  %v1473 = vunpack.c.h.b16 %v1377
  %v1474 = vpack.c.b16 %v1414, %v1410
  %v1475 = vpack.c.b16 %v1415, %v1411
  %v1476 = vpack.c.b16 %v1416, %v1412
  %v1477 = vpack.c.b16 %v1417, %v1413
  %v1478 = vpack.c.b16 %v1422, %v1418
  %v1479 = vpack.c.b16 %v1423, %v1419
  %v1480 = vpack.c.b16 %v1424, %v1420
  %v1481 = vpack.c.b16 %v1425, %v1421
  %v1482 = vpack.c.b16 %v1430, %v1426
  %v1483 = vpack.c.b16 %v1431, %v1427
  %v1484 = vpack.c.b16 %v1432, %v1428
  %v1485 = vpack.c.b16 %v1433, %v1429
  %v1486 = vpack.c.b16 %v1438, %v1434
  %v1487 = vpack.c.b16 %v1439, %v1435
  %v1488 = vpack.c.b16 %v1440, %v1436
  %v1489 = vpack.c.b16 %v1441, %v1437
  %v1490 = vpack.c.b16 %v1446, %v1442
  %v1491 = vpack.c.b16 %v1447, %v1443
  %v1492 = vpack.c.b16 %v1448, %v1444
  %v1493 = vpack.c.b16 %v1449, %v1445
  %v1494 = vpack.c.b16 %v1454, %v1450
  %v1495 = vpack.c.b16 %v1455, %v1451
  %v1496 = vpack.c.b16 %v1456, %v1452
  %v1497 = vpack.c.b16 %v1457, %v1453
  %v1498 = vpack.c.b16 %v1462, %v1458
  %v1499 = vpack.c.b16 %v1463, %v1459
  %v1500 = vpack.c.b16 %v1464, %v1460
  %v1501 = vpack.c.b16 %v1465, %v1461
  %v1502 = vpack.c.b16 %v1470, %v1466
  %v1503 = vpack.c.b16 %v1471, %v1467
  %v1504 = vpack.c.b16 %v1472, %v1468
  %v1505 = vpack.c.b16 %v1473, %v1469
  %1538 = vmatprep.subr.bf16.mxu0 %v1503
  %1539 = vmatpush1.bf16.msra.mxu0 %v1502
  %1540 = vmatprep.subr.bf16.mxu0 %v1499
  %1541 = vmatpush1.bf16.msra.mxu0 %v1498
  %1542 = vmatprep.subr.bf16.mxu0 %v1495
  %1543 = vmatpush1.bf16.msra.mxu0 %v1494
  %1544 = vmatprep.subr.bf16.mxu0 %v1491
  %1545 = vmatpush1.bf16.msra.mxu0 %v1490
  %1546 = vmatprep.subr.bf16.mxu0 %v1487
  %1547 = vmatpush1.bf16.msra.mxu0 %v1486
  %1548 = vmatprep.subr.bf16.mxu0 %v1483
  %1549 = vmatpush1.bf16.msra.mxu0 %v1482
  %1550 = vmatprep.subr.bf16.mxu0 %v1479
  %1551 = vmatpush1.bf16.msra.mxu0 %v1478
  %1552 = vmatprep.subr.bf16.mxu0 %v1475
  %1553 = vmatpush1.bf16.msra.mxu0 %v1474
  %1554 = vmatprep.subr.bf16.mxu0 0
  %1555 = vmatpush2.bf16.msra.mxu0 0
  %1556 = vmatprep.subr.bf16.mxu0 0
  %1557 = vmatpush2.bf16.msra.mxu0 0
  %1558 = vmatprep.subr.bf16.mxu0 0
  %1559 = vmatpush2.bf16.msra.mxu0 0
  %1560 = vmatprep.subr.bf16.mxu0 0
  %1561 = vmatpush2.bf16.msra.mxu0 0
  %1562 = vmatprep.subr.bf16.mxu0 0
  %1563 = vmatpush2.bf16.msra.mxu0 0
  %1564 = vmatprep.subr.bf16.mxu0 0
  %1565 = vmatpush2.bf16.msra.mxu0 0
  %1566 = vmatprep.subr.bf16.mxu0 0
  %1567 = vmatpush2.bf16.msra.mxu0 0
  %1568 = vmatprep.subr.bf16.mxu0 0
  %1569 = vmatpush2.bf16.msra.mxu0 0
  %1570 = vmatprep.mubr.bf16.mxu0 0
  %1571 = vmatmul.mubr.bf16.gmra.mxu0 %v1340
  %v1572 = vpop.f32.mrf.mxu0
  %v1573 = vadd.f32 0.0, %v1572
  %v1574 = vpop.f32.mrf.mxu0
  %v1575 = vadd.f32 0.0, %v1574
  %v1576 = vpop.f32.mrf.mxu0
  %v1577 = vpop.f32.mrf.mxu0
  %1578 = vdwg.mxu0
  %1579 = vmatprep.subr.bf16.mxu0 %v1505
  %1580 = vmatpush1.bf16.msra.mxu0 %v1504
  %1581 = vmatprep.subr.bf16.mxu0 %v1501
  %1582 = vmatpush1.bf16.msra.mxu0 %v1500
  %1583 = vmatprep.subr.bf16.mxu0 %v1497
  %1584 = vmatpush1.bf16.msra.mxu0 %v1496
  %1585 = vmatprep.subr.bf16.mxu0 %v1493
  %1586 = vmatpush1.bf16.msra.mxu0 %v1492
  %1587 = vmatprep.subr.bf16.mxu0 %v1489
  %1588 = vmatpush1.bf16.msra.mxu0 %v1488
  %1589 = vmatprep.subr.bf16.mxu0 %v1485
  %1590 = vmatpush1.bf16.msra.mxu0 %v1484
  %1591 = vmatprep.subr.bf16.mxu0 %v1481
  %1592 = vmatpush1.bf16.msra.mxu0 %v1480
  %1593 = vmatprep.subr.bf16.mxu0 %v1477
  %1594 = vmatpush1.bf16.msra.mxu0 %v1476
  %1595 = vmatprep.subr.bf16.mxu0 0
  %1596 = vmatpush2.bf16.msra.mxu0 0
  %1597 = vmatprep.subr.bf16.mxu0 0
  %1598 = vmatpush2.bf16.msra.mxu0 0
  %1599 = vmatprep.subr.bf16.mxu0 0
  %1600 = vmatpush2.bf16.msra.mxu0 0
  %1601 = vmatprep.subr.bf16.mxu0 0
  %1602 = vmatpush2.bf16.msra.mxu0 0
  %1603 = vmatprep.subr.bf16.mxu0 0
  %1604 = vmatpush2.bf16.msra.mxu0 0
  %1605 = vmatprep.subr.bf16.mxu0 0
  %1606 = vmatpush2.bf16.msra.mxu0 0
  %1607 = vmatprep.subr.bf16.mxu0 0
  %1608 = vmatpush2.bf16.msra.mxu0 0
  %1609 = vmatprep.subr.bf16.mxu0 0
  %1610 = vmatpush2.bf16.msra.mxu0 0
  %1611 = vmatprep.mubr.bf16.mxu0 0
  %1612 = vmatmul.mubr.bf16.gmra.mxu0 %v1340
  %v1613 = vpop.f32.mrf.mxu0
  %v1614 = vadd.f32 0.0, %v1613
  %v1615 = vpop.f32.mrf.mxu0
  %v1616 = vadd.f32 0.0, %v1615
  %v1617 = vpop.f32.mrf.mxu0
  %v1618 = vpop.f32.mrf.mxu0
  %1619 = vdwg.mxu0
  %v1620 = vld [vmem:[%s4] sm:$0xf]
  %v1621 = vld [vmem:[%s4 + $0x4] sm:$0xf]
  %v1622 = vld [vmem:[%s4 + $0x8] sm:$0xf]
  %v1623 = vld [vmem:[%s4 + $0xc] sm:$0xf]
  %v1624 = vld [vmem:[%s4 + $0x10] sm:$0xf]
  %v1625 = vld [vmem:[%s4 + $0x14] sm:$0xf]
  %v1626 = vld [vmem:[%s4 + $0x18] sm:$0xf]
  %v1627 = vld [vmem:[%s4 + $0x1c] sm:$0xf]
  %v1628 = vld [vmem:[%s4 + $0x20] sm:$0xf]
  %v1629 = vld [vmem:[%s4 + $0x24] sm:$0xf]
  %v1630 = vld [vmem:[%s4 + $0x28] sm:$0xf]
  %v1631 = vld [vmem:[%s4 + $0x2c] sm:$0xf]
  %v1632 = vld [vmem:[%s4 + $0x30] sm:$0xf]
  %v1633 = vld [vmem:[%s4 + $0x34] sm:$0xf]
  %v1634 = vld [vmem:[%s4 + $0x38] sm:$0xf]
  %v1635 = vld [vmem:[%s4 + $0x3c] sm:$0xf]
  %v1652 = vunpack.c.l.b16 %v1620
  %v1653 = vunpack.c.l.b16 %v1621
  %v1654 = vunpack.c.l.b16 %v1622
  %v1655 = vunpack.c.l.b16 %v1623
  %v1656 = vunpack.c.l.b16 %v1624
  %v1657 = vunpack.c.l.b16 %v1625
  %v1658 = vunpack.c.l.b16 %v1626
  %v1659 = vunpack.c.l.b16 %v1627
  %v1660 = vunpack.c.l.b16 %v1628
  %v1661 = vunpack.c.l.b16 %v1629
  %v1662 = vunpack.c.l.b16 %v1630
  %v1663 = vunpack.c.l.b16 %v1631
  %v1664 = vunpack.c.l.b16 %v1632
  %v1665 = vunpack.c.l.b16 %v1633
  %v1666 = vunpack.c.l.b16 %v1634
  %v1667 = vunpack.c.l.b16 %v1635
  %v1668 = vpack.c.b16 %v1653, %v1652
  %v1669 = vpack.c.b16 %v1655, %v1654
  %v1670 = vpack.c.b16 %v1657, %v1656
  %v1671 = vpack.c.b16 %v1659, %v1658
  %v1672 = vpack.c.b16 %v1661, %v1660
  %v1673 = vpack.c.b16 %v1663, %v1662
  %v1674 = vpack.c.b16 %v1665, %v1664
  %v1675 = vpack.c.b16 %v1667, %v1666
  %1684 = vmatprep.subr.bf16.mxu0 0
  %1685 = vmatpush1.bf16.msra.mxu0 %v1675
  %1686 = vmatprep.subr.bf16.mxu0 0
  %1687 = vmatpush1.bf16.msra.mxu0 %v1674
  %1688 = vmatprep.subr.bf16.mxu0 0
  %1689 = vmatpush1.bf16.msra.mxu0 %v1673
  %1690 = vmatprep.subr.bf16.mxu0 0
  %1691 = vmatpush1.bf16.msra.mxu0 %v1672
  %1692 = vmatprep.subr.bf16.mxu0 0
  %1693 = vmatpush1.bf16.msra.mxu0 %v1671
  %1694 = vmatprep.subr.bf16.mxu0 0
  %1695 = vmatpush1.bf16.msra.mxu0 %v1670
  %1696 = vmatprep.subr.bf16.mxu0 0
  %1697 = vmatpush1.bf16.msra.mxu0 %v1669
  %1698 = vmatprep.subr.bf16.mxu0 0
  %1699 = vmatpush1.bf16.msra.mxu0 %v1668
  %1700 = vmatprep.subr.bf16.mxu0 0
  %1701 = vmatpush2.bf16.msra.mxu0 0
  %1702 = vmatprep.subr.bf16.mxu0 0
  %1703 = vmatpush2.bf16.msra.mxu0 0
  %1704 = vmatprep.subr.bf16.mxu0 0
  %1705 = vmatpush2.bf16.msra.mxu0 0
  %1706 = vmatprep.subr.bf16.mxu0 0
  %1707 = vmatpush2.bf16.msra.mxu0 0
  %1708 = vmatprep.subr.bf16.mxu0 0
  %1709 = vmatpush2.bf16.msra.mxu0 0
  %1710 = vmatprep.subr.bf16.mxu0 0
  %1711 = vmatpush2.bf16.msra.mxu0 0
  %1712 = vmatprep.subr.bf16.mxu0 0
  %1713 = vmatpush2.bf16.msra.mxu0 0
  %1714 = vmatprep.subr.bf16.mxu0 0
  %1715 = vmatpush2.bf16.msra.mxu0 0
  %1716 = vmatprep.mubr.bf16.mxu0 0
  %1717 = vmatmul.mubr.bf16.gmra.mxu0 %v1341
  %v1718 = vpop.f32.mrf.mxu0
  %v1719 = vadd.f32 %v798, %v1718
  %v1720 = vpop.f32.mrf.mxu0
  %v1721 = vpop.f32.mrf.mxu0
  %v1722 = vpop.f32.mrf.mxu0
  %1723 = vdwg.mxu0
  %v1724 = vadd.f32 %v1342, %v1573
  %v1725 = vadd.f32 %v1343, %v1575
  %v1726 = vadd.f32 %v1344, %v1614
  %v1727 = vadd.f32 %v1345, %v1616
  %v1728 = vxor.u32 %v1724, 2147483648
  %v1729 = vxor.u32 %v1725, 2147483648
  %v1730 = vxor.u32 %v1726, 2147483648
  %v1731 = vxor.u32 %v1727, 2147483648
  %v1732 = vmul.f32 %v1728, 1.442695
  %v1733 = vpow.pop %v1732
  %v1734 = vmul.f32 %v1729, 1.442695
  %v1735 = vpow.pop %v1734
  %v1736 = vmul.f32 %v1730, 1.442695
  %v1737 = vpow.pop %v1736
  %v1738 = vmul.f32 %v1731, 1.442695
  %v1739 = vpow.pop %v1738
  %v1740 = vadd.f32 %v1733, 1.0
  %v1741 = vadd.f32 %v1735, 1.0
  %v1742 = vadd.f32 %v1737, 1.0
  %v1743 = vadd.f32 %v1739, 1.0
  %v1744 = vrcp.pop %v1740
  %v1745 = vmul.f32 1.0, %v1744
  %v1746 = vrcp.pop %v1741
  %v1747 = vmul.f32 1.0, %v1746
  %v1748 = vrcp.pop %v1742
  %v1749 = vmul.f32 1.0, %v1748
  %v1750 = vrcp.pop %v1743
  %v1751 = vmul.f32 1.0, %v1750
  %v1752 = vmul.f32 %v1749, %v1719
  %v1753 = vmul.f32 %v1745, %v1747
  %v1754 = vadd.f32 %v1752, %v1753
  %v1755 = vtanh.pop %v1754
  %v1756 = vmul.f32 %v1751, %v1755
  %1757 = vst [vmem:[#allocation3 + $0x10] sm:$0xff] %v1756
  %v1758 = vpack.c.bf16 %v1756, %v1756
  %v1759 = vpack.c.bf16 %v1754, %v1754
  %v1760 = vld [vmem:[#allocation2 + $0x60] sm:$0xff]
  %v1761 = vld [vmem:[#allocation2 + $0x68] sm:$0xff]
  %v1762 = vld [vmem:[#allocation2 + $0x70] sm:$0xff]
  %v1763 = vld [vmem:[#allocation2 + $0x78] sm:$0xff]
  %v1764 = vld [vmem:[%s3] sm:$0xff]
  %v1765 = vld [vmem:[%s3 + $0x8] sm:$0xff]
  %v1766 = vld [vmem:[%s3 + $0x10] sm:$0xff]
  %v1767 = vld [vmem:[%s3 + $0x18] sm:$0xff]
  %v1768 = vld [vmem:[%s3 + $0x20] sm:$0xff]
  %v1769 = vld [vmem:[%s3 + $0x28] sm:$0xff]
  %v1770 = vld [vmem:[%s3 + $0x30] sm:$0xff]
  %v1771 = vld [vmem:[%s3 + $0x38] sm:$0xff]
  %v1772 = vld [vmem:[%s3 + $0x40] sm:$0xff]
  %v1773 = vld [vmem:[%s3 + $0x48] sm:$0xff]
  %v1774 = vld [vmem:[%s3 + $0x50] sm:$0xff]
  %v1775 = vld [vmem:[%s3 + $0x58] sm:$0xff]
  %v1776 = vld [vmem:[%s3 + $0x60] sm:$0xff]
  %v1777 = vld [vmem:[%s3 + $0x68] sm:$0xff]
  %v1778 = vld [vmem:[%s3 + $0x70] sm:$0xff]
  %v1779 = vld [vmem:[%s3 + $0x78] sm:$0xff]
  %v1780 = vld [vmem:[%s3 + $0x80] sm:$0xff]
  %v1781 = vld [vmem:[%s3 + $0x88] sm:$0xff]
  %v1782 = vld [vmem:[%s3 + $0x90] sm:$0xff]
  %v1783 = vld [vmem:[%s3 + $0x98] sm:$0xff]
  %v1784 = vld [vmem:[%s3 + $0xa0] sm:$0xff]
  %v1785 = vld [vmem:[%s3 + $0xa8] sm:$0xff]
  %v1786 = vld [vmem:[%s3 + $0xb0] sm:$0xff]
  %v1787 = vld [vmem:[%s3 + $0xb8] sm:$0xff]
  %v1788 = vld [vmem:[%s3 + $0xc0] sm:$0xff]
  %v1789 = vld [vmem:[%s3 + $0xc8] sm:$0xff]
  %v1790 = vld [vmem:[%s3 + $0xd0] sm:$0xff]
  %v1791 = vld [vmem:[%s3 + $0xd8] sm:$0xff]
  %v1792 = vld [vmem:[%s3 + $0xe0] sm:$0xff]
  %v1793 = vld [vmem:[%s3 + $0xe8] sm:$0xff]
  %v1794 = vld [vmem:[%s3 + $0xf0] sm:$0xff]
  %v1795 = vld [vmem:[%s3 + $0xf8] sm:$0xff]
  %v1828 = vunpack.c.l.b16 %v1764
  %v1829 = vunpack.c.h.b16 %v1764
  %v1830 = vunpack.c.l.b16 %v1765
  %v1831 = vunpack.c.h.b16 %v1765
  %v1832 = vunpack.c.l.b16 %v1766
  %v1833 = vunpack.c.h.b16 %v1766
  %v1834 = vunpack.c.l.b16 %v1767
  %v1835 = vunpack.c.h.b16 %v1767
  %v1836 = vunpack.c.l.b16 %v1768
  %v1837 = vunpack.c.h.b16 %v1768
  %v1838 = vunpack.c.l.b16 %v1769
  %v1839 = vunpack.c.h.b16 %v1769
  %v1840 = vunpack.c.l.b16 %v1770
  %v1841 = vunpack.c.h.b16 %v1770
  %v1842 = vunpack.c.l.b16 %v1771
  %v1843 = vunpack.c.h.b16 %v1771
  %v1844 = vunpack.c.l.b16 %v1772
  %v1845 = vunpack.c.h.b16 %v1772
  %v1846 = vunpack.c.l.b16 %v1773
  %v1847 = vunpack.c.h.b16 %v1773
  %v1848 = vunpack.c.l.b16 %v1774
  %v1849 = vunpack.c.h.b16 %v1774
  %v1850 = vunpack.c.l.b16 %v1775
  %v1851 = vunpack.c.h.b16 %v1775
  %v1852 = vunpack.c.l.b16 %v1776
  %v1853 = vunpack.c.h.b16 %v1776
  %v1854 = vunpack.c.l.b16 %v1777
  %v1855 = vunpack.c.h.b16 %v1777
  %v1856 = vunpack.c.l.b16 %v1778
  %v1857 = vunpack.c.h.b16 %v1778
  %v1858 = vunpack.c.l.b16 %v1779
  %v1859 = vunpack.c.h.b16 %v1779
  %v1860 = vunpack.c.l.b16 %v1780
  %v1861 = vunpack.c.h.b16 %v1780
  %v1862 = vunpack.c.l.b16 %v1781
  %v1863 = vunpack.c.h.b16 %v1781
  %v1864 = vunpack.c.l.b16 %v1782
  %v1865 = vunpack.c.h.b16 %v1782
  %v1866 = vunpack.c.l.b16 %v1783
  %v1867 = vunpack.c.h.b16 %v1783
  %v1868 = vunpack.c.l.b16 %v1784
  %v1869 = vunpack.c.h.b16 %v1784
  %v1870 = vunpack.c.l.b16 %v1785
  %v1871 = vunpack.c.h.b16 %v1785
  %v1872 = vunpack.c.l.b16 %v1786
  %v1873 = vunpack.c.h.b16 %v1786
  %v1874 = vunpack.c.l.b16 %v1787
  %v1875 = vunpack.c.h.b16 %v1787
  %v1876 = vunpack.c.l.b16 %v1788
  %v1877 = vunpack.c.h.b16 %v1788
  %v1878 = vunpack.c.l.b16 %v1789
  %v1879 = vunpack.c.h.b16 %v1789
  %v1880 = vunpack.c.l.b16 %v1790
  %v1881 = vunpack.c.h.b16 %v1790
  %v1882 = vunpack.c.l.b16 %v1791
  %v1883 = vunpack.c.h.b16 %v1791
  %v1884 = vunpack.c.l.b16 %v1792
  %v1885 = vunpack.c.h.b16 %v1792
  %v1886 = vunpack.c.l.b16 %v1793
  %v1887 = vunpack.c.h.b16 %v1793
  %v1888 = vunpack.c.l.b16 %v1794
  %v1889 = vunpack.c.h.b16 %v1794
  %v1890 = vunpack.c.l.b16 %v1795
  %v1891 = vunpack.c.h.b16 %v1795
  %v1892 = vpack.c.b16 %v1832, %v1828
  %v1893 = vpack.c.b16 %v1833, %v1829
  %v1894 = vpack.c.b16 %v1834, %v1830
  %v1895 = vpack.c.b16 %v1835, %v1831
  %v1896 = vpack.c.b16 %v1840, %v1836
  %v1897 = vpack.c.b16 %v1841, %v1837
  %v1898 = vpack.c.b16 %v1842, %v1838
  %v1899 = vpack.c.b16 %v1843, %v1839
  %v1900 = vpack.c.b16 %v1848, %v1844
  %v1901 = vpack.c.b16 %v1849, %v1845
  %v1902 = vpack.c.b16 %v1850, %v1846
  %v1903 = vpack.c.b16 %v1851, %v1847
  %v1904 = vpack.c.b16 %v1856, %v1852
  %v1905 = vpack.c.b16 %v1857, %v1853
  %v1906 = vpack.c.b16 %v1858, %v1854
  %v1907 = vpack.c.b16 %v1859, %v1855
  %v1908 = vpack.c.b16 %v1864, %v1860
  %v1909 = vpack.c.b16 %v1865, %v1861
  %v1910 = vpack.c.b16 %v1866, %v1862
  %v1911 = vpack.c.b16 %v1867, %v1863
  %v1912 = vpack.c.b16 %v1872, %v1868
  %v1913 = vpack.c.b16 %v1873, %v1869
  %v1914 = vpack.c.b16 %v1874, %v1870
  %v1915 = vpack.c.b16 %v1875, %v1871
  %v1916 = vpack.c.b16 %v1880, %v1876
  %v1917 = vpack.c.b16 %v1881, %v1877
  %v1918 = vpack.c.b16 %v1882, %v1878
  %v1919 = vpack.c.b16 %v1883, %v1879
  %v1920 = vpack.c.b16 %v1888, %v1884
  %v1921 = vpack.c.b16 %v1889, %v1885
  %v1922 = vpack.c.b16 %v1890, %v1886
  %v1923 = vpack.c.b16 %v1891, %v1887
  %1956 = vmatprep.subr.bf16.mxu0 %v1921
  %1957 = vmatpush1.bf16.msra.mxu0 %v1920
  %1958 = vmatprep.subr.bf16.mxu0 %v1917
  %1959 = vmatpush1.bf16.msra.mxu0 %v1916
  %1960 = vmatprep.subr.bf16.mxu0 %v1913
  %1961 = vmatpush1.bf16.msra.mxu0 %v1912
  %1962 = vmatprep.subr.bf16.mxu0 %v1909
  %1963 = vmatpush1.bf16.msra.mxu0 %v1908
  %1964 = vmatprep.subr.bf16.mxu0 %v1905
  %1965 = vmatpush1.bf16.msra.mxu0 %v1904
  %1966 = vmatprep.subr.bf16.mxu0 %v1901
  %1967 = vmatpush1.bf16.msra.mxu0 %v1900
  %1968 = vmatprep.subr.bf16.mxu0 %v1897
  %1969 = vmatpush1.bf16.msra.mxu0 %v1896
  %1970 = vmatprep.subr.bf16.mxu0 %v1893
  %1971 = vmatpush1.bf16.msra.mxu0 %v1892
  %1972 = vmatprep.subr.bf16.mxu0 0
  %1973 = vmatpush2.bf16.msra.mxu0 0
  %1974 = vmatprep.subr.bf16.mxu0 0
  %1975 = vmatpush2.bf16.msra.mxu0 0
  %1976 = vmatprep.subr.bf16.mxu0 0
  %1977 = vmatpush2.bf16.msra.mxu0 0
  %1978 = vmatprep.subr.bf16.mxu0 0
  %1979 = vmatpush2.bf16.msra.mxu0 0
  %1980 = vmatprep.subr.bf16.mxu0 0
  %1981 = vmatpush2.bf16.msra.mxu0 0
  %1982 = vmatprep.subr.bf16.mxu0 0
  %1983 = vmatpush2.bf16.msra.mxu0 0
  %1984 = vmatprep.subr.bf16.mxu0 0
  %1985 = vmatpush2.bf16.msra.mxu0 0
  %1986 = vmatprep.subr.bf16.mxu0 0
  %1987 = vmatpush2.bf16.msra.mxu0 0
  %1988 = vmatprep.mubr.bf16.mxu0 0
  %1989 = vmatmul.mubr.bf16.gmra.mxu0 %v1758
  %v1990 = vpop.f32.mrf.mxu0
  %v1991 = vadd.f32 0.0, %v1990
  %v1992 = vpop.f32.mrf.mxu0
  %v1993 = vadd.f32 0.0, %v1992
  %v1994 = vpop.f32.mrf.mxu0
  %v1995 = vpop.f32.mrf.mxu0
  %1996 = vdwg.mxu0
  %1997 = vmatprep.subr.bf16.mxu0 %v1923
  %1998 = vmatpush1.bf16.msra.mxu0 %v1922
  %1999 = vmatprep.subr.bf16.mxu0 %v1919
  %2000 = vmatpush1.bf16.msra.mxu0 %v1918
  %2001 = vmatprep.subr.bf16.mxu0 %v1915
  %2002 = vmatpush1.bf16.msra.mxu0 %v1914
  %2003 = vmatprep.subr.bf16.mxu0 %v1911
  %2004 = vmatpush1.bf16.msra.mxu0 %v1910
  %2005 = vmatprep.subr.bf16.mxu0 %v1907
  %2006 = vmatpush1.bf16.msra.mxu0 %v1906
  %2007 = vmatprep.subr.bf16.mxu0 %v1903
  %2008 = vmatpush1.bf16.msra.mxu0 %v1902
  %2009 = vmatprep.subr.bf16.mxu0 %v1899
  %2010 = vmatpush1.bf16.msra.mxu0 %v1898
  %2011 = vmatprep.subr.bf16.mxu0 %v1895
  %2012 = vmatpush1.bf16.msra.mxu0 %v1894
  %2013 = vmatprep.subr.bf16.mxu0 0
  %2014 = vmatpush2.bf16.msra.mxu0 0
  %2015 = vmatprep.subr.bf16.mxu0 0
  %2016 = vmatpush2.bf16.msra.mxu0 0
  %2017 = vmatprep.subr.bf16.mxu0 0
  %2018 = vmatpush2.bf16.msra.mxu0 0
  %2019 = vmatprep.subr.bf16.mxu0 0
  %2020 = vmatpush2.bf16.msra.mxu0 0
  %2021 = vmatprep.subr.bf16.mxu0 0
  %2022 = vmatpush2.bf16.msra.mxu0 0
  %2023 = vmatprep.subr.bf16.mxu0 0
  %2024 = vmatpush2.bf16.msra.mxu0 0
  %2025 = vmatprep.subr.bf16.mxu0 0
  %2026 = vmatpush2.bf16.msra.mxu0 0
  %2027 = vmatprep.subr.bf16.mxu0 0
  %2028 = vmatpush2.bf16.msra.mxu0 0
  %2029 = vmatprep.mubr.bf16.mxu0 0
  %2030 = vmatmul.mubr.bf16.gmra.mxu0 %v1758
  %v2031 = vpop.f32.mrf.mxu0
  %v2032 = vadd.f32 0.0, %v2031
  %v2033 = vpop.f32.mrf.mxu0
  %v2034 = vadd.f32 0.0, %v2033
  %v2035 = vpop.f32.mrf.mxu0
  %v2036 = vpop.f32.mrf.mxu0
  %2037 = vdwg.mxu0
  %v2038 = vld [vmem:[%s4] sm:$0xf]
  %v2039 = vld [vmem:[%s4 + $0x4] sm:$0xf]
  %v2040 = vld [vmem:[%s4 + $0x8] sm:$0xf]
  %v2041 = vld [vmem:[%s4 + $0xc] sm:$0xf]
  %v2042 = vld [vmem:[%s4 + $0x10] sm:$0xf]
  %v2043 = vld [vmem:[%s4 + $0x14] sm:$0xf]
  %v2044 = vld [vmem:[%s4 + $0x18] sm:$0xf]
  %v2045 = vld [vmem:[%s4 + $0x1c] sm:$0xf]
  %v2046 = vld [vmem:[%s4 + $0x20] sm:$0xf]
  %v2047 = vld [vmem:[%s4 + $0x24] sm:$0xf]
  %v2048 = vld [vmem:[%s4 + $0x28] sm:$0xf]
  %v2049 = vld [vmem:[%s4 + $0x2c] sm:$0xf]
  %v2050 = vld [vmem:[%s4 + $0x30] sm:$0xf]
  %v2051 = vld [vmem:[%s4 + $0x34] sm:$0xf]
  %v2052 = vld [vmem:[%s4 + $0x38] sm:$0xf]
  %v2053 = vld [vmem:[%s4 + $0x3c] sm:$0xf]
  %v2070 = vunpack.c.l.b16 %v2038
  %v2071 = vunpack.c.l.b16 %v2039
  %v2072 = vunpack.c.l.b16 %v2040
  %v2073 = vunpack.c.l.b16 %v2041
  %v2074 = vunpack.c.l.b16 %v2042
  %v2075 = vunpack.c.l.b16 %v2043
  %v2076 = vunpack.c.l.b16 %v2044
  %v2077 = vunpack.c.l.b16 %v2045
  %v2078 = vunpack.c.l.b16 %v2046
  %v2079 = vunpack.c.l.b16 %v2047
  %v2080 = vunpack.c.l.b16 %v2048
  %v2081 = vunpack.c.l.b16 %v2049
  %v2082 = vunpack.c.l.b16 %v2050
  %v2083 = vunpack.c.l.b16 %v2051
  %v2084 = vunpack.c.l.b16 %v2052
  %v2085 = vunpack.c.l.b16 %v2053
  %v2086 = vpack.c.b16 %v2071, %v2070
  %v2087 = vpack.c.b16 %v2073, %v2072
  %v2088 = vpack.c.b16 %v2075, %v2074
  %v2089 = vpack.c.b16 %v2077, %v2076
  %v2090 = vpack.c.b16 %v2079, %v2078
  %v2091 = vpack.c.b16 %v2081, %v2080
  %v2092 = vpack.c.b16 %v2083, %v2082
  %v2093 = vpack.c.b16 %v2085, %v2084
  %2102 = vmatprep.subr.bf16.mxu0 0
  %2103 = vmatpush1.bf16.msra.mxu0 %v2093
  %2104 = vmatprep.subr.bf16.mxu0 0
  %2105 = vmatpush1.bf16.msra.mxu0 %v2092
  %2106 = vmatprep.subr.bf16.mxu0 0
  %2107 = vmatpush1.bf16.msra.mxu0 %v2091
  %2108 = vmatprep.subr.bf16.mxu0 0
  %2109 = vmatpush1.bf16.msra.mxu0 %v2090
  %2110 = vmatprep.subr.bf16.mxu0 0
  %2111 = vmatpush1.bf16.msra.mxu0 %v2089
  %2112 = vmatprep.subr.bf16.mxu0 0
  %2113 = vmatpush1.bf16.msra.mxu0 %v2088
  %2114 = vmatprep.subr.bf16.mxu0 0
  %2115 = vmatpush1.bf16.msra.mxu0 %v2087
  %2116 = vmatprep.subr.bf16.mxu0 0
  %2117 = vmatpush1.bf16.msra.mxu0 %v2086
  %2118 = vmatprep.subr.bf16.mxu0 0
  %2119 = vmatpush2.bf16.msra.mxu0 0
  %2120 = vmatprep.subr.bf16.mxu0 0
  %2121 = vmatpush2.bf16.msra.mxu0 0
  %2122 = vmatprep.subr.bf16.mxu0 0
  %2123 = vmatpush2.bf16.msra.mxu0 0
  %2124 = vmatprep.subr.bf16.mxu0 0
  %2125 = vmatpush2.bf16.msra.mxu0 0
  %2126 = vmatprep.subr.bf16.mxu0 0
  %2127 = vmatpush2.bf16.msra.mxu0 0
  %2128 = vmatprep.subr.bf16.mxu0 0
  %2129 = vmatpush2.bf16.msra.mxu0 0
  %2130 = vmatprep.subr.bf16.mxu0 0
  %2131 = vmatpush2.bf16.msra.mxu0 0
  %2132 = vmatprep.subr.bf16.mxu0 0
  %2133 = vmatpush2.bf16.msra.mxu0 0
  %2134 = vmatprep.mubr.bf16.mxu0 0
  %2135 = vmatmul.mubr.bf16.gmra.mxu0 %v1759
  %v2136 = vpop.f32.mrf.mxu0
  %v2137 = vadd.f32 %v798, %v2136
  %v2138 = vpop.f32.mrf.mxu0
  %v2139 = vpop.f32.mrf.mxu0
  %v2140 = vpop.f32.mrf.mxu0
  %2141 = vdwg.mxu0
  %v2142 = vadd.f32 %v1760, %v1991
  %v2143 = vadd.f32 %v1761, %v1993
  %v2144 = vadd.f32 %v1762, %v2032
  %v2145 = vadd.f32 %v1763, %v2034
  %v2146 = vxor.u32 %v2142, 2147483648
  %v2147 = vxor.u32 %v2143, 2147483648
  %v2148 = vxor.u32 %v2144, 2147483648
  %v2149 = vxor.u32 %v2145, 2147483648
  %v2150 = vmul.f32 %v2146, 1.442695
  %v2151 = vpow.pop %v2150
  %v2152 = vmul.f32 %v2147, 1.442695
  %v2153 = vpow.pop %v2152
  %v2154 = vmul.f32 %v2148, 1.442695
  %v2155 = vpow.pop %v2154
  %v2156 = vmul.f32 %v2149, 1.442695
  %v2157 = vpow.pop %v2156
  %v2158 = vadd.f32 %v2151, 1.0
  %v2159 = vadd.f32 %v2153, 1.0
  %v2160 = vadd.f32 %v2155, 1.0
  %v2161 = vadd.f32 %v2157, 1.0
  %v2162 = vrcp.pop %v2158
  %v2163 = vmul.f32 1.0, %v2162
  %v2164 = vrcp.pop %v2159
  %v2165 = vmul.f32 1.0, %v2164
  %v2166 = vrcp.pop %v2160
  %v2167 = vmul.f32 1.0, %v2166
  %v2168 = vrcp.pop %v2161
  %v2169 = vmul.f32 1.0, %v2168
  %v2170 = vmul.f32 %v2167, %v2137
  %v2171 = vmul.f32 %v2163, %v2165
  %v2172 = vadd.f32 %v2170, %v2171
  %v2173 = vtanh.pop %v2172
  %v2174 = vmul.f32 %v2169, %v2173
  %2175 = vst [vmem:[#allocation3 + $0x18] sm:$0xff] %v2174
  %v2176 = vpack.c.bf16 %v2174, %v2174
  %v2177 = vpack.c.bf16 %v2172, %v2172
  %v2178 = vld [vmem:[#allocation2 + $0x80] sm:$0xff]
  %v2179 = vld [vmem:[#allocation2 + $0x88] sm:$0xff]
  %v2180 = vld [vmem:[#allocation2 + $0x90] sm:$0xff]
  %v2181 = vld [vmem:[#allocation2 + $0x98] sm:$0xff]
  %v2182 = vld [vmem:[%s3] sm:$0xff]
  %v2183 = vld [vmem:[%s3 + $0x8] sm:$0xff]
  %v2184 = vld [vmem:[%s3 + $0x10] sm:$0xff]
  %v2185 = vld [vmem:[%s3 + $0x18] sm:$0xff]
  %v2186 = vld [vmem:[%s3 + $0x20] sm:$0xff]
  %v2187 = vld [vmem:[%s3 + $0x28] sm:$0xff]
  %v2188 = vld [vmem:[%s3 + $0x30] sm:$0xff]
  %v2189 = vld [vmem:[%s3 + $0x38] sm:$0xff]
  %v2190 = vld [vmem:[%s3 + $0x40] sm:$0xff]
  %v2191 = vld [vmem:[%s3 + $0x48] sm:$0xff]
  %v2192 = vld [vmem:[%s3 + $0x50] sm:$0xff]
  %v2193 = vld [vmem:[%s3 + $0x58] sm:$0xff]
  %v2194 = vld [vmem:[%s3 + $0x60] sm:$0xff]
  %v2195 = vld [vmem:[%s3 + $0x68] sm:$0xff]
  %v2196 = vld [vmem:[%s3 + $0x70] sm:$0xff]
  %v2197 = vld [vmem:[%s3 + $0x78] sm:$0xff]
  %v2198 = vld [vmem:[%s3 + $0x80] sm:$0xff]
  %v2199 = vld [vmem:[%s3 + $0x88] sm:$0xff]
  %v2200 = vld [vmem:[%s3 + $0x90] sm:$0xff]
  %v2201 = vld [vmem:[%s3 + $0x98] sm:$0xff]
  %v2202 = vld [vmem:[%s3 + $0xa0] sm:$0xff]
  %v2203 = vld [vmem:[%s3 + $0xa8] sm:$0xff]
  %v2204 = vld [vmem:[%s3 + $0xb0] sm:$0xff]
  %v2205 = vld [vmem:[%s3 + $0xb8] sm:$0xff]
  %v2206 = vld [vmem:[%s3 + $0xc0] sm:$0xff]
  %v2207 = vld [vmem:[%s3 + $0xc8] sm:$0xff]
  %v2208 = vld [vmem:[%s3 + $0xd0] sm:$0xff]
  %v2209 = vld [vmem:[%s3 + $0xd8] sm:$0xff]
  %v2210 = vld [vmem:[%s3 + $0xe0] sm:$0xff]
  %v2211 = vld [vmem:[%s3 + $0xe8] sm:$0xff]
  %v2212 = vld [vmem:[%s3 + $0xf0] sm:$0xff]
  %v2213 = vld [vmem:[%s3 + $0xf8] sm:$0xff]
  %v2246 = vunpack.c.l.b16 %v2182
  %v2247 = vunpack.c.h.b16 %v2182
  %v2248 = vunpack.c.l.b16 %v2183
  %v2249 = vunpack.c.h.b16 %v2183
  %v2250 = vunpack.c.l.b16 %v2184
  %v2251 = vunpack.c.h.b16 %v2184
  %v2252 = vunpack.c.l.b16 %v2185
  %v2253 = vunpack.c.h.b16 %v2185
  %v2254 = vunpack.c.l.b16 %v2186
  %v2255 = vunpack.c.h.b16 %v2186
  %v2256 = vunpack.c.l.b16 %v2187
  %v2257 = vunpack.c.h.b16 %v2187
  %v2258 = vunpack.c.l.b16 %v2188
  %v2259 = vunpack.c.h.b16 %v2188
  %v2260 = vunpack.c.l.b16 %v2189
  %v2261 = vunpack.c.h.b16 %v2189
  %v2262 = vunpack.c.l.b16 %v2190
  %v2263 = vunpack.c.h.b16 %v2190
  %v2264 = vunpack.c.l.b16 %v2191
  %v2265 = vunpack.c.h.b16 %v2191
  %v2266 = vunpack.c.l.b16 %v2192
  %v2267 = vunpack.c.h.b16 %v2192
  %v2268 = vunpack.c.l.b16 %v2193
  %v2269 = vunpack.c.h.b16 %v2193
  %v2270 = vunpack.c.l.b16 %v2194
  %v2271 = vunpack.c.h.b16 %v2194
  %v2272 = vunpack.c.l.b16 %v2195
  %v2273 = vunpack.c.h.b16 %v2195
  %v2274 = vunpack.c.l.b16 %v2196
  %v2275 = vunpack.c.h.b16 %v2196
  %v2276 = vunpack.c.l.b16 %v2197
  %v2277 = vunpack.c.h.b16 %v2197
  %v2278 = vunpack.c.l.b16 %v2198
  %v2279 = vunpack.c.h.b16 %v2198
  %v2280 = vunpack.c.l.b16 %v2199
  %v2281 = vunpack.c.h.b16 %v2199
  %v2282 = vunpack.c.l.b16 %v2200
  %v2283 = vunpack.c.h.b16 %v2200
  %v2284 = vunpack.c.l.b16 %v2201
  %v2285 = vunpack.c.h.b16 %v2201
  %v2286 = vunpack.c.l.b16 %v2202
  %v2287 = vunpack.c.h.b16 %v2202
  %v2288 = vunpack.c.l.b16 %v2203
  %v2289 = vunpack.c.h.b16 %v2203
  %v2290 = vunpack.c.l.b16 %v2204
  %v2291 = vunpack.c.h.b16 %v2204
  %v2292 = vunpack.c.l.b16 %v2205
  %v2293 = vunpack.c.h.b16 %v2205
  %v2294 = vunpack.c.l.b16 %v2206
  %v2295 = vunpack.c.h.b16 %v2206
  %v2296 = vunpack.c.l.b16 %v2207
  %v2297 = vunpack.c.h.b16 %v2207
  %v2298 = vunpack.c.l.b16 %v2208
  %v2299 = vunpack.c.h.b16 %v2208
  %v2300 = vunpack.c.l.b16 %v2209
  %v2301 = vunpack.c.h.b16 %v2209
  %v2302 = vunpack.c.l.b16 %v2210
  %v2303 = vunpack.c.h.b16 %v2210
  %v2304 = vunpack.c.l.b16 %v2211
  %v2305 = vunpack.c.h.b16 %v2211
  %v2306 = vunpack.c.l.b16 %v2212
  %v2307 = vunpack.c.h.b16 %v2212
  %v2308 = vunpack.c.l.b16 %v2213
  %v2309 = vunpack.c.h.b16 %v2213
  %v2310 = vpack.c.b16 %v2250, %v2246
  %v2311 = vpack.c.b16 %v2251, %v2247
  %v2312 = vpack.c.b16 %v2252, %v2248
  %v2313 = vpack.c.b16 %v2253, %v2249
  %v2314 = vpack.c.b16 %v2258, %v2254
  %v2315 = vpack.c.b16 %v2259, %v2255
  %v2316 = vpack.c.b16 %v2260, %v2256
  %v2317 = vpack.c.b16 %v2261, %v2257
  %v2318 = vpack.c.b16 %v2266, %v2262
  %v2319 = vpack.c.b16 %v2267, %v2263
  %v2320 = vpack.c.b16 %v2268, %v2264
  %v2321 = vpack.c.b16 %v2269, %v2265
  %v2322 = vpack.c.b16 %v2274, %v2270
  %v2323 = vpack.c.b16 %v2275, %v2271
  %v2324 = vpack.c.b16 %v2276, %v2272
  %v2325 = vpack.c.b16 %v2277, %v2273
  %v2326 = vpack.c.b16 %v2282, %v2278
  %v2327 = vpack.c.b16 %v2283, %v2279
  %v2328 = vpack.c.b16 %v2284, %v2280
  %v2329 = vpack.c.b16 %v2285, %v2281
  %v2330 = vpack.c.b16 %v2290, %v2286
  %v2331 = vpack.c.b16 %v2291, %v2287
  %v2332 = vpack.c.b16 %v2292, %v2288
  %v2333 = vpack.c.b16 %v2293, %v2289
  %v2334 = vpack.c.b16 %v2298, %v2294
  %v2335 = vpack.c.b16 %v2299, %v2295
  %v2336 = vpack.c.b16 %v2300, %v2296
  %v2337 = vpack.c.b16 %v2301, %v2297
  %v2338 = vpack.c.b16 %v2306, %v2302
  %v2339 = vpack.c.b16 %v2307, %v2303
  %v2340 = vpack.c.b16 %v2308, %v2304
  %v2341 = vpack.c.b16 %v2309, %v2305
  %2374 = vmatprep.subr.bf16.mxu0 %v2339
  %2375 = vmatpush1.bf16.msra.mxu0 %v2338
  %2376 = vmatprep.subr.bf16.mxu0 %v2335
  %2377 = vmatpush1.bf16.msra.mxu0 %v2334
  %2378 = vmatprep.subr.bf16.mxu0 %v2331
  %2379 = vmatpush1.bf16.msra.mxu0 %v2330
  %2380 = vmatprep.subr.bf16.mxu0 %v2327
  %2381 = vmatpush1.bf16.msra.mxu0 %v2326
  %2382 = vmatprep.subr.bf16.mxu0 %v2323
  %2383 = vmatpush1.bf16.msra.mxu0 %v2322
  %2384 = vmatprep.subr.bf16.mxu0 %v2319
  %2385 = vmatpush1.bf16.msra.mxu0 %v2318
  %2386 = vmatprep.subr.bf16.mxu0 %v2315
  %2387 = vmatpush1.bf16.msra.mxu0 %v2314
  %2388 = vmatprep.subr.bf16.mxu0 %v2311
  %2389 = vmatpush1.bf16.msra.mxu0 %v2310
  %2390 = vmatprep.subr.bf16.mxu0 0
  %2391 = vmatpush2.bf16.msra.mxu0 0
  %2392 = vmatprep.subr.bf16.mxu0 0
  %2393 = vmatpush2.bf16.msra.mxu0 0
  %2394 = vmatprep.subr.bf16.mxu0 0
  %2395 = vmatpush2.bf16.msra.mxu0 0
  %2396 = vmatprep.subr.bf16.mxu0 0
  %2397 = vmatpush2.bf16.msra.mxu0 0
  %2398 = vmatprep.subr.bf16.mxu0 0
  %2399 = vmatpush2.bf16.msra.mxu0 0
  %2400 = vmatprep.subr.bf16.mxu0 0
  %2401 = vmatpush2.bf16.msra.mxu0 0
  %2402 = vmatprep.subr.bf16.mxu0 0
  %2403 = vmatpush2.bf16.msra.mxu0 0
  %2404 = vmatprep.subr.bf16.mxu0 0
  %2405 = vmatpush2.bf16.msra.mxu0 0
  %2406 = vmatprep.mubr.bf16.mxu0 0
  %2407 = vmatmul.mubr.bf16.gmra.mxu0 %v2176
  %v2408 = vpop.f32.mrf.mxu0
  %v2409 = vadd.f32 0.0, %v2408
  %v2410 = vpop.f32.mrf.mxu0
  %v2411 = vadd.f32 0.0, %v2410
  %v2412 = vpop.f32.mrf.mxu0
  %v2413 = vpop.f32.mrf.mxu0
  %2414 = vdwg.mxu0
  %2415 = vmatprep.subr.bf16.mxu0 %v2341
  %2416 = vmatpush1.bf16.msra.mxu0 %v2340
  %2417 = vmatprep.subr.bf16.mxu0 %v2337
  %2418 = vmatpush1.bf16.msra.mxu0 %v2336
  %2419 = vmatprep.subr.bf16.mxu0 %v2333
  %2420 = vmatpush1.bf16.msra.mxu0 %v2332
  %2421 = vmatprep.subr.bf16.mxu0 %v2329
  %2422 = vmatpush1.bf16.msra.mxu0 %v2328
  %2423 = vmatprep.subr.bf16.mxu0 %v2325
  %2424 = vmatpush1.bf16.msra.mxu0 %v2324
  %2425 = vmatprep.subr.bf16.mxu0 %v2321
  %2426 = vmatpush1.bf16.msra.mxu0 %v2320
  %2427 = vmatprep.subr.bf16.mxu0 %v2317
  %2428 = vmatpush1.bf16.msra.mxu0 %v2316
  %2429 = vmatprep.subr.bf16.mxu0 %v2313
  %2430 = vmatpush1.bf16.msra.mxu0 %v2312
  %2431 = vmatprep.subr.bf16.mxu0 0
  %2432 = vmatpush2.bf16.msra.mxu0 0
  %2433 = vmatprep.subr.bf16.mxu0 0
  %2434 = vmatpush2.bf16.msra.mxu0 0
  %2435 = vmatprep.subr.bf16.mxu0 0
  %2436 = vmatpush2.bf16.msra.mxu0 0
  %2437 = vmatprep.subr.bf16.mxu0 0
  %2438 = vmatpush2.bf16.msra.mxu0 0
  %2439 = vmatprep.subr.bf16.mxu0 0
  %2440 = vmatpush2.bf16.msra.mxu0 0
  %2441 = vmatprep.subr.bf16.mxu0 0
  %2442 = vmatpush2.bf16.msra.mxu0 0
  %2443 = vmatprep.subr.bf16.mxu0 0
  %2444 = vmatpush2.bf16.msra.mxu0 0
  %2445 = vmatprep.subr.bf16.mxu0 0
  %2446 = vmatpush2.bf16.msra.mxu0 0
  %2447 = vmatprep.mubr.bf16.mxu0 0
  %2448 = vmatmul.mubr.bf16.gmra.mxu0 %v2176
  %v2449 = vpop.f32.mrf.mxu0
  %v2450 = vadd.f32 0.0, %v2449
  %v2451 = vpop.f32.mrf.mxu0
  %v2452 = vadd.f32 0.0, %v2451
  %v2453 = vpop.f32.mrf.mxu0
  %v2454 = vpop.f32.mrf.mxu0
  %2455 = vdwg.mxu0
  %v2456 = vld [vmem:[%s4] sm:$0xf]
  %v2457 = vld [vmem:[%s4 + $0x4] sm:$0xf]
  %v2458 = vld [vmem:[%s4 + $0x8] sm:$0xf]
  %v2459 = vld [vmem:[%s4 + $0xc] sm:$0xf]
  %v2460 = vld [vmem:[%s4 + $0x10] sm:$0xf]
  %v2461 = vld [vmem:[%s4 + $0x14] sm:$0xf]
  %v2462 = vld [vmem:[%s4 + $0x18] sm:$0xf]
  %v2463 = vld [vmem:[%s4 + $0x1c] sm:$0xf]
  %v2464 = vld [vmem:[%s4 + $0x20] sm:$0xf]
  %v2465 = vld [vmem:[%s4 + $0x24] sm:$0xf]
  %v2466 = vld [vmem:[%s4 + $0x28] sm:$0xf]
  %v2467 = vld [vmem:[%s4 + $0x2c] sm:$0xf]
  %v2468 = vld [vmem:[%s4 + $0x30] sm:$0xf]
  %v2469 = vld [vmem:[%s4 + $0x34] sm:$0xf]
  %v2470 = vld [vmem:[%s4 + $0x38] sm:$0xf]
  %v2471 = vld [vmem:[%s4 + $0x3c] sm:$0xf]
  %v2488 = vunpack.c.l.b16 %v2456
  %v2489 = vunpack.c.l.b16 %v2457
  %v2490 = vunpack.c.l.b16 %v2458
  %v2491 = vunpack.c.l.b16 %v2459
  %v2492 = vunpack.c.l.b16 %v2460
  %v2493 = vunpack.c.l.b16 %v2461
  %v2494 = vunpack.c.l.b16 %v2462
  %v2495 = vunpack.c.l.b16 %v2463
  %v2496 = vunpack.c.l.b16 %v2464
  %v2497 = vunpack.c.l.b16 %v2465
  %v2498 = vunpack.c.l.b16 %v2466
  %v2499 = vunpack.c.l.b16 %v2467
  %v2500 = vunpack.c.l.b16 %v2468
  %v2501 = vunpack.c.l.b16 %v2469
  %v2502 = vunpack.c.l.b16 %v2470
  %v2503 = vunpack.c.l.b16 %v2471
  %v2504 = vpack.c.b16 %v2489, %v2488
  %v2505 = vpack.c.b16 %v2491, %v2490
  %v2506 = vpack.c.b16 %v2493, %v2492
  %v2507 = vpack.c.b16 %v2495, %v2494
  %v2508 = vpack.c.b16 %v2497, %v2496
  %v2509 = vpack.c.b16 %v2499, %v2498
  %v2510 = vpack.c.b16 %v2501, %v2500
  %v2511 = vpack.c.b16 %v2503, %v2502
  %2520 = vmatprep.subr.bf16.mxu0 0
  %2521 = vmatpush1.bf16.msra.mxu0 %v2511
  %2522 = vmatprep.subr.bf16.mxu0 0
  %2523 = vmatpush1.bf16.msra.mxu0 %v2510
  %2524 = vmatprep.subr.bf16.mxu0 0
  %2525 = vmatpush1.bf16.msra.mxu0 %v2509
  %2526 = vmatprep.subr.bf16.mxu0 0
  %2527 = vmatpush1.bf16.msra.mxu0 %v2508
  %2528 = vmatprep.subr.bf16.mxu0 0
  %2529 = vmatpush1.bf16.msra.mxu0 %v2507
  %2530 = vmatprep.subr.bf16.mxu0 0
  %2531 = vmatpush1.bf16.msra.mxu0 %v2506
  %2532 = vmatprep.subr.bf16.mxu0 0
  %2533 = vmatpush1.bf16.msra.mxu0 %v2505
  %2534 = vmatprep.subr.bf16.mxu0 0
  %2535 = vmatpush1.bf16.msra.mxu0 %v2504
  %2536 = vmatprep.subr.bf16.mxu0 0
  %2537 = vmatpush2.bf16.msra.mxu0 0
  %2538 = vmatprep.subr.bf16.mxu0 0
  %2539 = vmatpush2.bf16.msra.mxu0 0
  %2540 = vmatprep.subr.bf16.mxu0 0
  %2541 = vmatpush2.bf16.msra.mxu0 0
  %2542 = vmatprep.subr.bf16.mxu0 0
  %2543 = vmatpush2.bf16.msra.mxu0 0
  %2544 = vmatprep.subr.bf16.mxu0 0
  %2545 = vmatpush2.bf16.msra.mxu0 0
  %2546 = vmatprep.subr.bf16.mxu0 0
  %2547 = vmatpush2.bf16.msra.mxu0 0
  %2548 = vmatprep.subr.bf16.mxu0 0
  %2549 = vmatpush2.bf16.msra.mxu0 0
  %2550 = vmatprep.subr.bf16.mxu0 0
  %2551 = vmatpush2.bf16.msra.mxu0 0
  %2552 = vmatprep.mubr.bf16.mxu0 0
  %2553 = vmatmul.mubr.bf16.gmra.mxu0 %v2177
  %v2554 = vpop.f32.mrf.mxu0
  %v2555 = vadd.f32 %v798, %v2554
  %v2556 = vpop.f32.mrf.mxu0
  %v2557 = vpop.f32.mrf.mxu0
  %v2558 = vpop.f32.mrf.mxu0
  %2559 = vdwg.mxu0
  %v2560 = vadd.f32 %v2178, %v2409
  %v2561 = vadd.f32 %v2179, %v2411
  %v2562 = vadd.f32 %v2180, %v2450
  %v2563 = vadd.f32 %v2181, %v2452
  %v2564 = vxor.u32 %v2560, 2147483648
  %v2565 = vxor.u32 %v2561, 2147483648
  %v2566 = vxor.u32 %v2562, 2147483648
  %v2567 = vxor.u32 %v2563, 2147483648
  %v2568 = vmul.f32 %v2564, 1.442695
  %v2569 = vpow.pop %v2568
  %v2570 = vmul.f32 %v2565, 1.442695
  %v2571 = vpow.pop %v2570
  %v2572 = vmul.f32 %v2566, 1.442695
  %v2573 = vpow.pop %v2572
  %v2574 = vmul.f32 %v2567, 1.442695
  %v2575 = vpow.pop %v2574
  %v2576 = vadd.f32 %v2569, 1.0
  %v2577 = vadd.f32 %v2571, 1.0
  %v2578 = vadd.f32 %v2573, 1.0
  %v2579 = vadd.f32 %v2575, 1.0
  %v2580 = vrcp.pop %v2576
  %v2581 = vmul.f32 1.0, %v2580
  %v2582 = vrcp.pop %v2577
  %v2583 = vmul.f32 1.0, %v2582
  %v2584 = vrcp.pop %v2578
  %v2585 = vmul.f32 1.0, %v2584
  %v2586 = vrcp.pop %v2579
  %v2587 = vmul.f32 1.0, %v2586
  %v2588 = vmul.f32 %v2585, %v2555
  %v2589 = vmul.f32 %v2581, %v2583
  %v2590 = vadd.f32 %v2588, %v2589
  %v2591 = vtanh.pop %v2590
  %v2592 = vmul.f32 %v2587, %v2591
  %2593 = vst [vmem:[#allocation3 + $0x20] sm:$0xff] %v2592
  %v2594 = vpack.c.bf16 %v2592, %v2592
  %v2595 = vpack.c.bf16 %v2590, %v2590
  %v2596 = vld [vmem:[#allocation2 + $0xa0] sm:$0xff]
  %v2597 = vld [vmem:[#allocation2 + $0xa8] sm:$0xff]
  %v2598 = vld [vmem:[#allocation2 + $0xb0] sm:$0xff]
  %v2599 = vld [vmem:[#allocation2 + $0xb8] sm:$0xff]
  %v2600 = vld [vmem:[%s3] sm:$0xff]
  %v2601 = vld [vmem:[%s3 + $0x8] sm:$0xff]
  %v2602 = vld [vmem:[%s3 + $0x10] sm:$0xff]
  %v2603 = vld [vmem:[%s3 + $0x18] sm:$0xff]
  %v2604 = vld [vmem:[%s3 + $0x20] sm:$0xff]
  %v2605 = vld [vmem:[%s3 + $0x28] sm:$0xff]
  %v2606 = vld [vmem:[%s3 + $0x30] sm:$0xff]
  %v2607 = vld [vmem:[%s3 + $0x38] sm:$0xff]
  %v2608 = vld [vmem:[%s3 + $0x40] sm:$0xff]
  %v2609 = vld [vmem:[%s3 + $0x48] sm:$0xff]
  %v2610 = vld [vmem:[%s3 + $0x50] sm:$0xff]
  %v2611 = vld [vmem:[%s3 + $0x58] sm:$0xff]
  %v2612 = vld [vmem:[%s3 + $0x60] sm:$0xff]
  %v2613 = vld [vmem:[%s3 + $0x68] sm:$0xff]
  %v2614 = vld [vmem:[%s3 + $0x70] sm:$0xff]
  %v2615 = vld [vmem:[%s3 + $0x78] sm:$0xff]
  %v2616 = vld [vmem:[%s3 + $0x80] sm:$0xff]
  %v2617 = vld [vmem:[%s3 + $0x88] sm:$0xff]
  %v2618 = vld [vmem:[%s3 + $0x90] sm:$0xff]
  %v2619 = vld [vmem:[%s3 + $0x98] sm:$0xff]
  %v2620 = vld [vmem:[%s3 + $0xa0] sm:$0xff]
  %v2621 = vld [vmem:[%s3 + $0xa8] sm:$0xff]
  %v2622 = vld [vmem:[%s3 + $0xb0] sm:$0xff]
  %v2623 = vld [vmem:[%s3 + $0xb8] sm:$0xff]
  %v2624 = vld [vmem:[%s3 + $0xc0] sm:$0xff]
  %v2625 = vld [vmem:[%s3 + $0xc8] sm:$0xff]
  %v2626 = vld [vmem:[%s3 + $0xd0] sm:$0xff]
  %v2627 = vld [vmem:[%s3 + $0xd8] sm:$0xff]
  %v2628 = vld [vmem:[%s3 + $0xe0] sm:$0xff]
  %v2629 = vld [vmem:[%s3 + $0xe8] sm:$0xff]
  %v2630 = vld [vmem:[%s3 + $0xf0] sm:$0xff]
  %v2631 = vld [vmem:[%s3 + $0xf8] sm:$0xff]
  %v2664 = vunpack.c.l.b16 %v2600
  %v2665 = vunpack.c.h.b16 %v2600
  %v2666 = vunpack.c.l.b16 %v2601
  %v2667 = vunpack.c.h.b16 %v2601
  %v2668 = vunpack.c.l.b16 %v2602
  %v2669 = vunpack.c.h.b16 %v2602
  %v2670 = vunpack.c.l.b16 %v2603
  %v2671 = vunpack.c.h.b16 %v2603
  %v2672 = vunpack.c.l.b16 %v2604
  %v2673 = vunpack.c.h.b16 %v2604
  %v2674 = vunpack.c.l.b16 %v2605
  %v2675 = vunpack.c.h.b16 %v2605
  %v2676 = vunpack.c.l.b16 %v2606
  %v2677 = vunpack.c.h.b16 %v2606
  %v2678 = vunpack.c.l.b16 %v2607
  %v2679 = vunpack.c.h.b16 %v2607
  %v2680 = vunpack.c.l.b16 %v2608
  %v2681 = vunpack.c.h.b16 %v2608
  %v2682 = vunpack.c.l.b16 %v2609
  %v2683 = vunpack.c.h.b16 %v2609
  %v2684 = vunpack.c.l.b16 %v2610
  %v2685 = vunpack.c.h.b16 %v2610
  %v2686 = vunpack.c.l.b16 %v2611
  %v2687 = vunpack.c.h.b16 %v2611
  %v2688 = vunpack.c.l.b16 %v2612
  %v2689 = vunpack.c.h.b16 %v2612
  %v2690 = vunpack.c.l.b16 %v2613
  %v2691 = vunpack.c.h.b16 %v2613
  %v2692 = vunpack.c.l.b16 %v2614
  %v2693 = vunpack.c.h.b16 %v2614
  %v2694 = vunpack.c.l.b16 %v2615
  %v2695 = vunpack.c.h.b16 %v2615
  %v2696 = vunpack.c.l.b16 %v2616
  %v2697 = vunpack.c.h.b16 %v2616
  %v2698 = vunpack.c.l.b16 %v2617
  %v2699 = vunpack.c.h.b16 %v2617
  %v2700 = vunpack.c.l.b16 %v2618
  %v2701 = vunpack.c.h.b16 %v2618
  %v2702 = vunpack.c.l.b16 %v2619
  %v2703 = vunpack.c.h.b16 %v2619
  %v2704 = vunpack.c.l.b16 %v2620
  %v2705 = vunpack.c.h.b16 %v2620
  %v2706 = vunpack.c.l.b16 %v2621
  %v2707 = vunpack.c.h.b16 %v2621
  %v2708 = vunpack.c.l.b16 %v2622
  %v2709 = vunpack.c.h.b16 %v2622
  %v2710 = vunpack.c.l.b16 %v2623
  %v2711 = vunpack.c.h.b16 %v2623
  %v2712 = vunpack.c.l.b16 %v2624
  %v2713 = vunpack.c.h.b16 %v2624
  %v2714 = vunpack.c.l.b16 %v2625
  %v2715 = vunpack.c.h.b16 %v2625
  %v2716 = vunpack.c.l.b16 %v2626
  %v2717 = vunpack.c.h.b16 %v2626
  %v2718 = vunpack.c.l.b16 %v2627
  %v2719 = vunpack.c.h.b16 %v2627
  %v2720 = vunpack.c.l.b16 %v2628
  %v2721 = vunpack.c.h.b16 %v2628
  %v2722 = vunpack.c.l.b16 %v2629
  %v2723 = vunpack.c.h.b16 %v2629
  %v2724 = vunpack.c.l.b16 %v2630
  %v2725 = vunpack.c.h.b16 %v2630
  %v2726 = vunpack.c.l.b16 %v2631
  %v2727 = vunpack.c.h.b16 %v2631
  %v2728 = vpack.c.b16 %v2668, %v2664
  %v2729 = vpack.c.b16 %v2669, %v2665
  %v2730 = vpack.c.b16 %v2670, %v2666
  %v2731 = vpack.c.b16 %v2671, %v2667
  %v2732 = vpack.c.b16 %v2676, %v2672
  %v2733 = vpack.c.b16 %v2677, %v2673
  %v2734 = vpack.c.b16 %v2678, %v2674
  %v2735 = vpack.c.b16 %v2679, %v2675
  %v2736 = vpack.c.b16 %v2684, %v2680
  %v2737 = vpack.c.b16 %v2685, %v2681
  %v2738 = vpack.c.b16 %v2686, %v2682
  %v2739 = vpack.c.b16 %v2687, %v2683
  %v2740 = vpack.c.b16 %v2692, %v2688
  %v2741 = vpack.c.b16 %v2693, %v2689
  %v2742 = vpack.c.b16 %v2694, %v2690
  %v2743 = vpack.c.b16 %v2695, %v2691
  %v2744 = vpack.c.b16 %v2700, %v2696
  %v2745 = vpack.c.b16 %v2701, %v2697
  %v2746 = vpack.c.b16 %v2702, %v2698
  %v2747 = vpack.c.b16 %v2703, %v2699
  %v2748 = vpack.c.b16 %v2708, %v2704
  %v2749 = vpack.c.b16 %v2709, %v2705
  %v2750 = vpack.c.b16 %v2710, %v2706
  %v2751 = vpack.c.b16 %v2711, %v2707
  %v2752 = vpack.c.b16 %v2716, %v2712
  %v2753 = vpack.c.b16 %v2717, %v2713
  %v2754 = vpack.c.b16 %v2718, %v2714
  %v2755 = vpack.c.b16 %v2719, %v2715
  %v2756 = vpack.c.b16 %v2724, %v2720
  %v2757 = vpack.c.b16 %v2725, %v2721
  %v2758 = vpack.c.b16 %v2726, %v2722
  %v2759 = vpack.c.b16 %v2727, %v2723
  %2792 = vmatprep.subr.bf16.mxu0 %v2757
  %2793 = vmatpush1.bf16.msra.mxu0 %v2756
  %2794 = vmatprep.subr.bf16.mxu0 %v2753
  %2795 = vmatpush1.bf16.msra.mxu0 %v2752
  %2796 = vmatprep.subr.bf16.mxu0 %v2749
  %2797 = vmatpush1.bf16.msra.mxu0 %v2748
  %2798 = vmatprep.subr.bf16.mxu0 %v2745
  %2799 = vmatpush1.bf16.msra.mxu0 %v2744
  %2800 = vmatprep.subr.bf16.mxu0 %v2741
  %2801 = vmatpush1.bf16.msra.mxu0 %v2740
  %2802 = vmatprep.subr.bf16.mxu0 %v2737
  %2803 = vmatpush1.bf16.msra.mxu0 %v2736
  %2804 = vmatprep.subr.bf16.mxu0 %v2733
  %2805 = vmatpush1.bf16.msra.mxu0 %v2732
  %2806 = vmatprep.subr.bf16.mxu0 %v2729
  %2807 = vmatpush1.bf16.msra.mxu0 %v2728
  %2808 = vmatprep.subr.bf16.mxu0 0
  %2809 = vmatpush2.bf16.msra.mxu0 0
  %2810 = vmatprep.subr.bf16.mxu0 0
  %2811 = vmatpush2.bf16.msra.mxu0 0
  %2812 = vmatprep.subr.bf16.mxu0 0
  %2813 = vmatpush2.bf16.msra.mxu0 0
  %2814 = vmatprep.subr.bf16.mxu0 0
  %2815 = vmatpush2.bf16.msra.mxu0 0
  %2816 = vmatprep.subr.bf16.mxu0 0
  %2817 = vmatpush2.bf16.msra.mxu0 0
  %2818 = vmatprep.subr.bf16.mxu0 0
  %2819 = vmatpush2.bf16.msra.mxu0 0
  %2820 = vmatprep.subr.bf16.mxu0 0
  %2821 = vmatpush2.bf16.msra.mxu0 0
  %2822 = vmatprep.subr.bf16.mxu0 0
  %2823 = vmatpush2.bf16.msra.mxu0 0
  %2824 = vmatprep.mubr.bf16.mxu0 0
  %2825 = vmatmul.mubr.bf16.gmra.mxu0 %v2594
  %v2826 = vpop.f32.mrf.mxu0
  %v2827 = vadd.f32 0.0, %v2826
  %v2828 = vpop.f32.mrf.mxu0
  %v2829 = vadd.f32 0.0, %v2828
  %v2830 = vpop.f32.mrf.mxu0
  %v2831 = vpop.f32.mrf.mxu0
  %2832 = vdwg.mxu0
  %2833 = vmatprep.subr.bf16.mxu0 %v2759
  %2834 = vmatpush1.bf16.msra.mxu0 %v2758
  %2835 = vmatprep.subr.bf16.mxu0 %v2755
  %2836 = vmatpush1.bf16.msra.mxu0 %v2754
  %2837 = vmatprep.subr.bf16.mxu0 %v2751
  %2838 = vmatpush1.bf16.msra.mxu0 %v2750
  %2839 = vmatprep.subr.bf16.mxu0 %v2747
  %2840 = vmatpush1.bf16.msra.mxu0 %v2746
  %2841 = vmatprep.subr.bf16.mxu0 %v2743
  %2842 = vmatpush1.bf16.msra.mxu0 %v2742
  %2843 = vmatprep.subr.bf16.mxu0 %v2739
  %2844 = vmatpush1.bf16.msra.mxu0 %v2738
  %2845 = vmatprep.subr.bf16.mxu0 %v2735
  %2846 = vmatpush1.bf16.msra.mxu0 %v2734
  %2847 = vmatprep.subr.bf16.mxu0 %v2731
  %2848 = vmatpush1.bf16.msra.mxu0 %v2730
  %2849 = vmatprep.subr.bf16.mxu0 0
  %2850 = vmatpush2.bf16.msra.mxu0 0
  %2851 = vmatprep.subr.bf16.mxu0 0
  %2852 = vmatpush2.bf16.msra.mxu0 0
  %2853 = vmatprep.subr.bf16.mxu0 0
  %2854 = vmatpush2.bf16.msra.mxu0 0
  %2855 = vmatprep.subr.bf16.mxu0 0
  %2856 = vmatpush2.bf16.msra.mxu0 0
  %2857 = vmatprep.subr.bf16.mxu0 0
  %2858 = vmatpush2.bf16.msra.mxu0 0
  %2859 = vmatprep.subr.bf16.mxu0 0
  %2860 = vmatpush2.bf16.msra.mxu0 0
  %2861 = vmatprep.subr.bf16.mxu0 0
  %2862 = vmatpush2.bf16.msra.mxu0 0
  %2863 = vmatprep.subr.bf16.mxu0 0
  %2864 = vmatpush2.bf16.msra.mxu0 0
  %2865 = vmatprep.mubr.bf16.mxu0 0
  %2866 = vmatmul.mubr.bf16.gmra.mxu0 %v2594
  %v2867 = vpop.f32.mrf.mxu0
  %v2868 = vadd.f32 0.0, %v2867
  %v2869 = vpop.f32.mrf.mxu0
  %v2870 = vadd.f32 0.0, %v2869
  %v2871 = vpop.f32.mrf.mxu0
  %v2872 = vpop.f32.mrf.mxu0
  %2873 = vdwg.mxu0
  %v2874 = vld [vmem:[%s4] sm:$0xf]
  %v2875 = vld [vmem:[%s4 + $0x4] sm:$0xf]
  %v2876 = vld [vmem:[%s4 + $0x8] sm:$0xf]
  %v2877 = vld [vmem:[%s4 + $0xc] sm:$0xf]
  %v2878 = vld [vmem:[%s4 + $0x10] sm:$0xf]
  %v2879 = vld [vmem:[%s4 + $0x14] sm:$0xf]
  %v2880 = vld [vmem:[%s4 + $0x18] sm:$0xf]
  %v2881 = vld [vmem:[%s4 + $0x1c] sm:$0xf]
  %v2882 = vld [vmem:[%s4 + $0x20] sm:$0xf]
  %v2883 = vld [vmem:[%s4 + $0x24] sm:$0xf]
  %v2884 = vld [vmem:[%s4 + $0x28] sm:$0xf]
  %v2885 = vld [vmem:[%s4 + $0x2c] sm:$0xf]
  %v2886 = vld [vmem:[%s4 + $0x30] sm:$0xf]
  %v2887 = vld [vmem:[%s4 + $0x34] sm:$0xf]
  %v2888 = vld [vmem:[%s4 + $0x38] sm:$0xf]
  %v2889 = vld [vmem:[%s4 + $0x3c] sm:$0xf]
  %v2906 = vunpack.c.l.b16 %v2874
  %v2907 = vunpack.c.l.b16 %v2875
  %v2908 = vunpack.c.l.b16 %v2876
  %v2909 = vunpack.c.l.b16 %v2877
  %v2910 = vunpack.c.l.b16 %v2878
  %v2911 = vunpack.c.l.b16 %v2879
  %v2912 = vunpack.c.l.b16 %v2880
  %v2913 = vunpack.c.l.b16 %v2881
  %v2914 = vunpack.c.l.b16 %v2882
  %v2915 = vunpack.c.l.b16 %v2883
  %v2916 = vunpack.c.l.b16 %v2884
  %v2917 = vunpack.c.l.b16 %v2885
  %v2918 = vunpack.c.l.b16 %v2886
  %v2919 = vunpack.c.l.b16 %v2887
  %v2920 = vunpack.c.l.b16 %v2888
  %v2921 = vunpack.c.l.b16 %v2889
  %v2922 = vpack.c.b16 %v2907, %v2906
  %v2923 = vpack.c.b16 %v2909, %v2908
  %v2924 = vpack.c.b16 %v2911, %v2910
  %v2925 = vpack.c.b16 %v2913, %v2912
  %v2926 = vpack.c.b16 %v2915, %v2914
  %v2927 = vpack.c.b16 %v2917, %v2916
  %v2928 = vpack.c.b16 %v2919, %v2918
  %v2929 = vpack.c.b16 %v2921, %v2920
  %2938 = vmatprep.subr.bf16.mxu0 0
  %2939 = vmatpush1.bf16.msra.mxu0 %v2929
  %2940 = vmatprep.subr.bf16.mxu0 0
  %2941 = vmatpush1.bf16.msra.mxu0 %v2928
  %2942 = vmatprep.subr.bf16.mxu0 0
  %2943 = vmatpush1.bf16.msra.mxu0 %v2927
  %2944 = vmatprep.subr.bf16.mxu0 0
  %2945 = vmatpush1.bf16.msra.mxu0 %v2926
  %2946 = vmatprep.subr.bf16.mxu0 0
  %2947 = vmatpush1.bf16.msra.mxu0 %v2925
  %2948 = vmatprep.subr.bf16.mxu0 0
  %2949 = vmatpush1.bf16.msra.mxu0 %v2924
  %2950 = vmatprep.subr.bf16.mxu0 0
  %2951 = vmatpush1.bf16.msra.mxu0 %v2923
  %2952 = vmatprep.subr.bf16.mxu0 0
  %2953 = vmatpush1.bf16.msra.mxu0 %v2922
  %2954 = vmatprep.subr.bf16.mxu0 0
  %2955 = vmatpush2.bf16.msra.mxu0 0
  %2956 = vmatprep.subr.bf16.mxu0 0
  %2957 = vmatpush2.bf16.msra.mxu0 0
  %2958 = vmatprep.subr.bf16.mxu0 0
  %2959 = vmatpush2.bf16.msra.mxu0 0
  %2960 = vmatprep.subr.bf16.mxu0 0
  %2961 = vmatpush2.bf16.msra.mxu0 0
  %2962 = vmatprep.subr.bf16.mxu0 0
  %2963 = vmatpush2.bf16.msra.mxu0 0
  %2964 = vmatprep.subr.bf16.mxu0 0
  %2965 = vmatpush2.bf16.msra.mxu0 0
  %2966 = vmatprep.subr.bf16.mxu0 0
  %2967 = vmatpush2.bf16.msra.mxu0 0
  %2968 = vmatprep.subr.bf16.mxu0 0
  %2969 = vmatpush2.bf16.msra.mxu0 0
  %2970 = vmatprep.mubr.bf16.mxu0 0
  %2971 = vmatmul.mubr.bf16.gmra.mxu0 %v2595
  %v2972 = vpop.f32.mrf.mxu0
  %v2973 = vadd.f32 %v798, %v2972
  %v2974 = vpop.f32.mrf.mxu0
  %v2975 = vpop.f32.mrf.mxu0
  %v2976 = vpop.f32.mrf.mxu0
  %2977 = vdwg.mxu0
  %v2978 = vadd.f32 %v2596, %v2827
  %v2979 = vadd.f32 %v2597, %v2829
  %v2980 = vadd.f32 %v2598, %v2868
  %v2981 = vadd.f32 %v2599, %v2870
  %v2982 = vxor.u32 %v2978, 2147483648
  %v2983 = vxor.u32 %v2979, 2147483648
  %v2984 = vxor.u32 %v2980, 2147483648
  %v2985 = vxor.u32 %v2981, 2147483648
  %v2986 = vmul.f32 %v2982, 1.442695
  %v2987 = vpow.pop %v2986
  %v2988 = vmul.f32 %v2983, 1.442695
  %v2989 = vpow.pop %v2988
  %v2990 = vmul.f32 %v2984, 1.442695
  %v2991 = vpow.pop %v2990
  %v2992 = vmul.f32 %v2985, 1.442695
  %v2993 = vpow.pop %v2992
  %v2994 = vadd.f32 %v2987, 1.0
  %v2995 = vadd.f32 %v2989, 1.0
  %v2996 = vadd.f32 %v2991, 1.0
  %v2997 = vadd.f32 %v2993, 1.0
  %v2998 = vrcp.pop %v2994
  %v2999 = vmul.f32 1.0, %v2998
  %v3000 = vrcp.pop %v2995
  %v3001 = vmul.f32 1.0, %v3000
  %v3002 = vrcp.pop %v2996
  %v3003 = vmul.f32 1.0, %v3002
  %v3004 = vrcp.pop %v2997
  %v3005 = vmul.f32 1.0, %v3004
  %v3006 = vmul.f32 %v3003, %v2973
  %v3007 = vmul.f32 %v2999, %v3001
  %v3008 = vadd.f32 %v3006, %v3007
  %v3009 = vtanh.pop %v3008
  %v3010 = vmul.f32 %v3005, %v3009
  %3011 = vst [vmem:[#allocation3 + $0x28] sm:$0xff] %v3010
  %v3012 = vpack.c.bf16 %v3010, %v3010
  %v3013 = vpack.c.bf16 %v3008, %v3008
  %v3014 = vld [vmem:[#allocation2 + $0xc0] sm:$0xff]
  %v3015 = vld [vmem:[#allocation2 + $0xc8] sm:$0xff]
  %v3016 = vld [vmem:[#allocation2 + $0xd0] sm:$0xff]
  %v3017 = vld [vmem:[#allocation2 + $0xd8] sm:$0xff]
  %v3018 = vld [vmem:[%s3] sm:$0xff]
  %v3019 = vld [vmem:[%s3 + $0x8] sm:$0xff]
  %v3020 = vld [vmem:[%s3 + $0x10] sm:$0xff]
  %v3021 = vld [vmem:[%s3 + $0x18] sm:$0xff]
  %v3022 = vld [vmem:[%s3 + $0x20] sm:$0xff]
  %v3023 = vld [vmem:[%s3 + $0x28] sm:$0xff]
  %v3024 = vld [vmem:[%s3 + $0x30] sm:$0xff]
  %v3025 = vld [vmem:[%s3 + $0x38] sm:$0xff]
  %v3026 = vld [vmem:[%s3 + $0x40] sm:$0xff]
  %v3027 = vld [vmem:[%s3 + $0x48] sm:$0xff]
  %v3028 = vld [vmem:[%s3 + $0x50] sm:$0xff]
  %v3029 = vld [vmem:[%s3 + $0x58] sm:$0xff]
  %v3030 = vld [vmem:[%s3 + $0x60] sm:$0xff]
  %v3031 = vld [vmem:[%s3 + $0x68] sm:$0xff]
  %v3032 = vld [vmem:[%s3 + $0x70] sm:$0xff]
  %v3033 = vld [vmem:[%s3 + $0x78] sm:$0xff]
  %v3034 = vld [vmem:[%s3 + $0x80] sm:$0xff]
  %v3035 = vld [vmem:[%s3 + $0x88] sm:$0xff]
  %v3036 = vld [vmem:[%s3 + $0x90] sm:$0xff]
  %v3037 = vld [vmem:[%s3 + $0x98] sm:$0xff]
  %v3038 = vld [vmem:[%s3 + $0xa0] sm:$0xff]
  %v3039 = vld [vmem:[%s3 + $0xa8] sm:$0xff]
  %v3040 = vld [vmem:[%s3 + $0xb0] sm:$0xff]
  %v3041 = vld [vmem:[%s3 + $0xb8] sm:$0xff]
  %v3042 = vld [vmem:[%s3 + $0xc0] sm:$0xff]
  %v3043 = vld [vmem:[%s3 + $0xc8] sm:$0xff]
  %v3044 = vld [vmem:[%s3 + $0xd0] sm:$0xff]
  %v3045 = vld [vmem:[%s3 + $0xd8] sm:$0xff]
  %v3046 = vld [vmem:[%s3 + $0xe0] sm:$0xff]
  %v3047 = vld [vmem:[%s3 + $0xe8] sm:$0xff]
  %v3048 = vld [vmem:[%s3 + $0xf0] sm:$0xff]
  %v3049 = vld [vmem:[%s3 + $0xf8] sm:$0xff]
  %v3082 = vunpack.c.l.b16 %v3018
  %v3083 = vunpack.c.h.b16 %v3018
  %v3084 = vunpack.c.l.b16 %v3019
  %v3085 = vunpack.c.h.b16 %v3019
  %v3086 = vunpack.c.l.b16 %v3020
  %v3087 = vunpack.c.h.b16 %v3020
  %v3088 = vunpack.c.l.b16 %v3021
  %v3089 = vunpack.c.h.b16 %v3021
  %v3090 = vunpack.c.l.b16 %v3022
  %v3091 = vunpack.c.h.b16 %v3022
  %v3092 = vunpack.c.l.b16 %v3023
  %v3093 = vunpack.c.h.b16 %v3023
  %v3094 = vunpack.c.l.b16 %v3024
  %v3095 = vunpack.c.h.b16 %v3024
  %v3096 = vunpack.c.l.b16 %v3025
  %v3097 = vunpack.c.h.b16 %v3025
  %v3098 = vunpack.c.l.b16 %v3026
  %v3099 = vunpack.c.h.b16 %v3026
  %v3100 = vunpack.c.l.b16 %v3027
  %v3101 = vunpack.c.h.b16 %v3027
  %v3102 = vunpack.c.l.b16 %v3028
  %v3103 = vunpack.c.h.b16 %v3028
  %v3104 = vunpack.c.l.b16 %v3029
  %v3105 = vunpack.c.h.b16 %v3029
  %v3106 = vunpack.c.l.b16 %v3030
  %v3107 = vunpack.c.h.b16 %v3030
  %v3108 = vunpack.c.l.b16 %v3031
  %v3109 = vunpack.c.h.b16 %v3031
  %v3110 = vunpack.c.l.b16 %v3032
  %v3111 = vunpack.c.h.b16 %v3032
  %v3112 = vunpack.c.l.b16 %v3033
  %v3113 = vunpack.c.h.b16 %v3033
  %v3114 = vunpack.c.l.b16 %v3034
  %v3115 = vunpack.c.h.b16 %v3034
  %v3116 = vunpack.c.l.b16 %v3035
  %v3117 = vunpack.c.h.b16 %v3035
  %v3118 = vunpack.c.l.b16 %v3036
  %v3119 = vunpack.c.h.b16 %v3036
  %v3120 = vunpack.c.l.b16 %v3037
  %v3121 = vunpack.c.h.b16 %v3037
  %v3122 = vunpack.c.l.b16 %v3038
  %v3123 = vunpack.c.h.b16 %v3038
  %v3124 = vunpack.c.l.b16 %v3039
  %v3125 = vunpack.c.h.b16 %v3039
  %v3126 = vunpack.c.l.b16 %v3040
  %v3127 = vunpack.c.h.b16 %v3040
  %v3128 = vunpack.c.l.b16 %v3041
  %v3129 = vunpack.c.h.b16 %v3041
  %v3130 = vunpack.c.l.b16 %v3042
  %v3131 = vunpack.c.h.b16 %v3042
  %v3132 = vunpack.c.l.b16 %v3043
  %v3133 = vunpack.c.h.b16 %v3043
  %v3134 = vunpack.c.l.b16 %v3044
  %v3135 = vunpack.c.h.b16 %v3044
  %v3136 = vunpack.c.l.b16 %v3045
  %v3137 = vunpack.c.h.b16 %v3045
  %v3138 = vunpack.c.l.b16 %v3046
  %v3139 = vunpack.c.h.b16 %v3046
  %v3140 = vunpack.c.l.b16 %v3047
  %v3141 = vunpack.c.h.b16 %v3047
  %v3142 = vunpack.c.l.b16 %v3048
  %v3143 = vunpack.c.h.b16 %v3048
  %v3144 = vunpack.c.l.b16 %v3049
  %v3145 = vunpack.c.h.b16 %v3049
  %v3146 = vpack.c.b16 %v3086, %v3082
  %v3147 = vpack.c.b16 %v3087, %v3083
  %v3148 = vpack.c.b16 %v3088, %v3084
  %v3149 = vpack.c.b16 %v3089, %v3085
  %v3150 = vpack.c.b16 %v3094, %v3090
  %v3151 = vpack.c.b16 %v3095, %v3091
  %v3152 = vpack.c.b16 %v3096, %v3092
  %v3153 = vpack.c.b16 %v3097, %v3093
  %v3154 = vpack.c.b16 %v3102, %v3098
  %v3155 = vpack.c.b16 %v3103, %v3099
  %v3156 = vpack.c.b16 %v3104, %v3100
  %v3157 = vpack.c.b16 %v3105, %v3101
  %v3158 = vpack.c.b16 %v3110, %v3106
  %v3159 = vpack.c.b16 %v3111, %v3107
  %v3160 = vpack.c.b16 %v3112, %v3108
  %v3161 = vpack.c.b16 %v3113, %v3109
  %v3162 = vpack.c.b16 %v3118, %v3114
  %v3163 = vpack.c.b16 %v3119, %v3115
  %v3164 = vpack.c.b16 %v3120, %v3116
  %v3165 = vpack.c.b16 %v3121, %v3117
  %v3166 = vpack.c.b16 %v3126, %v3122
  %v3167 = vpack.c.b16 %v3127, %v3123
  %v3168 = vpack.c.b16 %v3128, %v3124
  %v3169 = vpack.c.b16 %v3129, %v3125
  %v3170 = vpack.c.b16 %v3134, %v3130
  %v3171 = vpack.c.b16 %v3135, %v3131
  %v3172 = vpack.c.b16 %v3136, %v3132
  %v3173 = vpack.c.b16 %v3137, %v3133
  %v3174 = vpack.c.b16 %v3142, %v3138
  %v3175 = vpack.c.b16 %v3143, %v3139
  %v3176 = vpack.c.b16 %v3144, %v3140
  %v3177 = vpack.c.b16 %v3145, %v3141
  %3210 = vmatprep.subr.bf16.mxu0 %v3175
  %3211 = vmatpush1.bf16.msra.mxu0 %v3174
  %3212 = vmatprep.subr.bf16.mxu0 %v3171
  %3213 = vmatpush1.bf16.msra.mxu0 %v3170
  %3214 = vmatprep.subr.bf16.mxu0 %v3167
  %3215 = vmatpush1.bf16.msra.mxu0 %v3166
  %3216 = vmatprep.subr.bf16.mxu0 %v3163
  %3217 = vmatpush1.bf16.msra.mxu0 %v3162
  %3218 = vmatprep.subr.bf16.mxu0 %v3159
  %3219 = vmatpush1.bf16.msra.mxu0 %v3158
  %3220 = vmatprep.subr.bf16.mxu0 %v3155
  %3221 = vmatpush1.bf16.msra.mxu0 %v3154
  %3222 = vmatprep.subr.bf16.mxu0 %v3151
  %3223 = vmatpush1.bf16.msra.mxu0 %v3150
  %3224 = vmatprep.subr.bf16.mxu0 %v3147
  %3225 = vmatpush1.bf16.msra.mxu0 %v3146
  %3226 = vmatprep.subr.bf16.mxu0 0
  %3227 = vmatpush2.bf16.msra.mxu0 0
  %3228 = vmatprep.subr.bf16.mxu0 0
  %3229 = vmatpush2.bf16.msra.mxu0 0
  %3230 = vmatprep.subr.bf16.mxu0 0
  %3231 = vmatpush2.bf16.msra.mxu0 0
  %3232 = vmatprep.subr.bf16.mxu0 0
  %3233 = vmatpush2.bf16.msra.mxu0 0
  %3234 = vmatprep.subr.bf16.mxu0 0
  %3235 = vmatpush2.bf16.msra.mxu0 0
  %3236 = vmatprep.subr.bf16.mxu0 0
  %3237 = vmatpush2.bf16.msra.mxu0 0
  %3238 = vmatprep.subr.bf16.mxu0 0
  %3239 = vmatpush2.bf16.msra.mxu0 0
  %3240 = vmatprep.subr.bf16.mxu0 0
  %3241 = vmatpush2.bf16.msra.mxu0 0
  %3242 = vmatprep.mubr.bf16.mxu0 0
  %3243 = vmatmul.mubr.bf16.gmra.mxu0 %v3012
  %v3244 = vpop.f32.mrf.mxu0
  %v3245 = vadd.f32 0.0, %v3244
  %v3246 = vpop.f32.mrf.mxu0
  %v3247 = vadd.f32 0.0, %v3246
  %v3248 = vpop.f32.mrf.mxu0
  %v3249 = vpop.f32.mrf.mxu0
  %3250 = vdwg.mxu0
  %3251 = vmatprep.subr.bf16.mxu0 %v3177
  %3252 = vmatpush1.bf16.msra.mxu0 %v3176
  %3253 = vmatprep.subr.bf16.mxu0 %v3173
  %3254 = vmatpush1.bf16.msra.mxu0 %v3172
  %3255 = vmatprep.subr.bf16.mxu0 %v3169
  %3256 = vmatpush1.bf16.msra.mxu0 %v3168
  %3257 = vmatprep.subr.bf16.mxu0 %v3165
  %3258 = vmatpush1.bf16.msra.mxu0 %v3164
  %3259 = vmatprep.subr.bf16.mxu0 %v3161
  %3260 = vmatpush1.bf16.msra.mxu0 %v3160
  %3261 = vmatprep.subr.bf16.mxu0 %v3157
  %3262 = vmatpush1.bf16.msra.mxu0 %v3156
  %3263 = vmatprep.subr.bf16.mxu0 %v3153
  %3264 = vmatpush1.bf16.msra.mxu0 %v3152
  %3265 = vmatprep.subr.bf16.mxu0 %v3149
  %3266 = vmatpush1.bf16.msra.mxu0 %v3148
  %3267 = vmatprep.subr.bf16.mxu0 0
  %3268 = vmatpush2.bf16.msra.mxu0 0
  %3269 = vmatprep.subr.bf16.mxu0 0
  %3270 = vmatpush2.bf16.msra.mxu0 0
  %3271 = vmatprep.subr.bf16.mxu0 0
  %3272 = vmatpush2.bf16.msra.mxu0 0
  %3273 = vmatprep.subr.bf16.mxu0 0
  %3274 = vmatpush2.bf16.msra.mxu0 0
  %3275 = vmatprep.subr.bf16.mxu0 0
  %3276 = vmatpush2.bf16.msra.mxu0 0
  %3277 = vmatprep.subr.bf16.mxu0 0
  %3278 = vmatpush2.bf16.msra.mxu0 0
  %3279 = vmatprep.subr.bf16.mxu0 0
  %3280 = vmatpush2.bf16.msra.mxu0 0
  %3281 = vmatprep.subr.bf16.mxu0 0
  %3282 = vmatpush2.bf16.msra.mxu0 0
  %3283 = vmatprep.mubr.bf16.mxu0 0
  %3284 = vmatmul.mubr.bf16.gmra.mxu0 %v3012
  %v3285 = vpop.f32.mrf.mxu0
  %v3286 = vadd.f32 0.0, %v3285
  %v3287 = vpop.f32.mrf.mxu0
  %v3288 = vadd.f32 0.0, %v3287
  %v3289 = vpop.f32.mrf.mxu0
  %v3290 = vpop.f32.mrf.mxu0
  %3291 = vdwg.mxu0
  %v3292 = vld [vmem:[%s4] sm:$0xf]
  %v3293 = vld [vmem:[%s4 + $0x4] sm:$0xf]
  %v3294 = vld [vmem:[%s4 + $0x8] sm:$0xf]
  %v3295 = vld [vmem:[%s4 + $0xc] sm:$0xf]
  %v3296 = vld [vmem:[%s4 + $0x10] sm:$0xf]
  %v3297 = vld [vmem:[%s4 + $0x14] sm:$0xf]
  %v3298 = vld [vmem:[%s4 + $0x18] sm:$0xf]
  %v3299 = vld [vmem:[%s4 + $0x1c] sm:$0xf]
  %v3300 = vld [vmem:[%s4 + $0x20] sm:$0xf]
  %v3301 = vld [vmem:[%s4 + $0x24] sm:$0xf]
  %v3302 = vld [vmem:[%s4 + $0x28] sm:$0xf]
  %v3303 = vld [vmem:[%s4 + $0x2c] sm:$0xf]
  %v3304 = vld [vmem:[%s4 + $0x30] sm:$0xf]
  %v3305 = vld [vmem:[%s4 + $0x34] sm:$0xf]
  %v3306 = vld [vmem:[%s4 + $0x38] sm:$0xf]
  %v3307 = vld [vmem:[%s4 + $0x3c] sm:$0xf]
  %v3324 = vunpack.c.l.b16 %v3292
  %v3325 = vunpack.c.l.b16 %v3293
  %v3326 = vunpack.c.l.b16 %v3294
  %v3327 = vunpack.c.l.b16 %v3295
  %v3328 = vunpack.c.l.b16 %v3296
  %v3329 = vunpack.c.l.b16 %v3297
  %v3330 = vunpack.c.l.b16 %v3298
  %v3331 = vunpack.c.l.b16 %v3299
  %v3332 = vunpack.c.l.b16 %v3300
  %v3333 = vunpack.c.l.b16 %v3301
  %v3334 = vunpack.c.l.b16 %v3302
  %v3335 = vunpack.c.l.b16 %v3303
  %v3336 = vunpack.c.l.b16 %v3304
  %v3337 = vunpack.c.l.b16 %v3305
  %v3338 = vunpack.c.l.b16 %v3306
  %v3339 = vunpack.c.l.b16 %v3307
  %v3340 = vpack.c.b16 %v3325, %v3324
  %v3341 = vpack.c.b16 %v3327, %v3326
  %v3342 = vpack.c.b16 %v3329, %v3328
  %v3343 = vpack.c.b16 %v3331, %v3330
  %v3344 = vpack.c.b16 %v3333, %v3332
  %v3345 = vpack.c.b16 %v3335, %v3334
  %v3346 = vpack.c.b16 %v3337, %v3336
  %v3347 = vpack.c.b16 %v3339, %v3338
  %3356 = vmatprep.subr.bf16.mxu0 0
  %3357 = vmatpush1.bf16.msra.mxu0 %v3347
  %3358 = vmatprep.subr.bf16.mxu0 0
  %3359 = vmatpush1.bf16.msra.mxu0 %v3346
  %3360 = vmatprep.subr.bf16.mxu0 0
  %3361 = vmatpush1.bf16.msra.mxu0 %v3345
  %3362 = vmatprep.subr.bf16.mxu0 0
  %3363 = vmatpush1.bf16.msra.mxu0 %v3344
  %3364 = vmatprep.subr.bf16.mxu0 0
  %3365 = vmatpush1.bf16.msra.mxu0 %v3343
  %3366 = vmatprep.subr.bf16.mxu0 0
  %3367 = vmatpush1.bf16.msra.mxu0 %v3342
  %3368 = vmatprep.subr.bf16.mxu0 0
  %3369 = vmatpush1.bf16.msra.mxu0 %v3341
  %3370 = vmatprep.subr.bf16.mxu0 0
  %3371 = vmatpush1.bf16.msra.mxu0 %v3340
  %3372 = vmatprep.subr.bf16.mxu0 0
  %3373 = vmatpush2.bf16.msra.mxu0 0
  %3374 = vmatprep.subr.bf16.mxu0 0
  %3375 = vmatpush2.bf16.msra.mxu0 0
  %3376 = vmatprep.subr.bf16.mxu0 0
  %3377 = vmatpush2.bf16.msra.mxu0 0
  %3378 = vmatprep.subr.bf16.mxu0 0
  %3379 = vmatpush2.bf16.msra.mxu0 0
  %3380 = vmatprep.subr.bf16.mxu0 0
  %3381 = vmatpush2.bf16.msra.mxu0 0
  %3382 = vmatprep.subr.bf16.mxu0 0
  %3383 = vmatpush2.bf16.msra.mxu0 0
  %3384 = vmatprep.subr.bf16.mxu0 0
  %3385 = vmatpush2.bf16.msra.mxu0 0
  %3386 = vmatprep.subr.bf16.mxu0 0
  %3387 = vmatpush2.bf16.msra.mxu0 0
  %3388 = vmatprep.mubr.bf16.mxu0 0
  %3389 = vmatmul.mubr.bf16.gmra.mxu0 %v3013
  %v3390 = vpop.f32.mrf.mxu0
  %v3391 = vadd.f32 %v798, %v3390
  %v3392 = vpop.f32.mrf.mxu0
  %v3393 = vpop.f32.mrf.mxu0
  %v3394 = vpop.f32.mrf.mxu0
  %3395 = vdwg.mxu0
  %v3396 = vadd.f32 %v3014, %v3245
  %v3397 = vadd.f32 %v3015, %v3247
  %v3398 = vadd.f32 %v3016, %v3286
  %v3399 = vadd.f32 %v3017, %v3288
  %v3400 = vxor.u32 %v3396, 2147483648
  %v3401 = vxor.u32 %v3397, 2147483648
  %v3402 = vxor.u32 %v3398, 2147483648
  %v3403 = vxor.u32 %v3399, 2147483648
  %v3404 = vmul.f32 %v3400, 1.442695
  %v3405 = vpow.pop %v3404
  %v3406 = vmul.f32 %v3401, 1.442695
  %v3407 = vpow.pop %v3406
  %v3408 = vmul.f32 %v3402, 1.442695
  %v3409 = vpow.pop %v3408
  %v3410 = vmul.f32 %v3403, 1.442695
  %v3411 = vpow.pop %v3410
  %v3412 = vadd.f32 %v3405, 1.0
  %v3413 = vadd.f32 %v3407, 1.0
  %v3414 = vadd.f32 %v3409, 1.0
  %v3415 = vadd.f32 %v3411, 1.0
  %v3416 = vrcp.pop %v3412
  %v3417 = vmul.f32 1.0, %v3416
  %v3418 = vrcp.pop %v3413
  %v3419 = vmul.f32 1.0, %v3418
  %v3420 = vrcp.pop %v3414
  %v3421 = vmul.f32 1.0, %v3420
  %v3422 = vrcp.pop %v3415
  %v3423 = vmul.f32 1.0, %v3422
  %v3424 = vmul.f32 %v3421, %v3391
  %v3425 = vmul.f32 %v3417, %v3419
  %v3426 = vadd.f32 %v3424, %v3425
  %v3427 = vtanh.pop %v3426
  %v3428 = vmul.f32 %v3423, %v3427
  %3429 = vst [vmem:[#allocation3 + $0x30] sm:$0xff] %v3428
  %v3430 = vpack.c.bf16 %v3428, %v3428
  %v3431 = vpack.c.bf16 %v3426, %v3426
  %v3432 = vld [vmem:[#allocation2 + $0xe0] sm:$0xff]
  %v3433 = vld [vmem:[#allocation2 + $0xe8] sm:$0xff]
  %v3434 = vld [vmem:[#allocation2 + $0xf0] sm:$0xff]
  %v3435 = vld [vmem:[#allocation2 + $0xf8] sm:$0xff]
  %v3436 = vld [vmem:[%s3] sm:$0xff]
  %v3437 = vld [vmem:[%s3 + $0x8] sm:$0xff]
  %v3438 = vld [vmem:[%s3 + $0x10] sm:$0xff]
  %v3439 = vld [vmem:[%s3 + $0x18] sm:$0xff]
  %v3440 = vld [vmem:[%s3 + $0x20] sm:$0xff]
  %v3441 = vld [vmem:[%s3 + $0x28] sm:$0xff]
  %v3442 = vld [vmem:[%s3 + $0x30] sm:$0xff]
  %v3443 = vld [vmem:[%s3 + $0x38] sm:$0xff]
  %v3444 = vld [vmem:[%s3 + $0x40] sm:$0xff]
  %v3445 = vld [vmem:[%s3 + $0x48] sm:$0xff]
  %v3446 = vld [vmem:[%s3 + $0x50] sm:$0xff]
  %v3447 = vld [vmem:[%s3 + $0x58] sm:$0xff]
  %v3448 = vld [vmem:[%s3 + $0x60] sm:$0xff]
  %v3449 = vld [vmem:[%s3 + $0x68] sm:$0xff]
  %v3450 = vld [vmem:[%s3 + $0x70] sm:$0xff]
  %v3451 = vld [vmem:[%s3 + $0x78] sm:$0xff]
  %v3452 = vld [vmem:[%s3 + $0x80] sm:$0xff]
  %v3453 = vld [vmem:[%s3 + $0x88] sm:$0xff]
  %v3454 = vld [vmem:[%s3 + $0x90] sm:$0xff]
  %v3455 = vld [vmem:[%s3 + $0x98] sm:$0xff]
  %v3456 = vld [vmem:[%s3 + $0xa0] sm:$0xff]
  %v3457 = vld [vmem:[%s3 + $0xa8] sm:$0xff]
  %v3458 = vld [vmem:[%s3 + $0xb0] sm:$0xff]
  %v3459 = vld [vmem:[%s3 + $0xb8] sm:$0xff]
  %v3460 = vld [vmem:[%s3 + $0xc0] sm:$0xff]
  %v3461 = vld [vmem:[%s3 + $0xc8] sm:$0xff]
  %v3462 = vld [vmem:[%s3 + $0xd0] sm:$0xff]
  %v3463 = vld [vmem:[%s3 + $0xd8] sm:$0xff]
  %v3464 = vld [vmem:[%s3 + $0xe0] sm:$0xff]
  %v3465 = vld [vmem:[%s3 + $0xe8] sm:$0xff]
  %v3466 = vld [vmem:[%s3 + $0xf0] sm:$0xff]
  %v3467 = vld [vmem:[%s3 + $0xf8] sm:$0xff]
  %v3500 = vunpack.c.l.b16 %v3436
  %v3501 = vunpack.c.h.b16 %v3436
  %v3502 = vunpack.c.l.b16 %v3437
  %v3503 = vunpack.c.h.b16 %v3437
  %v3504 = vunpack.c.l.b16 %v3438
  %v3505 = vunpack.c.h.b16 %v3438
  %v3506 = vunpack.c.l.b16 %v3439
  %v3507 = vunpack.c.h.b16 %v3439
  %v3508 = vunpack.c.l.b16 %v3440
  %v3509 = vunpack.c.h.b16 %v3440
  %v3510 = vunpack.c.l.b16 %v3441
  %v3511 = vunpack.c.h.b16 %v3441
  %v3512 = vunpack.c.l.b16 %v3442
  %v3513 = vunpack.c.h.b16 %v3442
  %v3514 = vunpack.c.l.b16 %v3443
  %v3515 = vunpack.c.h.b16 %v3443
  %v3516 = vunpack.c.l.b16 %v3444
  %v3517 = vunpack.c.h.b16 %v3444
  %v3518 = vunpack.c.l.b16 %v3445
  %v3519 = vunpack.c.h.b16 %v3445
  %v3520 = vunpack.c.l.b16 %v3446
  %v3521 = vunpack.c.h.b16 %v3446
  %v3522 = vunpack.c.l.b16 %v3447
  %v3523 = vunpack.c.h.b16 %v3447
  %v3524 = vunpack.c.l.b16 %v3448
  %v3525 = vunpack.c.h.b16 %v3448
  %v3526 = vunpack.c.l.b16 %v3449
  %v3527 = vunpack.c.h.b16 %v3449
  %v3528 = vunpack.c.l.b16 %v3450
  %v3529 = vunpack.c.h.b16 %v3450
  %v3530 = vunpack.c.l.b16 %v3451
  %v3531 = vunpack.c.h.b16 %v3451
  %v3532 = vunpack.c.l.b16 %v3452
  %v3533 = vunpack.c.h.b16 %v3452
  %v3534 = vunpack.c.l.b16 %v3453
  %v3535 = vunpack.c.h.b16 %v3453
  %v3536 = vunpack.c.l.b16 %v3454
  %v3537 = vunpack.c.h.b16 %v3454
  %v3538 = vunpack.c.l.b16 %v3455
  %v3539 = vunpack.c.h.b16 %v3455
  %v3540 = vunpack.c.l.b16 %v3456
  %v3541 = vunpack.c.h.b16 %v3456
  %v3542 = vunpack.c.l.b16 %v3457
  %v3543 = vunpack.c.h.b16 %v3457
  %v3544 = vunpack.c.l.b16 %v3458
  %v3545 = vunpack.c.h.b16 %v3458
  %v3546 = vunpack.c.l.b16 %v3459
  %v3547 = vunpack.c.h.b16 %v3459
  %v3548 = vunpack.c.l.b16 %v3460
  %v3549 = vunpack.c.h.b16 %v3460
  %v3550 = vunpack.c.l.b16 %v3461
  %v3551 = vunpack.c.h.b16 %v3461
  %v3552 = vunpack.c.l.b16 %v3462
  %v3553 = vunpack.c.h.b16 %v3462
  %v3554 = vunpack.c.l.b16 %v3463
  %v3555 = vunpack.c.h.b16 %v3463
  %v3556 = vunpack.c.l.b16 %v3464
  %v3557 = vunpack.c.h.b16 %v3464
  %v3558 = vunpack.c.l.b16 %v3465
  %v3559 = vunpack.c.h.b16 %v3465
  %v3560 = vunpack.c.l.b16 %v3466
  %v3561 = vunpack.c.h.b16 %v3466
  %v3562 = vunpack.c.l.b16 %v3467
  %v3563 = vunpack.c.h.b16 %v3467
  %v3564 = vpack.c.b16 %v3504, %v3500
  %v3565 = vpack.c.b16 %v3505, %v3501
  %v3566 = vpack.c.b16 %v3506, %v3502
  %v3567 = vpack.c.b16 %v3507, %v3503
  %v3568 = vpack.c.b16 %v3512, %v3508
  %v3569 = vpack.c.b16 %v3513, %v3509
  %v3570 = vpack.c.b16 %v3514, %v3510
  %v3571 = vpack.c.b16 %v3515, %v3511
  %v3572 = vpack.c.b16 %v3520, %v3516
  %v3573 = vpack.c.b16 %v3521, %v3517
  %v3574 = vpack.c.b16 %v3522, %v3518
  %v3575 = vpack.c.b16 %v3523, %v3519
  %v3576 = vpack.c.b16 %v3528, %v3524
  %v3577 = vpack.c.b16 %v3529, %v3525
  %v3578 = vpack.c.b16 %v3530, %v3526
  %v3579 = vpack.c.b16 %v3531, %v3527
  %v3580 = vpack.c.b16 %v3536, %v3532
  %v3581 = vpack.c.b16 %v3537, %v3533
  %v3582 = vpack.c.b16 %v3538, %v3534
  %v3583 = vpack.c.b16 %v3539, %v3535
  %v3584 = vpack.c.b16 %v3544, %v3540
  %v3585 = vpack.c.b16 %v3545, %v3541
  %v3586 = vpack.c.b16 %v3546, %v3542
  %v3587 = vpack.c.b16 %v3547, %v3543
  %v3588 = vpack.c.b16 %v3552, %v3548
  %v3589 = vpack.c.b16 %v3553, %v3549
  %v3590 = vpack.c.b16 %v3554, %v3550
  %v3591 = vpack.c.b16 %v3555, %v3551
  %v3592 = vpack.c.b16 %v3560, %v3556
  %v3593 = vpack.c.b16 %v3561, %v3557
  %v3594 = vpack.c.b16 %v3562, %v3558
  %v3595 = vpack.c.b16 %v3563, %v3559
  %3628 = vmatprep.subr.bf16.mxu0 %v3593
  %3629 = vmatpush1.bf16.msra.mxu0 %v3592
  %3630 = vmatprep.subr.bf16.mxu0 %v3589
  %3631 = vmatpush1.bf16.msra.mxu0 %v3588
  %3632 = vmatprep.subr.bf16.mxu0 %v3585
  %3633 = vmatpush1.bf16.msra.mxu0 %v3584
  %3634 = vmatprep.subr.bf16.mxu0 %v3581
  %3635 = vmatpush1.bf16.msra.mxu0 %v3580
  %3636 = vmatprep.subr.bf16.mxu0 %v3577
  %3637 = vmatpush1.bf16.msra.mxu0 %v3576
  %3638 = vmatprep.subr.bf16.mxu0 %v3573
  %3639 = vmatpush1.bf16.msra.mxu0 %v3572
  %3640 = vmatprep.subr.bf16.mxu0 %v3569
  %3641 = vmatpush1.bf16.msra.mxu0 %v3568
  %3642 = vmatprep.subr.bf16.mxu0 %v3565
  %3643 = vmatpush1.bf16.msra.mxu0 %v3564
  %3644 = vmatprep.subr.bf16.mxu0 0
  %3645 = vmatpush2.bf16.msra.mxu0 0
  %3646 = vmatprep.subr.bf16.mxu0 0
  %3647 = vmatpush2.bf16.msra.mxu0 0
  %3648 = vmatprep.subr.bf16.mxu0 0
  %3649 = vmatpush2.bf16.msra.mxu0 0
  %3650 = vmatprep.subr.bf16.mxu0 0
  %3651 = vmatpush2.bf16.msra.mxu0 0
  %3652 = vmatprep.subr.bf16.mxu0 0
  %3653 = vmatpush2.bf16.msra.mxu0 0
  %3654 = vmatprep.subr.bf16.mxu0 0
  %3655 = vmatpush2.bf16.msra.mxu0 0
  %3656 = vmatprep.subr.bf16.mxu0 0
  %3657 = vmatpush2.bf16.msra.mxu0 0
  %3658 = vmatprep.subr.bf16.mxu0 0
  %3659 = vmatpush2.bf16.msra.mxu0 0
  %3660 = vmatprep.mubr.bf16.mxu0 0
  %3661 = vmatmul.mubr.bf16.gmra.mxu0 %v3430
  %v3662 = vpop.f32.mrf.mxu0
  %v3663 = vadd.f32 0.0, %v3662
  %v3664 = vpop.f32.mrf.mxu0
  %v3665 = vadd.f32 0.0, %v3664
  %v3666 = vpop.f32.mrf.mxu0
  %v3667 = vpop.f32.mrf.mxu0
  %3668 = vdwg.mxu0
  %3669 = vmatprep.subr.bf16.mxu0 %v3595
  %3670 = vmatpush1.bf16.msra.mxu0 %v3594
  %3671 = vmatprep.subr.bf16.mxu0 %v3591
  %3672 = vmatpush1.bf16.msra.mxu0 %v3590
  %3673 = vmatprep.subr.bf16.mxu0 %v3587
  %3674 = vmatpush1.bf16.msra.mxu0 %v3586
  %3675 = vmatprep.subr.bf16.mxu0 %v3583
  %3676 = vmatpush1.bf16.msra.mxu0 %v3582
  %3677 = vmatprep.subr.bf16.mxu0 %v3579
  %3678 = vmatpush1.bf16.msra.mxu0 %v3578
  %3679 = vmatprep.subr.bf16.mxu0 %v3575
  %3680 = vmatpush1.bf16.msra.mxu0 %v3574
  %3681 = vmatprep.subr.bf16.mxu0 %v3571
  %3682 = vmatpush1.bf16.msra.mxu0 %v3570
  %3683 = vmatprep.subr.bf16.mxu0 %v3567
  %3684 = vmatpush1.bf16.msra.mxu0 %v3566
  %3685 = vmatprep.subr.bf16.mxu0 0
  %3686 = vmatpush2.bf16.msra.mxu0 0
  %3687 = vmatprep.subr.bf16.mxu0 0
  %3688 = vmatpush2.bf16.msra.mxu0 0
  %3689 = vmatprep.subr.bf16.mxu0 0
  %3690 = vmatpush2.bf16.msra.mxu0 0
  %3691 = vmatprep.subr.bf16.mxu0 0
  %3692 = vmatpush2.bf16.msra.mxu0 0
  %3693 = vmatprep.subr.bf16.mxu0 0
  %3694 = vmatpush2.bf16.msra.mxu0 0
  %3695 = vmatprep.subr.bf16.mxu0 0
  %3696 = vmatpush2.bf16.msra.mxu0 0
  %3697 = vmatprep.subr.bf16.mxu0 0
  %3698 = vmatpush2.bf16.msra.mxu0 0
  %3699 = vmatprep.subr.bf16.mxu0 0
  %3700 = vmatpush2.bf16.msra.mxu0 0
  %3701 = vmatprep.mubr.bf16.mxu0 0
  %3702 = vmatmul.mubr.bf16.gmra.mxu0 %v3430
  %v3703 = vpop.f32.mrf.mxu0
  %v3704 = vadd.f32 0.0, %v3703
  %v3705 = vpop.f32.mrf.mxu0
  %v3706 = vadd.f32 0.0, %v3705
  %v3707 = vpop.f32.mrf.mxu0
  %v3708 = vpop.f32.mrf.mxu0
  %3709 = vdwg.mxu0
  %v3710 = vld [vmem:[%s4] sm:$0xf]
  %v3711 = vld [vmem:[%s4 + $0x4] sm:$0xf]
  %v3712 = vld [vmem:[%s4 + $0x8] sm:$0xf]
  %v3713 = vld [vmem:[%s4 + $0xc] sm:$0xf]
  %v3714 = vld [vmem:[%s4 + $0x10] sm:$0xf]
  %v3715 = vld [vmem:[%s4 + $0x14] sm:$0xf]
  %v3716 = vld [vmem:[%s4 + $0x18] sm:$0xf]
  %v3717 = vld [vmem:[%s4 + $0x1c] sm:$0xf]
  %v3718 = vld [vmem:[%s4 + $0x20] sm:$0xf]
  %v3719 = vld [vmem:[%s4 + $0x24] sm:$0xf]
  %v3720 = vld [vmem:[%s4 + $0x28] sm:$0xf]
  %v3721 = vld [vmem:[%s4 + $0x2c] sm:$0xf]
  %v3722 = vld [vmem:[%s4 + $0x30] sm:$0xf]
  %v3723 = vld [vmem:[%s4 + $0x34] sm:$0xf]
  %v3724 = vld [vmem:[%s4 + $0x38] sm:$0xf]
  %v3725 = vld [vmem:[%s4 + $0x3c] sm:$0xf]
  %v3742 = vunpack.c.l.b16 %v3710
  %v3743 = vunpack.c.l.b16 %v3711
  %v3744 = vunpack.c.l.b16 %v3712
  %v3745 = vunpack.c.l.b16 %v3713
  %v3746 = vunpack.c.l.b16 %v3714
  %v3747 = vunpack.c.l.b16 %v3715
  %v3748 = vunpack.c.l.b16 %v3716
  %v3749 = vunpack.c.l.b16 %v3717
  %v3750 = vunpack.c.l.b16 %v3718
  %v3751 = vunpack.c.l.b16 %v3719
  %v3752 = vunpack.c.l.b16 %v3720
  %v3753 = vunpack.c.l.b16 %v3721
  %v3754 = vunpack.c.l.b16 %v3722
  %v3755 = vunpack.c.l.b16 %v3723
  %v3756 = vunpack.c.l.b16 %v3724
  %v3757 = vunpack.c.l.b16 %v3725
  %v3758 = vpack.c.b16 %v3743, %v3742
  %v3759 = vpack.c.b16 %v3745, %v3744
  %v3760 = vpack.c.b16 %v3747, %v3746
  %v3761 = vpack.c.b16 %v3749, %v3748
  %v3762 = vpack.c.b16 %v3751, %v3750
  %v3763 = vpack.c.b16 %v3753, %v3752
  %v3764 = vpack.c.b16 %v3755, %v3754
  %v3765 = vpack.c.b16 %v3757, %v3756
  %3774 = vmatprep.subr.bf16.mxu0 0
  %3775 = vmatpush1.bf16.msra.mxu0 %v3765
  %3776 = vmatprep.subr.bf16.mxu0 0
  %3777 = vmatpush1.bf16.msra.mxu0 %v3764
  %3778 = vmatprep.subr.bf16.mxu0 0
  %3779 = vmatpush1.bf16.msra.mxu0 %v3763
  %3780 = vmatprep.subr.bf16.mxu0 0
  %3781 = vmatpush1.bf16.msra.mxu0 %v3762
  %3782 = vmatprep.subr.bf16.mxu0 0
  %3783 = vmatpush1.bf16.msra.mxu0 %v3761
  %3784 = vmatprep.subr.bf16.mxu0 0
  %3785 = vmatpush1.bf16.msra.mxu0 %v3760
  %3786 = vmatprep.subr.bf16.mxu0 0
  %3787 = vmatpush1.bf16.msra.mxu0 %v3759
  %3788 = vmatprep.subr.bf16.mxu0 0
  %3789 = vmatpush1.bf16.msra.mxu0 %v3758
  %3790 = vmatprep.subr.bf16.mxu0 0
  %3791 = vmatpush2.bf16.msra.mxu0 0
  %3792 = vmatprep.subr.bf16.mxu0 0
  %3793 = vmatpush2.bf16.msra.mxu0 0
  %3794 = vmatprep.subr.bf16.mxu0 0
  %3795 = vmatpush2.bf16.msra.mxu0 0
  %3796 = vmatprep.subr.bf16.mxu0 0
  %3797 = vmatpush2.bf16.msra.mxu0 0
  %3798 = vmatprep.subr.bf16.mxu0 0
  %3799 = vmatpush2.bf16.msra.mxu0 0
  %3800 = vmatprep.subr.bf16.mxu0 0
  %3801 = vmatpush2.bf16.msra.mxu0 0
  %3802 = vmatprep.subr.bf16.mxu0 0
  %3803 = vmatpush2.bf16.msra.mxu0 0
  %3804 = vmatprep.subr.bf16.mxu0 0
  %3805 = vmatpush2.bf16.msra.mxu0 0
  %3806 = vmatprep.mubr.bf16.mxu0 0
  %3807 = vmatmul.mubr.bf16.gmra.mxu0 %v3431
  %v3808 = vpop.f32.mrf.mxu0
  %v3809 = vadd.f32 %v798, %v3808
  %v3810 = vpop.f32.mrf.mxu0
  %v3811 = vpop.f32.mrf.mxu0
  %v3812 = vpop.f32.mrf.mxu0
  %3813 = vdwg.mxu0
  %v3814 = vadd.f32 %v3432, %v3663
  %v3815 = vadd.f32 %v3433, %v3665
  %v3816 = vadd.f32 %v3434, %v3704
  %v3817 = vadd.f32 %v3435, %v3706
  %v3818 = vxor.u32 %v3814, 2147483648
  %v3819 = vxor.u32 %v3815, 2147483648
  %v3820 = vxor.u32 %v3816, 2147483648
  %v3821 = vxor.u32 %v3817, 2147483648
  %v3822 = vmul.f32 %v3818, 1.442695
  %v3823 = vpow.pop %v3822
  %v3824 = vmul.f32 %v3819, 1.442695
  %v3825 = vpow.pop %v3824
  %v3826 = vmul.f32 %v3820, 1.442695
  %v3827 = vpow.pop %v3826
  %v3828 = vmul.f32 %v3821, 1.442695
  %v3829 = vpow.pop %v3828
  %v3830 = vadd.f32 %v3823, 1.0
  %v3831 = vadd.f32 %v3825, 1.0
  %v3832 = vadd.f32 %v3827, 1.0
  %v3833 = vadd.f32 %v3829, 1.0
  %v3834 = vrcp.pop %v3830
  %v3835 = vmul.f32 1.0, %v3834
  %v3836 = vrcp.pop %v3831
  %v3837 = vmul.f32 1.0, %v3836
  %v3838 = vrcp.pop %v3832
  %v3839 = vmul.f32 1.0, %v3838
  %v3840 = vrcp.pop %v3833
  %v3841 = vmul.f32 1.0, %v3840
  %v3842 = vmul.f32 %v3839, %v3809
  %v3843 = vmul.f32 %v3835, %v3837
  %v3844 = vadd.f32 %v3842, %v3843
  %v3845 = vtanh.pop %v3844
  %v3846 = vmul.f32 %v3841, %v3845
  %3847 = vst [vmem:[#allocation3 + $0x38] sm:$0xff] %v3846
  %v3848 = vpack.c.bf16 %v3846, %v3846
  %v3849 = vpack.c.bf16 %v3844, %v3844
  %v3850 = vld [vmem:[#allocation2 + $0x100] sm:$0xff]
  %v3851 = vld [vmem:[#allocation2 + $0x108] sm:$0xff]
  %v3852 = vld [vmem:[#allocation2 + $0x110] sm:$0xff]
  %v3853 = vld [vmem:[#allocation2 + $0x118] sm:$0xff]
  %v3854 = vld [vmem:[%s3] sm:$0xff]
  %v3855 = vld [vmem:[%s3 + $0x8] sm:$0xff]
  %v3856 = vld [vmem:[%s3 + $0x10] sm:$0xff]
  %v3857 = vld [vmem:[%s3 + $0x18] sm:$0xff]
  %v3858 = vld [vmem:[%s3 + $0x20] sm:$0xff]
  %v3859 = vld [vmem:[%s3 + $0x28] sm:$0xff]
  %v3860 = vld [vmem:[%s3 + $0x30] sm:$0xff]
  %v3861 = vld [vmem:[%s3 + $0x38] sm:$0xff]
  %v3862 = vld [vmem:[%s3 + $0x40] sm:$0xff]
  %v3863 = vld [vmem:[%s3 + $0x48] sm:$0xff]
  %v3864 = vld [vmem:[%s3 + $0x50] sm:$0xff]
  %v3865 = vld [vmem:[%s3 + $0x58] sm:$0xff]
  %v3866 = vld [vmem:[%s3 + $0x60] sm:$0xff]
  %v3867 = vld [vmem:[%s3 + $0x68] sm:$0xff]
  %v3868 = vld [vmem:[%s3 + $0x70] sm:$0xff]
  %v3869 = vld [vmem:[%s3 + $0x78] sm:$0xff]
  %v3870 = vld [vmem:[%s3 + $0x80] sm:$0xff]
  %v3871 = vld [vmem:[%s3 + $0x88] sm:$0xff]
  %v3872 = vld [vmem:[%s3 + $0x90] sm:$0xff]
  %v3873 = vld [vmem:[%s3 + $0x98] sm:$0xff]
  %v3874 = vld [vmem:[%s3 + $0xa0] sm:$0xff]
  %v3875 = vld [vmem:[%s3 + $0xa8] sm:$0xff]
  %v3876 = vld [vmem:[%s3 + $0xb0] sm:$0xff]
  %v3877 = vld [vmem:[%s3 + $0xb8] sm:$0xff]
  %v3878 = vld [vmem:[%s3 + $0xc0] sm:$0xff]
  %v3879 = vld [vmem:[%s3 + $0xc8] sm:$0xff]
  %v3880 = vld [vmem:[%s3 + $0xd0] sm:$0xff]
  %v3881 = vld [vmem:[%s3 + $0xd8] sm:$0xff]
  %v3882 = vld [vmem:[%s3 + $0xe0] sm:$0xff]
  %v3883 = vld [vmem:[%s3 + $0xe8] sm:$0xff]
  %v3884 = vld [vmem:[%s3 + $0xf0] sm:$0xff]
  %v3885 = vld [vmem:[%s3 + $0xf8] sm:$0xff]
  %v3918 = vunpack.c.l.b16 %v3854
  %v3919 = vunpack.c.h.b16 %v3854
  %v3920 = vunpack.c.l.b16 %v3855
  %v3921 = vunpack.c.h.b16 %v3855
  %v3922 = vunpack.c.l.b16 %v3856
  %v3923 = vunpack.c.h.b16 %v3856
  %v3924 = vunpack.c.l.b16 %v3857
  %v3925 = vunpack.c.h.b16 %v3857
  %v3926 = vunpack.c.l.b16 %v3858
  %v3927 = vunpack.c.h.b16 %v3858
  %v3928 = vunpack.c.l.b16 %v3859
  %v3929 = vunpack.c.h.b16 %v3859
  %v3930 = vunpack.c.l.b16 %v3860
  %v3931 = vunpack.c.h.b16 %v3860
  %v3932 = vunpack.c.l.b16 %v3861
  %v3933 = vunpack.c.h.b16 %v3861
  %v3934 = vunpack.c.l.b16 %v3862
  %v3935 = vunpack.c.h.b16 %v3862
  %v3936 = vunpack.c.l.b16 %v3863
  %v3937 = vunpack.c.h.b16 %v3863
  %v3938 = vunpack.c.l.b16 %v3864
  %v3939 = vunpack.c.h.b16 %v3864
  %v3940 = vunpack.c.l.b16 %v3865
  %v3941 = vunpack.c.h.b16 %v3865
  %v3942 = vunpack.c.l.b16 %v3866
  %v3943 = vunpack.c.h.b16 %v3866
  %v3944 = vunpack.c.l.b16 %v3867
  %v3945 = vunpack.c.h.b16 %v3867
  %v3946 = vunpack.c.l.b16 %v3868
  %v3947 = vunpack.c.h.b16 %v3868
  %v3948 = vunpack.c.l.b16 %v3869
  %v3949 = vunpack.c.h.b16 %v3869
  %v3950 = vunpack.c.l.b16 %v3870
  %v3951 = vunpack.c.h.b16 %v3870
  %v3952 = vunpack.c.l.b16 %v3871
  %v3953 = vunpack.c.h.b16 %v3871
  %v3954 = vunpack.c.l.b16 %v3872
  %v3955 = vunpack.c.h.b16 %v3872
  %v3956 = vunpack.c.l.b16 %v3873
  %v3957 = vunpack.c.h.b16 %v3873
  %v3958 = vunpack.c.l.b16 %v3874
  %v3959 = vunpack.c.h.b16 %v3874
  %v3960 = vunpack.c.l.b16 %v3875
  %v3961 = vunpack.c.h.b16 %v3875
  %v3962 = vunpack.c.l.b16 %v3876
  %v3963 = vunpack.c.h.b16 %v3876
  %v3964 = vunpack.c.l.b16 %v3877
  %v3965 = vunpack.c.h.b16 %v3877
  %v3966 = vunpack.c.l.b16 %v3878
  %v3967 = vunpack.c.h.b16 %v3878
  %v3968 = vunpack.c.l.b16 %v3879
  %v3969 = vunpack.c.h.b16 %v3879
  %v3970 = vunpack.c.l.b16 %v3880
  %v3971 = vunpack.c.h.b16 %v3880
  %v3972 = vunpack.c.l.b16 %v3881
  %v3973 = vunpack.c.h.b16 %v3881
  %v3974 = vunpack.c.l.b16 %v3882
  %v3975 = vunpack.c.h.b16 %v3882
  %v3976 = vunpack.c.l.b16 %v3883
  %v3977 = vunpack.c.h.b16 %v3883
  %v3978 = vunpack.c.l.b16 %v3884
  %v3979 = vunpack.c.h.b16 %v3884
  %v3980 = vunpack.c.l.b16 %v3885
  %v3981 = vunpack.c.h.b16 %v3885
  %v3982 = vpack.c.b16 %v3922, %v3918
  %v3983 = vpack.c.b16 %v3923, %v3919
  %v3984 = vpack.c.b16 %v3924, %v3920
  %v3985 = vpack.c.b16 %v3925, %v3921
  %v3986 = vpack.c.b16 %v3930, %v3926
  %v3987 = vpack.c.b16 %v3931, %v3927
  %v3988 = vpack.c.b16 %v3932, %v3928
  %v3989 = vpack.c.b16 %v3933, %v3929
  %v3990 = vpack.c.b16 %v3938, %v3934
  %v3991 = vpack.c.b16 %v3939, %v3935
  %v3992 = vpack.c.b16 %v3940, %v3936
  %v3993 = vpack.c.b16 %v3941, %v3937
  %v3994 = vpack.c.b16 %v3946, %v3942
  %v3995 = vpack.c.b16 %v3947, %v3943
  %v3996 = vpack.c.b16 %v3948, %v3944
  %v3997 = vpack.c.b16 %v3949, %v3945
  %v3998 = vpack.c.b16 %v3954, %v3950
  %v3999 = vpack.c.b16 %v3955, %v3951
  %v4000 = vpack.c.b16 %v3956, %v3952
  %v4001 = vpack.c.b16 %v3957, %v3953
  %v4002 = vpack.c.b16 %v3962, %v3958
  %v4003 = vpack.c.b16 %v3963, %v3959
  %v4004 = vpack.c.b16 %v3964, %v3960
  %v4005 = vpack.c.b16 %v3965, %v3961
  %v4006 = vpack.c.b16 %v3970, %v3966
  %v4007 = vpack.c.b16 %v3971, %v3967
  %v4008 = vpack.c.b16 %v3972, %v3968
  %v4009 = vpack.c.b16 %v3973, %v3969
  %v4010 = vpack.c.b16 %v3978, %v3974
  %v4011 = vpack.c.b16 %v3979, %v3975
  %v4012 = vpack.c.b16 %v3980, %v3976
  %v4013 = vpack.c.b16 %v3981, %v3977
  %4046 = vmatprep.subr.bf16.mxu0 %v4011
  %4047 = vmatpush1.bf16.msra.mxu0 %v4010
  %4048 = vmatprep.subr.bf16.mxu0 %v4007
  %4049 = vmatpush1.bf16.msra.mxu0 %v4006
  %4050 = vmatprep.subr.bf16.mxu0 %v4003
  %4051 = vmatpush1.bf16.msra.mxu0 %v4002
  %4052 = vmatprep.subr.bf16.mxu0 %v3999
  %4053 = vmatpush1.bf16.msra.mxu0 %v3998
  %4054 = vmatprep.subr.bf16.mxu0 %v3995
  %4055 = vmatpush1.bf16.msra.mxu0 %v3994
  %4056 = vmatprep.subr.bf16.mxu0 %v3991
  %4057 = vmatpush1.bf16.msra.mxu0 %v3990
  %4058 = vmatprep.subr.bf16.mxu0 %v3987
  %4059 = vmatpush1.bf16.msra.mxu0 %v3986
  %4060 = vmatprep.subr.bf16.mxu0 %v3983
  %4061 = vmatpush1.bf16.msra.mxu0 %v3982
  %4062 = vmatprep.subr.bf16.mxu0 0
  %4063 = vmatpush2.bf16.msra.mxu0 0
  %4064 = vmatprep.subr.bf16.mxu0 0
  %4065 = vmatpush2.bf16.msra.mxu0 0
  %4066 = vmatprep.subr.bf16.mxu0 0
  %4067 = vmatpush2.bf16.msra.mxu0 0
  %4068 = vmatprep.subr.bf16.mxu0 0
  %4069 = vmatpush2.bf16.msra.mxu0 0
  %4070 = vmatprep.subr.bf16.mxu0 0
  %4071 = vmatpush2.bf16.msra.mxu0 0
  %4072 = vmatprep.subr.bf16.mxu0 0
  %4073 = vmatpush2.bf16.msra.mxu0 0
  %4074 = vmatprep.subr.bf16.mxu0 0
  %4075 = vmatpush2.bf16.msra.mxu0 0
  %4076 = vmatprep.subr.bf16.mxu0 0
  %4077 = vmatpush2.bf16.msra.mxu0 0
  %4078 = vmatprep.mubr.bf16.mxu0 0
  %4079 = vmatmul.mubr.bf16.gmra.mxu0 %v3848
  %v4080 = vpop.f32.mrf.mxu0
  %v4081 = vadd.f32 0.0, %v4080
  %v4082 = vpop.f32.mrf.mxu0
  %v4083 = vadd.f32 0.0, %v4082
  %v4084 = vpop.f32.mrf.mxu0
  %v4085 = vpop.f32.mrf.mxu0
  %4086 = vdwg.mxu0
  %4087 = vmatprep.subr.bf16.mxu0 %v4013
  %4088 = vmatpush1.bf16.msra.mxu0 %v4012
  %4089 = vmatprep.subr.bf16.mxu0 %v4009
  %4090 = vmatpush1.bf16.msra.mxu0 %v4008
  %4091 = vmatprep.subr.bf16.mxu0 %v4005
  %4092 = vmatpush1.bf16.msra.mxu0 %v4004
  %4093 = vmatprep.subr.bf16.mxu0 %v4001
  %4094 = vmatpush1.bf16.msra.mxu0 %v4000
  %4095 = vmatprep.subr.bf16.mxu0 %v3997
  %4096 = vmatpush1.bf16.msra.mxu0 %v3996
  %4097 = vmatprep.subr.bf16.mxu0 %v3993
  %4098 = vmatpush1.bf16.msra.mxu0 %v3992
  %4099 = vmatprep.subr.bf16.mxu0 %v3989
  %4100 = vmatpush1.bf16.msra.mxu0 %v3988
  %4101 = vmatprep.subr.bf16.mxu0 %v3985
  %4102 = vmatpush1.bf16.msra.mxu0 %v3984
  %4103 = vmatprep.subr.bf16.mxu0 0
  %4104 = vmatpush2.bf16.msra.mxu0 0
  %4105 = vmatprep.subr.bf16.mxu0 0
  %4106 = vmatpush2.bf16.msra.mxu0 0
  %4107 = vmatprep.subr.bf16.mxu0 0
  %4108 = vmatpush2.bf16.msra.mxu0 0
  %4109 = vmatprep.subr.bf16.mxu0 0
  %4110 = vmatpush2.bf16.msra.mxu0 0
  %4111 = vmatprep.subr.bf16.mxu0 0
  %4112 = vmatpush2.bf16.msra.mxu0 0
  %4113 = vmatprep.subr.bf16.mxu0 0
  %4114 = vmatpush2.bf16.msra.mxu0 0
  %4115 = vmatprep.subr.bf16.mxu0 0
  %4116 = vmatpush2.bf16.msra.mxu0 0
  %4117 = vmatprep.subr.bf16.mxu0 0
  %4118 = vmatpush2.bf16.msra.mxu0 0
  %4119 = vmatprep.mubr.bf16.mxu0 0
  %4120 = vmatmul.mubr.bf16.gmra.mxu0 %v3848
  %v4121 = vpop.f32.mrf.mxu0
  %v4122 = vadd.f32 0.0, %v4121
  %v4123 = vpop.f32.mrf.mxu0
  %v4124 = vadd.f32 0.0, %v4123
  %v4125 = vpop.f32.mrf.mxu0
  %v4126 = vpop.f32.mrf.mxu0
  %4127 = vdwg.mxu0
  %v4128 = vld [vmem:[%s4] sm:$0xf]
  %v4129 = vld [vmem:[%s4 + $0x4] sm:$0xf]
  %v4130 = vld [vmem:[%s4 + $0x8] sm:$0xf]
  %v4131 = vld [vmem:[%s4 + $0xc] sm:$0xf]
  %v4132 = vld [vmem:[%s4 + $0x10] sm:$0xf]
  %v4133 = vld [vmem:[%s4 + $0x14] sm:$0xf]
  %v4134 = vld [vmem:[%s4 + $0x18] sm:$0xf]
  %v4135 = vld [vmem:[%s4 + $0x1c] sm:$0xf]
  %v4136 = vld [vmem:[%s4 + $0x20] sm:$0xf]
  %v4137 = vld [vmem:[%s4 + $0x24] sm:$0xf]
  %v4138 = vld [vmem:[%s4 + $0x28] sm:$0xf]
  %v4139 = vld [vmem:[%s4 + $0x2c] sm:$0xf]
  %v4140 = vld [vmem:[%s4 + $0x30] sm:$0xf]
  %v4141 = vld [vmem:[%s4 + $0x34] sm:$0xf]
  %v4142 = vld [vmem:[%s4 + $0x38] sm:$0xf]
  %v4143 = vld [vmem:[%s4 + $0x3c] sm:$0xf]
  %v4160 = vunpack.c.l.b16 %v4128
  %v4161 = vunpack.c.l.b16 %v4129
  %v4162 = vunpack.c.l.b16 %v4130
  %v4163 = vunpack.c.l.b16 %v4131
  %v4164 = vunpack.c.l.b16 %v4132
  %v4165 = vunpack.c.l.b16 %v4133
  %v4166 = vunpack.c.l.b16 %v4134
  %v4167 = vunpack.c.l.b16 %v4135
  %v4168 = vunpack.c.l.b16 %v4136
  %v4169 = vunpack.c.l.b16 %v4137
  %v4170 = vunpack.c.l.b16 %v4138
  %v4171 = vunpack.c.l.b16 %v4139
  %v4172 = vunpack.c.l.b16 %v4140
  %v4173 = vunpack.c.l.b16 %v4141
  %v4174 = vunpack.c.l.b16 %v4142
  %v4175 = vunpack.c.l.b16 %v4143
  %v4176 = vpack.c.b16 %v4161, %v4160
  %v4177 = vpack.c.b16 %v4163, %v4162
  %v4178 = vpack.c.b16 %v4165, %v4164
  %v4179 = vpack.c.b16 %v4167, %v4166
  %v4180 = vpack.c.b16 %v4169, %v4168
  %v4181 = vpack.c.b16 %v4171, %v4170
  %v4182 = vpack.c.b16 %v4173, %v4172
  %v4183 = vpack.c.b16 %v4175, %v4174
  %4192 = vmatprep.subr.bf16.mxu0 0
  %4193 = vmatpush1.bf16.msra.mxu0 %v4183
  %4194 = vmatprep.subr.bf16.mxu0 0
  %4195 = vmatpush1.bf16.msra.mxu0 %v4182
  %4196 = vmatprep.subr.bf16.mxu0 0
  %4197 = vmatpush1.bf16.msra.mxu0 %v4181
  %4198 = vmatprep.subr.bf16.mxu0 0
  %4199 = vmatpush1.bf16.msra.mxu0 %v4180
  %4200 = vmatprep.subr.bf16.mxu0 0
  %4201 = vmatpush1.bf16.msra.mxu0 %v4179
  %4202 = vmatprep.subr.bf16.mxu0 0
  %4203 = vmatpush1.bf16.msra.mxu0 %v4178
  %4204 = vmatprep.subr.bf16.mxu0 0
  %4205 = vmatpush1.bf16.msra.mxu0 %v4177
  %4206 = vmatprep.subr.bf16.mxu0 0
  %4207 = vmatpush1.bf16.msra.mxu0 %v4176
  %4208 = vmatprep.subr.bf16.mxu0 0
  %4209 = vmatpush2.bf16.msra.mxu0 0
  %4210 = vmatprep.subr.bf16.mxu0 0
  %4211 = vmatpush2.bf16.msra.mxu0 0
  %4212 = vmatprep.subr.bf16.mxu0 0
  %4213 = vmatpush2.bf16.msra.mxu0 0
  %4214 = vmatprep.subr.bf16.mxu0 0
  %4215 = vmatpush2.bf16.msra.mxu0 0
  %4216 = vmatprep.subr.bf16.mxu0 0
  %4217 = vmatpush2.bf16.msra.mxu0 0
  %4218 = vmatprep.subr.bf16.mxu0 0
  %4219 = vmatpush2.bf16.msra.mxu0 0
  %4220 = vmatprep.subr.bf16.mxu0 0
  %4221 = vmatpush2.bf16.msra.mxu0 0
  %4222 = vmatprep.subr.bf16.mxu0 0
  %4223 = vmatpush2.bf16.msra.mxu0 0
  %4224 = vmatprep.mubr.bf16.mxu0 0
  %4225 = vmatmul.mubr.bf16.gmra.mxu0 %v3849
  %v4226 = vpop.f32.mrf.mxu0
  %v4227 = vadd.f32 %v798, %v4226
  %v4228 = vpop.f32.mrf.mxu0
  %v4229 = vpop.f32.mrf.mxu0
  %v4230 = vpop.f32.mrf.mxu0
  %4231 = vdwg.mxu0
  %v4232 = vadd.f32 %v3850, %v4081
  %v4233 = vadd.f32 %v3851, %v4083
  %v4234 = vadd.f32 %v3852, %v4122
  %v4235 = vadd.f32 %v3853, %v4124
  %v4236 = vxor.u32 %v4232, 2147483648
  %v4237 = vxor.u32 %v4233, 2147483648
  %v4238 = vxor.u32 %v4234, 2147483648
  %v4239 = vxor.u32 %v4235, 2147483648
  %v4240 = vmul.f32 %v4236, 1.442695
  %v4241 = vpow.pop %v4240
  %v4242 = vmul.f32 %v4237, 1.442695
  %v4243 = vpow.pop %v4242
  %v4244 = vmul.f32 %v4238, 1.442695
  %v4245 = vpow.pop %v4244
  %v4246 = vmul.f32 %v4239, 1.442695
  %v4247 = vpow.pop %v4246
  %v4248 = vadd.f32 %v4241, 1.0
  %v4249 = vadd.f32 %v4243, 1.0
  %v4250 = vadd.f32 %v4245, 1.0
  %v4251 = vadd.f32 %v4247, 1.0
  %v4252 = vrcp.pop %v4248
  %v4253 = vmul.f32 1.0, %v4252
  %v4254 = vrcp.pop %v4249
  %v4255 = vmul.f32 1.0, %v4254
  %v4256 = vrcp.pop %v4250
  %v4257 = vmul.f32 1.0, %v4256
  %v4258 = vrcp.pop %v4251
  %v4259 = vmul.f32 1.0, %v4258
  %v4260 = vmul.f32 %v4257, %v4227
  %v4261 = vmul.f32 %v4253, %v4255
  %v4262 = vadd.f32 %v4260, %v4261
  %v4263 = vtanh.pop %v4262
  %v4264 = vmul.f32 %v4259, %v4263
  %4265 = vst [vmem:[#allocation3 + $0x40] sm:$0xff] %v4264
  %v4266 = vpack.c.bf16 %v4264, %v4264
  %v4267 = vpack.c.bf16 %v4262, %v4262
  %v4268 = vld [vmem:[#allocation2 + $0x120] sm:$0xff]
  %v4269 = vld [vmem:[#allocation2 + $0x128] sm:$0xff]
  %v4270 = vld [vmem:[#allocation2 + $0x130] sm:$0xff]
  %v4271 = vld [vmem:[#allocation2 + $0x138] sm:$0xff]
  %v4272 = vld [vmem:[%s3] sm:$0xff]
  %v4273 = vld [vmem:[%s3 + $0x8] sm:$0xff]
  %v4274 = vld [vmem:[%s3 + $0x10] sm:$0xff]
  %v4275 = vld [vmem:[%s3 + $0x18] sm:$0xff]
  %v4276 = vld [vmem:[%s3 + $0x20] sm:$0xff]
  %v4277 = vld [vmem:[%s3 + $0x28] sm:$0xff]
  %v4278 = vld [vmem:[%s3 + $0x30] sm:$0xff]
  %v4279 = vld [vmem:[%s3 + $0x38] sm:$0xff]
  %v4280 = vld [vmem:[%s3 + $0x40] sm:$0xff]
  %v4281 = vld [vmem:[%s3 + $0x48] sm:$0xff]
  %v4282 = vld [vmem:[%s3 + $0x50] sm:$0xff]
  %v4283 = vld [vmem:[%s3 + $0x58] sm:$0xff]
  %v4284 = vld [vmem:[%s3 + $0x60] sm:$0xff]
  %v4285 = vld [vmem:[%s3 + $0x68] sm:$0xff]
  %v4286 = vld [vmem:[%s3 + $0x70] sm:$0xff]
  %v4287 = vld [vmem:[%s3 + $0x78] sm:$0xff]
  %v4288 = vld [vmem:[%s3 + $0x80] sm:$0xff]
  %v4289 = vld [vmem:[%s3 + $0x88] sm:$0xff]
  %v4290 = vld [vmem:[%s3 + $0x90] sm:$0xff]
  %v4291 = vld [vmem:[%s3 + $0x98] sm:$0xff]
  %v4292 = vld [vmem:[%s3 + $0xa0] sm:$0xff]
  %v4293 = vld [vmem:[%s3 + $0xa8] sm:$0xff]
  %v4294 = vld [vmem:[%s3 + $0xb0] sm:$0xff]
  %v4295 = vld [vmem:[%s3 + $0xb8] sm:$0xff]
  %v4296 = vld [vmem:[%s3 + $0xc0] sm:$0xff]
  %v4297 = vld [vmem:[%s3 + $0xc8] sm:$0xff]
  %v4298 = vld [vmem:[%s3 + $0xd0] sm:$0xff]
  %v4299 = vld [vmem:[%s3 + $0xd8] sm:$0xff]
  %v4300 = vld [vmem:[%s3 + $0xe0] sm:$0xff]
  %v4301 = vld [vmem:[%s3 + $0xe8] sm:$0xff]
  %v4302 = vld [vmem:[%s3 + $0xf0] sm:$0xff]
  %v4303 = vld [vmem:[%s3 + $0xf8] sm:$0xff]
  %v4336 = vunpack.c.l.b16 %v4272
  %v4337 = vunpack.c.h.b16 %v4272
  %v4338 = vunpack.c.l.b16 %v4273
  %v4339 = vunpack.c.h.b16 %v4273
  %v4340 = vunpack.c.l.b16 %v4274
  %v4341 = vunpack.c.h.b16 %v4274
  %v4342 = vunpack.c.l.b16 %v4275
  %v4343 = vunpack.c.h.b16 %v4275
  %v4344 = vunpack.c.l.b16 %v4276
  %v4345 = vunpack.c.h.b16 %v4276
  %v4346 = vunpack.c.l.b16 %v4277
  %v4347 = vunpack.c.h.b16 %v4277
  %v4348 = vunpack.c.l.b16 %v4278
  %v4349 = vunpack.c.h.b16 %v4278
  %v4350 = vunpack.c.l.b16 %v4279
  %v4351 = vunpack.c.h.b16 %v4279
  %v4352 = vunpack.c.l.b16 %v4280
  %v4353 = vunpack.c.h.b16 %v4280
  %v4354 = vunpack.c.l.b16 %v4281
  %v4355 = vunpack.c.h.b16 %v4281
  %v4356 = vunpack.c.l.b16 %v4282
  %v4357 = vunpack.c.h.b16 %v4282
  %v4358 = vunpack.c.l.b16 %v4283
  %v4359 = vunpack.c.h.b16 %v4283
  %v4360 = vunpack.c.l.b16 %v4284
  %v4361 = vunpack.c.h.b16 %v4284
  %v4362 = vunpack.c.l.b16 %v4285
  %v4363 = vunpack.c.h.b16 %v4285
  %v4364 = vunpack.c.l.b16 %v4286
  %v4365 = vunpack.c.h.b16 %v4286
  %v4366 = vunpack.c.l.b16 %v4287
  %v4367 = vunpack.c.h.b16 %v4287
  %v4368 = vunpack.c.l.b16 %v4288
  %v4369 = vunpack.c.h.b16 %v4288
  %v4370 = vunpack.c.l.b16 %v4289
  %v4371 = vunpack.c.h.b16 %v4289
  %v4372 = vunpack.c.l.b16 %v4290
  %v4373 = vunpack.c.h.b16 %v4290
  %v4374 = vunpack.c.l.b16 %v4291
  %v4375 = vunpack.c.h.b16 %v4291
  %v4376 = vunpack.c.l.b16 %v4292
  %v4377 = vunpack.c.h.b16 %v4292
  %v4378 = vunpack.c.l.b16 %v4293
  %v4379 = vunpack.c.h.b16 %v4293
  %v4380 = vunpack.c.l.b16 %v4294
  %v4381 = vunpack.c.h.b16 %v4294
  %v4382 = vunpack.c.l.b16 %v4295
  %v4383 = vunpack.c.h.b16 %v4295
  %v4384 = vunpack.c.l.b16 %v4296
  %v4385 = vunpack.c.h.b16 %v4296
  %v4386 = vunpack.c.l.b16 %v4297
  %v4387 = vunpack.c.h.b16 %v4297
  %v4388 = vunpack.c.l.b16 %v4298
  %v4389 = vunpack.c.h.b16 %v4298
  %v4390 = vunpack.c.l.b16 %v4299
  %v4391 = vunpack.c.h.b16 %v4299
  %v4392 = vunpack.c.l.b16 %v4300
  %v4393 = vunpack.c.h.b16 %v4300
  %v4394 = vunpack.c.l.b16 %v4301
  %v4395 = vunpack.c.h.b16 %v4301
  %v4396 = vunpack.c.l.b16 %v4302
  %v4397 = vunpack.c.h.b16 %v4302
  %v4398 = vunpack.c.l.b16 %v4303
  %v4399 = vunpack.c.h.b16 %v4303
  %v4400 = vpack.c.b16 %v4340, %v4336
  %v4401 = vpack.c.b16 %v4341, %v4337
  %v4402 = vpack.c.b16 %v4342, %v4338
  %v4403 = vpack.c.b16 %v4343, %v4339
  %v4404 = vpack.c.b16 %v4348, %v4344
  %v4405 = vpack.c.b16 %v4349, %v4345
  %v4406 = vpack.c.b16 %v4350, %v4346
  %v4407 = vpack.c.b16 %v4351, %v4347
  %v4408 = vpack.c.b16 %v4356, %v4352
  %v4409 = vpack.c.b16 %v4357, %v4353
  %v4410 = vpack.c.b16 %v4358, %v4354
  %v4411 = vpack.c.b16 %v4359, %v4355
  %v4412 = vpack.c.b16 %v4364, %v4360
  %v4413 = vpack.c.b16 %v4365, %v4361
  %v4414 = vpack.c.b16 %v4366, %v4362
  %v4415 = vpack.c.b16 %v4367, %v4363
  %v4416 = vpack.c.b16 %v4372, %v4368
  %v4417 = vpack.c.b16 %v4373, %v4369
  %v4418 = vpack.c.b16 %v4374, %v4370
  %v4419 = vpack.c.b16 %v4375, %v4371
  %v4420 = vpack.c.b16 %v4380, %v4376
  %v4421 = vpack.c.b16 %v4381, %v4377
  %v4422 = vpack.c.b16 %v4382, %v4378
  %v4423 = vpack.c.b16 %v4383, %v4379
  %v4424 = vpack.c.b16 %v4388, %v4384
  %v4425 = vpack.c.b16 %v4389, %v4385
  %v4426 = vpack.c.b16 %v4390, %v4386
  %v4427 = vpack.c.b16 %v4391, %v4387
  %v4428 = vpack.c.b16 %v4396, %v4392
  %v4429 = vpack.c.b16 %v4397, %v4393
  %v4430 = vpack.c.b16 %v4398, %v4394
  %v4431 = vpack.c.b16 %v4399, %v4395
  %4464 = vmatprep.subr.bf16.mxu0 %v4429
  %4465 = vmatpush1.bf16.msra.mxu0 %v4428
  %4466 = vmatprep.subr.bf16.mxu0 %v4425
  %4467 = vmatpush1.bf16.msra.mxu0 %v4424
  %4468 = vmatprep.subr.bf16.mxu0 %v4421
  %4469 = vmatpush1.bf16.msra.mxu0 %v4420
  %4470 = vmatprep.subr.bf16.mxu0 %v4417
  %4471 = vmatpush1.bf16.msra.mxu0 %v4416
  %4472 = vmatprep.subr.bf16.mxu0 %v4413
  %4473 = vmatpush1.bf16.msra.mxu0 %v4412
  %4474 = vmatprep.subr.bf16.mxu0 %v4409
  %4475 = vmatpush1.bf16.msra.mxu0 %v4408
  %4476 = vmatprep.subr.bf16.mxu0 %v4405
  %4477 = vmatpush1.bf16.msra.mxu0 %v4404
  %4478 = vmatprep.subr.bf16.mxu0 %v4401
  %4479 = vmatpush1.bf16.msra.mxu0 %v4400
  %4480 = vmatprep.subr.bf16.mxu0 0
  %4481 = vmatpush2.bf16.msra.mxu0 0
  %4482 = vmatprep.subr.bf16.mxu0 0
  %4483 = vmatpush2.bf16.msra.mxu0 0
  %4484 = vmatprep.subr.bf16.mxu0 0
  %4485 = vmatpush2.bf16.msra.mxu0 0
  %4486 = vmatprep.subr.bf16.mxu0 0
  %4487 = vmatpush2.bf16.msra.mxu0 0
  %4488 = vmatprep.subr.bf16.mxu0 0
  %4489 = vmatpush2.bf16.msra.mxu0 0
  %4490 = vmatprep.subr.bf16.mxu0 0
  %4491 = vmatpush2.bf16.msra.mxu0 0
  %4492 = vmatprep.subr.bf16.mxu0 0
  %4493 = vmatpush2.bf16.msra.mxu0 0
  %4494 = vmatprep.subr.bf16.mxu0 0
  %4495 = vmatpush2.bf16.msra.mxu0 0
  %4496 = vmatprep.mubr.bf16.mxu0 0
  %4497 = vmatmul.mubr.bf16.gmra.mxu0 %v4266
  %v4498 = vpop.f32.mrf.mxu0
  %v4499 = vadd.f32 0.0, %v4498
  %v4500 = vpop.f32.mrf.mxu0
  %v4501 = vadd.f32 0.0, %v4500
  %v4502 = vpop.f32.mrf.mxu0
  %v4503 = vpop.f32.mrf.mxu0
  %4504 = vdwg.mxu0
  %4505 = vmatprep.subr.bf16.mxu0 %v4431
  %4506 = vmatpush1.bf16.msra.mxu0 %v4430
  %4507 = vmatprep.subr.bf16.mxu0 %v4427
  %4508 = vmatpush1.bf16.msra.mxu0 %v4426
  %4509 = vmatprep.subr.bf16.mxu0 %v4423
  %4510 = vmatpush1.bf16.msra.mxu0 %v4422
  %4511 = vmatprep.subr.bf16.mxu0 %v4419
  %4512 = vmatpush1.bf16.msra.mxu0 %v4418
  %4513 = vmatprep.subr.bf16.mxu0 %v4415
  %4514 = vmatpush1.bf16.msra.mxu0 %v4414
  %4515 = vmatprep.subr.bf16.mxu0 %v4411
  %4516 = vmatpush1.bf16.msra.mxu0 %v4410
  %4517 = vmatprep.subr.bf16.mxu0 %v4407
  %4518 = vmatpush1.bf16.msra.mxu0 %v4406
  %4519 = vmatprep.subr.bf16.mxu0 %v4403
  %4520 = vmatpush1.bf16.msra.mxu0 %v4402
  %4521 = vmatprep.subr.bf16.mxu0 0
  %4522 = vmatpush2.bf16.msra.mxu0 0
  %4523 = vmatprep.subr.bf16.mxu0 0
  %4524 = vmatpush2.bf16.msra.mxu0 0
  %4525 = vmatprep.subr.bf16.mxu0 0
  %4526 = vmatpush2.bf16.msra.mxu0 0
  %4527 = vmatprep.subr.bf16.mxu0 0
  %4528 = vmatpush2.bf16.msra.mxu0 0
  %4529 = vmatprep.subr.bf16.mxu0 0
  %4530 = vmatpush2.bf16.msra.mxu0 0
  %4531 = vmatprep.subr.bf16.mxu0 0
  %4532 = vmatpush2.bf16.msra.mxu0 0
  %4533 = vmatprep.subr.bf16.mxu0 0
  %4534 = vmatpush2.bf16.msra.mxu0 0
  %4535 = vmatprep.subr.bf16.mxu0 0
  %4536 = vmatpush2.bf16.msra.mxu0 0
  %4537 = vmatprep.mubr.bf16.mxu0 0
  %4538 = vmatmul.mubr.bf16.gmra.mxu0 %v4266
  %v4539 = vpop.f32.mrf.mxu0
  %v4540 = vadd.f32 0.0, %v4539
  %v4541 = vpop.f32.mrf.mxu0
  %v4542 = vadd.f32 0.0, %v4541
  %v4543 = vpop.f32.mrf.mxu0
  %v4544 = vpop.f32.mrf.mxu0
  %4545 = vdwg.mxu0
  %v4546 = vld [vmem:[%s4] sm:$0xf]
  %v4547 = vld [vmem:[%s4 + $0x4] sm:$0xf]
  %v4548 = vld [vmem:[%s4 + $0x8] sm:$0xf]
  %v4549 = vld [vmem:[%s4 + $0xc] sm:$0xf]
  %v4550 = vld [vmem:[%s4 + $0x10] sm:$0xf]
  %v4551 = vld [vmem:[%s4 + $0x14] sm:$0xf]
  %v4552 = vld [vmem:[%s4 + $0x18] sm:$0xf]
  %v4553 = vld [vmem:[%s4 + $0x1c] sm:$0xf]
  %v4554 = vld [vmem:[%s4 + $0x20] sm:$0xf]
  %v4555 = vld [vmem:[%s4 + $0x24] sm:$0xf]
  %v4556 = vld [vmem:[%s4 + $0x28] sm:$0xf]
  %v4557 = vld [vmem:[%s4 + $0x2c] sm:$0xf]
  %v4558 = vld [vmem:[%s4 + $0x30] sm:$0xf]
  %v4559 = vld [vmem:[%s4 + $0x34] sm:$0xf]
  %v4560 = vld [vmem:[%s4 + $0x38] sm:$0xf]
  %v4561 = vld [vmem:[%s4 + $0x3c] sm:$0xf]
  %v4578 = vunpack.c.l.b16 %v4546
  %v4579 = vunpack.c.l.b16 %v4547
  %v4580 = vunpack.c.l.b16 %v4548
  %v4581 = vunpack.c.l.b16 %v4549
  %v4582 = vunpack.c.l.b16 %v4550
  %v4583 = vunpack.c.l.b16 %v4551
  %v4584 = vunpack.c.l.b16 %v4552
  %v4585 = vunpack.c.l.b16 %v4553
  %v4586 = vunpack.c.l.b16 %v4554
  %v4587 = vunpack.c.l.b16 %v4555
  %v4588 = vunpack.c.l.b16 %v4556
  %v4589 = vunpack.c.l.b16 %v4557
  %v4590 = vunpack.c.l.b16 %v4558
  %v4591 = vunpack.c.l.b16 %v4559
  %v4592 = vunpack.c.l.b16 %v4560
  %v4593 = vunpack.c.l.b16 %v4561
  %v4594 = vpack.c.b16 %v4579, %v4578
  %v4595 = vpack.c.b16 %v4581, %v4580
  %v4596 = vpack.c.b16 %v4583, %v4582
  %v4597 = vpack.c.b16 %v4585, %v4584
  %v4598 = vpack.c.b16 %v4587, %v4586
  %v4599 = vpack.c.b16 %v4589, %v4588
  %v4600 = vpack.c.b16 %v4591, %v4590
  %v4601 = vpack.c.b16 %v4593, %v4592
  %4610 = vmatprep.subr.bf16.mxu0 0
  %4611 = vmatpush1.bf16.msra.mxu0 %v4601
  %4612 = vmatprep.subr.bf16.mxu0 0
  %4613 = vmatpush1.bf16.msra.mxu0 %v4600
  %4614 = vmatprep.subr.bf16.mxu0 0
  %4615 = vmatpush1.bf16.msra.mxu0 %v4599
  %4616 = vmatprep.subr.bf16.mxu0 0
  %4617 = vmatpush1.bf16.msra.mxu0 %v4598
  %4618 = vmatprep.subr.bf16.mxu0 0
  %4619 = vmatpush1.bf16.msra.mxu0 %v4597
  %4620 = vmatprep.subr.bf16.mxu0 0
  %4621 = vmatpush1.bf16.msra.mxu0 %v4596
  %4622 = vmatprep.subr.bf16.mxu0 0
  %4623 = vmatpush1.bf16.msra.mxu0 %v4595
  %4624 = vmatprep.subr.bf16.mxu0 0
  %4625 = vmatpush1.bf16.msra.mxu0 %v4594
  %4626 = vmatprep.subr.bf16.mxu0 0
  %4627 = vmatpush2.bf16.msra.mxu0 0
  %4628 = vmatprep.subr.bf16.mxu0 0
  %4629 = vmatpush2.bf16.msra.mxu0 0
  %4630 = vmatprep.subr.bf16.mxu0 0
  %4631 = vmatpush2.bf16.msra.mxu0 0
  %4632 = vmatprep.subr.bf16.mxu0 0
  %4633 = vmatpush2.bf16.msra.mxu0 0
  %4634 = vmatprep.subr.bf16.mxu0 0
  %4635 = vmatpush2.bf16.msra.mxu0 0
  %4636 = vmatprep.subr.bf16.mxu0 0
  %4637 = vmatpush2.bf16.msra.mxu0 0
  %4638 = vmatprep.subr.bf16.mxu0 0
  %4639 = vmatpush2.bf16.msra.mxu0 0
  %4640 = vmatprep.subr.bf16.mxu0 0
  %4641 = vmatpush2.bf16.msra.mxu0 0
  %4642 = vmatprep.mubr.bf16.mxu0 0
  %4643 = vmatmul.mubr.bf16.gmra.mxu0 %v4267
  %v4644 = vpop.f32.mrf.mxu0
  %v4645 = vadd.f32 %v798, %v4644
  %v4646 = vpop.f32.mrf.mxu0
  %v4647 = vpop.f32.mrf.mxu0
  %v4648 = vpop.f32.mrf.mxu0
  %4649 = vdwg.mxu0
  %v4650 = vadd.f32 %v4268, %v4499
  %v4651 = vadd.f32 %v4269, %v4501
  %v4652 = vadd.f32 %v4270, %v4540
  %v4653 = vadd.f32 %v4271, %v4542
  %v4654 = vxor.u32 %v4650, 2147483648
  %v4655 = vxor.u32 %v4651, 2147483648
  %v4656 = vxor.u32 %v4652, 2147483648
  %v4657 = vxor.u32 %v4653, 2147483648
  %v4658 = vmul.f32 %v4654, 1.442695
  %v4659 = vpow.pop %v4658
  %v4660 = vmul.f32 %v4655, 1.442695
  %v4661 = vpow.pop %v4660
  %v4662 = vmul.f32 %v4656, 1.442695
  %v4663 = vpow.pop %v4662
  %v4664 = vmul.f32 %v4657, 1.442695
  %v4665 = vpow.pop %v4664
  %v4666 = vadd.f32 %v4659, 1.0
  %v4667 = vadd.f32 %v4661, 1.0
  %v4668 = vadd.f32 %v4663, 1.0
  %v4669 = vadd.f32 %v4665, 1.0
  %v4670 = vrcp.pop %v4666
  %v4671 = vmul.f32 1.0, %v4670
  %v4672 = vrcp.pop %v4667
  %v4673 = vmul.f32 1.0, %v4672
  %v4674 = vrcp.pop %v4668
  %v4675 = vmul.f32 1.0, %v4674
  %v4676 = vrcp.pop %v4669
  %v4677 = vmul.f32 1.0, %v4676
  %v4678 = vmul.f32 %v4675, %v4645
  %v4679 = vmul.f32 %v4671, %v4673
  %v4680 = vadd.f32 %v4678, %v4679
  %v4681 = vtanh.pop %v4680
  %v4682 = vmul.f32 %v4677, %v4681
  %4683 = vst [vmem:[#allocation3 + $0x48] sm:$0xff] %v4682
  %v4684 = vpack.c.bf16 %v4682, %v4682
  %v4685 = vpack.c.bf16 %v4680, %v4680
  %v4686 = vld [vmem:[#allocation2 + $0x140] sm:$0xff]
  %v4687 = vld [vmem:[#allocation2 + $0x148] sm:$0xff]
  %v4688 = vld [vmem:[#allocation2 + $0x150] sm:$0xff]
  %v4689 = vld [vmem:[#allocation2 + $0x158] sm:$0xff]
  %v4690 = vld [vmem:[%s3] sm:$0xff]
  %v4691 = vld [vmem:[%s3 + $0x8] sm:$0xff]
  %v4692 = vld [vmem:[%s3 + $0x10] sm:$0xff]
  %v4693 = vld [vmem:[%s3 + $0x18] sm:$0xff]
  %v4694 = vld [vmem:[%s3 + $0x20] sm:$0xff]
  %v4695 = vld [vmem:[%s3 + $0x28] sm:$0xff]
  %v4696 = vld [vmem:[%s3 + $0x30] sm:$0xff]
  %v4697 = vld [vmem:[%s3 + $0x38] sm:$0xff]
  %v4698 = vld [vmem:[%s3 + $0x40] sm:$0xff]
  %v4699 = vld [vmem:[%s3 + $0x48] sm:$0xff]
  %v4700 = vld [vmem:[%s3 + $0x50] sm:$0xff]
  %v4701 = vld [vmem:[%s3 + $0x58] sm:$0xff]
  %v4702 = vld [vmem:[%s3 + $0x60] sm:$0xff]
  %v4703 = vld [vmem:[%s3 + $0x68] sm:$0xff]
  %v4704 = vld [vmem:[%s3 + $0x70] sm:$0xff]
  %v4705 = vld [vmem:[%s3 + $0x78] sm:$0xff]
  %v4706 = vld [vmem:[%s3 + $0x80] sm:$0xff]
  %v4707 = vld [vmem:[%s3 + $0x88] sm:$0xff]
  %v4708 = vld [vmem:[%s3 + $0x90] sm:$0xff]
  %v4709 = vld [vmem:[%s3 + $0x98] sm:$0xff]
  %v4710 = vld [vmem:[%s3 + $0xa0] sm:$0xff]
  %v4711 = vld [vmem:[%s3 + $0xa8] sm:$0xff]
  %v4712 = vld [vmem:[%s3 + $0xb0] sm:$0xff]
  %v4713 = vld [vmem:[%s3 + $0xb8] sm:$0xff]
  %v4714 = vld [vmem:[%s3 + $0xc0] sm:$0xff]
  %v4715 = vld [vmem:[%s3 + $0xc8] sm:$0xff]
  %v4716 = vld [vmem:[%s3 + $0xd0] sm:$0xff]
  %v4717 = vld [vmem:[%s3 + $0xd8] sm:$0xff]
  %v4718 = vld [vmem:[%s3 + $0xe0] sm:$0xff]
  %v4719 = vld [vmem:[%s3 + $0xe8] sm:$0xff]
  %v4720 = vld [vmem:[%s3 + $0xf0] sm:$0xff]
  %v4721 = vld [vmem:[%s3 + $0xf8] sm:$0xff]
  %v4754 = vunpack.c.l.b16 %v4690
  %v4755 = vunpack.c.h.b16 %v4690
  %v4756 = vunpack.c.l.b16 %v4691
  %v4757 = vunpack.c.h.b16 %v4691
  %v4758 = vunpack.c.l.b16 %v4692
  %v4759 = vunpack.c.h.b16 %v4692
  %v4760 = vunpack.c.l.b16 %v4693
  %v4761 = vunpack.c.h.b16 %v4693
  %v4762 = vunpack.c.l.b16 %v4694
  %v4763 = vunpack.c.h.b16 %v4694
  %v4764 = vunpack.c.l.b16 %v4695
  %v4765 = vunpack.c.h.b16 %v4695
  %v4766 = vunpack.c.l.b16 %v4696
  %v4767 = vunpack.c.h.b16 %v4696
  %v4768 = vunpack.c.l.b16 %v4697
  %v4769 = vunpack.c.h.b16 %v4697
  %v4770 = vunpack.c.l.b16 %v4698
  %v4771 = vunpack.c.h.b16 %v4698
  %v4772 = vunpack.c.l.b16 %v4699
  %v4773 = vunpack.c.h.b16 %v4699
  %v4774 = vunpack.c.l.b16 %v4700
  %v4775 = vunpack.c.h.b16 %v4700
  %v4776 = vunpack.c.l.b16 %v4701
  %v4777 = vunpack.c.h.b16 %v4701
  %v4778 = vunpack.c.l.b16 %v4702
  %v4779 = vunpack.c.h.b16 %v4702
  %v4780 = vunpack.c.l.b16 %v4703
  %v4781 = vunpack.c.h.b16 %v4703
  %v4782 = vunpack.c.l.b16 %v4704
  %v4783 = vunpack.c.h.b16 %v4704
  %v4784 = vunpack.c.l.b16 %v4705
  %v4785 = vunpack.c.h.b16 %v4705
  %v4786 = vunpack.c.l.b16 %v4706
  %v4787 = vunpack.c.h.b16 %v4706
  %v4788 = vunpack.c.l.b16 %v4707
  %v4789 = vunpack.c.h.b16 %v4707
  %v4790 = vunpack.c.l.b16 %v4708
  %v4791 = vunpack.c.h.b16 %v4708
  %v4792 = vunpack.c.l.b16 %v4709
  %v4793 = vunpack.c.h.b16 %v4709
  %v4794 = vunpack.c.l.b16 %v4710
  %v4795 = vunpack.c.h.b16 %v4710
  %v4796 = vunpack.c.l.b16 %v4711
  %v4797 = vunpack.c.h.b16 %v4711
  %v4798 = vunpack.c.l.b16 %v4712
  %v4799 = vunpack.c.h.b16 %v4712
  %v4800 = vunpack.c.l.b16 %v4713
  %v4801 = vunpack.c.h.b16 %v4713
  %v4802 = vunpack.c.l.b16 %v4714
  %v4803 = vunpack.c.h.b16 %v4714
  %v4804 = vunpack.c.l.b16 %v4715
  %v4805 = vunpack.c.h.b16 %v4715
  %v4806 = vunpack.c.l.b16 %v4716
  %v4807 = vunpack.c.h.b16 %v4716
  %v4808 = vunpack.c.l.b16 %v4717
  %v4809 = vunpack.c.h.b16 %v4717
  %v4810 = vunpack.c.l.b16 %v4718
  %v4811 = vunpack.c.h.b16 %v4718
  %v4812 = vunpack.c.l.b16 %v4719
  %v4813 = vunpack.c.h.b16 %v4719
  %v4814 = vunpack.c.l.b16 %v4720
  %v4815 = vunpack.c.h.b16 %v4720
  %v4816 = vunpack.c.l.b16 %v4721
  %v4817 = vunpack.c.h.b16 %v4721
  %v4818 = vpack.c.b16 %v4758, %v4754
  %v4819 = vpack.c.b16 %v4759, %v4755
  %v4820 = vpack.c.b16 %v4760, %v4756
  %v4821 = vpack.c.b16 %v4761, %v4757
  %v4822 = vpack.c.b16 %v4766, %v4762
  %v4823 = vpack.c.b16 %v4767, %v4763
  %v4824 = vpack.c.b16 %v4768, %v4764
  %v4825 = vpack.c.b16 %v4769, %v4765
  %v4826 = vpack.c.b16 %v4774, %v4770
  %v4827 = vpack.c.b16 %v4775, %v4771
  %v4828 = vpack.c.b16 %v4776, %v4772
  %v4829 = vpack.c.b16 %v4777, %v4773
  %v4830 = vpack.c.b16 %v4782, %v4778
  %v4831 = vpack.c.b16 %v4783, %v4779
  %v4832 = vpack.c.b16 %v4784, %v4780
  %v4833 = vpack.c.b16 %v4785, %v4781
  %v4834 = vpack.c.b16 %v4790, %v4786
  %v4835 = vpack.c.b16 %v4791, %v4787
  %v4836 = vpack.c.b16 %v4792, %v4788
  %v4837 = vpack.c.b16 %v4793, %v4789
  %v4838 = vpack.c.b16 %v4798, %v4794
  %v4839 = vpack.c.b16 %v4799, %v4795
  %v4840 = vpack.c.b16 %v4800, %v4796
  %v4841 = vpack.c.b16 %v4801, %v4797
  %v4842 = vpack.c.b16 %v4806, %v4802
  %v4843 = vpack.c.b16 %v4807, %v4803
  %v4844 = vpack.c.b16 %v4808, %v4804
  %v4845 = vpack.c.b16 %v4809, %v4805
  %v4846 = vpack.c.b16 %v4814, %v4810
  %v4847 = vpack.c.b16 %v4815, %v4811
  %v4848 = vpack.c.b16 %v4816, %v4812
  %v4849 = vpack.c.b16 %v4817, %v4813
  %4882 = vmatprep.subr.bf16.mxu0 %v4847
  %4883 = vmatpush1.bf16.msra.mxu0 %v4846
  %4884 = vmatprep.subr.bf16.mxu0 %v4843
  %4885 = vmatpush1.bf16.msra.mxu0 %v4842
  %4886 = vmatprep.subr.bf16.mxu0 %v4839
  %4887 = vmatpush1.bf16.msra.mxu0 %v4838
  %4888 = vmatprep.subr.bf16.mxu0 %v4835
  %4889 = vmatpush1.bf16.msra.mxu0 %v4834
  %4890 = vmatprep.subr.bf16.mxu0 %v4831
  %4891 = vmatpush1.bf16.msra.mxu0 %v4830
  %4892 = vmatprep.subr.bf16.mxu0 %v4827
  %4893 = vmatpush1.bf16.msra.mxu0 %v4826
  %4894 = vmatprep.subr.bf16.mxu0 %v4823
  %4895 = vmatpush1.bf16.msra.mxu0 %v4822
  %4896 = vmatprep.subr.bf16.mxu0 %v4819
  %4897 = vmatpush1.bf16.msra.mxu0 %v4818
  %4898 = vmatprep.subr.bf16.mxu0 0
  %4899 = vmatpush2.bf16.msra.mxu0 0
  %4900 = vmatprep.subr.bf16.mxu0 0
  %4901 = vmatpush2.bf16.msra.mxu0 0
  %4902 = vmatprep.subr.bf16.mxu0 0
  %4903 = vmatpush2.bf16.msra.mxu0 0
  %4904 = vmatprep.subr.bf16.mxu0 0
  %4905 = vmatpush2.bf16.msra.mxu0 0
  %4906 = vmatprep.subr.bf16.mxu0 0
  %4907 = vmatpush2.bf16.msra.mxu0 0
  %4908 = vmatprep.subr.bf16.mxu0 0
  %4909 = vmatpush2.bf16.msra.mxu0 0
  %4910 = vmatprep.subr.bf16.mxu0 0
  %4911 = vmatpush2.bf16.msra.mxu0 0
  %4912 = vmatprep.subr.bf16.mxu0 0
  %4913 = vmatpush2.bf16.msra.mxu0 0
  %4914 = vmatprep.mubr.bf16.mxu0 0
  %4915 = vmatmul.mubr.bf16.gmra.mxu0 %v4684
  %v4916 = vpop.f32.mrf.mxu0
  %v4917 = vadd.f32 0.0, %v4916
  %v4918 = vpop.f32.mrf.mxu0
  %v4919 = vadd.f32 0.0, %v4918
  %v4920 = vpop.f32.mrf.mxu0
  %v4921 = vpop.f32.mrf.mxu0
  %4922 = vdwg.mxu0
  %4923 = vmatprep.subr.bf16.mxu0 %v4849
  %4924 = vmatpush1.bf16.msra.mxu0 %v4848
  %4925 = vmatprep.subr.bf16.mxu0 %v4845
  %4926 = vmatpush1.bf16.msra.mxu0 %v4844
  %4927 = vmatprep.subr.bf16.mxu0 %v4841
  %4928 = vmatpush1.bf16.msra.mxu0 %v4840
  %4929 = vmatprep.subr.bf16.mxu0 %v4837
  %4930 = vmatpush1.bf16.msra.mxu0 %v4836
  %4931 = vmatprep.subr.bf16.mxu0 %v4833
  %4932 = vmatpush1.bf16.msra.mxu0 %v4832
  %4933 = vmatprep.subr.bf16.mxu0 %v4829
  %4934 = vmatpush1.bf16.msra.mxu0 %v4828
  %4935 = vmatprep.subr.bf16.mxu0 %v4825
  %4936 = vmatpush1.bf16.msra.mxu0 %v4824
  %4937 = vmatprep.subr.bf16.mxu0 %v4821
  %4938 = vmatpush1.bf16.msra.mxu0 %v4820
  %4939 = vmatprep.subr.bf16.mxu0 0
  %4940 = vmatpush2.bf16.msra.mxu0 0
  %4941 = vmatprep.subr.bf16.mxu0 0
  %4942 = vmatpush2.bf16.msra.mxu0 0
  %4943 = vmatprep.subr.bf16.mxu0 0
  %4944 = vmatpush2.bf16.msra.mxu0 0
  %4945 = vmatprep.subr.bf16.mxu0 0
  %4946 = vmatpush2.bf16.msra.mxu0 0
  %4947 = vmatprep.subr.bf16.mxu0 0
  %4948 = vmatpush2.bf16.msra.mxu0 0
  %4949 = vmatprep.subr.bf16.mxu0 0
  %4950 = vmatpush2.bf16.msra.mxu0 0
  %4951 = vmatprep.subr.bf16.mxu0 0
  %4952 = vmatpush2.bf16.msra.mxu0 0
  %4953 = vmatprep.subr.bf16.mxu0 0
  %4954 = vmatpush2.bf16.msra.mxu0 0
  %4955 = vmatprep.mubr.bf16.mxu0 0
  %4956 = vmatmul.mubr.bf16.gmra.mxu0 %v4684
  %v4957 = vpop.f32.mrf.mxu0
  %v4958 = vadd.f32 0.0, %v4957
  %v4959 = vpop.f32.mrf.mxu0
  %v4960 = vadd.f32 0.0, %v4959
  %v4961 = vpop.f32.mrf.mxu0
  %v4962 = vpop.f32.mrf.mxu0
  %4963 = vdwg.mxu0
  %v4964 = vld [vmem:[%s4] sm:$0xf]
  %v4965 = vld [vmem:[%s4 + $0x4] sm:$0xf]
  %v4966 = vld [vmem:[%s4 + $0x8] sm:$0xf]
  %v4967 = vld [vmem:[%s4 + $0xc] sm:$0xf]
  %v4968 = vld [vmem:[%s4 + $0x10] sm:$0xf]
  %v4969 = vld [vmem:[%s4 + $0x14] sm:$0xf]
  %v4970 = vld [vmem:[%s4 + $0x18] sm:$0xf]
  %v4971 = vld [vmem:[%s4 + $0x1c] sm:$0xf]
  %v4972 = vld [vmem:[%s4 + $0x20] sm:$0xf]
  %v4973 = vld [vmem:[%s4 + $0x24] sm:$0xf]
  %v4974 = vld [vmem:[%s4 + $0x28] sm:$0xf]
  %v4975 = vld [vmem:[%s4 + $0x2c] sm:$0xf]
  %v4976 = vld [vmem:[%s4 + $0x30] sm:$0xf]
  %v4977 = vld [vmem:[%s4 + $0x34] sm:$0xf]
  %v4978 = vld [vmem:[%s4 + $0x38] sm:$0xf]
  %v4979 = vld [vmem:[%s4 + $0x3c] sm:$0xf]
  %v4996 = vunpack.c.l.b16 %v4964
  %v4997 = vunpack.c.l.b16 %v4965
  %v4998 = vunpack.c.l.b16 %v4966
  %v4999 = vunpack.c.l.b16 %v4967
  %v5000 = vunpack.c.l.b16 %v4968
  %v5001 = vunpack.c.l.b16 %v4969
  %v5002 = vunpack.c.l.b16 %v4970
  %v5003 = vunpack.c.l.b16 %v4971
  %v5004 = vunpack.c.l.b16 %v4972
  %v5005 = vunpack.c.l.b16 %v4973
  %v5006 = vunpack.c.l.b16 %v4974
  %v5007 = vunpack.c.l.b16 %v4975
  %v5008 = vunpack.c.l.b16 %v4976
  %v5009 = vunpack.c.l.b16 %v4977
  %v5010 = vunpack.c.l.b16 %v4978
  %v5011 = vunpack.c.l.b16 %v4979
  %v5012 = vpack.c.b16 %v4997, %v4996
  %v5013 = vpack.c.b16 %v4999, %v4998
  %v5014 = vpack.c.b16 %v5001, %v5000
  %v5015 = vpack.c.b16 %v5003, %v5002
  %v5016 = vpack.c.b16 %v5005, %v5004
  %v5017 = vpack.c.b16 %v5007, %v5006
  %v5018 = vpack.c.b16 %v5009, %v5008
  %v5019 = vpack.c.b16 %v5011, %v5010
  %5028 = vmatprep.subr.bf16.mxu0 0
  %5029 = vmatpush1.bf16.msra.mxu0 %v5019
  %5030 = vmatprep.subr.bf16.mxu0 0
  %5031 = vmatpush1.bf16.msra.mxu0 %v5018
  %5032 = vmatprep.subr.bf16.mxu0 0
  %5033 = vmatpush1.bf16.msra.mxu0 %v5017
  %5034 = vmatprep.subr.bf16.mxu0 0
  %5035 = vmatpush1.bf16.msra.mxu0 %v5016
  %5036 = vmatprep.subr.bf16.mxu0 0
  %5037 = vmatpush1.bf16.msra.mxu0 %v5015
  %5038 = vmatprep.subr.bf16.mxu0 0
  %5039 = vmatpush1.bf16.msra.mxu0 %v5014
  %5040 = vmatprep.subr.bf16.mxu0 0
  %5041 = vmatpush1.bf16.msra.mxu0 %v5013
  %5042 = vmatprep.subr.bf16.mxu0 0
  %5043 = vmatpush1.bf16.msra.mxu0 %v5012
  %5044 = vmatprep.subr.bf16.mxu0 0
  %5045 = vmatpush2.bf16.msra.mxu0 0
  %5046 = vmatprep.subr.bf16.mxu0 0
  %5047 = vmatpush2.bf16.msra.mxu0 0
  %5048 = vmatprep.subr.bf16.mxu0 0
  %5049 = vmatpush2.bf16.msra.mxu0 0
  %5050 = vmatprep.subr.bf16.mxu0 0
  %5051 = vmatpush2.bf16.msra.mxu0 0
  %5052 = vmatprep.subr.bf16.mxu0 0
  %5053 = vmatpush2.bf16.msra.mxu0 0
  %5054 = vmatprep.subr.bf16.mxu0 0
  %5055 = vmatpush2.bf16.msra.mxu0 0
  %5056 = vmatprep.subr.bf16.mxu0 0
  %5057 = vmatpush2.bf16.msra.mxu0 0
  %5058 = vmatprep.subr.bf16.mxu0 0
  %5059 = vmatpush2.bf16.msra.mxu0 0
  %5060 = vmatprep.mubr.bf16.mxu0 0
  %5061 = vmatmul.mubr.bf16.gmra.mxu0 %v4685
  %v5062 = vpop.f32.mrf.mxu0
  %v5063 = vadd.f32 %v798, %v5062
  %v5064 = vpop.f32.mrf.mxu0
  %v5065 = vpop.f32.mrf.mxu0
  %v5066 = vpop.f32.mrf.mxu0
  %5067 = vdwg.mxu0
  %v5068 = vadd.f32 %v4686, %v4917
  %v5069 = vadd.f32 %v4687, %v4919
  %v5070 = vadd.f32 %v4688, %v4958
  %v5071 = vadd.f32 %v4689, %v4960
  %v5072 = vxor.u32 %v5068, 2147483648
  %v5073 = vxor.u32 %v5069, 2147483648
  %v5074 = vxor.u32 %v5070, 2147483648
  %v5075 = vxor.u32 %v5071, 2147483648
  %v5076 = vmul.f32 %v5072, 1.442695
  %v5077 = vpow.pop %v5076
  %v5078 = vmul.f32 %v5073, 1.442695
  %v5079 = vpow.pop %v5078
  %v5080 = vmul.f32 %v5074, 1.442695
  %v5081 = vpow.pop %v5080
  %v5082 = vmul.f32 %v5075, 1.442695
  %v5083 = vpow.pop %v5082
  %v5084 = vadd.f32 %v5077, 1.0
  %v5085 = vadd.f32 %v5079, 1.0
  %v5086 = vadd.f32 %v5081, 1.0
  %v5087 = vadd.f32 %v5083, 1.0
  %v5088 = vrcp.pop %v5084
  %v5089 = vmul.f32 1.0, %v5088
  %v5090 = vrcp.pop %v5085
  %v5091 = vmul.f32 1.0, %v5090
  %v5092 = vrcp.pop %v5086
  %v5093 = vmul.f32 1.0, %v5092
  %v5094 = vrcp.pop %v5087
  %v5095 = vmul.f32 1.0, %v5094
  %v5096 = vmul.f32 %v5093, %v5063
  %v5097 = vmul.f32 %v5089, %v5091
  %v5098 = vadd.f32 %v5096, %v5097
  %v5099 = vtanh.pop %v5098
  %v5100 = vmul.f32 %v5095, %v5099
  %5101 = vst [vmem:[#allocation3 + $0x50] sm:$0xff] %v5100
  %v5102 = vpack.c.bf16 %v5100, %v5100
  %v5103 = vpack.c.bf16 %v5098, %v5098
  %v5104 = vld [vmem:[#allocation2 + $0x160] sm:$0xff]
  %v5105 = vld [vmem:[#allocation2 + $0x168] sm:$0xff]
  %v5106 = vld [vmem:[#allocation2 + $0x170] sm:$0xff]
  %v5107 = vld [vmem:[#allocation2 + $0x178] sm:$0xff]
  %v5108 = vld [vmem:[%s3] sm:$0xff]
  %v5109 = vld [vmem:[%s3 + $0x8] sm:$0xff]
  %v5110 = vld [vmem:[%s3 + $0x10] sm:$0xff]
  %v5111 = vld [vmem:[%s3 + $0x18] sm:$0xff]
  %v5112 = vld [vmem:[%s3 + $0x20] sm:$0xff]
  %v5113 = vld [vmem:[%s3 + $0x28] sm:$0xff]
  %v5114 = vld [vmem:[%s3 + $0x30] sm:$0xff]
  %v5115 = vld [vmem:[%s3 + $0x38] sm:$0xff]
  %v5116 = vld [vmem:[%s3 + $0x40] sm:$0xff]
  %v5117 = vld [vmem:[%s3 + $0x48] sm:$0xff]
  %v5118 = vld [vmem:[%s3 + $0x50] sm:$0xff]
  %v5119 = vld [vmem:[%s3 + $0x58] sm:$0xff]
  %v5120 = vld [vmem:[%s3 + $0x60] sm:$0xff]
  %v5121 = vld [vmem:[%s3 + $0x68] sm:$0xff]
  %v5122 = vld [vmem:[%s3 + $0x70] sm:$0xff]
  %v5123 = vld [vmem:[%s3 + $0x78] sm:$0xff]
  %v5124 = vld [vmem:[%s3 + $0x80] sm:$0xff]
  %v5125 = vld [vmem:[%s3 + $0x88] sm:$0xff]
  %v5126 = vld [vmem:[%s3 + $0x90] sm:$0xff]
  %v5127 = vld [vmem:[%s3 + $0x98] sm:$0xff]
  %v5128 = vld [vmem:[%s3 + $0xa0] sm:$0xff]
  %v5129 = vld [vmem:[%s3 + $0xa8] sm:$0xff]
  %v5130 = vld [vmem:[%s3 + $0xb0] sm:$0xff]
  %v5131 = vld [vmem:[%s3 + $0xb8] sm:$0xff]
  %v5132 = vld [vmem:[%s3 + $0xc0] sm:$0xff]
  %v5133 = vld [vmem:[%s3 + $0xc8] sm:$0xff]
  %v5134 = vld [vmem:[%s3 + $0xd0] sm:$0xff]
  %v5135 = vld [vmem:[%s3 + $0xd8] sm:$0xff]
  %v5136 = vld [vmem:[%s3 + $0xe0] sm:$0xff]
  %v5137 = vld [vmem:[%s3 + $0xe8] sm:$0xff]
  %v5138 = vld [vmem:[%s3 + $0xf0] sm:$0xff]
  %v5139 = vld [vmem:[%s3 + $0xf8] sm:$0xff]
  %v5172 = vunpack.c.l.b16 %v5108
  %v5173 = vunpack.c.h.b16 %v5108
  %v5174 = vunpack.c.l.b16 %v5109
  %v5175 = vunpack.c.h.b16 %v5109
  %v5176 = vunpack.c.l.b16 %v5110
  %v5177 = vunpack.c.h.b16 %v5110
  %v5178 = vunpack.c.l.b16 %v5111
  %v5179 = vunpack.c.h.b16 %v5111
  %v5180 = vunpack.c.l.b16 %v5112
  %v5181 = vunpack.c.h.b16 %v5112
  %v5182 = vunpack.c.l.b16 %v5113
  %v5183 = vunpack.c.h.b16 %v5113
  %v5184 = vunpack.c.l.b16 %v5114
  %v5185 = vunpack.c.h.b16 %v5114
  %v5186 = vunpack.c.l.b16 %v5115
  %v5187 = vunpack.c.h.b16 %v5115
  %v5188 = vunpack.c.l.b16 %v5116
  %v5189 = vunpack.c.h.b16 %v5116
  %v5190 = vunpack.c.l.b16 %v5117
  %v5191 = vunpack.c.h.b16 %v5117
  %v5192 = vunpack.c.l.b16 %v5118
  %v5193 = vunpack.c.h.b16 %v5118
  %v5194 = vunpack.c.l.b16 %v5119
  %v5195 = vunpack.c.h.b16 %v5119
  %v5196 = vunpack.c.l.b16 %v5120
  %v5197 = vunpack.c.h.b16 %v5120
  %v5198 = vunpack.c.l.b16 %v5121
  %v5199 = vunpack.c.h.b16 %v5121
  %v5200 = vunpack.c.l.b16 %v5122
  %v5201 = vunpack.c.h.b16 %v5122
  %v5202 = vunpack.c.l.b16 %v5123
  %v5203 = vunpack.c.h.b16 %v5123
  %v5204 = vunpack.c.l.b16 %v5124
  %v5205 = vunpack.c.h.b16 %v5124
  %v5206 = vunpack.c.l.b16 %v5125
  %v5207 = vunpack.c.h.b16 %v5125
  %v5208 = vunpack.c.l.b16 %v5126
  %v5209 = vunpack.c.h.b16 %v5126
  %v5210 = vunpack.c.l.b16 %v5127
  %v5211 = vunpack.c.h.b16 %v5127
  %v5212 = vunpack.c.l.b16 %v5128
  %v5213 = vunpack.c.h.b16 %v5128
  %v5214 = vunpack.c.l.b16 %v5129
  %v5215 = vunpack.c.h.b16 %v5129
  %v5216 = vunpack.c.l.b16 %v5130
  %v5217 = vunpack.c.h.b16 %v5130
  %v5218 = vunpack.c.l.b16 %v5131
  %v5219 = vunpack.c.h.b16 %v5131
  %v5220 = vunpack.c.l.b16 %v5132
  %v5221 = vunpack.c.h.b16 %v5132
  %v5222 = vunpack.c.l.b16 %v5133
  %v5223 = vunpack.c.h.b16 %v5133
  %v5224 = vunpack.c.l.b16 %v5134
  %v5225 = vunpack.c.h.b16 %v5134
  %v5226 = vunpack.c.l.b16 %v5135
  %v5227 = vunpack.c.h.b16 %v5135
  %v5228 = vunpack.c.l.b16 %v5136
  %v5229 = vunpack.c.h.b16 %v5136
  %v5230 = vunpack.c.l.b16 %v5137
  %v5231 = vunpack.c.h.b16 %v5137
  %v5232 = vunpack.c.l.b16 %v5138
  %v5233 = vunpack.c.h.b16 %v5138
  %v5234 = vunpack.c.l.b16 %v5139
  %v5235 = vunpack.c.h.b16 %v5139
  %v5236 = vpack.c.b16 %v5176, %v5172
  %v5237 = vpack.c.b16 %v5177, %v5173
  %v5238 = vpack.c.b16 %v5178, %v5174
  %v5239 = vpack.c.b16 %v5179, %v5175
  %v5240 = vpack.c.b16 %v5184, %v5180
  %v5241 = vpack.c.b16 %v5185, %v5181
  %v5242 = vpack.c.b16 %v5186, %v5182
  %v5243 = vpack.c.b16 %v5187, %v5183
  %v5244 = vpack.c.b16 %v5192, %v5188
  %v5245 = vpack.c.b16 %v5193, %v5189
  %v5246 = vpack.c.b16 %v5194, %v5190
  %v5247 = vpack.c.b16 %v5195, %v5191
  %v5248 = vpack.c.b16 %v5200, %v5196
  %v5249 = vpack.c.b16 %v5201, %v5197
  %v5250 = vpack.c.b16 %v5202, %v5198
  %v5251 = vpack.c.b16 %v5203, %v5199
  %v5252 = vpack.c.b16 %v5208, %v5204
  %v5253 = vpack.c.b16 %v5209, %v5205
  %v5254 = vpack.c.b16 %v5210, %v5206
  %v5255 = vpack.c.b16 %v5211, %v5207
  %v5256 = vpack.c.b16 %v5216, %v5212
  %v5257 = vpack.c.b16 %v5217, %v5213
  %v5258 = vpack.c.b16 %v5218, %v5214
  %v5259 = vpack.c.b16 %v5219, %v5215
  %v5260 = vpack.c.b16 %v5224, %v5220
  %v5261 = vpack.c.b16 %v5225, %v5221
  %v5262 = vpack.c.b16 %v5226, %v5222
  %v5263 = vpack.c.b16 %v5227, %v5223
  %v5264 = vpack.c.b16 %v5232, %v5228
  %v5265 = vpack.c.b16 %v5233, %v5229
  %v5266 = vpack.c.b16 %v5234, %v5230
  %v5267 = vpack.c.b16 %v5235, %v5231
  %5300 = vmatprep.subr.bf16.mxu0 %v5265
  %5301 = vmatpush1.bf16.msra.mxu0 %v5264
  %5302 = vmatprep.subr.bf16.mxu0 %v5261
  %5303 = vmatpush1.bf16.msra.mxu0 %v5260
  %5304 = vmatprep.subr.bf16.mxu0 %v5257
  %5305 = vmatpush1.bf16.msra.mxu0 %v5256
  %5306 = vmatprep.subr.bf16.mxu0 %v5253
  %5307 = vmatpush1.bf16.msra.mxu0 %v5252
  %5308 = vmatprep.subr.bf16.mxu0 %v5249
  %5309 = vmatpush1.bf16.msra.mxu0 %v5248
  %5310 = vmatprep.subr.bf16.mxu0 %v5245
  %5311 = vmatpush1.bf16.msra.mxu0 %v5244
  %5312 = vmatprep.subr.bf16.mxu0 %v5241
  %5313 = vmatpush1.bf16.msra.mxu0 %v5240
  %5314 = vmatprep.subr.bf16.mxu0 %v5237
  %5315 = vmatpush1.bf16.msra.mxu0 %v5236
  %5316 = vmatprep.subr.bf16.mxu0 0
  %5317 = vmatpush2.bf16.msra.mxu0 0
  %5318 = vmatprep.subr.bf16.mxu0 0
  %5319 = vmatpush2.bf16.msra.mxu0 0
  %5320 = vmatprep.subr.bf16.mxu0 0
  %5321 = vmatpush2.bf16.msra.mxu0 0
  %5322 = vmatprep.subr.bf16.mxu0 0
  %5323 = vmatpush2.bf16.msra.mxu0 0
  %5324 = vmatprep.subr.bf16.mxu0 0
  %5325 = vmatpush2.bf16.msra.mxu0 0
  %5326 = vmatprep.subr.bf16.mxu0 0
  %5327 = vmatpush2.bf16.msra.mxu0 0
  %5328 = vmatprep.subr.bf16.mxu0 0
  %5329 = vmatpush2.bf16.msra.mxu0 0
  %5330 = vmatprep.subr.bf16.mxu0 0
  %5331 = vmatpush2.bf16.msra.mxu0 0
  %5332 = vmatprep.mubr.bf16.mxu0 0
  %5333 = vmatmul.mubr.bf16.gmra.mxu0 %v5102
  %v5334 = vpop.f32.mrf.mxu0
  %v5335 = vadd.f32 0.0, %v5334
  %v5336 = vpop.f32.mrf.mxu0
  %v5337 = vadd.f32 0.0, %v5336
  %v5338 = vpop.f32.mrf.mxu0
  %v5339 = vpop.f32.mrf.mxu0
  %5340 = vdwg.mxu0
  %5341 = vmatprep.subr.bf16.mxu0 %v5267
  %5342 = vmatpush1.bf16.msra.mxu0 %v5266
  %5343 = vmatprep.subr.bf16.mxu0 %v5263
  %5344 = vmatpush1.bf16.msra.mxu0 %v5262
  %5345 = vmatprep.subr.bf16.mxu0 %v5259
  %5346 = vmatpush1.bf16.msra.mxu0 %v5258
  %5347 = vmatprep.subr.bf16.mxu0 %v5255
  %5348 = vmatpush1.bf16.msra.mxu0 %v5254
  %5349 = vmatprep.subr.bf16.mxu0 %v5251
  %5350 = vmatpush1.bf16.msra.mxu0 %v5250
  %5351 = vmatprep.subr.bf16.mxu0 %v5247
  %5352 = vmatpush1.bf16.msra.mxu0 %v5246
  %5353 = vmatprep.subr.bf16.mxu0 %v5243
  %5354 = vmatpush1.bf16.msra.mxu0 %v5242
  %5355 = vmatprep.subr.bf16.mxu0 %v5239
  %5356 = vmatpush1.bf16.msra.mxu0 %v5238
  %5357 = vmatprep.subr.bf16.mxu0 0
  %5358 = vmatpush2.bf16.msra.mxu0 0
  %5359 = vmatprep.subr.bf16.mxu0 0
  %5360 = vmatpush2.bf16.msra.mxu0 0
  %5361 = vmatprep.subr.bf16.mxu0 0
  %5362 = vmatpush2.bf16.msra.mxu0 0
  %5363 = vmatprep.subr.bf16.mxu0 0
  %5364 = vmatpush2.bf16.msra.mxu0 0
  %5365 = vmatprep.subr.bf16.mxu0 0
  %5366 = vmatpush2.bf16.msra.mxu0 0
  %5367 = vmatprep.subr.bf16.mxu0 0
  %5368 = vmatpush2.bf16.msra.mxu0 0
  %5369 = vmatprep.subr.bf16.mxu0 0
  %5370 = vmatpush2.bf16.msra.mxu0 0
  %5371 = vmatprep.subr.bf16.mxu0 0
  %5372 = vmatpush2.bf16.msra.mxu0 0
  %5373 = vmatprep.mubr.bf16.mxu0 0
  %5374 = vmatmul.mubr.bf16.gmra.mxu0 %v5102
  %v5375 = vpop.f32.mrf.mxu0
  %v5376 = vadd.f32 0.0, %v5375
  %v5377 = vpop.f32.mrf.mxu0
  %v5378 = vadd.f32 0.0, %v5377
  %v5379 = vpop.f32.mrf.mxu0
  %v5380 = vpop.f32.mrf.mxu0
  %5381 = vdwg.mxu0
  %v5382 = vld [vmem:[%s4] sm:$0xf]
  %v5383 = vld [vmem:[%s4 + $0x4] sm:$0xf]
  %v5384 = vld [vmem:[%s4 + $0x8] sm:$0xf]
  %v5385 = vld [vmem:[%s4 + $0xc] sm:$0xf]
  %v5386 = vld [vmem:[%s4 + $0x10] sm:$0xf]
  %v5387 = vld [vmem:[%s4 + $0x14] sm:$0xf]
  %v5388 = vld [vmem:[%s4 + $0x18] sm:$0xf]
  %v5389 = vld [vmem:[%s4 + $0x1c] sm:$0xf]
  %v5390 = vld [vmem:[%s4 + $0x20] sm:$0xf]
  %v5391 = vld [vmem:[%s4 + $0x24] sm:$0xf]
  %v5392 = vld [vmem:[%s4 + $0x28] sm:$0xf]
  %v5393 = vld [vmem:[%s4 + $0x2c] sm:$0xf]
  %v5394 = vld [vmem:[%s4 + $0x30] sm:$0xf]
  %v5395 = vld [vmem:[%s4 + $0x34] sm:$0xf]
  %v5396 = vld [vmem:[%s4 + $0x38] sm:$0xf]
  %v5397 = vld [vmem:[%s4 + $0x3c] sm:$0xf]
  %v5414 = vunpack.c.l.b16 %v5382
  %v5415 = vunpack.c.l.b16 %v5383
  %v5416 = vunpack.c.l.b16 %v5384
  %v5417 = vunpack.c.l.b16 %v5385
  %v5418 = vunpack.c.l.b16 %v5386
  %v5419 = vunpack.c.l.b16 %v5387
  %v5420 = vunpack.c.l.b16 %v5388
  %v5421 = vunpack.c.l.b16 %v5389
  %v5422 = vunpack.c.l.b16 %v5390
  %v5423 = vunpack.c.l.b16 %v5391
  %v5424 = vunpack.c.l.b16 %v5392
  %v5425 = vunpack.c.l.b16 %v5393
  %v5426 = vunpack.c.l.b16 %v5394
  %v5427 = vunpack.c.l.b16 %v5395
  %v5428 = vunpack.c.l.b16 %v5396
  %v5429 = vunpack.c.l.b16 %v5397
  %v5430 = vpack.c.b16 %v5415, %v5414
  %v5431 = vpack.c.b16 %v5417, %v5416
  %v5432 = vpack.c.b16 %v5419, %v5418
  %v5433 = vpack.c.b16 %v5421, %v5420
  %v5434 = vpack.c.b16 %v5423, %v5422
  %v5435 = vpack.c.b16 %v5425, %v5424
  %v5436 = vpack.c.b16 %v5427, %v5426
  %v5437 = vpack.c.b16 %v5429, %v5428
  %5446 = vmatprep.subr.bf16.mxu0 0
  %5447 = vmatpush1.bf16.msra.mxu0 %v5437
  %5448 = vmatprep.subr.bf16.mxu0 0
  %5449 = vmatpush1.bf16.msra.mxu0 %v5436
  %5450 = vmatprep.subr.bf16.mxu0 0
  %5451 = vmatpush1.bf16.msra.mxu0 %v5435
  %5452 = vmatprep.subr.bf16.mxu0 0
  %5453 = vmatpush1.bf16.msra.mxu0 %v5434
  %5454 = vmatprep.subr.bf16.mxu0 0
  %5455 = vmatpush1.bf16.msra.mxu0 %v5433
  %5456 = vmatprep.subr.bf16.mxu0 0
  %5457 = vmatpush1.bf16.msra.mxu0 %v5432
  %5458 = vmatprep.subr.bf16.mxu0 0
  %5459 = vmatpush1.bf16.msra.mxu0 %v5431
  %5460 = vmatprep.subr.bf16.mxu0 0
  %5461 = vmatpush1.bf16.msra.mxu0 %v5430
  %5462 = vmatprep.subr.bf16.mxu0 0
  %5463 = vmatpush2.bf16.msra.mxu0 0
  %5464 = vmatprep.subr.bf16.mxu0 0
  %5465 = vmatpush2.bf16.msra.mxu0 0
  %5466 = vmatprep.subr.bf16.mxu0 0
  %5467 = vmatpush2.bf16.msra.mxu0 0
  %5468 = vmatprep.subr.bf16.mxu0 0
  %5469 = vmatpush2.bf16.msra.mxu0 0
  %5470 = vmatprep.subr.bf16.mxu0 0
  %5471 = vmatpush2.bf16.msra.mxu0 0
  %5472 = vmatprep.subr.bf16.mxu0 0
  %5473 = vmatpush2.bf16.msra.mxu0 0
  %5474 = vmatprep.subr.bf16.mxu0 0
  %5475 = vmatpush2.bf16.msra.mxu0 0
  %5476 = vmatprep.subr.bf16.mxu0 0
  %5477 = vmatpush2.bf16.msra.mxu0 0
  %5478 = vmatprep.mubr.bf16.mxu0 0
  %5479 = vmatmul.mubr.bf16.gmra.mxu0 %v5103
  %v5480 = vpop.f32.mrf.mxu0
  %v5481 = vadd.f32 %v798, %v5480
  %v5482 = vpop.f32.mrf.mxu0
  %v5483 = vpop.f32.mrf.mxu0
  %v5484 = vpop.f32.mrf.mxu0
  %5485 = vdwg.mxu0
  %v5486 = vadd.f32 %v5104, %v5335
  %v5487 = vadd.f32 %v5105, %v5337
  %v5488 = vadd.f32 %v5106, %v5376
  %v5489 = vadd.f32 %v5107, %v5378
  %v5490 = vxor.u32 %v5486, 2147483648
  %v5491 = vxor.u32 %v5487, 2147483648
  %v5492 = vxor.u32 %v5488, 2147483648
  %v5493 = vxor.u32 %v5489, 2147483648
  %v5494 = vmul.f32 %v5490, 1.442695
  %v5495 = vpow.pop %v5494
  %v5496 = vmul.f32 %v5491, 1.442695
  %v5497 = vpow.pop %v5496
  %v5498 = vmul.f32 %v5492, 1.442695
  %v5499 = vpow.pop %v5498
  %v5500 = vmul.f32 %v5493, 1.442695
  %v5501 = vpow.pop %v5500
  %v5502 = vadd.f32 %v5495, 1.0
  %v5503 = vadd.f32 %v5497, 1.0
  %v5504 = vadd.f32 %v5499, 1.0
  %v5505 = vadd.f32 %v5501, 1.0
  %v5506 = vrcp.pop %v5502
  %v5507 = vmul.f32 1.0, %v5506
  %v5508 = vrcp.pop %v5503
  %v5509 = vmul.f32 1.0, %v5508
  %v5510 = vrcp.pop %v5504
  %v5511 = vmul.f32 1.0, %v5510
  %v5512 = vrcp.pop %v5505
  %v5513 = vmul.f32 1.0, %v5512
  %v5514 = vmul.f32 %v5511, %v5481
  %v5515 = vmul.f32 %v5507, %v5509
  %v5516 = vadd.f32 %v5514, %v5515
  %v5517 = vtanh.pop %v5516
  %v5518 = vmul.f32 %v5513, %v5517
  %5519 = vst [vmem:[#allocation3 + $0x58] sm:$0xff] %v5518
  %v5520 = vpack.c.bf16 %v5518, %v5518
  %v5521 = vpack.c.bf16 %v5516, %v5516
  %v5522 = vld [vmem:[#allocation2 + $0x180] sm:$0xff]
  %v5523 = vld [vmem:[#allocation2 + $0x188] sm:$0xff]
  %v5524 = vld [vmem:[#allocation2 + $0x190] sm:$0xff]
  %v5525 = vld [vmem:[#allocation2 + $0x198] sm:$0xff]
  %v5526 = vld [vmem:[%s3] sm:$0xff]
  %v5527 = vld [vmem:[%s3 + $0x8] sm:$0xff]
  %v5528 = vld [vmem:[%s3 + $0x10] sm:$0xff]
  %v5529 = vld [vmem:[%s3 + $0x18] sm:$0xff]
  %v5530 = vld [vmem:[%s3 + $0x20] sm:$0xff]
  %v5531 = vld [vmem:[%s3 + $0x28] sm:$0xff]
  %v5532 = vld [vmem:[%s3 + $0x30] sm:$0xff]
  %v5533 = vld [vmem:[%s3 + $0x38] sm:$0xff]
  %v5534 = vld [vmem:[%s3 + $0x40] sm:$0xff]
  %v5535 = vld [vmem:[%s3 + $0x48] sm:$0xff]
  %v5536 = vld [vmem:[%s3 + $0x50] sm:$0xff]
  %v5537 = vld [vmem:[%s3 + $0x58] sm:$0xff]
  %v5538 = vld [vmem:[%s3 + $0x60] sm:$0xff]
  %v5539 = vld [vmem:[%s3 + $0x68] sm:$0xff]
  %v5540 = vld [vmem:[%s3 + $0x70] sm:$0xff]
  %v5541 = vld [vmem:[%s3 + $0x78] sm:$0xff]
  %v5542 = vld [vmem:[%s3 + $0x80] sm:$0xff]
  %v5543 = vld [vmem:[%s3 + $0x88] sm:$0xff]
  %v5544 = vld [vmem:[%s3 + $0x90] sm:$0xff]
  %v5545 = vld [vmem:[%s3 + $0x98] sm:$0xff]
  %v5546 = vld [vmem:[%s3 + $0xa0] sm:$0xff]
  %v5547 = vld [vmem:[%s3 + $0xa8] sm:$0xff]
  %v5548 = vld [vmem:[%s3 + $0xb0] sm:$0xff]
  %v5549 = vld [vmem:[%s3 + $0xb8] sm:$0xff]
  %v5550 = vld [vmem:[%s3 + $0xc0] sm:$0xff]
  %v5551 = vld [vmem:[%s3 + $0xc8] sm:$0xff]
  %v5552 = vld [vmem:[%s3 + $0xd0] sm:$0xff]
  %v5553 = vld [vmem:[%s3 + $0xd8] sm:$0xff]
  %v5554 = vld [vmem:[%s3 + $0xe0] sm:$0xff]
  %v5555 = vld [vmem:[%s3 + $0xe8] sm:$0xff]
  %v5556 = vld [vmem:[%s3 + $0xf0] sm:$0xff]
  %v5557 = vld [vmem:[%s3 + $0xf8] sm:$0xff]
  %v5590 = vunpack.c.l.b16 %v5526
  %v5591 = vunpack.c.h.b16 %v5526
  %v5592 = vunpack.c.l.b16 %v5527
  %v5593 = vunpack.c.h.b16 %v5527
  %v5594 = vunpack.c.l.b16 %v5528
  %v5595 = vunpack.c.h.b16 %v5528
  %v5596 = vunpack.c.l.b16 %v5529
  %v5597 = vunpack.c.h.b16 %v5529
  %v5598 = vunpack.c.l.b16 %v5530
  %v5599 = vunpack.c.h.b16 %v5530
  %v5600 = vunpack.c.l.b16 %v5531
  %v5601 = vunpack.c.h.b16 %v5531
  %v5602 = vunpack.c.l.b16 %v5532
  %v5603 = vunpack.c.h.b16 %v5532
  %v5604 = vunpack.c.l.b16 %v5533
  %v5605 = vunpack.c.h.b16 %v5533
  %v5606 = vunpack.c.l.b16 %v5534
  %v5607 = vunpack.c.h.b16 %v5534
  %v5608 = vunpack.c.l.b16 %v5535
  %v5609 = vunpack.c.h.b16 %v5535
  %v5610 = vunpack.c.l.b16 %v5536
  %v5611 = vunpack.c.h.b16 %v5536
  %v5612 = vunpack.c.l.b16 %v5537
  %v5613 = vunpack.c.h.b16 %v5537
  %v5614 = vunpack.c.l.b16 %v5538
  %v5615 = vunpack.c.h.b16 %v5538
  %v5616 = vunpack.c.l.b16 %v5539
  %v5617 = vunpack.c.h.b16 %v5539
  %v5618 = vunpack.c.l.b16 %v5540
  %v5619 = vunpack.c.h.b16 %v5540
  %v5620 = vunpack.c.l.b16 %v5541
  %v5621 = vunpack.c.h.b16 %v5541
  %v5622 = vunpack.c.l.b16 %v5542
  %v5623 = vunpack.c.h.b16 %v5542
  %v5624 = vunpack.c.l.b16 %v5543
  %v5625 = vunpack.c.h.b16 %v5543
  %v5626 = vunpack.c.l.b16 %v5544
  %v5627 = vunpack.c.h.b16 %v5544
  %v5628 = vunpack.c.l.b16 %v5545
  %v5629 = vunpack.c.h.b16 %v5545
  %v5630 = vunpack.c.l.b16 %v5546
  %v5631 = vunpack.c.h.b16 %v5546
  %v5632 = vunpack.c.l.b16 %v5547
  %v5633 = vunpack.c.h.b16 %v5547
  %v5634 = vunpack.c.l.b16 %v5548
  %v5635 = vunpack.c.h.b16 %v5548
  %v5636 = vunpack.c.l.b16 %v5549
  %v5637 = vunpack.c.h.b16 %v5549
  %v5638 = vunpack.c.l.b16 %v5550
  %v5639 = vunpack.c.h.b16 %v5550
  %v5640 = vunpack.c.l.b16 %v5551
  %v5641 = vunpack.c.h.b16 %v5551
  %v5642 = vunpack.c.l.b16 %v5552
  %v5643 = vunpack.c.h.b16 %v5552
  %v5644 = vunpack.c.l.b16 %v5553
  %v5645 = vunpack.c.h.b16 %v5553
  %v5646 = vunpack.c.l.b16 %v5554
  %v5647 = vunpack.c.h.b16 %v5554
  %v5648 = vunpack.c.l.b16 %v5555
  %v5649 = vunpack.c.h.b16 %v5555
  %v5650 = vunpack.c.l.b16 %v5556
  %v5651 = vunpack.c.h.b16 %v5556
  %v5652 = vunpack.c.l.b16 %v5557
  %v5653 = vunpack.c.h.b16 %v5557
  %v5654 = vpack.c.b16 %v5594, %v5590
  %v5655 = vpack.c.b16 %v5595, %v5591
  %v5656 = vpack.c.b16 %v5596, %v5592
  %v5657 = vpack.c.b16 %v5597, %v5593
  %v5658 = vpack.c.b16 %v5602, %v5598
  %v5659 = vpack.c.b16 %v5603, %v5599
  %v5660 = vpack.c.b16 %v5604, %v5600
  %v5661 = vpack.c.b16 %v5605, %v5601
  %v5662 = vpack.c.b16 %v5610, %v5606
  %v5663 = vpack.c.b16 %v5611, %v5607
  %v5664 = vpack.c.b16 %v5612, %v5608
  %v5665 = vpack.c.b16 %v5613, %v5609
  %v5666 = vpack.c.b16 %v5618, %v5614
  %v5667 = vpack.c.b16 %v5619, %v5615
  %v5668 = vpack.c.b16 %v5620, %v5616
  %v5669 = vpack.c.b16 %v5621, %v5617
  %v5670 = vpack.c.b16 %v5626, %v5622
  %v5671 = vpack.c.b16 %v5627, %v5623
  %v5672 = vpack.c.b16 %v5628, %v5624
  %v5673 = vpack.c.b16 %v5629, %v5625
  %v5674 = vpack.c.b16 %v5634, %v5630
  %v5675 = vpack.c.b16 %v5635, %v5631
  %v5676 = vpack.c.b16 %v5636, %v5632
  %v5677 = vpack.c.b16 %v5637, %v5633
  %v5678 = vpack.c.b16 %v5642, %v5638
  %v5679 = vpack.c.b16 %v5643, %v5639
  %v5680 = vpack.c.b16 %v5644, %v5640
  %v5681 = vpack.c.b16 %v5645, %v5641
  %v5682 = vpack.c.b16 %v5650, %v5646
  %v5683 = vpack.c.b16 %v5651, %v5647
  %v5684 = vpack.c.b16 %v5652, %v5648
  %v5685 = vpack.c.b16 %v5653, %v5649
  %5718 = vmatprep.subr.bf16.mxu0 %v5683
  %5719 = vmatpush1.bf16.msra.mxu0 %v5682
  %5720 = vmatprep.subr.bf16.mxu0 %v5679
  %5721 = vmatpush1.bf16.msra.mxu0 %v5678
  %5722 = vmatprep.subr.bf16.mxu0 %v5675
  %5723 = vmatpush1.bf16.msra.mxu0 %v5674
  %5724 = vmatprep.subr.bf16.mxu0 %v5671
  %5725 = vmatpush1.bf16.msra.mxu0 %v5670
  %5726 = vmatprep.subr.bf16.mxu0 %v5667
  %5727 = vmatpush1.bf16.msra.mxu0 %v5666
  %5728 = vmatprep.subr.bf16.mxu0 %v5663
  %5729 = vmatpush1.bf16.msra.mxu0 %v5662
  %5730 = vmatprep.subr.bf16.mxu0 %v5659
  %5731 = vmatpush1.bf16.msra.mxu0 %v5658
  %5732 = vmatprep.subr.bf16.mxu0 %v5655
  %5733 = vmatpush1.bf16.msra.mxu0 %v5654
  %5734 = vmatprep.subr.bf16.mxu0 0
  %5735 = vmatpush2.bf16.msra.mxu0 0
  %5736 = vmatprep.subr.bf16.mxu0 0
  %5737 = vmatpush2.bf16.msra.mxu0 0
  %5738 = vmatprep.subr.bf16.mxu0 0
  %5739 = vmatpush2.bf16.msra.mxu0 0
  %5740 = vmatprep.subr.bf16.mxu0 0
  %5741 = vmatpush2.bf16.msra.mxu0 0
  %5742 = vmatprep.subr.bf16.mxu0 0
  %5743 = vmatpush2.bf16.msra.mxu0 0
  %5744 = vmatprep.subr.bf16.mxu0 0
  %5745 = vmatpush2.bf16.msra.mxu0 0
  %5746 = vmatprep.subr.bf16.mxu0 0
  %5747 = vmatpush2.bf16.msra.mxu0 0
  %5748 = vmatprep.subr.bf16.mxu0 0
  %5749 = vmatpush2.bf16.msra.mxu0 0
  %5750 = vmatprep.mubr.bf16.mxu0 0
  %5751 = vmatmul.mubr.bf16.gmra.mxu0 %v5520
  %v5752 = vpop.f32.mrf.mxu0
  %v5753 = vadd.f32 0.0, %v5752
  %v5754 = vpop.f32.mrf.mxu0
  %v5755 = vadd.f32 0.0, %v5754
  %v5756 = vpop.f32.mrf.mxu0
  %v5757 = vpop.f32.mrf.mxu0
  %5758 = vdwg.mxu0
  %5759 = vmatprep.subr.bf16.mxu0 %v5685
  %5760 = vmatpush1.bf16.msra.mxu0 %v5684
  %5761 = vmatprep.subr.bf16.mxu0 %v5681
  %5762 = vmatpush1.bf16.msra.mxu0 %v5680
  %5763 = vmatprep.subr.bf16.mxu0 %v5677
  %5764 = vmatpush1.bf16.msra.mxu0 %v5676
  %5765 = vmatprep.subr.bf16.mxu0 %v5673
  %5766 = vmatpush1.bf16.msra.mxu0 %v5672
  %5767 = vmatprep.subr.bf16.mxu0 %v5669
  %5768 = vmatpush1.bf16.msra.mxu0 %v5668
  %5769 = vmatprep.subr.bf16.mxu0 %v5665
  %5770 = vmatpush1.bf16.msra.mxu0 %v5664
  %5771 = vmatprep.subr.bf16.mxu0 %v5661
  %5772 = vmatpush1.bf16.msra.mxu0 %v5660
  %5773 = vmatprep.subr.bf16.mxu0 %v5657
  %5774 = vmatpush1.bf16.msra.mxu0 %v5656
  %5775 = vmatprep.subr.bf16.mxu0 0
  %5776 = vmatpush2.bf16.msra.mxu0 0
  %5777 = vmatprep.subr.bf16.mxu0 0
  %5778 = vmatpush2.bf16.msra.mxu0 0
  %5779 = vmatprep.subr.bf16.mxu0 0
  %5780 = vmatpush2.bf16.msra.mxu0 0
  %5781 = vmatprep.subr.bf16.mxu0 0
  %5782 = vmatpush2.bf16.msra.mxu0 0
  %5783 = vmatprep.subr.bf16.mxu0 0
  %5784 = vmatpush2.bf16.msra.mxu0 0
  %5785 = vmatprep.subr.bf16.mxu0 0
  %5786 = vmatpush2.bf16.msra.mxu0 0
  %5787 = vmatprep.subr.bf16.mxu0 0
  %5788 = vmatpush2.bf16.msra.mxu0 0
  %5789 = vmatprep.subr.bf16.mxu0 0
  %5790 = vmatpush2.bf16.msra.mxu0 0
  %5791 = vmatprep.mubr.bf16.mxu0 0
  %5792 = vmatmul.mubr.bf16.gmra.mxu0 %v5520
  %v5793 = vpop.f32.mrf.mxu0
  %v5794 = vadd.f32 0.0, %v5793
  %v5795 = vpop.f32.mrf.mxu0
  %v5796 = vadd.f32 0.0, %v5795
  %v5797 = vpop.f32.mrf.mxu0
  %v5798 = vpop.f32.mrf.mxu0
  %5799 = vdwg.mxu0
  %v5800 = vld [vmem:[%s4] sm:$0xf]
  %v5801 = vld [vmem:[%s4 + $0x4] sm:$0xf]
  %v5802 = vld [vmem:[%s4 + $0x8] sm:$0xf]
  %v5803 = vld [vmem:[%s4 + $0xc] sm:$0xf]
  %v5804 = vld [vmem:[%s4 + $0x10] sm:$0xf]
  %v5805 = vld [vmem:[%s4 + $0x14] sm:$0xf]
  %v5806 = vld [vmem:[%s4 + $0x18] sm:$0xf]
  %v5807 = vld [vmem:[%s4 + $0x1c] sm:$0xf]
  %v5808 = vld [vmem:[%s4 + $0x20] sm:$0xf]
  %v5809 = vld [vmem:[%s4 + $0x24] sm:$0xf]
  %v5810 = vld [vmem:[%s4 + $0x28] sm:$0xf]
  %v5811 = vld [vmem:[%s4 + $0x2c] sm:$0xf]
  %v5812 = vld [vmem:[%s4 + $0x30] sm:$0xf]
  %v5813 = vld [vmem:[%s4 + $0x34] sm:$0xf]
  %v5814 = vld [vmem:[%s4 + $0x38] sm:$0xf]
  %v5815 = vld [vmem:[%s4 + $0x3c] sm:$0xf]
  %v5832 = vunpack.c.l.b16 %v5800
  %v5833 = vunpack.c.l.b16 %v5801
  %v5834 = vunpack.c.l.b16 %v5802
  %v5835 = vunpack.c.l.b16 %v5803
  %v5836 = vunpack.c.l.b16 %v5804
  %v5837 = vunpack.c.l.b16 %v5805
  %v5838 = vunpack.c.l.b16 %v5806
  %v5839 = vunpack.c.l.b16 %v5807
  %v5840 = vunpack.c.l.b16 %v5808
  %v5841 = vunpack.c.l.b16 %v5809
  %v5842 = vunpack.c.l.b16 %v5810
  %v5843 = vunpack.c.l.b16 %v5811
  %v5844 = vunpack.c.l.b16 %v5812
  %v5845 = vunpack.c.l.b16 %v5813
  %v5846 = vunpack.c.l.b16 %v5814
  %v5847 = vunpack.c.l.b16 %v5815
  %v5848 = vpack.c.b16 %v5833, %v5832
  %v5849 = vpack.c.b16 %v5835, %v5834
  %v5850 = vpack.c.b16 %v5837, %v5836
  %v5851 = vpack.c.b16 %v5839, %v5838
  %v5852 = vpack.c.b16 %v5841, %v5840
  %v5853 = vpack.c.b16 %v5843, %v5842
  %v5854 = vpack.c.b16 %v5845, %v5844
  %v5855 = vpack.c.b16 %v5847, %v5846
  %5864 = vmatprep.subr.bf16.mxu0 0
  %5865 = vmatpush1.bf16.msra.mxu0 %v5855
  %5866 = vmatprep.subr.bf16.mxu0 0
  %5867 = vmatpush1.bf16.msra.mxu0 %v5854
  %5868 = vmatprep.subr.bf16.mxu0 0
  %5869 = vmatpush1.bf16.msra.mxu0 %v5853
  %5870 = vmatprep.subr.bf16.mxu0 0
  %5871 = vmatpush1.bf16.msra.mxu0 %v5852
  %5872 = vmatprep.subr.bf16.mxu0 0
  %5873 = vmatpush1.bf16.msra.mxu0 %v5851
  %5874 = vmatprep.subr.bf16.mxu0 0
  %5875 = vmatpush1.bf16.msra.mxu0 %v5850
  %5876 = vmatprep.subr.bf16.mxu0 0
  %5877 = vmatpush1.bf16.msra.mxu0 %v5849
  %5878 = vmatprep.subr.bf16.mxu0 0
  %5879 = vmatpush1.bf16.msra.mxu0 %v5848
  %5880 = vmatprep.subr.bf16.mxu0 0
  %5881 = vmatpush2.bf16.msra.mxu0 0
  %5882 = vmatprep.subr.bf16.mxu0 0
  %5883 = vmatpush2.bf16.msra.mxu0 0
  %5884 = vmatprep.subr.bf16.mxu0 0
  %5885 = vmatpush2.bf16.msra.mxu0 0
  %5886 = vmatprep.subr.bf16.mxu0 0
  %5887 = vmatpush2.bf16.msra.mxu0 0
  %5888 = vmatprep.subr.bf16.mxu0 0
  %5889 = vmatpush2.bf16.msra.mxu0 0
  %5890 = vmatprep.subr.bf16.mxu0 0
  %5891 = vmatpush2.bf16.msra.mxu0 0
  %5892 = vmatprep.subr.bf16.mxu0 0
  %5893 = vmatpush2.bf16.msra.mxu0 0
  %5894 = vmatprep.subr.bf16.mxu0 0
  %5895 = vmatpush2.bf16.msra.mxu0 0
  %5896 = vmatprep.mubr.bf16.mxu0 0
  %5897 = vmatmul.mubr.bf16.gmra.mxu0 %v5521
  %v5898 = vpop.f32.mrf.mxu0
  %v5899 = vadd.f32 %v798, %v5898
  %v5900 = vpop.f32.mrf.mxu0
  %v5901 = vpop.f32.mrf.mxu0
  %v5902 = vpop.f32.mrf.mxu0
  %5903 = vdwg.mxu0
  %v5904 = vadd.f32 %v5522, %v5753
  %v5905 = vadd.f32 %v5523, %v5755
  %v5906 = vadd.f32 %v5524, %v5794
  %v5907 = vadd.f32 %v5525, %v5796
  %v5908 = vxor.u32 %v5904, 2147483648
  %v5909 = vxor.u32 %v5905, 2147483648
  %v5910 = vxor.u32 %v5906, 2147483648
  %v5911 = vxor.u32 %v5907, 2147483648
  %v5912 = vmul.f32 %v5908, 1.442695
  %v5913 = vpow.pop %v5912
  %v5914 = vmul.f32 %v5909, 1.442695
  %v5915 = vpow.pop %v5914
  %v5916 = vmul.f32 %v5910, 1.442695
  %v5917 = vpow.pop %v5916
  %v5918 = vmul.f32 %v5911, 1.442695
  %v5919 = vpow.pop %v5918
  %v5920 = vadd.f32 %v5913, 1.0
  %v5921 = vadd.f32 %v5915, 1.0
  %v5922 = vadd.f32 %v5917, 1.0
  %v5923 = vadd.f32 %v5919, 1.0
  %v5924 = vrcp.pop %v5920
  %v5925 = vmul.f32 1.0, %v5924
  %v5926 = vrcp.pop %v5921
  %v5927 = vmul.f32 1.0, %v5926
  %v5928 = vrcp.pop %v5922
  %v5929 = vmul.f32 1.0, %v5928
  %v5930 = vrcp.pop %v5923
  %v5931 = vmul.f32 1.0, %v5930
  %v5932 = vmul.f32 %v5929, %v5899
  %v5933 = vmul.f32 %v5925, %v5927
  %v5934 = vadd.f32 %v5932, %v5933
  %v5935 = vtanh.pop %v5934
  %v5936 = vmul.f32 %v5931, %v5935
  %5937 = vst [vmem:[#allocation3 + $0x60] sm:$0xff] %v5936
  %v5938 = vpack.c.bf16 %v5936, %v5936
  %v5939 = vpack.c.bf16 %v5934, %v5934
  %v5940 = vld [vmem:[#allocation2 + $0x1a0] sm:$0xff]
  %v5941 = vld [vmem:[#allocation2 + $0x1a8] sm:$0xff]
  %v5942 = vld [vmem:[#allocation2 + $0x1b0] sm:$0xff]
  %v5943 = vld [vmem:[#allocation2 + $0x1b8] sm:$0xff]
  %v5944 = vld [vmem:[%s3] sm:$0xff]
  %v5945 = vld [vmem:[%s3 + $0x8] sm:$0xff]
  %v5946 = vld [vmem:[%s3 + $0x10] sm:$0xff]
  %v5947 = vld [vmem:[%s3 + $0x18] sm:$0xff]
  %v5948 = vld [vmem:[%s3 + $0x20] sm:$0xff]
  %v5949 = vld [vmem:[%s3 + $0x28] sm:$0xff]
  %v5950 = vld [vmem:[%s3 + $0x30] sm:$0xff]
  %v5951 = vld [vmem:[%s3 + $0x38] sm:$0xff]
  %v5952 = vld [vmem:[%s3 + $0x40] sm:$0xff]
  %v5953 = vld [vmem:[%s3 + $0x48] sm:$0xff]
  %v5954 = vld [vmem:[%s3 + $0x50] sm:$0xff]
  %v5955 = vld [vmem:[%s3 + $0x58] sm:$0xff]
  %v5956 = vld [vmem:[%s3 + $0x60] sm:$0xff]
  %v5957 = vld [vmem:[%s3 + $0x68] sm:$0xff]
  %v5958 = vld [vmem:[%s3 + $0x70] sm:$0xff]
  %v5959 = vld [vmem:[%s3 + $0x78] sm:$0xff]
  %v5960 = vld [vmem:[%s3 + $0x80] sm:$0xff]
  %v5961 = vld [vmem:[%s3 + $0x88] sm:$0xff]
  %v5962 = vld [vmem:[%s3 + $0x90] sm:$0xff]
  %v5963 = vld [vmem:[%s3 + $0x98] sm:$0xff]
  %v5964 = vld [vmem:[%s3 + $0xa0] sm:$0xff]
  %v5965 = vld [vmem:[%s3 + $0xa8] sm:$0xff]
  %v5966 = vld [vmem:[%s3 + $0xb0] sm:$0xff]
  %v5967 = vld [vmem:[%s3 + $0xb8] sm:$0xff]
  %v5968 = vld [vmem:[%s3 + $0xc0] sm:$0xff]
  %v5969 = vld [vmem:[%s3 + $0xc8] sm:$0xff]
  %v5970 = vld [vmem:[%s3 + $0xd0] sm:$0xff]
  %v5971 = vld [vmem:[%s3 + $0xd8] sm:$0xff]
  %v5972 = vld [vmem:[%s3 + $0xe0] sm:$0xff]
  %v5973 = vld [vmem:[%s3 + $0xe8] sm:$0xff]
  %v5974 = vld [vmem:[%s3 + $0xf0] sm:$0xff]
  %v5975 = vld [vmem:[%s3 + $0xf8] sm:$0xff]
  %v6008 = vunpack.c.l.b16 %v5944
  %v6009 = vunpack.c.h.b16 %v5944
  %v6010 = vunpack.c.l.b16 %v5945
  %v6011 = vunpack.c.h.b16 %v5945
  %v6012 = vunpack.c.l.b16 %v5946
  %v6013 = vunpack.c.h.b16 %v5946
  %v6014 = vunpack.c.l.b16 %v5947
  %v6015 = vunpack.c.h.b16 %v5947
  %v6016 = vunpack.c.l.b16 %v5948
  %v6017 = vunpack.c.h.b16 %v5948
  %v6018 = vunpack.c.l.b16 %v5949
  %v6019 = vunpack.c.h.b16 %v5949
  %v6020 = vunpack.c.l.b16 %v5950
  %v6021 = vunpack.c.h.b16 %v5950
  %v6022 = vunpack.c.l.b16 %v5951
  %v6023 = vunpack.c.h.b16 %v5951
  %v6024 = vunpack.c.l.b16 %v5952
  %v6025 = vunpack.c.h.b16 %v5952
  %v6026 = vunpack.c.l.b16 %v5953
  %v6027 = vunpack.c.h.b16 %v5953
  %v6028 = vunpack.c.l.b16 %v5954
  %v6029 = vunpack.c.h.b16 %v5954
  %v6030 = vunpack.c.l.b16 %v5955
  %v6031 = vunpack.c.h.b16 %v5955
  %v6032 = vunpack.c.l.b16 %v5956
  %v6033 = vunpack.c.h.b16 %v5956
  %v6034 = vunpack.c.l.b16 %v5957
  %v6035 = vunpack.c.h.b16 %v5957
  %v6036 = vunpack.c.l.b16 %v5958
  %v6037 = vunpack.c.h.b16 %v5958
  %v6038 = vunpack.c.l.b16 %v5959
  %v6039 = vunpack.c.h.b16 %v5959
  %v6040 = vunpack.c.l.b16 %v5960
  %v6041 = vunpack.c.h.b16 %v5960
  %v6042 = vunpack.c.l.b16 %v5961
  %v6043 = vunpack.c.h.b16 %v5961
  %v6044 = vunpack.c.l.b16 %v5962
  %v6045 = vunpack.c.h.b16 %v5962
  %v6046 = vunpack.c.l.b16 %v5963
  %v6047 = vunpack.c.h.b16 %v5963
  %v6048 = vunpack.c.l.b16 %v5964
  %v6049 = vunpack.c.h.b16 %v5964
  %v6050 = vunpack.c.l.b16 %v5965
  %v6051 = vunpack.c.h.b16 %v5965
  %v6052 = vunpack.c.l.b16 %v5966
  %v6053 = vunpack.c.h.b16 %v5966
  %v6054 = vunpack.c.l.b16 %v5967
  %v6055 = vunpack.c.h.b16 %v5967
  %v6056 = vunpack.c.l.b16 %v5968
  %v6057 = vunpack.c.h.b16 %v5968
  %v6058 = vunpack.c.l.b16 %v5969
  %v6059 = vunpack.c.h.b16 %v5969
  %v6060 = vunpack.c.l.b16 %v5970
  %v6061 = vunpack.c.h.b16 %v5970
  %v6062 = vunpack.c.l.b16 %v5971
  %v6063 = vunpack.c.h.b16 %v5971
  %v6064 = vunpack.c.l.b16 %v5972
  %v6065 = vunpack.c.h.b16 %v5972
  %v6066 = vunpack.c.l.b16 %v5973
  %v6067 = vunpack.c.h.b16 %v5973
  %v6068 = vunpack.c.l.b16 %v5974
  %v6069 = vunpack.c.h.b16 %v5974
  %v6070 = vunpack.c.l.b16 %v5975
  %v6071 = vunpack.c.h.b16 %v5975
  %v6072 = vpack.c.b16 %v6012, %v6008
  %v6073 = vpack.c.b16 %v6013, %v6009
  %v6074 = vpack.c.b16 %v6014, %v6010
  %v6075 = vpack.c.b16 %v6015, %v6011
  %v6076 = vpack.c.b16 %v6020, %v6016
  %v6077 = vpack.c.b16 %v6021, %v6017
  %v6078 = vpack.c.b16 %v6022, %v6018
  %v6079 = vpack.c.b16 %v6023, %v6019
  %v6080 = vpack.c.b16 %v6028, %v6024
  %v6081 = vpack.c.b16 %v6029, %v6025
  %v6082 = vpack.c.b16 %v6030, %v6026
  %v6083 = vpack.c.b16 %v6031, %v6027
  %v6084 = vpack.c.b16 %v6036, %v6032
  %v6085 = vpack.c.b16 %v6037, %v6033
  %v6086 = vpack.c.b16 %v6038, %v6034
  %v6087 = vpack.c.b16 %v6039, %v6035
  %v6088 = vpack.c.b16 %v6044, %v6040
  %v6089 = vpack.c.b16 %v6045, %v6041
  %v6090 = vpack.c.b16 %v6046, %v6042
  %v6091 = vpack.c.b16 %v6047, %v6043
  %v6092 = vpack.c.b16 %v6052, %v6048
  %v6093 = vpack.c.b16 %v6053, %v6049
  %v6094 = vpack.c.b16 %v6054, %v6050
  %v6095 = vpack.c.b16 %v6055, %v6051
  %v6096 = vpack.c.b16 %v6060, %v6056
  %v6097 = vpack.c.b16 %v6061, %v6057
  %v6098 = vpack.c.b16 %v6062, %v6058
  %v6099 = vpack.c.b16 %v6063, %v6059
  %v6100 = vpack.c.b16 %v6068, %v6064
  %v6101 = vpack.c.b16 %v6069, %v6065
  %v6102 = vpack.c.b16 %v6070, %v6066
  %v6103 = vpack.c.b16 %v6071, %v6067
  %6136 = vmatprep.subr.bf16.mxu0 %v6101
  %6137 = vmatpush1.bf16.msra.mxu0 %v6100
  %6138 = vmatprep.subr.bf16.mxu0 %v6097
  %6139 = vmatpush1.bf16.msra.mxu0 %v6096
  %6140 = vmatprep.subr.bf16.mxu0 %v6093
  %6141 = vmatpush1.bf16.msra.mxu0 %v6092
  %6142 = vmatprep.subr.bf16.mxu0 %v6089
  %6143 = vmatpush1.bf16.msra.mxu0 %v6088
  %6144 = vmatprep.subr.bf16.mxu0 %v6085
  %6145 = vmatpush1.bf16.msra.mxu0 %v6084
  %6146 = vmatprep.subr.bf16.mxu0 %v6081
  %6147 = vmatpush1.bf16.msra.mxu0 %v6080
  %6148 = vmatprep.subr.bf16.mxu0 %v6077
  %6149 = vmatpush1.bf16.msra.mxu0 %v6076
  %6150 = vmatprep.subr.bf16.mxu0 %v6073
  %6151 = vmatpush1.bf16.msra.mxu0 %v6072
  %6152 = vmatprep.subr.bf16.mxu0 0
  %6153 = vmatpush2.bf16.msra.mxu0 0
  %6154 = vmatprep.subr.bf16.mxu0 0
  %6155 = vmatpush2.bf16.msra.mxu0 0
  %6156 = vmatprep.subr.bf16.mxu0 0
  %6157 = vmatpush2.bf16.msra.mxu0 0
  %6158 = vmatprep.subr.bf16.mxu0 0
  %6159 = vmatpush2.bf16.msra.mxu0 0
  %6160 = vmatprep.subr.bf16.mxu0 0
  %6161 = vmatpush2.bf16.msra.mxu0 0
  %6162 = vmatprep.subr.bf16.mxu0 0
  %6163 = vmatpush2.bf16.msra.mxu0 0
  %6164 = vmatprep.subr.bf16.mxu0 0
  %6165 = vmatpush2.bf16.msra.mxu0 0
  %6166 = vmatprep.subr.bf16.mxu0 0
  %6167 = vmatpush2.bf16.msra.mxu0 0
  %6168 = vmatprep.mubr.bf16.mxu0 0
  %6169 = vmatmul.mubr.bf16.gmra.mxu0 %v5938
  %v6170 = vpop.f32.mrf.mxu0
  %v6171 = vadd.f32 0.0, %v6170
  %v6172 = vpop.f32.mrf.mxu0
  %v6173 = vadd.f32 0.0, %v6172
  %v6174 = vpop.f32.mrf.mxu0
  %v6175 = vpop.f32.mrf.mxu0
  %6176 = vdwg.mxu0
  %6177 = vmatprep.subr.bf16.mxu0 %v6103
  %6178 = vmatpush1.bf16.msra.mxu0 %v6102
  %6179 = vmatprep.subr.bf16.mxu0 %v6099
  %6180 = vmatpush1.bf16.msra.mxu0 %v6098
  %6181 = vmatprep.subr.bf16.mxu0 %v6095
  %6182 = vmatpush1.bf16.msra.mxu0 %v6094
  %6183 = vmatprep.subr.bf16.mxu0 %v6091
  %6184 = vmatpush1.bf16.msra.mxu0 %v6090
  %6185 = vmatprep.subr.bf16.mxu0 %v6087
  %6186 = vmatpush1.bf16.msra.mxu0 %v6086
  %6187 = vmatprep.subr.bf16.mxu0 %v6083
  %6188 = vmatpush1.bf16.msra.mxu0 %v6082
  %6189 = vmatprep.subr.bf16.mxu0 %v6079
  %6190 = vmatpush1.bf16.msra.mxu0 %v6078
  %6191 = vmatprep.subr.bf16.mxu0 %v6075
  %6192 = vmatpush1.bf16.msra.mxu0 %v6074
  %6193 = vmatprep.subr.bf16.mxu0 0
  %6194 = vmatpush2.bf16.msra.mxu0 0
  %6195 = vmatprep.subr.bf16.mxu0 0
  %6196 = vmatpush2.bf16.msra.mxu0 0
  %6197 = vmatprep.subr.bf16.mxu0 0
  %6198 = vmatpush2.bf16.msra.mxu0 0
  %6199 = vmatprep.subr.bf16.mxu0 0
  %6200 = vmatpush2.bf16.msra.mxu0 0
  %6201 = vmatprep.subr.bf16.mxu0 0
  %6202 = vmatpush2.bf16.msra.mxu0 0
  %6203 = vmatprep.subr.bf16.mxu0 0
  %6204 = vmatpush2.bf16.msra.mxu0 0
  %6205 = vmatprep.subr.bf16.mxu0 0
  %6206 = vmatpush2.bf16.msra.mxu0 0
  %6207 = vmatprep.subr.bf16.mxu0 0
  %6208 = vmatpush2.bf16.msra.mxu0 0
  %6209 = vmatprep.mubr.bf16.mxu0 0
  %6210 = vmatmul.mubr.bf16.gmra.mxu0 %v5938
  %v6211 = vpop.f32.mrf.mxu0
  %v6212 = vadd.f32 0.0, %v6211
  %v6213 = vpop.f32.mrf.mxu0
  %v6214 = vadd.f32 0.0, %v6213
  %v6215 = vpop.f32.mrf.mxu0
  %v6216 = vpop.f32.mrf.mxu0
  %6217 = vdwg.mxu0
  %v6218 = vld [vmem:[%s4] sm:$0xf]
  %v6219 = vld [vmem:[%s4 + $0x4] sm:$0xf]
  %v6220 = vld [vmem:[%s4 + $0x8] sm:$0xf]
  %v6221 = vld [vmem:[%s4 + $0xc] sm:$0xf]
  %v6222 = vld [vmem:[%s4 + $0x10] sm:$0xf]
  %v6223 = vld [vmem:[%s4 + $0x14] sm:$0xf]
  %v6224 = vld [vmem:[%s4 + $0x18] sm:$0xf]
  %v6225 = vld [vmem:[%s4 + $0x1c] sm:$0xf]
  %v6226 = vld [vmem:[%s4 + $0x20] sm:$0xf]
  %v6227 = vld [vmem:[%s4 + $0x24] sm:$0xf]
  %v6228 = vld [vmem:[%s4 + $0x28] sm:$0xf]
  %v6229 = vld [vmem:[%s4 + $0x2c] sm:$0xf]
  %v6230 = vld [vmem:[%s4 + $0x30] sm:$0xf]
  %v6231 = vld [vmem:[%s4 + $0x34] sm:$0xf]
  %v6232 = vld [vmem:[%s4 + $0x38] sm:$0xf]
  %v6233 = vld [vmem:[%s4 + $0x3c] sm:$0xf]
  %v6250 = vunpack.c.l.b16 %v6218
  %v6251 = vunpack.c.l.b16 %v6219
  %v6252 = vunpack.c.l.b16 %v6220
  %v6253 = vunpack.c.l.b16 %v6221
  %v6254 = vunpack.c.l.b16 %v6222
  %v6255 = vunpack.c.l.b16 %v6223
  %v6256 = vunpack.c.l.b16 %v6224
  %v6257 = vunpack.c.l.b16 %v6225
  %v6258 = vunpack.c.l.b16 %v6226
  %v6259 = vunpack.c.l.b16 %v6227
  %v6260 = vunpack.c.l.b16 %v6228
  %v6261 = vunpack.c.l.b16 %v6229
  %v6262 = vunpack.c.l.b16 %v6230
  %v6263 = vunpack.c.l.b16 %v6231
  %v6264 = vunpack.c.l.b16 %v6232
  %v6265 = vunpack.c.l.b16 %v6233
  %v6266 = vpack.c.b16 %v6251, %v6250
  %v6267 = vpack.c.b16 %v6253, %v6252
  %v6268 = vpack.c.b16 %v6255, %v6254
  %v6269 = vpack.c.b16 %v6257, %v6256
  %v6270 = vpack.c.b16 %v6259, %v6258
  %v6271 = vpack.c.b16 %v6261, %v6260
  %v6272 = vpack.c.b16 %v6263, %v6262
  %v6273 = vpack.c.b16 %v6265, %v6264
  %6282 = vmatprep.subr.bf16.mxu0 0
  %6283 = vmatpush1.bf16.msra.mxu0 %v6273
  %6284 = vmatprep.subr.bf16.mxu0 0
  %6285 = vmatpush1.bf16.msra.mxu0 %v6272
  %6286 = vmatprep.subr.bf16.mxu0 0
  %6287 = vmatpush1.bf16.msra.mxu0 %v6271
  %6288 = vmatprep.subr.bf16.mxu0 0
  %6289 = vmatpush1.bf16.msra.mxu0 %v6270
  %6290 = vmatprep.subr.bf16.mxu0 0
  %6291 = vmatpush1.bf16.msra.mxu0 %v6269
  %6292 = vmatprep.subr.bf16.mxu0 0
  %6293 = vmatpush1.bf16.msra.mxu0 %v6268
  %6294 = vmatprep.subr.bf16.mxu0 0
  %6295 = vmatpush1.bf16.msra.mxu0 %v6267
  %6296 = vmatprep.subr.bf16.mxu0 0
  %6297 = vmatpush1.bf16.msra.mxu0 %v6266
  %6298 = vmatprep.subr.bf16.mxu0 0
  %6299 = vmatpush2.bf16.msra.mxu0 0
  %6300 = vmatprep.subr.bf16.mxu0 0
  %6301 = vmatpush2.bf16.msra.mxu0 0
  %6302 = vmatprep.subr.bf16.mxu0 0
  %6303 = vmatpush2.bf16.msra.mxu0 0
  %6304 = vmatprep.subr.bf16.mxu0 0
  %6305 = vmatpush2.bf16.msra.mxu0 0
  %6306 = vmatprep.subr.bf16.mxu0 0
  %6307 = vmatpush2.bf16.msra.mxu0 0
  %6308 = vmatprep.subr.bf16.mxu0 0
  %6309 = vmatpush2.bf16.msra.mxu0 0
  %6310 = vmatprep.subr.bf16.mxu0 0
  %6311 = vmatpush2.bf16.msra.mxu0 0
  %6312 = vmatprep.subr.bf16.mxu0 0
  %6313 = vmatpush2.bf16.msra.mxu0 0
  %6314 = vmatprep.mubr.bf16.mxu0 0
  %6315 = vmatmul.mubr.bf16.gmra.mxu0 %v5939
  %v6316 = vpop.f32.mrf.mxu0
  %v6317 = vadd.f32 %v798, %v6316
  %v6318 = vpop.f32.mrf.mxu0
  %v6319 = vpop.f32.mrf.mxu0
  %v6320 = vpop.f32.mrf.mxu0
  %6321 = vdwg.mxu0
  %v6322 = vadd.f32 %v5940, %v6171
  %v6323 = vadd.f32 %v5941, %v6173
  %v6324 = vadd.f32 %v5942, %v6212
  %v6325 = vadd.f32 %v5943, %v6214
  %v6326 = vxor.u32 %v6322, 2147483648
  %v6327 = vxor.u32 %v6323, 2147483648
  %v6328 = vxor.u32 %v6324, 2147483648
  %v6329 = vxor.u32 %v6325, 2147483648
  %v6330 = vmul.f32 %v6326, 1.442695
  %v6331 = vpow.pop %v6330
  %v6332 = vmul.f32 %v6327, 1.442695
  %v6333 = vpow.pop %v6332
  %v6334 = vmul.f32 %v6328, 1.442695
  %v6335 = vpow.pop %v6334
  %v6336 = vmul.f32 %v6329, 1.442695
  %v6337 = vpow.pop %v6336
  %v6338 = vadd.f32 %v6331, 1.0
  %v6339 = vadd.f32 %v6333, 1.0
  %v6340 = vadd.f32 %v6335, 1.0
  %v6341 = vadd.f32 %v6337, 1.0
  %v6342 = vrcp.pop %v6338
  %v6343 = vmul.f32 1.0, %v6342
  %v6344 = vrcp.pop %v6339
  %v6345 = vmul.f32 1.0, %v6344
  %v6346 = vrcp.pop %v6340
  %v6347 = vmul.f32 1.0, %v6346
  %v6348 = vrcp.pop %v6341
  %v6349 = vmul.f32 1.0, %v6348
  %v6350 = vmul.f32 %v6347, %v6317
  %v6351 = vmul.f32 %v6343, %v6345
  %v6352 = vadd.f32 %v6350, %v6351
  %v6353 = vtanh.pop %v6352
  %v6354 = vmul.f32 %v6349, %v6353
  %6355 = vst [vmem:[#allocation3 + $0x68] sm:$0xff] %v6354
  %v6356 = vpack.c.bf16 %v6354, %v6354
  %v6357 = vpack.c.bf16 %v6352, %v6352
  %v6358 = vld [vmem:[#allocation2 + $0x1c0] sm:$0xff]
  %v6359 = vld [vmem:[#allocation2 + $0x1c8] sm:$0xff]
  %v6360 = vld [vmem:[#allocation2 + $0x1d0] sm:$0xff]
  %v6361 = vld [vmem:[#allocation2 + $0x1d8] sm:$0xff]
  %v6362 = vld [vmem:[%s3] sm:$0xff]
  %v6363 = vld [vmem:[%s3 + $0x8] sm:$0xff]
  %v6364 = vld [vmem:[%s3 + $0x10] sm:$0xff]
  %v6365 = vld [vmem:[%s3 + $0x18] sm:$0xff]
  %v6366 = vld [vmem:[%s3 + $0x20] sm:$0xff]
  %v6367 = vld [vmem:[%s3 + $0x28] sm:$0xff]
  %v6368 = vld [vmem:[%s3 + $0x30] sm:$0xff]
  %v6369 = vld [vmem:[%s3 + $0x38] sm:$0xff]
  %v6370 = vld [vmem:[%s3 + $0x40] sm:$0xff]
  %v6371 = vld [vmem:[%s3 + $0x48] sm:$0xff]
  %v6372 = vld [vmem:[%s3 + $0x50] sm:$0xff]
  %v6373 = vld [vmem:[%s3 + $0x58] sm:$0xff]
  %v6374 = vld [vmem:[%s3 + $0x60] sm:$0xff]
  %v6375 = vld [vmem:[%s3 + $0x68] sm:$0xff]
  %v6376 = vld [vmem:[%s3 + $0x70] sm:$0xff]
  %v6377 = vld [vmem:[%s3 + $0x78] sm:$0xff]
  %v6378 = vld [vmem:[%s3 + $0x80] sm:$0xff]
  %v6379 = vld [vmem:[%s3 + $0x88] sm:$0xff]
  %v6380 = vld [vmem:[%s3 + $0x90] sm:$0xff]
  %v6381 = vld [vmem:[%s3 + $0x98] sm:$0xff]
  %v6382 = vld [vmem:[%s3 + $0xa0] sm:$0xff]
  %v6383 = vld [vmem:[%s3 + $0xa8] sm:$0xff]
  %v6384 = vld [vmem:[%s3 + $0xb0] sm:$0xff]
  %v6385 = vld [vmem:[%s3 + $0xb8] sm:$0xff]
  %v6386 = vld [vmem:[%s3 + $0xc0] sm:$0xff]
  %v6387 = vld [vmem:[%s3 + $0xc8] sm:$0xff]
  %v6388 = vld [vmem:[%s3 + $0xd0] sm:$0xff]
  %v6389 = vld [vmem:[%s3 + $0xd8] sm:$0xff]
  %v6390 = vld [vmem:[%s3 + $0xe0] sm:$0xff]
  %v6391 = vld [vmem:[%s3 + $0xe8] sm:$0xff]
  %v6392 = vld [vmem:[%s3 + $0xf0] sm:$0xff]
  %v6393 = vld [vmem:[%s3 + $0xf8] sm:$0xff]
  %v6426 = vunpack.c.l.b16 %v6362
  %v6427 = vunpack.c.h.b16 %v6362
  %v6428 = vunpack.c.l.b16 %v6363
  %v6429 = vunpack.c.h.b16 %v6363
  %v6430 = vunpack.c.l.b16 %v6364
  %v6431 = vunpack.c.h.b16 %v6364
  %v6432 = vunpack.c.l.b16 %v6365
  %v6433 = vunpack.c.h.b16 %v6365
  %v6434 = vunpack.c.l.b16 %v6366
  %v6435 = vunpack.c.h.b16 %v6366
  %v6436 = vunpack.c.l.b16 %v6367
  %v6437 = vunpack.c.h.b16 %v6367
  %v6438 = vunpack.c.l.b16 %v6368
  %v6439 = vunpack.c.h.b16 %v6368
  %v6440 = vunpack.c.l.b16 %v6369
  %v6441 = vunpack.c.h.b16 %v6369
  %v6442 = vunpack.c.l.b16 %v6370
  %v6443 = vunpack.c.h.b16 %v6370
  %v6444 = vunpack.c.l.b16 %v6371
  %v6445 = vunpack.c.h.b16 %v6371
  %v6446 = vunpack.c.l.b16 %v6372
  %v6447 = vunpack.c.h.b16 %v6372
  %v6448 = vunpack.c.l.b16 %v6373
  %v6449 = vunpack.c.h.b16 %v6373
  %v6450 = vunpack.c.l.b16 %v6374
  %v6451 = vunpack.c.h.b16 %v6374
  %v6452 = vunpack.c.l.b16 %v6375
  %v6453 = vunpack.c.h.b16 %v6375
  %v6454 = vunpack.c.l.b16 %v6376
  %v6455 = vunpack.c.h.b16 %v6376
  %v6456 = vunpack.c.l.b16 %v6377
  %v6457 = vunpack.c.h.b16 %v6377
  %v6458 = vunpack.c.l.b16 %v6378
  %v6459 = vunpack.c.h.b16 %v6378
  %v6460 = vunpack.c.l.b16 %v6379
  %v6461 = vunpack.c.h.b16 %v6379
  %v6462 = vunpack.c.l.b16 %v6380
  %v6463 = vunpack.c.h.b16 %v6380
  %v6464 = vunpack.c.l.b16 %v6381
  %v6465 = vunpack.c.h.b16 %v6381
  %v6466 = vunpack.c.l.b16 %v6382
  %v6467 = vunpack.c.h.b16 %v6382
  %v6468 = vunpack.c.l.b16 %v6383
  %v6469 = vunpack.c.h.b16 %v6383
  %v6470 = vunpack.c.l.b16 %v6384
  %v6471 = vunpack.c.h.b16 %v6384
  %v6472 = vunpack.c.l.b16 %v6385
  %v6473 = vunpack.c.h.b16 %v6385
  %v6474 = vunpack.c.l.b16 %v6386
  %v6475 = vunpack.c.h.b16 %v6386
  %v6476 = vunpack.c.l.b16 %v6387
  %v6477 = vunpack.c.h.b16 %v6387
  %v6478 = vunpack.c.l.b16 %v6388
  %v6479 = vunpack.c.h.b16 %v6388
  %v6480 = vunpack.c.l.b16 %v6389
  %v6481 = vunpack.c.h.b16 %v6389
  %v6482 = vunpack.c.l.b16 %v6390
  %v6483 = vunpack.c.h.b16 %v6390
  %v6484 = vunpack.c.l.b16 %v6391
  %v6485 = vunpack.c.h.b16 %v6391
  %v6486 = vunpack.c.l.b16 %v6392
  %v6487 = vunpack.c.h.b16 %v6392
  %v6488 = vunpack.c.l.b16 %v6393
  %v6489 = vunpack.c.h.b16 %v6393
  %v6490 = vpack.c.b16 %v6430, %v6426
  %v6491 = vpack.c.b16 %v6431, %v6427
  %v6492 = vpack.c.b16 %v6432, %v6428
  %v6493 = vpack.c.b16 %v6433, %v6429
  %v6494 = vpack.c.b16 %v6438, %v6434
  %v6495 = vpack.c.b16 %v6439, %v6435
  %v6496 = vpack.c.b16 %v6440, %v6436
  %v6497 = vpack.c.b16 %v6441, %v6437
  %v6498 = vpack.c.b16 %v6446, %v6442
  %v6499 = vpack.c.b16 %v6447, %v6443
  %v6500 = vpack.c.b16 %v6448, %v6444
  %v6501 = vpack.c.b16 %v6449, %v6445
  %v6502 = vpack.c.b16 %v6454, %v6450
  %v6503 = vpack.c.b16 %v6455, %v6451
  %v6504 = vpack.c.b16 %v6456, %v6452
  %v6505 = vpack.c.b16 %v6457, %v6453
  %v6506 = vpack.c.b16 %v6462, %v6458
  %v6507 = vpack.c.b16 %v6463, %v6459
  %v6508 = vpack.c.b16 %v6464, %v6460
  %v6509 = vpack.c.b16 %v6465, %v6461
  %v6510 = vpack.c.b16 %v6470, %v6466
  %v6511 = vpack.c.b16 %v6471, %v6467
  %v6512 = vpack.c.b16 %v6472, %v6468
  %v6513 = vpack.c.b16 %v6473, %v6469
  %v6514 = vpack.c.b16 %v6478, %v6474
  %v6515 = vpack.c.b16 %v6479, %v6475
  %v6516 = vpack.c.b16 %v6480, %v6476
  %v6517 = vpack.c.b16 %v6481, %v6477
  %v6518 = vpack.c.b16 %v6486, %v6482
  %v6519 = vpack.c.b16 %v6487, %v6483
  %v6520 = vpack.c.b16 %v6488, %v6484
  %v6521 = vpack.c.b16 %v6489, %v6485
  %6554 = vmatprep.subr.bf16.mxu0 %v6519
  %6555 = vmatpush1.bf16.msra.mxu0 %v6518
  %6556 = vmatprep.subr.bf16.mxu0 %v6515
  %6557 = vmatpush1.bf16.msra.mxu0 %v6514
  %6558 = vmatprep.subr.bf16.mxu0 %v6511
  %6559 = vmatpush1.bf16.msra.mxu0 %v6510
  %6560 = vmatprep.subr.bf16.mxu0 %v6507
  %6561 = vmatpush1.bf16.msra.mxu0 %v6506
  %6562 = vmatprep.subr.bf16.mxu0 %v6503
  %6563 = vmatpush1.bf16.msra.mxu0 %v6502
  %6564 = vmatprep.subr.bf16.mxu0 %v6499
  %6565 = vmatpush1.bf16.msra.mxu0 %v6498
  %6566 = vmatprep.subr.bf16.mxu0 %v6495
  %6567 = vmatpush1.bf16.msra.mxu0 %v6494
  %6568 = vmatprep.subr.bf16.mxu0 %v6491
  %6569 = vmatpush1.bf16.msra.mxu0 %v6490
  %6570 = vmatprep.subr.bf16.mxu0 0
  %6571 = vmatpush2.bf16.msra.mxu0 0
  %6572 = vmatprep.subr.bf16.mxu0 0
  %6573 = vmatpush2.bf16.msra.mxu0 0
  %6574 = vmatprep.subr.bf16.mxu0 0
  %6575 = vmatpush2.bf16.msra.mxu0 0
  %6576 = vmatprep.subr.bf16.mxu0 0
  %6577 = vmatpush2.bf16.msra.mxu0 0
  %6578 = vmatprep.subr.bf16.mxu0 0
  %6579 = vmatpush2.bf16.msra.mxu0 0
  %6580 = vmatprep.subr.bf16.mxu0 0
  %6581 = vmatpush2.bf16.msra.mxu0 0
  %6582 = vmatprep.subr.bf16.mxu0 0
  %6583 = vmatpush2.bf16.msra.mxu0 0
  %6584 = vmatprep.subr.bf16.mxu0 0
  %6585 = vmatpush2.bf16.msra.mxu0 0
  %6586 = vmatprep.mubr.bf16.mxu0 0
  %6587 = vmatmul.mubr.bf16.gmra.mxu0 %v6356
  %v6588 = vpop.f32.mrf.mxu0
  %v6589 = vadd.f32 0.0, %v6588
  %v6590 = vpop.f32.mrf.mxu0
  %v6591 = vadd.f32 0.0, %v6590
  %v6592 = vpop.f32.mrf.mxu0
  %v6593 = vpop.f32.mrf.mxu0
  %6594 = vdwg.mxu0
  %6595 = vmatprep.subr.bf16.mxu0 %v6521
  %6596 = vmatpush1.bf16.msra.mxu0 %v6520
  %6597 = vmatprep.subr.bf16.mxu0 %v6517
  %6598 = vmatpush1.bf16.msra.mxu0 %v6516
  %6599 = vmatprep.subr.bf16.mxu0 %v6513
  %6600 = vmatpush1.bf16.msra.mxu0 %v6512
  %6601 = vmatprep.subr.bf16.mxu0 %v6509
  %6602 = vmatpush1.bf16.msra.mxu0 %v6508
  %6603 = vmatprep.subr.bf16.mxu0 %v6505
  %6604 = vmatpush1.bf16.msra.mxu0 %v6504
  %6605 = vmatprep.subr.bf16.mxu0 %v6501
  %6606 = vmatpush1.bf16.msra.mxu0 %v6500
  %6607 = vmatprep.subr.bf16.mxu0 %v6497
  %6608 = vmatpush1.bf16.msra.mxu0 %v6496
  %6609 = vmatprep.subr.bf16.mxu0 %v6493
  %6610 = vmatpush1.bf16.msra.mxu0 %v6492
  %6611 = vmatprep.subr.bf16.mxu0 0
  %6612 = vmatpush2.bf16.msra.mxu0 0
  %6613 = vmatprep.subr.bf16.mxu0 0
  %6614 = vmatpush2.bf16.msra.mxu0 0
  %6615 = vmatprep.subr.bf16.mxu0 0
  %6616 = vmatpush2.bf16.msra.mxu0 0
  %6617 = vmatprep.subr.bf16.mxu0 0
  %6618 = vmatpush2.bf16.msra.mxu0 0
  %6619 = vmatprep.subr.bf16.mxu0 0
  %6620 = vmatpush2.bf16.msra.mxu0 0
  %6621 = vmatprep.subr.bf16.mxu0 0
  %6622 = vmatpush2.bf16.msra.mxu0 0
  %6623 = vmatprep.subr.bf16.mxu0 0
  %6624 = vmatpush2.bf16.msra.mxu0 0
  %6625 = vmatprep.subr.bf16.mxu0 0
  %6626 = vmatpush2.bf16.msra.mxu0 0
  %6627 = vmatprep.mubr.bf16.mxu0 0
  %6628 = vmatmul.mubr.bf16.gmra.mxu0 %v6356
  %v6629 = vpop.f32.mrf.mxu0
  %v6630 = vadd.f32 0.0, %v6629
  %v6631 = vpop.f32.mrf.mxu0
  %v6632 = vadd.f32 0.0, %v6631
  %v6633 = vpop.f32.mrf.mxu0
  %v6634 = vpop.f32.mrf.mxu0
  %6635 = vdwg.mxu0
  %v6636 = vld [vmem:[%s4] sm:$0xf]
  %v6637 = vld [vmem:[%s4 + $0x4] sm:$0xf]
  %v6638 = vld [vmem:[%s4 + $0x8] sm:$0xf]
  %v6639 = vld [vmem:[%s4 + $0xc] sm:$0xf]
  %v6640 = vld [vmem:[%s4 + $0x10] sm:$0xf]
  %v6641 = vld [vmem:[%s4 + $0x14] sm:$0xf]
  %v6642 = vld [vmem:[%s4 + $0x18] sm:$0xf]
  %v6643 = vld [vmem:[%s4 + $0x1c] sm:$0xf]
  %v6644 = vld [vmem:[%s4 + $0x20] sm:$0xf]
  %v6645 = vld [vmem:[%s4 + $0x24] sm:$0xf]
  %v6646 = vld [vmem:[%s4 + $0x28] sm:$0xf]
  %v6647 = vld [vmem:[%s4 + $0x2c] sm:$0xf]
  %v6648 = vld [vmem:[%s4 + $0x30] sm:$0xf]
  %v6649 = vld [vmem:[%s4 + $0x34] sm:$0xf]
  %v6650 = vld [vmem:[%s4 + $0x38] sm:$0xf]
  %v6651 = vld [vmem:[%s4 + $0x3c] sm:$0xf]
  %v6668 = vunpack.c.l.b16 %v6636
  %v6669 = vunpack.c.l.b16 %v6637
  %v6670 = vunpack.c.l.b16 %v6638
  %v6671 = vunpack.c.l.b16 %v6639
  %v6672 = vunpack.c.l.b16 %v6640
  %v6673 = vunpack.c.l.b16 %v6641
  %v6674 = vunpack.c.l.b16 %v6642
  %v6675 = vunpack.c.l.b16 %v6643
  %v6676 = vunpack.c.l.b16 %v6644
  %v6677 = vunpack.c.l.b16 %v6645
  %v6678 = vunpack.c.l.b16 %v6646
  %v6679 = vunpack.c.l.b16 %v6647
  %v6680 = vunpack.c.l.b16 %v6648
  %v6681 = vunpack.c.l.b16 %v6649
  %v6682 = vunpack.c.l.b16 %v6650
  %v6683 = vunpack.c.l.b16 %v6651
  %v6684 = vpack.c.b16 %v6669, %v6668
  %v6685 = vpack.c.b16 %v6671, %v6670
  %v6686 = vpack.c.b16 %v6673, %v6672
  %v6687 = vpack.c.b16 %v6675, %v6674
  %v6688 = vpack.c.b16 %v6677, %v6676
  %v6689 = vpack.c.b16 %v6679, %v6678
  %v6690 = vpack.c.b16 %v6681, %v6680
  %v6691 = vpack.c.b16 %v6683, %v6682
  %6700 = vmatprep.subr.bf16.mxu0 0
  %6701 = vmatpush1.bf16.msra.mxu0 %v6691
  %6702 = vmatprep.subr.bf16.mxu0 0
  %6703 = vmatpush1.bf16.msra.mxu0 %v6690
  %6704 = vmatprep.subr.bf16.mxu0 0
  %6705 = vmatpush1.bf16.msra.mxu0 %v6689
  %6706 = vmatprep.subr.bf16.mxu0 0
  %6707 = vmatpush1.bf16.msra.mxu0 %v6688
  %6708 = vmatprep.subr.bf16.mxu0 0
  %6709 = vmatpush1.bf16.msra.mxu0 %v6687
  %6710 = vmatprep.subr.bf16.mxu0 0
  %6711 = vmatpush1.bf16.msra.mxu0 %v6686
  %6712 = vmatprep.subr.bf16.mxu0 0
  %6713 = vmatpush1.bf16.msra.mxu0 %v6685
  %6714 = vmatprep.subr.bf16.mxu0 0
  %6715 = vmatpush1.bf16.msra.mxu0 %v6684
  %6716 = vmatprep.subr.bf16.mxu0 0
  %6717 = vmatpush2.bf16.msra.mxu0 0
  %6718 = vmatprep.subr.bf16.mxu0 0
  %6719 = vmatpush2.bf16.msra.mxu0 0
  %6720 = vmatprep.subr.bf16.mxu0 0
  %6721 = vmatpush2.bf16.msra.mxu0 0
  %6722 = vmatprep.subr.bf16.mxu0 0
  %6723 = vmatpush2.bf16.msra.mxu0 0
  %6724 = vmatprep.subr.bf16.mxu0 0
  %6725 = vmatpush2.bf16.msra.mxu0 0
  %6726 = vmatprep.subr.bf16.mxu0 0
  %6727 = vmatpush2.bf16.msra.mxu0 0
  %6728 = vmatprep.subr.bf16.mxu0 0
  %6729 = vmatpush2.bf16.msra.mxu0 0
  %6730 = vmatprep.subr.bf16.mxu0 0
  %6731 = vmatpush2.bf16.msra.mxu0 0
  %6732 = vmatprep.mubr.bf16.mxu0 0
  %6733 = vmatmul.mubr.bf16.gmra.mxu0 %v6357
  %v6734 = vpop.f32.mrf.mxu0
  %v6735 = vadd.f32 %v798, %v6734
  %v6736 = vpop.f32.mrf.mxu0
  %v6737 = vpop.f32.mrf.mxu0
  %v6738 = vpop.f32.mrf.mxu0
  %6739 = vdwg.mxu0
  %v6740 = vadd.f32 %v6358, %v6589
  %v6741 = vadd.f32 %v6359, %v6591
  %v6742 = vadd.f32 %v6360, %v6630
  %v6743 = vadd.f32 %v6361, %v6632
  %v6744 = vxor.u32 %v6740, 2147483648
  %v6745 = vxor.u32 %v6741, 2147483648
  %v6746 = vxor.u32 %v6742, 2147483648
  %v6747 = vxor.u32 %v6743, 2147483648
  %v6748 = vmul.f32 %v6744, 1.442695
  %v6749 = vpow.pop %v6748
  %v6750 = vmul.f32 %v6745, 1.442695
  %v6751 = vpow.pop %v6750
  %v6752 = vmul.f32 %v6746, 1.442695
  %v6753 = vpow.pop %v6752
  %v6754 = vmul.f32 %v6747, 1.442695
  %v6755 = vpow.pop %v6754
  %v6756 = vadd.f32 %v6749, 1.0
  %v6757 = vadd.f32 %v6751, 1.0
  %v6758 = vadd.f32 %v6753, 1.0
  %v6759 = vadd.f32 %v6755, 1.0
  %v6760 = vrcp.pop %v6756
  %v6761 = vmul.f32 1.0, %v6760
  %v6762 = vrcp.pop %v6757
  %v6763 = vmul.f32 1.0, %v6762
  %v6764 = vrcp.pop %v6758
  %v6765 = vmul.f32 1.0, %v6764
  %v6766 = vrcp.pop %v6759
  %v6767 = vmul.f32 1.0, %v6766
  %v6768 = vmul.f32 %v6765, %v6735
  %v6769 = vmul.f32 %v6761, %v6763
  %v6770 = vadd.f32 %v6768, %v6769
  %v6771 = vtanh.pop %v6770
  %v6772 = vmul.f32 %v6767, %v6771
  %6773 = vst [vmem:[#allocation3 + $0x70] sm:$0xff] %v6772
  %v6774 = vld [vmem:[#allocation3] sm:$0xff]
  %v6775 = vld [vmem:[#allocation3 + $0x8] sm:$0xff]
  %v6776 = vld [vmem:[#allocation3 + $0x10] sm:$0xff]
  %v6777 = vld [vmem:[#allocation3 + $0x18] sm:$0xff]
  %v6778 = vld [vmem:[#allocation3 + $0x20] sm:$0xff]
  %v6779 = vld [vmem:[#allocation3 + $0x28] sm:$0xff]
  %v6780 = vld [vmem:[#allocation3 + $0x30] sm:$0xff]
  %v6781 = vld [vmem:[#allocation3 + $0x38] sm:$0xff]
  %v6782 = vld [vmem:[#allocation3 + $0x40] sm:$0xff]
  %v6783 = vld [vmem:[#allocation3 + $0x48] sm:$0xff]
  %v6784 = vld [vmem:[#allocation3 + $0x50] sm:$0xff]
  %v6785 = vld [vmem:[#allocation3 + $0x58] sm:$0xff]
  %v6786 = vld [vmem:[#allocation3 + $0x60] sm:$0xff]
  %v6787 = vld [vmem:[#allocation3 + $0x68] sm:$0xff]
  %v6788 = vld [vmem:[#allocation3 + $0x70] sm:$0xff]
  %v6789 = vld [vmem:[%s6] sm:$0xff]
  %v6790 = vld [vmem:[%s6 + $0x8] sm:$0xff]
  %v6791 = vld [vmem:[%s6 + $0x10] sm:$0xff]
  %v6792 = vld [vmem:[%s6 + $0x18] sm:$0xff]
  %v6793 = vld [vmem:[%s6 + $0x20] sm:$0xff]
  %v6794 = vld [vmem:[%s6 + $0x28] sm:$0xff]
  %v6795 = vld [vmem:[%s6 + $0x30] sm:$0xff]
  %v6796 = vld [vmem:[%s6 + $0x38] sm:$0xff]
  %v6797 = vld [vmem:[%s6 + $0x40] sm:$0xff]
  %v6798 = vld [vmem:[%s6 + $0x48] sm:$0xff]
  %v6799 = vld [vmem:[%s6 + $0x50] sm:$0xff]
  %v6800 = vld [vmem:[%s6 + $0x58] sm:$0xff]
  %v6801 = vld [vmem:[%s6 + $0x60] sm:$0xff]
  %v6802 = vld [vmem:[%s6 + $0x68] sm:$0xff]
  %v6803 = vld [vmem:[%s6 + $0x70] sm:$0xff]
  %v6804 = vld [vmem:[%s6 + $0x78] sm:$0xff]
  %v6805 = vld [vmem:[%s6 + $0x80] sm:$0xff]
  %v6806 = vld [vmem:[%s6 + $0x88] sm:$0xff]
  %v6807 = vld [vmem:[%s6 + $0x90] sm:$0xff]
  %v6808 = vld [vmem:[%s6 + $0x98] sm:$0xff]
  %v6809 = vld [vmem:[%s6 + $0xa0] sm:$0xff]
  %v6810 = vld [vmem:[%s6 + $0xa8] sm:$0xff]
  %v6811 = vld [vmem:[%s6 + $0xb0] sm:$0xff]
  %v6812 = vld [vmem:[%s6 + $0xb8] sm:$0xff]
  %v6813 = vld [vmem:[%s6 + $0xc0] sm:$0xff]
  %v6814 = vld [vmem:[%s6 + $0xc8] sm:$0xff]
  %v6815 = vld [vmem:[%s6 + $0xd0] sm:$0xff]
  %v6816 = vld [vmem:[%s6 + $0xd8] sm:$0xff]
  %v6817 = vld [vmem:[%s6 + $0xe0] sm:$0xff]
  %v6818 = vld [vmem:[%s6 + $0xe8] sm:$0xff]
  %v6819 = vld [vmem:[%s6 + $0xf0] sm:$0xff]
  %v6820 = vld [vmem:[%s6 + $0xf8] sm:$0xff]
  %v6821 = vld [vmem:[%s7] sm:$0x3]
  %v6823 = vlaneseq
  %v6824 = vshrl.u32 %v6823, 7
  %v6825 = vsub.s32 0, %v6824
  %v6826 = vrot.slane %v6821, %v6825
  %v6827 = vlaneseq
  %v6828 = vshrl.u32 %v6827, 7
  %v6829 = vsub.s32 1, %v6828
  %v6830 = vrot.slane %v6821, %v6829
  %6833 = vmatprep.subr.mxu0 %v6820
  %6834 = vmatpush1.msra.mxu0 %v6819
  %6835 = vmatprep.subr.mxu0 %v6818
  %6836 = vmatpush1.msra.mxu0 %v6817
  %6837 = vmatprep.subr.mxu0 %v6816
  %6838 = vmatpush1.msra.mxu0 %v6815
  %6839 = vmatprep.subr.mxu0 %v6814
  %6840 = vmatpush1.msra.mxu0 %v6813
  %6841 = vmatprep.subr.mxu0 %v6812
  %6842 = vmatpush1.msra.mxu0 %v6811
  %6843 = vmatprep.subr.mxu0 %v6810
  %6844 = vmatpush1.msra.mxu0 %v6809
  %6845 = vmatprep.subr.mxu0 %v6808
  %6846 = vmatpush1.msra.mxu0 %v6807
  %6847 = vmatprep.subr.mxu0 %v6806
  %6848 = vmatpush1.msra.mxu0 %v6805
  %6849 = vmatprep.subr.mxu0 %v6804
  %6850 = vmatpush1.msra.mxu0 %v6803
  %6851 = vmatprep.subr.mxu0 %v6802
  %6852 = vmatpush1.msra.mxu0 %v6801
  %6853 = vmatprep.subr.mxu0 %v6800
  %6854 = vmatpush1.msra.mxu0 %v6799
  %6855 = vmatprep.subr.mxu0 %v6798
  %6856 = vmatpush1.msra.mxu0 %v6797
  %6857 = vmatprep.subr.mxu0 %v6796
  %6858 = vmatpush1.msra.mxu0 %v6795
  %6859 = vmatprep.subr.mxu0 %v6794
  %6860 = vmatpush1.msra.mxu0 %v6793
  %6861 = vmatprep.subr.mxu0 %v6792
  %6862 = vmatpush1.msra.mxu0 %v6791
  %6863 = vmatprep.subr.mxu0 %v6790
  %6864 = vmatpush1.msra.mxu0 %v6789
  %6865 = vmatprep.subr.mxu0 0.0
  %6866 = vmatpush2.msra.mxu0 0.0
  %6867 = vmatprep.subr.mxu0 0.0
  %6868 = vmatpush2.msra.mxu0 0.0
  %6869 = vmatprep.subr.mxu0 0.0
  %6870 = vmatpush2.msra.mxu0 0.0
  %6871 = vmatprep.subr.mxu0 0.0
  %6872 = vmatpush2.msra.mxu0 0.0
  %6873 = vmatprep.subr.mxu0 0.0
  %6874 = vmatpush2.msra.mxu0 0.0
  %6875 = vmatprep.subr.mxu0 0.0
  %6876 = vmatpush2.msra.mxu0 0.0
  %6877 = vmatprep.subr.mxu0 0.0
  %6878 = vmatpush2.msra.mxu0 0.0
  %6879 = vmatprep.subr.mxu0 0.0
  %6880 = vmatpush2.msra.mxu0 0.0
  %6881 = vmatprep.subr.mxu0 0.0
  %6882 = vmatpush2.msra.mxu0 0.0
  %6883 = vmatprep.subr.mxu0 0.0
  %6884 = vmatpush2.msra.mxu0 0.0
  %6885 = vmatprep.subr.mxu0 0.0
  %6886 = vmatpush2.msra.mxu0 0.0
  %6887 = vmatprep.subr.mxu0 0.0
  %6888 = vmatpush2.msra.mxu0 0.0
  %6889 = vmatprep.subr.mxu0 0.0
  %6890 = vmatpush2.msra.mxu0 0.0
  %6891 = vmatprep.subr.mxu0 0.0
  %6892 = vmatpush2.msra.mxu0 0.0
  %6893 = vmatprep.subr.mxu0 0.0
  %6894 = vmatpush2.msra.mxu0 0.0
  %6895 = vmatprep.subr.mxu0 0.0
  %6896 = vmatpush2.msra.mxu0 0.0
  %6897 = vmatprep.mubr.f32.mxu0 0.0
  %6898 = vmatmul.mubr.f32.gmra.mxu0 %v6774
  %v6899 = vpop.f32.mrf.mxu0
  %v6900 = vadd.f32 %v6826, %v6899
  %v6901 = vpop.f32.mrf.mxu0
  %v6902 = vadd.f32 %v6830, %v6901
  %6903 = vmatprep.mubr.f32.mxu0 0.0
  %6904 = vmatmul.mubr.f32.gmra.mxu0 %v6775
  %v6905 = vpop.f32.mrf.mxu0
  %v6906 = vadd.f32 %v6826, %v6905
  %v6907 = vpop.f32.mrf.mxu0
  %v6908 = vadd.f32 %v6830, %v6907
  %6909 = vmatprep.mubr.f32.mxu0 0.0
  %6910 = vmatmul.mubr.f32.gmra.mxu0 %v6776
  %v6911 = vpop.f32.mrf.mxu0
  %v6912 = vadd.f32 %v6826, %v6911
  %v6913 = vpop.f32.mrf.mxu0
  %v6914 = vadd.f32 %v6830, %v6913
  %6915 = vmatprep.mubr.f32.mxu0 0.0
  %6916 = vmatmul.mubr.f32.gmra.mxu0 %v6777
  %v6917 = vpop.f32.mrf.mxu0
  %v6918 = vadd.f32 %v6826, %v6917
  %v6919 = vpop.f32.mrf.mxu0
  %v6920 = vadd.f32 %v6830, %v6919
  %6921 = vmatprep.mubr.f32.mxu0 0.0
  %6922 = vmatmul.mubr.f32.gmra.mxu0 %v6778
  %v6923 = vpop.f32.mrf.mxu0
  %v6924 = vadd.f32 %v6826, %v6923
  %v6925 = vpop.f32.mrf.mxu0
  %v6926 = vadd.f32 %v6830, %v6925
  %6927 = vmatprep.mubr.f32.mxu0 0.0
  %6928 = vmatmul.mubr.f32.gmra.mxu0 %v6779
  %v6929 = vpop.f32.mrf.mxu0
  %v6930 = vadd.f32 %v6826, %v6929
  %v6931 = vpop.f32.mrf.mxu0
  %v6932 = vadd.f32 %v6830, %v6931
  %6933 = vmatprep.mubr.f32.mxu0 0.0
  %6934 = vmatmul.mubr.f32.gmra.mxu0 %v6780
  %v6935 = vpop.f32.mrf.mxu0
  %v6936 = vadd.f32 %v6826, %v6935
  %v6937 = vpop.f32.mrf.mxu0
  %v6938 = vadd.f32 %v6830, %v6937
  %6939 = vmatprep.mubr.f32.mxu0 0.0
  %6940 = vmatmul.mubr.f32.gmra.mxu0 %v6781
  %v6941 = vpop.f32.mrf.mxu0
  %v6942 = vadd.f32 %v6826, %v6941
  %v6943 = vpop.f32.mrf.mxu0
  %v6944 = vadd.f32 %v6830, %v6943
  %6945 = vmatprep.mubr.f32.mxu0 0.0
  %6946 = vmatmul.mubr.f32.gmra.mxu0 %v6782
  %v6947 = vpop.f32.mrf.mxu0
  %v6948 = vadd.f32 %v6826, %v6947
  %v6949 = vpop.f32.mrf.mxu0
  %v6950 = vadd.f32 %v6830, %v6949
  %6951 = vmatprep.mubr.f32.mxu0 0.0
  %6952 = vmatmul.mubr.f32.gmra.mxu0 %v6783
  %v6953 = vpop.f32.mrf.mxu0
  %v6954 = vadd.f32 %v6826, %v6953
  %v6955 = vpop.f32.mrf.mxu0
  %v6956 = vadd.f32 %v6830, %v6955
  %6957 = vmatprep.mubr.f32.mxu0 0.0
  %6958 = vmatmul.mubr.f32.gmra.mxu0 %v6784
  %v6959 = vpop.f32.mrf.mxu0
  %v6960 = vadd.f32 %v6826, %v6959
  %v6961 = vpop.f32.mrf.mxu0
  %v6962 = vadd.f32 %v6830, %v6961
  %6963 = vmatprep.mubr.f32.mxu0 0.0
  %6964 = vmatmul.mubr.f32.gmra.mxu0 %v6785
  %v6965 = vpop.f32.mrf.mxu0
  %v6966 = vadd.f32 %v6826, %v6965
  %v6967 = vpop.f32.mrf.mxu0
  %v6968 = vadd.f32 %v6830, %v6967
  %6969 = vmatprep.mubr.f32.mxu0 0.0
  %6970 = vmatmul.mubr.f32.gmra.mxu0 %v6786
  %v6971 = vpop.f32.mrf.mxu0
  %v6972 = vadd.f32 %v6826, %v6971
  %v6973 = vpop.f32.mrf.mxu0
  %v6974 = vadd.f32 %v6830, %v6973
  %6975 = vmatprep.mubr.f32.mxu0 0.0
  %6976 = vmatmul.mubr.f32.gmra.mxu0 %v6787
  %v6977 = vpop.f32.mrf.mxu0
  %v6978 = vadd.f32 %v6826, %v6977
  %v6979 = vpop.f32.mrf.mxu0
  %v6980 = vadd.f32 %v6830, %v6979
  %6981 = vmatprep.mubr.f32.mxu0 0.0
  %6982 = vmatmul.mubr.f32.gmra.mxu0 %v6788
  %v6983 = vpop.f32.mrf.mxu0
  %v6984 = vadd.f32 %v6826, %v6983
  %v6985 = vpop.f32.mrf.mxu0
  %v6986 = vadd.f32 %v6830, %v6985
  %6987 = vdwg.mxu0
  %6988 = vst [vmem:[%s8] sm:$0xff] %v6900
  %6989 = vst [vmem:[%s8 + $0x8] sm:$0xff] %v6902
  %6990 = vst [vmem:[%s8 + $0x10] sm:$0xff] %v6906
  %6991 = vst [vmem:[%s8 + $0x18] sm:$0xff] %v6908
  %6992 = vst [vmem:[%s8 + $0x20] sm:$0xff] %v6912
  %6993 = vst [vmem:[%s8 + $0x28] sm:$0xff] %v6914
  %6994 = vst [vmem:[%s8 + $0x30] sm:$0xff] %v6918
  %6995 = vst [vmem:[%s8 + $0x38] sm:$0xff] %v6920
  %6996 = vst [vmem:[%s8 + $0x40] sm:$0xff] %v6924
  %6997 = vst [vmem:[%s8 + $0x48] sm:$0xff] %v6926
  %6998 = vst [vmem:[%s8 + $0x50] sm:$0xff] %v6930
  %6999 = vst [vmem:[%s8 + $0x58] sm:$0xff] %v6932
  %7000 = vst [vmem:[%s8 + $0x60] sm:$0xff] %v6936
  %7001 = vst [vmem:[%s8 + $0x68] sm:$0xff] %v6938
  %7002 = vst [vmem:[%s8 + $0x70] sm:$0xff] %v6942
  %7003 = vst [vmem:[%s8 + $0x78] sm:$0xff] %v6944
  %7004 = vst [vmem:[%s8 + $0x80] sm:$0xff] %v6948
  %7005 = vst [vmem:[%s8 + $0x88] sm:$0xff] %v6950
  %7006 = vst [vmem:[%s8 + $0x90] sm:$0xff] %v6954
  %7007 = vst [vmem:[%s8 + $0x98] sm:$0xff] %v6956
  %7008 = vst [vmem:[%s8 + $0xa0] sm:$0xff] %v6960
  %7009 = vst [vmem:[%s8 + $0xa8] sm:$0xff] %v6962
  %7010 = vst [vmem:[%s8 + $0xb0] sm:$0xff] %v6966
  %7011 = vst [vmem:[%s8 + $0xb8] sm:$0xff] %v6968
  %7012 = vst [vmem:[%s8 + $0xc0] sm:$0xff] %v6972
  %7013 = vst [vmem:[%s8 + $0xc8] sm:$0xff] %v6974
  %7014 = vst [vmem:[%s8 + $0xd0] sm:$0xff] %v6978
  %7015 = vst [vmem:[%s8 + $0xd8] sm:$0xff] %v6980
  %7016 = vst [vmem:[%s8 + $0xe0] sm:$0xff] %v6984
  %7017 = vst [vmem:[%s8 + $0xe8] sm:$0xff] %v6986
  // Predicated region
  $region34: #{diagonal_lstm_forward.1} parent=0 // pred_check
    _
  $region35: #{diagonal_lstm_forward.1} parent=0 // pred_check_branch
    %7019 = sbr.rel (0) target = $region37
  $region36: #{diagonal_lstm_forward.1} parent=0 // pred_region
    _
  $region37: #{diagonal_lstm_forward.1} parent=0 // pred_fallthru
    _
  // Predicated region
  $region38: #{diagonal_lstm_forward.1} parent=0 // pred_check
    _
  $region39: #{diagonal_lstm_forward.1} parent=0 // pred_check_branch
    %7021 = sbr.rel (0) target = $region41
  $region40: #{diagonal_lstm_forward.1} parent=0 // pred_region
    _
  $region41: #{diagonal_lstm_forward.1} parent=0 // pred_fallthru
    _

</llo_original>
